<compile_context>
chip_gen: v5e
topology: v5e:2x2
jax: 0.10.0
libtpu: 0.0.40
codegen_flags: <defaults>
</compile_context>

<pallas_src>
import jax
import jax.numpy as jnp
from jax import lax
from jax.experimental import pallas as pl
from jax.experimental.pallas import tpu as pltpu

FRN_EPS = 1e-6


def _round_up(x, m):
    return (x + m - 1) // m * m


# ----------------------------------------------------------------------------
# Fused kernel: [conv3d(3x3x3)+bias -> FRN -> TLU] x 2, one sample per step
# ----------------------------------------------------------------------------
def _build_fused_kernel(starts, data_off, pf_pad, inv_s, eps):
    """starts: 27 static lane offsets of the conv taps inside the extended
    (zero-halo) flat buffers; data_off: lane-aligned offset of the real data;
    pf_pad: lane-padded flat size of the padded grid; inv_s: 1/(D*H*W)."""

    def conv_frn(src, w_ref, prm_ref, mask):
        # src    : (Cin_p, L)  bf16 value (extended flat layout, zero halos)
        # w_ref  : (27, Cout_p, Cin_p) bf16 conv taps
        # prm_ref: (4, Cout_p, 1) f32  -> [bias, gamma, beta, tau]
        cout_p = w_ref.shape[1]
        acc = jnp.zeros((cout_p, pf_pad), jnp.float32)
        for t, s in enumerate(starts):            # 27 static taps, unrolled
            xs = src[:, s:s + pf_pad]             # shifted window (Cin_p, pf_pad)
            acc = acc + jnp.dot(w_ref[t], xs,
                                preferred_element_type=jnp.float32)
        acc = (acc + prm_ref[0]) * mask           # conv bias; zero non-valid cols
        # FRN: nu2 = mean over valid spatial positions of x^2, per channel
        nu2 = jnp.sum(acc * acc, axis=1, keepdims=True) * inv_s   # (Cout_p, 1)
        y = acc * lax.rsqrt(nu2 + eps)
        y = prm_ref[1] * y + prm_ref[2]           # gamma * y + beta
        y = jnp.maximum(y, prm_ref[3])            # TLU
        return y * mask                           # keep the zero halo ring exact

    def kernel(x_ref, mask_ref, w1_ref, p1_ref, w2_ref, p2_ref, o_ref, mid_ref):
        mask = mask_ref[...]                      # (1, pf_pad) f32

        # ---- layer 1 -> VMEM mid scratch (zero halos = conv2's padding) ----
        mid_ref[...] = jnp.zeros_like(mid_ref)
        y1 = conv_frn(x_ref[0], w1_ref, p1_ref, mask)
        mid_ref[:, data_off:data_off + pf_pad] = y1.astype(mid_ref.dtype)

        # ---- layer 2 -> output (lane-dense (Cout, S) store) ----
        y2 = conv_frn(mid_ref[...], w2_ref, p2_ref, mask)
        o_ref[0] = y2.astype(o_ref.dtype)

    return kernel


# ----------------------------------------------------------------------------
# conv_block forward (defaults: residual=False, identity=False, dropout=False)
# ----------------------------------------------------------------------------
def conv_block_forward(x_ncdhw, params):
    N, Cin, D, H, W = x_ncdhw.shape
    mid_ch = params["w1"].shape[0]
    out_ch = params["w2"].shape[0]

    Dp, Hp, Wp = D + 2, H + 2, W + 2          # zero-padded ('same', pad=1) grid
    Pf = Dp * Hp * Wp                         # flat size of the padded grid
    S = D * H * W                             # number of valid positions
    Pf_pad = _round_up(Pf, 128)               # lane-dense flat length
    B = Hp * Wp + Wp + 1                      # max |flat tap offset|
    A = _round_up(B, 128)                     # aligned data offset in ext buffer
    L = _round_up(A + Pf_pad + B, 128)        # extended flat length (zero halos)

    Cin_p = _round_up(Cin, 16)
    mid_p = _round_up(mid_ch, 16)
    out_p = _round_up(out_ch, 16)

    # ---- wrapper glue: a single zero-pad pass over x (no 27x im2col) ----
    xpad = jnp.pad(x_ncdhw,
                   ((0, 0), (0, Cin_p - Cin), (1, 1), (1, 1), (1, 1)))
    x_ext = jnp.pad(xpad.reshape(N, Cin_p, Pf),
                    ((0, 0), (0, 0), (A, L - A - Pf))).astype(jnp.bfloat16)

    # valid-position mask on the (flattened, lane-padded) padded grid
    m = jnp.pad(jnp.ones((D, H, W), jnp.float32), 1)
    mask = jnp.pad(m.reshape(Pf), (0, Pf_pad - Pf)).reshape(1, Pf_pad)

    def prep_w(w, co_p, ci_p):
        co, ci = w.shape[:2]
        w = jnp.pad(w, ((0, co_p - co), (0, ci_p - ci),
                        (0, 0), (0, 0), (0, 0)))
        # (co_p, ci_p, 3,3,3) -> (27 taps, co_p, ci_p), tap index = kd*9+kh*3+kw
        return jnp.transpose(w, (2, 3, 4, 0, 1)).reshape(
            27, co_p, ci_p).astype(jnp.bfloat16)

    def prep_p(bias, gamma, beta, tau, c_p):
        c = bias.shape[0]
        stk = jnp.stack([bias, gamma, beta, tau]).astype(jnp.float32)  # (4, c)
        return jnp.pad(stk, ((0, 0), (0, c_p - c))).reshape(4, c_p, 1)

    w1t = prep_w(params["w1"], mid_p, Cin_p)
    w2t = prep_w(params["w2"], out_p, mid_p)
    p1 = prep_p(params["b1"], params["g1"], params["be1"], params["t1"], mid_p)
    p2 = prep_p(params["b2"], params["g2"], params["be2"], params["t2"], out_p)

    # static per-tap lane offsets into the extended flat buffers
    starts = tuple(A + (kd - 1) * Hp * Wp + (kh - 1) * Wp + (kw - 1)
                   for kd in range(3) for kh in range(3) for kw in range(3))

    kernel = _build_fused_kernel(starts, A, Pf_pad, 1.0 / S, FRN_EPS)

    full3 = lambda n: (0, 0, 0)
    flops = 2 * N * Pf_pad * 27 * (Cin_p * mid_p + mid_p * out_p)
    bytes_accessed = (x_ext.size * 2 + N * out_p * Pf_pad * 4
                      + (w1t.size + w2t.size) * 2
                      + (p1.size + p2.size + mask.size) * 4)

    out_flat = pl.pallas_call(
        kernel,
        out_shape=jax.ShapeDtypeStruct((N, out_p, Pf_pad), jnp.float32),
        grid_spec=pltpu.PrefetchScalarGridSpec(
            num_scalar_prefetch=0,
            grid=(N,),
            in_specs=[
                pl.BlockSpec((1, Cin_p, L), lambda n: (n, 0, 0)),
                pl.BlockSpec((1, Pf_pad), lambda n: (0, 0)),
                pl.BlockSpec((27, mid_p, Cin_p), full3),
                pl.BlockSpec((4, mid_p, 1), full3),
                pl.BlockSpec((27, out_p, mid_p), full3),
                pl.BlockSpec((4, out_p, 1), full3),
            ],
            out_specs=pl.BlockSpec((1, out_p, Pf_pad), lambda n: (n, 0, 0)),
            scratch_shapes=[pltpu.VMEM((mid_p, L), jnp.bfloat16)],
        ),
        compiler_params=pltpu.CompilerParams(
            dimension_semantics=("parallel",)),
        cost_estimate=pl.CostEstimate(
            flops=int(flops),
            transcendentals=int(N * (mid_p + out_p)),
            bytes_accessed=int(bytes_accessed)),
    )(x_ext, mask, w1t, p1, w2t, p2)

    # extract real channels + interior of the padded grid -> NCDHW (no transpose)
    y = out_flat[:, :out_ch, :Pf].reshape(N, out_ch, Dp, Hp, Wp)
    return y[:, :, 1:1 + D, 1:1 + H, 1:1 + W]


# ----------------------------------------------------------------------------
# Pure-JAX reference (XLA conv, f32 HIGHEST) for the self-check
# ----------------------------------------------------------------------------
def _frn_ref(x, gamma, beta, tau):
    nu2 = jnp.mean(x * x, axis=(2, 3, 4), keepdims=True)
    y = x * lax.rsqrt(nu2 + FRN_EPS)
    y = gamma.reshape(1, -1, 1, 1, 1) * y + beta.reshape(1, -1, 1, 1, 1)
    return jnp.maximum(y, tau.reshape(1, -1, 1, 1, 1))


def _conv3d_ref(x, w, b):
    y = lax.conv_general_dilated(
        x, w, window_strides=(1, 1, 1), padding=[(1, 1)] * 3,
        dimension_numbers=("NCDHW", "OIDHW", "NCDHW"),
        precision=lax.Precision.HIGHEST)
    return y + b.reshape(1, -1, 1, 1, 1)


def conv_block_reference(x, p):
    y = _frn_ref(_conv3d_ref(x, p["w1"], p["b1"]), p["g1"], p["be1"], p["t1"])
    y = _frn_ref(_conv3d_ref(y, p["w2"], p["b2"]), p["g2"], p["be2"], p["t2"])
    return y


# ----------------------------------------------------------------------------
def make_params(key, in_ch, mid_ch, out_ch):
    ks = jax.random.split(key, 8)
    k1 = 1.0 / jnp.sqrt(in_ch * 27.0)
    k2 = 1.0 / jnp.sqrt(mid_ch * 27.0)
    return {
        "w1": jax.random.uniform(ks[0], (mid_ch, in_ch, 3, 3, 3), jnp.float32, -k1, k1),
        "b1": jax.random.uniform(ks[1], (mid_ch,), jnp.float32, -k1, k1),
        "g1": 1.0 + 0.1 * jax.random.normal(ks[2], (mid_ch,), jnp.float32),
        "be1": 0.1 * jax.random.normal(ks[3], (mid_ch,), jnp.float32),
        "t1": 0.1 * jax.random.normal(ks[4], (mid_ch,), jnp.float32),
        "w2": jax.random.uniform(ks[5], (out_ch, mid_ch, 3, 3, 3), jnp.float32, -k2, k2),
        "b2": jax.random.uniform(ks[6], (out_ch,), jnp.float32, -k2, k2),
        "g2": jnp.ones((out_ch,), jnp.float32),
        "be2": jnp.zeros((out_ch,), jnp.float32),
        "t2": jnp.zeros((out_ch,), jnp.float32),
    }


if __name__ == "__main__":
    key = jax.random.PRNGKey(0)
    kx, kp = jax.random.split(key)

    N, in_ch, mid_ch, out_ch = 2, 4, 8, 4
    D = H = W = 8
    x = jax.random.normal(kx, (N, in_ch, D, H, W), jnp.float32)   # NCDHW
    params = make_params(kp, in_ch, mid_ch, out_ch)

    fwd = jax.jit(conv_block_forward)
    out = jax.block_until_ready(fwd(x, params))
    ref = jax.block_until_ready(conv_block_reference(x, params))

    assert out.shape == (N, out_ch, D, H, W), out.shape
    err = jnp.abs(out - ref)
    max_err = float(jnp.max(err))
    mean_err = float(jnp.mean(err))
    # Tolerance accounts for bf16 MXU matmuls (f32 accumulation) vs the
    # f32 Precision.HIGHEST reference, as recommended by the perf review.
    assert max_err < 5e-2, f"max err vs reference: {max_err}"
    assert mean_err < 1e-2, f"mean err vs reference: {mean_err}"

    print("KERNEL_OK")
</pallas_src>

<mosaic_0001>
module attributes {stable_mosaic.version = 11 : i64} {
  func.func @kernel(%arg0: i32, %arg1: memref<1x16x1280xbf16, #tpu.memory_space<vmem>>, %arg2: memref<1x1024xf32, #tpu.memory_space<vmem>>, %arg3: memref<27x16x16xbf16, #tpu.memory_space<vmem>>, %arg4: memref<4x16x1xf32, #tpu.memory_space<vmem>>, %arg5: memref<27x16x16xbf16, #tpu.memory_space<vmem>>, %arg6: memref<4x16x1xf32, #tpu.memory_space<vmem>>, %arg7: memref<1x16x1024xf32, #tpu.memory_space<vmem>>, %arg8: memref<16x1280xbf16, #tpu.memory_space<vmem>>) attributes {dimension_semantics = [#tpu.dimension_semantics<parallel>], iteration_bounds = array<i64: 2>, scalar_prefetch = 0 : i64, scratch_operands = 1 : i64, tpu.core_type = #tpu.core_type<tc>, window_params = [{transform_indices = @transform_0, window_bounds = array<i64: 1, 16, 1280>}, {pipeline_mode = #tpu.pipeline_mode<synchronous>, transform_indices = @transform_1, window_bounds = array<i64: 1, 1024>}, {pipeline_mode = #tpu.pipeline_mode<synchronous>, transform_indices = @transform_2, window_bounds = array<i64: 27, 16, 16>}, {pipeline_mode = #tpu.pipeline_mode<synchronous>, transform_indices = @transform_3, window_bounds = array<i64: 4, 16, 1>}, {pipeline_mode = #tpu.pipeline_mode<synchronous>, transform_indices = @transform_4, window_bounds = array<i64: 27, 16, 16>}, {pipeline_mode = #tpu.pipeline_mode<synchronous>, transform_indices = @transform_5, window_bounds = array<i64: 4, 16, 1>}, {transform_indices = @transform_6, window_bounds = array<i64: 1, 16, 1024>}]} {
    %c0 = arith.constant 0 : index
    %c0_0 = arith.constant 0 : index
    %0 = vector.load %arg2[%c0, %c0_0] : memref<1x1024xf32, #tpu.memory_space<vmem>>, vector<1x1024xf32>
    %cst = arith.constant 0.000000e+00 : bf16
    %1 = vector.broadcast %cst : bf16 to vector<16x1280xbf16>
    %c0_1 = arith.constant 0 : index
    %c0_2 = arith.constant 0 : index
    %2 = vector.load %arg8[%c0_1, %c0_2] : memref<16x1280xbf16, #tpu.memory_space<vmem>>, vector<16x1280xbf16>
    tpu.vector_store %arg8[%c0_1, %c0_2], %1 {strides = array<i32>} : memref<16x1280xbf16, #tpu.memory_space<vmem>>, vector<16x1280xbf16>,
    %c0_3 = arith.constant 0 : index
    %c0_4 = arith.constant 0 : index
    %c0_5 = arith.constant 0 : index
    %3 = vector.load %arg1[%c0_3, %c0_4, %c0_5] : memref<1x16x1280xbf16, #tpu.memory_space<vmem>>, vector<1x16x1280xbf16>
    %4 = vector.shape_cast %3 : vector<1x16x1280xbf16> to vector<16x1280xbf16>
    %cst_6 = arith.constant 0.000000e+00 : f32
    %5 = vector.broadcast %cst_6 : f32 to vector<16x1024xf32>
    %6 = vector.extract_strided_slice %4 {offsets = [0, 17], sizes = [16, 1024], strides = [1, 1]} : vector<16x1280xbf16> to vector<16x1024xbf16>
    %c0_7 = arith.constant 0 : index
    %c0_8 = arith.constant 0 : index
    %c0_9 = arith.constant 0 : index
    %7 = vector.load %arg3[%c0_7, %c0_8, %c0_9] : memref<27x16x16xbf16, #tpu.memory_space<vmem>>, vector<1x16x16xbf16>
    %8 = vector.shape_cast %7 : vector<1x16x16xbf16> to vector<16x16xbf16>
    %cst_10 = arith.constant dense<0.000000e+00> : vector<16x1024xf32>
    %9 = tpu.matmul %8, %6, %cst_10 {dimension_numbers = #tpu.dot_dimension_numbers<[1], [0], [0], [1], [0, 0, 1, 1], [], []>} : vector<16x16xbf16>, vector<16x1024xbf16>, vector<16x1024xf32> -> vector<16x1024xf32>
    %10 = arith.addf %5, %9 : vector<16x1024xf32>
    %11 = vector.extract_strided_slice %4 {offsets = [0, 18], sizes = [16, 1024], strides = [1, 1]} : vector<16x1280xbf16> to vector<16x1024xbf16>
    %c1 = arith.constant 1 : index
    %c0_11 = arith.constant 0 : index
    %c0_12 = arith.constant 0 : index
    %12 = vector.load %arg3[%c1, %c0_11, %c0_12] : memref<27x16x16xbf16, #tpu.memory_space<vmem>>, vector<1x16x16xbf16>
    %13 = vector.shape_cast %12 : vector<1x16x16xbf16> to vector<16x16xbf16>
    %cst_13 = arith.constant dense<0.000000e+00> : vector<16x1024xf32>
    %14 = tpu.matmul %13, %11, %cst_13 {dimension_numbers = #tpu.dot_dimension_numbers<[1], [0], [0], [1], [0, 0, 1, 1], [], []>} : vector<16x16xbf16>, vector<16x1024xbf16>, vector<16x1024xf32> -> vector<16x1024xf32>
    %15 = arith.addf %10, %14 : vector<16x1024xf32>
    %16 = vector.extract_strided_slice %4 {offsets = [0, 19], sizes = [16, 1024], strides = [1, 1]} : vector<16x1280xbf16> to vector<16x1024xbf16>
    %c2 = arith.constant 2 : index
    %c0_14 = arith.constant 0 : index
    %c0_15 = arith.constant 0 : index
    %17 = vector.load %arg3[%c2, %c0_14, %c0_15] : memref<27x16x16xbf16, #tpu.memory_space<vmem>>, vector<1x16x16xbf16>
    %18 = vector.shape_cast %17 : vector<1x16x16xbf16> to vector<16x16xbf16>
    %cst_16 = arith.constant dense<0.000000e+00> : vector<16x1024xf32>
    %19 = tpu.matmul %18, %16, %cst_16 {dimension_numbers = #tpu.dot_dimension_numbers<[1], [0], [0], [1], [0, 0, 1, 1], [], []>} : vector<16x16xbf16>, vector<16x1024xbf16>, vector<16x1024xf32> -> vector<16x1024xf32>
    %20 = arith.addf %15, %19 : vector<16x1024xf32>
    %21 = vector.extract_strided_slice %4 {offsets = [0, 27], sizes = [16, 1024], strides = [1, 1]} : vector<16x1280xbf16> to vector<16x1024xbf16>
    %c3 = arith.constant 3 : index
    %c0_17 = arith.constant 0 : index
    %c0_18 = arith.constant 0 : index
    %22 = vector.load %arg3[%c3, %c0_17, %c0_18] : memref<27x16x16xbf16, #tpu.memory_space<vmem>>, vector<1x16x16xbf16>
    %23 = vector.shape_cast %22 : vector<1x16x16xbf16> to vector<16x16xbf16>
    %cst_19 = arith.constant dense<0.000000e+00> : vector<16x1024xf32>
    %24 = tpu.matmul %23, %21, %cst_19 {dimension_numbers = #tpu.dot_dimension_numbers<[1], [0], [0], [1], [0, 0, 1, 1], [], []>} : vector<16x16xbf16>, vector<16x1024xbf16>, vector<16x1024xf32> -> vector<16x1024xf32>
    %25 = arith.addf %20, %24 : vector<16x1024xf32>
    %26 = vector.extract_strided_slice %4 {offsets = [0, 28], sizes = [16, 1024], strides = [1, 1]} : vector<16x1280xbf16> to vector<16x1024xbf16>
    %c4 = arith.constant 4 : index
    %c0_20 = arith.constant 0 : index
    %c0_21 = arith.constant 0 : index
    %27 = vector.load %arg3[%c4, %c0_20, %c0_21] : memref<27x16x16xbf16, #tpu.memory_space<vmem>>, vector<1x16x16xbf16>
    %28 = vector.shape_cast %27 : vector<1x16x16xbf16> to vector<16x16xbf16>
    %cst_22 = arith.constant dense<0.000000e+00> : vector<16x1024xf32>
    %29 = tpu.matmul %28, %26, %cst_22 {dimension_numbers = #tpu.dot_dimension_numbers<[1], [0], [0], [1], [0, 0, 1, 1], [], []>} : vector<16x16xbf16>, vector<16x1024xbf16>, vector<16x1024xf32> -> vector<16x1024xf32>
    %30 = arith.addf %25, %29 : vector<16x1024xf32>
    %31 = vector.extract_strided_slice %4 {offsets = [0, 29], sizes = [16, 1024], strides = [1, 1]} : vector<16x1280xbf16> to vector<16x1024xbf16>
    %c5 = arith.constant 5 : index
    %c0_23 = arith.constant 0 : index
    %c0_24 = arith.constant 0 : index
    %32 = vector.load %arg3[%c5, %c0_23, %c0_24] : memref<27x16x16xbf16, #tpu.memory_space<vmem>>, vector<1x16x16xbf16>
    %33 = vector.shape_cast %32 : vector<1x16x16xbf16> to vector<16x16xbf16>
    %cst_25 = arith.constant dense<0.000000e+00> : vector<16x1024xf32>
    %34 = tpu.matmul %33, %31, %cst_25 {dimension_numbers = #tpu.dot_dimension_numbers<[1], [0], [0], [1], [0, 0, 1, 1], [], []>} : vector<16x16xbf16>, vector<16x1024xbf16>, vector<16x1024xf32> -> vector<16x1024xf32>
    %35 = arith.addf %30, %34 : vector<16x1024xf32>
    %36 = vector.extract_strided_slice %4 {offsets = [0, 37], sizes = [16, 1024], strides = [1, 1]} : vector<16x1280xbf16> to vector<16x1024xbf16>
    %c6 = arith.constant 6 : index
    %c0_26 = arith.constant 0 : index
    %c0_27 = arith.constant 0 : index
    %37 = vector.load %arg3[%c6, %c0_26, %c0_27] : memref<27x16x16xbf16, #tpu.memory_space<vmem>>, vector<1x16x16xbf16>
    %38 = vector.shape_cast %37 : vector<1x16x16xbf16> to vector<16x16xbf16>
    %cst_28 = arith.constant dense<0.000000e+00> : vector<16x1024xf32>
    %39 = tpu.matmul %38, %36, %cst_28 {dimension_numbers = #tpu.dot_dimension_numbers<[1], [0], [0], [1], [0, 0, 1, 1], [], []>} : vector<16x16xbf16>, vector<16x1024xbf16>, vector<16x1024xf32> -> vector<16x1024xf32>
    %40 = arith.addf %35, %39 : vector<16x1024xf32>
    %41 = vector.extract_strided_slice %4 {offsets = [0, 38], sizes = [16, 1024], strides = [1, 1]} : vector<16x1280xbf16> to vector<16x1024xbf16>
    %c7 = arith.constant 7 : index
    %c0_29 = arith.constant 0 : index
    %c0_30 = arith.constant 0 : index
    %42 = vector.load %arg3[%c7, %c0_29, %c0_30] : memref<27x16x16xbf16, #tpu.memory_space<vmem>>, vector<1x16x16xbf16>
    %43 = vector.shape_cast %42 : vector<1x16x16xbf16> to vector<16x16xbf16>
    %cst_31 = arith.constant dense<0.000000e+00> : vector<16x1024xf32>
    %44 = tpu.matmul %43, %41, %cst_31 {dimension_numbers = #tpu.dot_dimension_numbers<[1], [0], [0], [1], [0, 0, 1, 1], [], []>} : vector<16x16xbf16>, vector<16x1024xbf16>, vector<16x1024xf32> -> vector<16x1024xf32>
    %45 = arith.addf %40, %44 : vector<16x1024xf32>
    %46 = vector.extract_strided_slice %4 {offsets = [0, 39], sizes = [16, 1024], strides = [1, 1]} : vector<16x1280xbf16> to vector<16x1024xbf16>
    %c8 = arith.constant 8 : index
    %c0_32 = arith.constant 0 : index
    %c0_33 = arith.constant 0 : index
    %47 = vector.load %arg3[%c8, %c0_32, %c0_33] : memref<27x16x16xbf16, #tpu.memory_space<vmem>>, vector<1x16x16xbf16>
    %48 = vector.shape_cast %47 : vector<1x16x16xbf16> to vector<16x16xbf16>
    %cst_34 = arith.constant dense<0.000000e+00> : vector<16x1024xf32>
    %49 = tpu.matmul %48, %46, %cst_34 {dimension_numbers = #tpu.dot_dimension_numbers<[1], [0], [0], [1], [0, 0, 1, 1], [], []>} : vector<16x16xbf16>, vector<16x1024xbf16>, vector<16x1024xf32> -> vector<16x1024xf32>
    %50 = arith.addf %45, %49 : vector<16x1024xf32>
    %51 = vector.extract_strided_slice %4 {offsets = [0, 117], sizes = [16, 1024], strides = [1, 1]} : vector<16x1280xbf16> to vector<16x1024xbf16>
    %c9 = arith.constant 9 : index
    %c0_35 = arith.constant 0 : index
    %c0_36 = arith.constant 0 : index
    %52 = vector.load %arg3[%c9, %c0_35, %c0_36] : memref<27x16x16xbf16, #tpu.memory_space<vmem>>, vector<1x16x16xbf16>
    %53 = vector.shape_cast %52 : vector<1x16x16xbf16> to vector<16x16xbf16>
    %cst_37 = arith.constant dense<0.000000e+00> : vector<16x1024xf32>
    %54 = tpu.matmul %53, %51, %cst_37 {dimension_numbers = #tpu.dot_dimension_numbers<[1], [0], [0], [1], [0, 0, 1, 1], [], []>} : vector<16x16xbf16>, vector<16x1024xbf16>, vector<16x1024xf32> -> vector<16x1024xf32>
    %55 = arith.addf %50, %54 : vector<16x1024xf32>
    %56 = vector.extract_strided_slice %4 {offsets = [0, 118], sizes = [16, 1024], strides = [1, 1]} : vector<16x1280xbf16> to vector<16x1024xbf16>
    %c10 = arith.constant 10 : index
    %c0_38 = arith.constant 0 : index
    %c0_39 = arith.constant 0 : index
    %57 = vector.load %arg3[%c10, %c0_38, %c0_39] : memref<27x16x16xbf16, #tpu.memory_space<vmem>>, vector<1x16x16xbf16>
    %58 = vector.shape_cast %57 : vector<1x16x16xbf16> to vector<16x16xbf16>
    %cst_40 = arith.constant dense<0.000000e+00> : vector<16x1024xf32>
    %59 = tpu.matmul %58, %56, %cst_40 {dimension_numbers = #tpu.dot_dimension_numbers<[1], [0], [0], [1], [0, 0, 1, 1], [], []>} : vector<16x16xbf16>, vector<16x1024xbf16>, vector<16x1024xf32> -> vector<16x1024xf32>
    %60 = arith.addf %55, %59 : vector<16x1024xf32>
    %61 = vector.extract_strided_slice %4 {offsets = [0, 119], sizes = [16, 1024], strides = [1, 1]} : vector<16x1280xbf16> to vector<16x1024xbf16>
    %c11 = arith.constant 11 : index
    %c0_41 = arith.constant 0 : index
    %c0_42 = arith.constant 0 : index
    %62 = vector.load %arg3[%c11, %c0_41, %c0_42] : memref<27x16x16xbf16, #tpu.memory_space<vmem>>, vector<1x16x16xbf16>
    %63 = vector.shape_cast %62 : vector<1x16x16xbf16> to vector<16x16xbf16>
    %cst_43 = arith.constant dense<0.000000e+00> : vector<16x1024xf32>
    %64 = tpu.matmul %63, %61, %cst_43 {dimension_numbers = #tpu.dot_dimension_numbers<[1], [0], [0], [1], [0, 0, 1, 1], [], []>} : vector<16x16xbf16>, vector<16x1024xbf16>, vector<16x1024xf32> -> vector<16x1024xf32>
    %65 = arith.addf %60, %64 : vector<16x1024xf32>
    %66 = vector.extract_strided_slice %4 {offsets = [0, 127], sizes = [16, 1024], strides = [1, 1]} : vector<16x1280xbf16> to vector<16x1024xbf16>
    %c12 = arith.constant 12 : index
    %c0_44 = arith.constant 0 : index
    %c0_45 = arith.constant 0 : index
    %67 = vector.load %arg3[%c12, %c0_44, %c0_45] : memref<27x16x16xbf16, #tpu.memory_space<vmem>>, vector<1x16x16xbf16>
    %68 = vector.shape_cast %67 : vector<1x16x16xbf16> to vector<16x16xbf16>
    %cst_46 = arith.constant dense<0.000000e+00> : vector<16x1024xf32>
    %69 = tpu.matmul %68, %66, %cst_46 {dimension_numbers = #tpu.dot_dimension_numbers<[1], [0], [0], [1], [0, 0, 1, 1], [], []>} : vector<16x16xbf16>, vector<16x1024xbf16>, vector<16x1024xf32> -> vector<16x1024xf32>
    %70 = arith.addf %65, %69 : vector<16x1024xf32>
    %71 = vector.extract_strided_slice %4 {offsets = [0, 128], sizes = [16, 1024], strides = [1, 1]} : vector<16x1280xbf16> to vector<16x1024xbf16>
    %c13 = arith.constant 13 : index
    %c0_47 = arith.constant 0 : index
    %c0_48 = arith.constant 0 : index
    %72 = vector.load %arg3[%c13, %c0_47, %c0_48] : memref<27x16x16xbf16, #tpu.memory_space<vmem>>, vector<1x16x16xbf16>
    %73 = vector.shape_cast %72 : vector<1x16x16xbf16> to vector<16x16xbf16>
    %cst_49 = arith.constant dense<0.000000e+00> : vector<16x1024xf32>
    %74 = tpu.matmul %73, %71, %cst_49 {dimension_numbers = #tpu.dot_dimension_numbers<[1], [0], [0], [1], [0, 0, 1, 1], [], []>} : vector<16x16xbf16>, vector<16x1024xbf16>, vector<16x1024xf32> -> vector<16x1024xf32>
    %75 = arith.addf %70, %74 : vector<16x1024xf32>
    %76 = vector.extract_strided_slice %4 {offsets = [0, 129], sizes = [16, 1024], strides = [1, 1]} : vector<16x1280xbf16> to vector<16x1024xbf16>
    %c14 = arith.constant 14 : index
    %c0_50 = arith.constant 0 : index
    %c0_51 = arith.constant 0 : index
    %77 = vector.load %arg3[%c14, %c0_50, %c0_51] : memref<27x16x16xbf16, #tpu.memory_space<vmem>>, vector<1x16x16xbf16>
    %78 = vector.shape_cast %77 : vector<1x16x16xbf16> to vector<16x16xbf16>
    %cst_52 = arith.constant dense<0.000000e+00> : vector<16x1024xf32>
    %79 = tpu.matmul %78, %76, %cst_52 {dimension_numbers = #tpu.dot_dimension_numbers<[1], [0], [0], [1], [0, 0, 1, 1], [], []>} : vector<16x16xbf16>, vector<16x1024xbf16>, vector<16x1024xf32> -> vector<16x1024xf32>
    %80 = arith.addf %75, %79 : vector<16x1024xf32>
    %81 = vector.extract_strided_slice %4 {offsets = [0, 137], sizes = [16, 1024], strides = [1, 1]} : vector<16x1280xbf16> to vector<16x1024xbf16>
    %c15 = arith.constant 15 : index
    %c0_53 = arith.constant 0 : index
    %c0_54 = arith.constant 0 : index
    %82 = vector.load %arg3[%c15, %c0_53, %c0_54] : memref<27x16x16xbf16, #tpu.memory_space<vmem>>, vector<1x16x16xbf16>
    %83 = vector.shape_cast %82 : vector<1x16x16xbf16> to vector<16x16xbf16>
    %cst_55 = arith.constant dense<0.000000e+00> : vector<16x1024xf32>
    %84 = tpu.matmul %83, %81, %cst_55 {dimension_numbers = #tpu.dot_dimension_numbers<[1], [0], [0], [1], [0, 0, 1, 1], [], []>} : vector<16x16xbf16>, vector<16x1024xbf16>, vector<16x1024xf32> -> vector<16x1024xf32>
    %85 = arith.addf %80, %84 : vector<16x1024xf32>
    %86 = vector.extract_strided_slice %4 {offsets = [0, 138], sizes = [16, 1024], strides = [1, 1]} : vector<16x1280xbf16> to vector<16x1024xbf16>
    %c16 = arith.constant 16 : index
    %c0_56 = arith.constant 0 : index
    %c0_57 = arith.constant 0 : index
    %87 = vector.load %arg3[%c16, %c0_56, %c0_57] : memref<27x16x16xbf16, #tpu.memory_space<vmem>>, vector<1x16x16xbf16>
    %88 = vector.shape_cast %87 : vector<1x16x16xbf16> to vector<16x16xbf16>
    %cst_58 = arith.constant dense<0.000000e+00> : vector<16x1024xf32>
    %89 = tpu.matmul %88, %86, %cst_58 {dimension_numbers = #tpu.dot_dimension_numbers<[1], [0], [0], [1], [0, 0, 1, 1], [], []>} : vector<16x16xbf16>, vector<16x1024xbf16>, vector<16x1024xf32> -> vector<16x1024xf32>
    %90 = arith.addf %85, %89 : vector<16x1024xf32>
    %91 = vector.extract_strided_slice %4 {offsets = [0, 139], sizes = [16, 1024], strides = [1, 1]} : vector<16x1280xbf16> to vector<16x1024xbf16>
    %c17 = arith.constant 17 : index
    %c0_59 = arith.constant 0 : index
    %c0_60 = arith.constant 0 : index
    %92 = vector.load %arg3[%c17, %c0_59, %c0_60] : memref<27x16x16xbf16, #tpu.memory_space<vmem>>, vector<1x16x16xbf16>
    %93 = vector.shape_cast %92 : vector<1x16x16xbf16> to vector<16x16xbf16>
    %cst_61 = arith.constant dense<0.000000e+00> : vector<16x1024xf32>
    %94 = tpu.matmul %93, %91, %cst_61 {dimension_numbers = #tpu.dot_dimension_numbers<[1], [0], [0], [1], [0, 0, 1, 1], [], []>} : vector<16x16xbf16>, vector<16x1024xbf16>, vector<16x1024xf32> -> vector<16x1024xf32>
    %95 = arith.addf %90, %94 : vector<16x1024xf32>
    %96 = vector.extract_strided_slice %4 {offsets = [0, 217], sizes = [16, 1024], strides = [1, 1]} : vector<16x1280xbf16> to vector<16x1024xbf16>
    %c18 = arith.constant 18 : index
    %c0_62 = arith.constant 0 : index
    %c0_63 = arith.constant 0 : index
    %97 = vector.load %arg3[%c18, %c0_62, %c0_63] : memref<27x16x16xbf16, #tpu.memory_space<vmem>>, vector<1x16x16xbf16>
    %98 = vector.shape_cast %97 : vector<1x16x16xbf16> to vector<16x16xbf16>
    %cst_64 = arith.constant dense<0.000000e+00> : vector<16x1024xf32>
    %99 = tpu.matmul %98, %96, %cst_64 {dimension_numbers = #tpu.dot_dimension_numbers<[1], [0], [0], [1], [0, 0, 1, 1], [], []>} : vector<16x16xbf16>, vector<16x1024xbf16>, vector<16x1024xf32> -> vector<16x1024xf32>
    %100 = arith.addf %95, %99 : vector<16x1024xf32>
    %101 = vector.extract_strided_slice %4 {offsets = [0, 218], sizes = [16, 1024], strides = [1, 1]} : vector<16x1280xbf16> to vector<16x1024xbf16>
    %c19 = arith.constant 19 : index
    %c0_65 = arith.constant 0 : index
    %c0_66 = arith.constant 0 : index
    %102 = vector.load %arg3[%c19, %c0_65, %c0_66] : memref<27x16x16xbf16, #tpu.memory_space<vmem>>, vector<1x16x16xbf16>
    %103 = vector.shape_cast %102 : vector<1x16x16xbf16> to vector<16x16xbf16>
    %cst_67 = arith.constant dense<0.000000e+00> : vector<16x1024xf32>
    %104 = tpu.matmul %103, %101, %cst_67 {dimension_numbers = #tpu.dot_dimension_numbers<[1], [0], [0], [1], [0, 0, 1, 1], [], []>} : vector<16x16xbf16>, vector<16x1024xbf16>, vector<16x1024xf32> -> vector<16x1024xf32>
    %105 = arith.addf %100, %104 : vector<16x1024xf32>
    %106 = vector.extract_strided_slice %4 {offsets = [0, 219], sizes = [16, 1024], strides = [1, 1]} : vector<16x1280xbf16> to vector<16x1024xbf16>
    %c20 = arith.constant 20 : index
    %c0_68 = arith.constant 0 : index
    %c0_69 = arith.constant 0 : index
    %107 = vector.load %arg3[%c20, %c0_68, %c0_69] : memref<27x16x16xbf16, #tpu.memory_space<vmem>>, vector<1x16x16xbf16>
    %108 = vector.shape_cast %107 : vector<1x16x16xbf16> to vector<16x16xbf16>
    %cst_70 = arith.constant dense<0.000000e+00> : vector<16x1024xf32>
    %109 = tpu.matmul %108, %106, %cst_70 {dimension_numbers = #tpu.dot_dimension_numbers<[1], [0], [0], [1], [0, 0, 1, 1], [], []>} : vector<16x16xbf16>, vector<16x1024xbf16>, vector<16x1024xf32> -> vector<16x1024xf32>
    %110 = arith.addf %105, %109 : vector<16x1024xf32>
    %111 = vector.extract_strided_slice %4 {offsets = [0, 227], sizes = [16, 1024], strides = [1, 1]} : vector<16x1280xbf16> to vector<16x1024xbf16>
    %c21 = arith.constant 21 : index
    %c0_71 = arith.constant 0 : index
    %c0_72 = arith.constant 0 : index
    %112 = vector.load %arg3[%c21, %c0_71, %c0_72] : memref<27x16x16xbf16, #tpu.memory_space<vmem>>, vector<1x16x16xbf16>
    %113 = vector.shape_cast %112 : vector<1x16x16xbf16> to vector<16x16xbf16>
    %cst_73 = arith.constant dense<0.000000e+00> : vector<16x1024xf32>
    %114 = tpu.matmul %113, %111, %cst_73 {dimension_numbers = #tpu.dot_dimension_numbers<[1], [0], [0], [1], [0, 0, 1, 1], [], []>} : vector<16x16xbf16>, vector<16x1024xbf16>, vector<16x1024xf32> -> vector<16x1024xf32>
    %115 = arith.addf %110, %114 : vector<16x1024xf32>
    %116 = vector.extract_strided_slice %4 {offsets = [0, 228], sizes = [16, 1024], strides = [1, 1]} : vector<16x1280xbf16> to vector<16x1024xbf16>
    %c22 = arith.constant 22 : index
    %c0_74 = arith.constant 0 : index
    %c0_75 = arith.constant 0 : index
    %117 = vector.load %arg3[%c22, %c0_74, %c0_75] : memref<27x16x16xbf16, #tpu.memory_space<vmem>>, vector<1x16x16xbf16>
    %118 = vector.shape_cast %117 : vector<1x16x16xbf16> to vector<16x16xbf16>
    %cst_76 = arith.constant dense<0.000000e+00> : vector<16x1024xf32>
    %119 = tpu.matmul %118, %116, %cst_76 {dimension_numbers = #tpu.dot_dimension_numbers<[1], [0], [0], [1], [0, 0, 1, 1], [], []>} : vector<16x16xbf16>, vector<16x1024xbf16>, vector<16x1024xf32> -> vector<16x1024xf32>
    %120 = arith.addf %115, %119 : vector<16x1024xf32>
    %121 = vector.extract_strided_slice %4 {offsets = [0, 229], sizes = [16, 1024], strides = [1, 1]} : vector<16x1280xbf16> to vector<16x1024xbf16>
    %c23 = arith.constant 23 : index
    %c0_77 = arith.constant 0 : index
    %c0_78 = arith.constant 0 : index
    %122 = vector.load %arg3[%c23, %c0_77, %c0_78] : memref<27x16x16xbf16, #tpu.memory_space<vmem>>, vector<1x16x16xbf16>
    %123 = vector.shape_cast %122 : vector<1x16x16xbf16> to vector<16x16xbf16>
    %cst_79 = arith.constant dense<0.000000e+00> : vector<16x1024xf32>
    %124 = tpu.matmul %123, %121, %cst_79 {dimension_numbers = #tpu.dot_dimension_numbers<[1], [0], [0], [1], [0, 0, 1, 1], [], []>} : vector<16x16xbf16>, vector<16x1024xbf16>, vector<16x1024xf32> -> vector<16x1024xf32>
    %125 = arith.addf %120, %124 : vector<16x1024xf32>
    %126 = vector.extract_strided_slice %4 {offsets = [0, 237], sizes = [16, 1024], strides = [1, 1]} : vector<16x1280xbf16> to vector<16x1024xbf16>
    %c24 = arith.constant 24 : index
    %c0_80 = arith.constant 0 : index
    %c0_81 = arith.constant 0 : index
    %127 = vector.load %arg3[%c24, %c0_80, %c0_81] : memref<27x16x16xbf16, #tpu.memory_space<vmem>>, vector<1x16x16xbf16>
    %128 = vector.shape_cast %127 : vector<1x16x16xbf16> to vector<16x16xbf16>
    %cst_82 = arith.constant dense<0.000000e+00> : vector<16x1024xf32>
    %129 = tpu.matmul %128, %126, %cst_82 {dimension_numbers = #tpu.dot_dimension_numbers<[1], [0], [0], [1], [0, 0, 1, 1], [], []>} : vector<16x16xbf16>, vector<16x1024xbf16>, vector<16x1024xf32> -> vector<16x1024xf32>
    %130 = arith.addf %125, %129 : vector<16x1024xf32>
    %131 = vector.extract_strided_slice %4 {offsets = [0, 238], sizes = [16, 1024], strides = [1, 1]} : vector<16x1280xbf16> to vector<16x1024xbf16>
    %c25 = arith.constant 25 : index
    %c0_83 = arith.constant 0 : index
    %c0_84 = arith.constant 0 : index
    %132 = vector.load %arg3[%c25, %c0_83, %c0_84] : memref<27x16x16xbf16, #tpu.memory_space<vmem>>, vector<1x16x16xbf16>
    %133 = vector.shape_cast %132 : vector<1x16x16xbf16> to vector<16x16xbf16>
    %cst_85 = arith.constant dense<0.000000e+00> : vector<16x1024xf32>
    %134 = tpu.matmul %133, %131, %cst_85 {dimension_numbers = #tpu.dot_dimension_numbers<[1], [0], [0], [1], [0, 0, 1, 1], [], []>} : vector<16x16xbf16>, vector<16x1024xbf16>, vector<16x1024xf32> -> vector<16x1024xf32>
    %135 = arith.addf %130, %134 : vector<16x1024xf32>
    %136 = vector.extract_strided_slice %4 {offsets = [0, 239], sizes = [16, 1024], strides = [1, 1]} : vector<16x1280xbf16> to vector<16x1024xbf16>
    %c26 = arith.constant 26 : index
    %c0_86 = arith.constant 0 : index
    %c0_87 = arith.constant 0 : index
    %137 = vector.load %arg3[%c26, %c0_86, %c0_87] : memref<27x16x16xbf16, #tpu.memory_space<vmem>>, vector<1x16x16xbf16>
    %138 = vector.shape_cast %137 : vector<1x16x16xbf16> to vector<16x16xbf16>
    %cst_88 = arith.constant dense<0.000000e+00> : vector<16x1024xf32>
    %139 = tpu.matmul %138, %136, %cst_88 {dimension_numbers = #tpu.dot_dimension_numbers<[1], [0], [0], [1], [0, 0, 1, 1], [], []>} : vector<16x16xbf16>, vector<16x1024xbf16>, vector<16x1024xf32> -> vector<16x1024xf32>
    %140 = arith.addf %135, %139 : vector<16x1024xf32>
    %c0_89 = arith.constant 0 : index
    %c0_90 = arith.constant 0 : index
    %c0_91 = arith.constant 0 : index
    %141 = vector.load %arg4[%c0_89, %c0_90, %c0_91] : memref<4x16x1xf32, #tpu.memory_space<vmem>>, vector<1x16x1xf32>
    %142 = vector.shape_cast %141 : vector<1x16x1xf32> to vector<16x1xf32>
    %143 = vector.broadcast %142 : vector<16x1xf32> to vector<16x1024xf32>
    %144 = arith.addf %140, %143 : vector<16x1024xf32>
    %145 = vector.broadcast %0 : vector<1x1024xf32> to vector<16x1024xf32>
    %146 = arith.mulf %144, %145 : vector<16x1024xf32>
    %147 = arith.mulf %146, %146 : vector<16x1024xf32>
    %cst_92 = arith.constant dense<0.000000e+00> : vector<16xf32>
    %148 = vector.multi_reduction <add>, %147, %cst_92 [1] : vector<16x1024xf32> to vector<16xf32>
    %149 = vector.shape_cast %148 : vector<16xf32> to vector<16x1xf32>
    %cst_93 = arith.constant 0.001953125 : f32
    %150 = vector.broadcast %cst_93 : f32 to vector<16x1xf32>
    %151 = arith.mulf %149, %150 : vector<16x1xf32>
    %cst_94 = arith.constant 9.99999997E-7 : f32
    %152 = vector.broadcast %cst_94 : f32 to vector<16x1xf32>
    %153 = arith.addf %151, %152 : vector<16x1xf32>
    %154 = math.rsqrt %153 : vector<16x1xf32>
    %155 = vector.broadcast %154 : vector<16x1xf32> to vector<16x1024xf32>
    %156 = arith.mulf %146, %155 : vector<16x1024xf32>
    %c1_95 = arith.constant 1 : index
    %c0_96 = arith.constant 0 : index
    %c0_97 = arith.constant 0 : index
    %157 = vector.load %arg4[%c1_95, %c0_96, %c0_97] : memref<4x16x1xf32, #tpu.memory_space<vmem>>, vector<1x16x1xf32>
    %158 = vector.shape_cast %157 : vector<1x16x1xf32> to vector<16x1xf32>
    %159 = vector.broadcast %158 : vector<16x1xf32> to vector<16x1024xf32>
    %160 = arith.mulf %159, %156 : vector<16x1024xf32>
    %c2_98 = arith.constant 2 : index
    %c0_99 = arith.constant 0 : index
    %c0_100 = arith.constant 0 : index
    %161 = vector.load %arg4[%c2_98, %c0_99, %c0_100] : memref<4x16x1xf32, #tpu.memory_space<vmem>>, vector<1x16x1xf32>
    %162 = vector.shape_cast %161 : vector<1x16x1xf32> to vector<16x1xf32>
    %163 = vector.broadcast %162 : vector<16x1xf32> to vector<16x1024xf32>
    %164 = arith.addf %160, %163 : vector<16x1024xf32>
    %c3_101 = arith.constant 3 : index
    %c0_102 = arith.constant 0 : index
    %c0_103 = arith.constant 0 : index
    %165 = vector.load %arg4[%c3_101, %c0_102, %c0_103] : memref<4x16x1xf32, #tpu.memory_space<vmem>>, vector<1x16x1xf32>
    %166 = vector.shape_cast %165 : vector<1x16x1xf32> to vector<16x1xf32>
    %167 = vector.broadcast %166 : vector<16x1xf32> to vector<16x1024xf32>
    %168 = arith.maximumf %164, %167 : vector<16x1024xf32>
    %169 = vector.broadcast %0 : vector<1x1024xf32> to vector<16x1024xf32>
    %170 = arith.mulf %168, %169 : vector<16x1024xf32>
    %171 = arith.truncf %170 : vector<16x1024xf32> to vector<16x1024xbf16>
    %c0_104 = arith.constant 0 : index
    %c128 = arith.constant 128 : index
    %172 = vector.load %arg8[%c0_104, %c128] : memref<16x1280xbf16, #tpu.memory_space<vmem>>, vector<16x1024xbf16>
    tpu.vector_store %arg8[%c0_104, %c128], %171 {strides = array<i32>} : memref<16x1280xbf16, #tpu.memory_space<vmem>>, vector<16x1024xbf16>,
    %c0_105 = arith.constant 0 : index
    %c0_106 = arith.constant 0 : index
    %173 = vector.load %arg8[%c0_105, %c0_106] : memref<16x1280xbf16, #tpu.memory_space<vmem>>, vector<16x1280xbf16>
    %cst_107 = arith.constant 0.000000e+00 : f32
    %174 = vector.broadcast %cst_107 : f32 to vector<16x1024xf32>
    %175 = vector.extract_strided_slice %173 {offsets = [0, 17], sizes = [16, 1024], strides = [1, 1]} : vector<16x1280xbf16> to vector<16x1024xbf16>
    %c0_108 = arith.constant 0 : index
    %c0_109 = arith.constant 0 : index
    %c0_110 = arith.constant 0 : index
    %176 = vector.load %arg5[%c0_108, %c0_109, %c0_110] : memref<27x16x16xbf16, #tpu.memory_space<vmem>>, vector<1x16x16xbf16>
    %177 = vector.shape_cast %176 : vector<1x16x16xbf16> to vector<16x16xbf16>
    %cst_111 = arith.constant dense<0.000000e+00> : vector<16x1024xf32>
    %178 = tpu.matmul %177, %175, %cst_111 {dimension_numbers = #tpu.dot_dimension_numbers<[1], [0], [0], [1], [0, 0, 1, 1], [], []>} : vector<16x16xbf16>, vector<16x1024xbf16>, vector<16x1024xf32> -> vector<16x1024xf32>
    %179 = arith.addf %174, %178 : vector<16x1024xf32>
    %180 = vector.extract_strided_slice %173 {offsets = [0, 18], sizes = [16, 1024], strides = [1, 1]} : vector<16x1280xbf16> to vector<16x1024xbf16>
    %c1_112 = arith.constant 1 : index
    %c0_113 = arith.constant 0 : index
    %c0_114 = arith.constant 0 : index
    %181 = vector.load %arg5[%c1_112, %c0_113, %c0_114] : memref<27x16x16xbf16, #tpu.memory_space<vmem>>, vector<1x16x16xbf16>
    %182 = vector.shape_cast %181 : vector<1x16x16xbf16> to vector<16x16xbf16>
    %cst_115 = arith.constant dense<0.000000e+00> : vector<16x1024xf32>
    %183 = tpu.matmul %182, %180, %cst_115 {dimension_numbers = #tpu.dot_dimension_numbers<[1], [0], [0], [1], [0, 0, 1, 1], [], []>} : vector<16x16xbf16>, vector<16x1024xbf16>, vector<16x1024xf32> -> vector<16x1024xf32>
    %184 = arith.addf %179, %183 : vector<16x1024xf32>
    %185 = vector.extract_strided_slice %173 {offsets = [0, 19], sizes = [16, 1024], strides = [1, 1]} : vector<16x1280xbf16> to vector<16x1024xbf16>
    %c2_116 = arith.constant 2 : index
    %c0_117 = arith.constant 0 : index
    %c0_118 = arith.constant 0 : index
    %186 = vector.load %arg5[%c2_116, %c0_117, %c0_118] : memref<27x16x16xbf16, #tpu.memory_space<vmem>>, vector<1x16x16xbf16>
    %187 = vector.shape_cast %186 : vector<1x16x16xbf16> to vector<16x16xbf16>
    %cst_119 = arith.constant dense<0.000000e+00> : vector<16x1024xf32>
    %188 = tpu.matmul %187, %185, %cst_119 {dimension_numbers = #tpu.dot_dimension_numbers<[1], [0], [0], [1], [0, 0, 1, 1], [], []>} : vector<16x16xbf16>, vector<16x1024xbf16>, vector<16x1024xf32> -> vector<16x1024xf32>
    %189 = arith.addf %184, %188 : vector<16x1024xf32>
    %190 = vector.extract_strided_slice %173 {offsets = [0, 27], sizes = [16, 1024], strides = [1, 1]} : vector<16x1280xbf16> to vector<16x1024xbf16>
    %c3_120 = arith.constant 3 : index
    %c0_121 = arith.constant 0 : index
    %c0_122 = arith.constant 0 : index
    %191 = vector.load %arg5[%c3_120, %c0_121, %c0_122] : memref<27x16x16xbf16, #tpu.memory_space<vmem>>, vector<1x16x16xbf16>
    %192 = vector.shape_cast %191 : vector<1x16x16xbf16> to vector<16x16xbf16>
    %cst_123 = arith.constant dense<0.000000e+00> : vector<16x1024xf32>
    %193 = tpu.matmul %192, %190, %cst_123 {dimension_numbers = #tpu.dot_dimension_numbers<[1], [0], [0], [1], [0, 0, 1, 1], [], []>} : vector<16x16xbf16>, vector<16x1024xbf16>, vector<16x1024xf32> -> vector<16x1024xf32>
    %194 = arith.addf %189, %193 : vector<16x1024xf32>
    %195 = vector.extract_strided_slice %173 {offsets = [0, 28], sizes = [16, 1024], strides = [1, 1]} : vector<16x1280xbf16> to vector<16x1024xbf16>
    %c4_124 = arith.constant 4 : index
    %c0_125 = arith.constant 0 : index
    %c0_126 = arith.constant 0 : index
    %196 = vector.load %arg5[%c4_124, %c0_125, %c0_126] : memref<27x16x16xbf16, #tpu.memory_space<vmem>>, vector<1x16x16xbf16>
    %197 = vector.shape_cast %196 : vector<1x16x16xbf16> to vector<16x16xbf16>
    %cst_127 = arith.constant dense<0.000000e+00> : vector<16x1024xf32>
    %198 = tpu.matmul %197, %195, %cst_127 {dimension_numbers = #tpu.dot_dimension_numbers<[1], [0], [0], [1], [0, 0, 1, 1], [], []>} : vector<16x16xbf16>, vector<16x1024xbf16>, vector<16x1024xf32> -> vector<16x1024xf32>
    %199 = arith.addf %194, %198 : vector<16x1024xf32>
    %200 = vector.extract_strided_slice %173 {offsets = [0, 29], sizes = [16, 1024], strides = [1, 1]} : vector<16x1280xbf16> to vector<16x1024xbf16>
    %c5_128 = arith.constant 5 : index
    %c0_129 = arith.constant 0 : index
    %c0_130 = arith.constant 0 : index
    %201 = vector.load %arg5[%c5_128, %c0_129, %c0_130] : memref<27x16x16xbf16, #tpu.memory_space<vmem>>, vector<1x16x16xbf16>
    %202 = vector.shape_cast %201 : vector<1x16x16xbf16> to vector<16x16xbf16>
    %cst_131 = arith.constant dense<0.000000e+00> : vector<16x1024xf32>
    %203 = tpu.matmul %202, %200, %cst_131 {dimension_numbers = #tpu.dot_dimension_numbers<[1], [0], [0], [1], [0, 0, 1, 1], [], []>} : vector<16x16xbf16>, vector<16x1024xbf16>, vector<16x1024xf32> -> vector<16x1024xf32>
    %204 = arith.addf %199, %203 : vector<16x1024xf32>
    %205 = vector.extract_strided_slice %173 {offsets = [0, 37], sizes = [16, 1024], strides = [1, 1]} : vector<16x1280xbf16> to vector<16x1024xbf16>
    %c6_132 = arith.constant 6 : index
    %c0_133 = arith.constant 0 : index
    %c0_134 = arith.constant 0 : index
    %206 = vector.load %arg5[%c6_132, %c0_133, %c0_134] : memref<27x16x16xbf16, #tpu.memory_space<vmem>>, vector<1x16x16xbf16>
    %207 = vector.shape_cast %206 : vector<1x16x16xbf16> to vector<16x16xbf16>
    %cst_135 = arith.constant dense<0.000000e+00> : vector<16x1024xf32>
    %208 = tpu.matmul %207, %205, %cst_135 {dimension_numbers = #tpu.dot_dimension_numbers<[1], [0], [0], [1], [0, 0, 1, 1], [], []>} : vector<16x16xbf16>, vector<16x1024xbf16>, vector<16x1024xf32> -> vector<16x1024xf32>
    %209 = arith.addf %204, %208 : vector<16x1024xf32>
    %210 = vector.extract_strided_slice %173 {offsets = [0, 38], sizes = [16, 1024], strides = [1, 1]} : vector<16x1280xbf16> to vector<16x1024xbf16>
    %c7_136 = arith.constant 7 : index
    %c0_137 = arith.constant 0 : index
    %c0_138 = arith.constant 0 : index
    %211 = vector.load %arg5[%c7_136, %c0_137, %c0_138] : memref<27x16x16xbf16, #tpu.memory_space<vmem>>, vector<1x16x16xbf16>
    %212 = vector.shape_cast %211 : vector<1x16x16xbf16> to vector<16x16xbf16>
    %cst_139 = arith.constant dense<0.000000e+00> : vector<16x1024xf32>
    %213 = tpu.matmul %212, %210, %cst_139 {dimension_numbers = #tpu.dot_dimension_numbers<[1], [0], [0], [1], [0, 0, 1, 1], [], []>} : vector<16x16xbf16>, vector<16x1024xbf16>, vector<16x1024xf32> -> vector<16x1024xf32>
    %214 = arith.addf %209, %213 : vector<16x1024xf32>
    %215 = vector.extract_strided_slice %173 {offsets = [0, 39], sizes = [16, 1024], strides = [1, 1]} : vector<16x1280xbf16> to vector<16x1024xbf16>
    %c8_140 = arith.constant 8 : index
    %c0_141 = arith.constant 0 : index
    %c0_142 = arith.constant 0 : index
    %216 = vector.load %arg5[%c8_140, %c0_141, %c0_142] : memref<27x16x16xbf16, #tpu.memory_space<vmem>>, vector<1x16x16xbf16>
    %217 = vector.shape_cast %216 : vector<1x16x16xbf16> to vector<16x16xbf16>
    %cst_143 = arith.constant dense<0.000000e+00> : vector<16x1024xf32>
    %218 = tpu.matmul %217, %215, %cst_143 {dimension_numbers = #tpu.dot_dimension_numbers<[1], [0], [0], [1], [0, 0, 1, 1], [], []>} : vector<16x16xbf16>, vector<16x1024xbf16>, vector<16x1024xf32> -> vector<16x1024xf32>
    %219 = arith.addf %214, %218 : vector<16x1024xf32>
    %220 = vector.extract_strided_slice %173 {offsets = [0, 117], sizes = [16, 1024], strides = [1, 1]} : vector<16x1280xbf16> to vector<16x1024xbf16>
    %c9_144 = arith.constant 9 : index
    %c0_145 = arith.constant 0 : index
    %c0_146 = arith.constant 0 : index
    %221 = vector.load %arg5[%c9_144, %c0_145, %c0_146] : memref<27x16x16xbf16, #tpu.memory_space<vmem>>, vector<1x16x16xbf16>
    %222 = vector.shape_cast %221 : vector<1x16x16xbf16> to vector<16x16xbf16>
    %cst_147 = arith.constant dense<0.000000e+00> : vector<16x1024xf32>
    %223 = tpu.matmul %222, %220, %cst_147 {dimension_numbers = #tpu.dot_dimension_numbers<[1], [0], [0], [1], [0, 0, 1, 1], [], []>} : vector<16x16xbf16>, vector<16x1024xbf16>, vector<16x1024xf32> -> vector<16x1024xf32>
    %224 = arith.addf %219, %223 : vector<16x1024xf32>
    %225 = vector.extract_strided_slice %173 {offsets = [0, 118], sizes = [16, 1024], strides = [1, 1]} : vector<16x1280xbf16> to vector<16x1024xbf16>
    %c10_148 = arith.constant 10 : index
    %c0_149 = arith.constant 0 : index
    %c0_150 = arith.constant 0 : index
    %226 = vector.load %arg5[%c10_148, %c0_149, %c0_150] : memref<27x16x16xbf16, #tpu.memory_space<vmem>>, vector<1x16x16xbf16>
    %227 = vector.shape_cast %226 : vector<1x16x16xbf16> to vector<16x16xbf16>
    %cst_151 = arith.constant dense<0.000000e+00> : vector<16x1024xf32>
    %228 = tpu.matmul %227, %225, %cst_151 {dimension_numbers = #tpu.dot_dimension_numbers<[1], [0], [0], [1], [0, 0, 1, 1], [], []>} : vector<16x16xbf16>, vector<16x1024xbf16>, vector<16x1024xf32> -> vector<16x1024xf32>
    %229 = arith.addf %224, %228 : vector<16x1024xf32>
    %230 = vector.extract_strided_slice %173 {offsets = [0, 119], sizes = [16, 1024], strides = [1, 1]} : vector<16x1280xbf16> to vector<16x1024xbf16>
    %c11_152 = arith.constant 11 : index
    %c0_153 = arith.constant 0 : index
    %c0_154 = arith.constant 0 : index
    %231 = vector.load %arg5[%c11_152, %c0_153, %c0_154] : memref<27x16x16xbf16, #tpu.memory_space<vmem>>, vector<1x16x16xbf16>
    %232 = vector.shape_cast %231 : vector<1x16x16xbf16> to vector<16x16xbf16>
    %cst_155 = arith.constant dense<0.000000e+00> : vector<16x1024xf32>
    %233 = tpu.matmul %232, %230, %cst_155 {dimension_numbers = #tpu.dot_dimension_numbers<[1], [0], [0], [1], [0, 0, 1, 1], [], []>} : vector<16x16xbf16>, vector<16x1024xbf16>, vector<16x1024xf32> -> vector<16x1024xf32>
    %234 = arith.addf %229, %233 : vector<16x1024xf32>
    %235 = vector.extract_strided_slice %173 {offsets = [0, 127], sizes = [16, 1024], strides = [1, 1]} : vector<16x1280xbf16> to vector<16x1024xbf16>
    %c12_156 = arith.constant 12 : index
    %c0_157 = arith.constant 0 : index
    %c0_158 = arith.constant 0 : index
    %236 = vector.load %arg5[%c12_156, %c0_157, %c0_158] : memref<27x16x16xbf16, #tpu.memory_space<vmem>>, vector<1x16x16xbf16>
    %237 = vector.shape_cast %236 : vector<1x16x16xbf16> to vector<16x16xbf16>
    %cst_159 = arith.constant dense<0.000000e+00> : vector<16x1024xf32>
    %238 = tpu.matmul %237, %235, %cst_159 {dimension_numbers = #tpu.dot_dimension_numbers<[1], [0], [0], [1], [0, 0, 1, 1], [], []>} : vector<16x16xbf16>, vector<16x1024xbf16>, vector<16x1024xf32> -> vector<16x1024xf32>
    %239 = arith.addf %234, %238 : vector<16x1024xf32>
    %240 = vector.extract_strided_slice %173 {offsets = [0, 128], sizes = [16, 1024], strides = [1, 1]} : vector<16x1280xbf16> to vector<16x1024xbf16>
    %c13_160 = arith.constant 13 : index
    %c0_161 = arith.constant 0 : index
    %c0_162 = arith.constant 0 : index
    %241 = vector.load %arg5[%c13_160, %c0_161, %c0_162] : memref<27x16x16xbf16, #tpu.memory_space<vmem>>, vector<1x16x16xbf16>
    %242 = vector.shape_cast %241 : vector<1x16x16xbf16> to vector<16x16xbf16>
    %cst_163 = arith.constant dense<0.000000e+00> : vector<16x1024xf32>
    %243 = tpu.matmul %242, %240, %cst_163 {dimension_numbers = #tpu.dot_dimension_numbers<[1], [0], [0], [1], [0, 0, 1, 1], [], []>} : vector<16x16xbf16>, vector<16x1024xbf16>, vector<16x1024xf32> -> vector<16x1024xf32>
    %244 = arith.addf %239, %243 : vector<16x1024xf32>
    %245 = vector.extract_strided_slice %173 {offsets = [0, 129], sizes = [16, 1024], strides = [1, 1]} : vector<16x1280xbf16> to vector<16x1024xbf16>
    %c14_164 = arith.constant 14 : index
    %c0_165 = arith.constant 0 : index
    %c0_166 = arith.constant 0 : index
    %246 = vector.load %arg5[%c14_164, %c0_165, %c0_166] : memref<27x16x16xbf16, #tpu.memory_space<vmem>>, vector<1x16x16xbf16>
    %247 = vector.shape_cast %246 : vector<1x16x16xbf16> to vector<16x16xbf16>
    %cst_167 = arith.constant dense<0.000000e+00> : vector<16x1024xf32>
    %248 = tpu.matmul %247, %245, %cst_167 {dimension_numbers = #tpu.dot_dimension_numbers<[1], [0], [0], [1], [0, 0, 1, 1], [], []>} : vector<16x16xbf16>, vector<16x1024xbf16>, vector<16x1024xf32> -> vector<16x1024xf32>
    %249 = arith.addf %244, %248 : vector<16x1024xf32>
    %250 = vector.extract_strided_slice %173 {offsets = [0, 137], sizes = [16, 1024], strides = [1, 1]} : vector<16x1280xbf16> to vector<16x1024xbf16>
    %c15_168 = arith.constant 15 : index
    %c0_169 = arith.constant 0 : index
    %c0_170 = arith.constant 0 : index
    %251 = vector.load %arg5[%c15_168, %c0_169, %c0_170] : memref<27x16x16xbf16, #tpu.memory_space<vmem>>, vector<1x16x16xbf16>
    %252 = vector.shape_cast %251 : vector<1x16x16xbf16> to vector<16x16xbf16>
    %cst_171 = arith.constant dense<0.000000e+00> : vector<16x1024xf32>
    %253 = tpu.matmul %252, %250, %cst_171 {dimension_numbers = #tpu.dot_dimension_numbers<[1], [0], [0], [1], [0, 0, 1, 1], [], []>} : vector<16x16xbf16>, vector<16x1024xbf16>, vector<16x1024xf32> -> vector<16x1024xf32>
    %254 = arith.addf %249, %253 : vector<16x1024xf32>
    %255 = vector.extract_strided_slice %173 {offsets = [0, 138], sizes = [16, 1024], strides = [1, 1]} : vector<16x1280xbf16> to vector<16x1024xbf16>
    %c16_172 = arith.constant 16 : index
    %c0_173 = arith.constant 0 : index
    %c0_174 = arith.constant 0 : index
    %256 = vector.load %arg5[%c16_172, %c0_173, %c0_174] : memref<27x16x16xbf16, #tpu.memory_space<vmem>>, vector<1x16x16xbf16>
    %257 = vector.shape_cast %256 : vector<1x16x16xbf16> to vector<16x16xbf16>
    %cst_175 = arith.constant dense<0.000000e+00> : vector<16x1024xf32>
    %258 = tpu.matmul %257, %255, %cst_175 {dimension_numbers = #tpu.dot_dimension_numbers<[1], [0], [0], [1], [0, 0, 1, 1], [], []>} : vector<16x16xbf16>, vector<16x1024xbf16>, vector<16x1024xf32> -> vector<16x1024xf32>
    %259 = arith.addf %254, %258 : vector<16x1024xf32>
    %260 = vector.extract_strided_slice %173 {offsets = [0, 139], sizes = [16, 1024], strides = [1, 1]} : vector<16x1280xbf16> to vector<16x1024xbf16>
    %c17_176 = arith.constant 17 : index
    %c0_177 = arith.constant 0 : index
    %c0_178 = arith.constant 0 : index
    %261 = vector.load %arg5[%c17_176, %c0_177, %c0_178] : memref<27x16x16xbf16, #tpu.memory_space<vmem>>, vector<1x16x16xbf16>
    %262 = vector.shape_cast %261 : vector<1x16x16xbf16> to vector<16x16xbf16>
    %cst_179 = arith.constant dense<0.000000e+00> : vector<16x1024xf32>
    %263 = tpu.matmul %262, %260, %cst_179 {dimension_numbers = #tpu.dot_dimension_numbers<[1], [0], [0], [1], [0, 0, 1, 1], [], []>} : vector<16x16xbf16>, vector<16x1024xbf16>, vector<16x1024xf32> -> vector<16x1024xf32>
    %264 = arith.addf %259, %263 : vector<16x1024xf32>
    %265 = vector.extract_strided_slice %173 {offsets = [0, 217], sizes = [16, 1024], strides = [1, 1]} : vector<16x1280xbf16> to vector<16x1024xbf16>
    %c18_180 = arith.constant 18 : index
    %c0_181 = arith.constant 0 : index
    %c0_182 = arith.constant 0 : index
    %266 = vector.load %arg5[%c18_180, %c0_181, %c0_182] : memref<27x16x16xbf16, #tpu.memory_space<vmem>>, vector<1x16x16xbf16>
    %267 = vector.shape_cast %266 : vector<1x16x16xbf16> to vector<16x16xbf16>
    %cst_183 = arith.constant dense<0.000000e+00> : vector<16x1024xf32>
    %268 = tpu.matmul %267, %265, %cst_183 {dimension_numbers = #tpu.dot_dimension_numbers<[1], [0], [0], [1], [0, 0, 1, 1], [], []>} : vector<16x16xbf16>, vector<16x1024xbf16>, vector<16x1024xf32> -> vector<16x1024xf32>
    %269 = arith.addf %264, %268 : vector<16x1024xf32>
    %270 = vector.extract_strided_slice %173 {offsets = [0, 218], sizes = [16, 1024], strides = [1, 1]} : vector<16x1280xbf16> to vector<16x1024xbf16>
    %c19_184 = arith.constant 19 : index
    %c0_185 = arith.constant 0 : index
    %c0_186 = arith.constant 0 : index
    %271 = vector.load %arg5[%c19_184, %c0_185, %c0_186] : memref<27x16x16xbf16, #tpu.memory_space<vmem>>, vector<1x16x16xbf16>
    %272 = vector.shape_cast %271 : vector<1x16x16xbf16> to vector<16x16xbf16>
    %cst_187 = arith.constant dense<0.000000e+00> : vector<16x1024xf32>
    %273 = tpu.matmul %272, %270, %cst_187 {dimension_numbers = #tpu.dot_dimension_numbers<[1], [0], [0], [1], [0, 0, 1, 1], [], []>} : vector<16x16xbf16>, vector<16x1024xbf16>, vector<16x1024xf32> -> vector<16x1024xf32>
    %274 = arith.addf %269, %273 : vector<16x1024xf32>
    %275 = vector.extract_strided_slice %173 {offsets = [0, 219], sizes = [16, 1024], strides = [1, 1]} : vector<16x1280xbf16> to vector<16x1024xbf16>
    %c20_188 = arith.constant 20 : index
    %c0_189 = arith.constant 0 : index
    %c0_190 = arith.constant 0 : index
    %276 = vector.load %arg5[%c20_188, %c0_189, %c0_190] : memref<27x16x16xbf16, #tpu.memory_space<vmem>>, vector<1x16x16xbf16>
    %277 = vector.shape_cast %276 : vector<1x16x16xbf16> to vector<16x16xbf16>
    %cst_191 = arith.constant dense<0.000000e+00> : vector<16x1024xf32>
    %278 = tpu.matmul %277, %275, %cst_191 {dimension_numbers = #tpu.dot_dimension_numbers<[1], [0], [0], [1], [0, 0, 1, 1], [], []>} : vector<16x16xbf16>, vector<16x1024xbf16>, vector<16x1024xf32> -> vector<16x1024xf32>
    %279 = arith.addf %274, %278 : vector<16x1024xf32>
    %280 = vector.extract_strided_slice %173 {offsets = [0, 227], sizes = [16, 1024], strides = [1, 1]} : vector<16x1280xbf16> to vector<16x1024xbf16>
    %c21_192 = arith.constant 21 : index
    %c0_193 = arith.constant 0 : index
    %c0_194 = arith.constant 0 : index
    %281 = vector.load %arg5[%c21_192, %c0_193, %c0_194] : memref<27x16x16xbf16, #tpu.memory_space<vmem>>, vector<1x16x16xbf16>
    %282 = vector.shape_cast %281 : vector<1x16x16xbf16> to vector<16x16xbf16>
    %cst_195 = arith.constant dense<0.000000e+00> : vector<16x1024xf32>
    %283 = tpu.matmul %282, %280, %cst_195 {dimension_numbers = #tpu.dot_dimension_numbers<[1], [0], [0], [1], [0, 0, 1, 1], [], []>} : vector<16x16xbf16>, vector<16x1024xbf16>, vector<16x1024xf32> -> vector<16x1024xf32>
    %284 = arith.addf %279, %283 : vector<16x1024xf32>
    %285 = vector.extract_strided_slice %173 {offsets = [0, 228], sizes = [16, 1024], strides = [1, 1]} : vector<16x1280xbf16> to vector<16x1024xbf16>
    %c22_196 = arith.constant 22 : index
    %c0_197 = arith.constant 0 : index
    %c0_198 = arith.constant 0 : index
    %286 = vector.load %arg5[%c22_196, %c0_197, %c0_198] : memref<27x16x16xbf16, #tpu.memory_space<vmem>>, vector<1x16x16xbf16>
    %287 = vector.shape_cast %286 : vector<1x16x16xbf16> to vector<16x16xbf16>
    %cst_199 = arith.constant dense<0.000000e+00> : vector<16x1024xf32>
    %288 = tpu.matmul %287, %285, %cst_199 {dimension_numbers = #tpu.dot_dimension_numbers<[1], [0], [0], [1], [0, 0, 1, 1], [], []>} : vector<16x16xbf16>, vector<16x1024xbf16>, vector<16x1024xf32> -> vector<16x1024xf32>
    %289 = arith.addf %284, %288 : vector<16x1024xf32>
    %290 = vector.extract_strided_slice %173 {offsets = [0, 229], sizes = [16, 1024], strides = [1, 1]} : vector<16x1280xbf16> to vector<16x1024xbf16>
    %c23_200 = arith.constant 23 : index
    %c0_201 = arith.constant 0 : index
    %c0_202 = arith.constant 0 : index
    %291 = vector.load %arg5[%c23_200, %c0_201, %c0_202] : memref<27x16x16xbf16, #tpu.memory_space<vmem>>, vector<1x16x16xbf16>
    %292 = vector.shape_cast %291 : vector<1x16x16xbf16> to vector<16x16xbf16>
    %cst_203 = arith.constant dense<0.000000e+00> : vector<16x1024xf32>
    %293 = tpu.matmul %292, %290, %cst_203 {dimension_numbers = #tpu.dot_dimension_numbers<[1], [0], [0], [1], [0, 0, 1, 1], [], []>} : vector<16x16xbf16>, vector<16x1024xbf16>, vector<16x1024xf32> -> vector<16x1024xf32>
    %294 = arith.addf %289, %293 : vector<16x1024xf32>
    %295 = vector.extract_strided_slice %173 {offsets = [0, 237], sizes = [16, 1024], strides = [1, 1]} : vector<16x1280xbf16> to vector<16x1024xbf16>
    %c24_204 = arith.constant 24 : index
    %c0_205 = arith.constant 0 : index
    %c0_206 = arith.constant 0 : index
    %296 = vector.load %arg5[%c24_204, %c0_205, %c0_206] : memref<27x16x16xbf16, #tpu.memory_space<vmem>>, vector<1x16x16xbf16>
    %297 = vector.shape_cast %296 : vector<1x16x16xbf16> to vector<16x16xbf16>
    %cst_207 = arith.constant dense<0.000000e+00> : vector<16x1024xf32>
    %298 = tpu.matmul %297, %295, %cst_207 {dimension_numbers = #tpu.dot_dimension_numbers<[1], [0], [0], [1], [0, 0, 1, 1], [], []>} : vector<16x16xbf16>, vector<16x1024xbf16>, vector<16x1024xf32> -> vector<16x1024xf32>
    %299 = arith.addf %294, %298 : vector<16x1024xf32>
    %300 = vector.extract_strided_slice %173 {offsets = [0, 238], sizes = [16, 1024], strides = [1, 1]} : vector<16x1280xbf16> to vector<16x1024xbf16>
    %c25_208 = arith.constant 25 : index
    %c0_209 = arith.constant 0 : index
    %c0_210 = arith.constant 0 : index
    %301 = vector.load %arg5[%c25_208, %c0_209, %c0_210] : memref<27x16x16xbf16, #tpu.memory_space<vmem>>, vector<1x16x16xbf16>
    %302 = vector.shape_cast %301 : vector<1x16x16xbf16> to vector<16x16xbf16>
    %cst_211 = arith.constant dense<0.000000e+00> : vector<16x1024xf32>
    %303 = tpu.matmul %302, %300, %cst_211 {dimension_numbers = #tpu.dot_dimension_numbers<[1], [0], [0], [1], [0, 0, 1, 1], [], []>} : vector<16x16xbf16>, vector<16x1024xbf16>, vector<16x1024xf32> -> vector<16x1024xf32>
    %304 = arith.addf %299, %303 : vector<16x1024xf32>
    %305 = vector.extract_strided_slice %173 {offsets = [0, 239], sizes = [16, 1024], strides = [1, 1]} : vector<16x1280xbf16> to vector<16x1024xbf16>
    %c26_212 = arith.constant 26 : index
    %c0_213 = arith.constant 0 : index
    %c0_214 = arith.constant 0 : index
    %306 = vector.load %arg5[%c26_212, %c0_213, %c0_214] : memref<27x16x16xbf16, #tpu.memory_space<vmem>>, vector<1x16x16xbf16>
    %307 = vector.shape_cast %306 : vector<1x16x16xbf16> to vector<16x16xbf16>
    %cst_215 = arith.constant dense<0.000000e+00> : vector<16x1024xf32>
    %308 = tpu.matmul %307, %305, %cst_215 {dimension_numbers = #tpu.dot_dimension_numbers<[1], [0], [0], [1], [0, 0, 1, 1], [], []>} : vector<16x16xbf16>, vector<16x1024xbf16>, vector<16x1024xf32> -> vector<16x1024xf32>
    %309 = arith.addf %304, %308 : vector<16x1024xf32>
    %c0_216 = arith.constant 0 : index
    %c0_217 = arith.constant 0 : index
    %c0_218 = arith.constant 0 : index
    %310 = vector.load %arg6[%c0_216, %c0_217, %c0_218] : memref<4x16x1xf32, #tpu.memory_space<vmem>>, vector<1x16x1xf32>
    %311 = vector.shape_cast %310 : vector<1x16x1xf32> to vector<16x1xf32>
    %312 = vector.broadcast %311 : vector<16x1xf32> to vector<16x1024xf32>
    %313 = arith.addf %309, %312 : vector<16x1024xf32>
    %314 = vector.broadcast %0 : vector<1x1024xf32> to vector<16x1024xf32>
    %315 = arith.mulf %313, %314 : vector<16x1024xf32>
    %316 = arith.mulf %315, %315 : vector<16x1024xf32>
    %cst_219 = arith.constant dense<0.000000e+00> : vector<16xf32>
    %317 = vector.multi_reduction <add>, %316, %cst_219 [1] : vector<16x1024xf32> to vector<16xf32>
    %318 = vector.shape_cast %317 : vector<16xf32> to vector<16x1xf32>
    %cst_220 = arith.constant 0.001953125 : f32
    %319 = vector.broadcast %cst_220 : f32 to vector<16x1xf32>
    %320 = arith.mulf %318, %319 : vector<16x1xf32>
    %cst_221 = arith.constant 9.99999997E-7 : f32
    %321 = vector.broadcast %cst_221 : f32 to vector<16x1xf32>
    %322 = arith.addf %320, %321 : vector<16x1xf32>
    %323 = math.rsqrt %322 : vector<16x1xf32>
    %324 = vector.broadcast %323 : vector<16x1xf32> to vector<16x1024xf32>
    %325 = arith.mulf %315, %324 : vector<16x1024xf32>
    %c1_222 = arith.constant 1 : index
    %c0_223 = arith.constant 0 : index
    %c0_224 = arith.constant 0 : index
    %326 = vector.load %arg6[%c1_222, %c0_223, %c0_224] : memref<4x16x1xf32, #tpu.memory_space<vmem>>, vector<1x16x1xf32>
    %327 = vector.shape_cast %326 : vector<1x16x1xf32> to vector<16x1xf32>
    %328 = vector.broadcast %327 : vector<16x1xf32> to vector<16x1024xf32>
    %329 = arith.mulf %328, %325 : vector<16x1024xf32>
    %c2_225 = arith.constant 2 : index
    %c0_226 = arith.constant 0 : index
    %c0_227 = arith.constant 0 : index
    %330 = vector.load %arg6[%c2_225, %c0_226, %c0_227] : memref<4x16x1xf32, #tpu.memory_space<vmem>>, vector<1x16x1xf32>
    %331 = vector.shape_cast %330 : vector<1x16x1xf32> to vector<16x1xf32>
    %332 = vector.broadcast %331 : vector<16x1xf32> to vector<16x1024xf32>
    %333 = arith.addf %329, %332 : vector<16x1024xf32>
    %c3_228 = arith.constant 3 : index
    %c0_229 = arith.constant 0 : index
    %c0_230 = arith.constant 0 : index
    %334 = vector.load %arg6[%c3_228, %c0_229, %c0_230] : memref<4x16x1xf32, #tpu.memory_space<vmem>>, vector<1x16x1xf32>
    %335 = vector.shape_cast %334 : vector<1x16x1xf32> to vector<16x1xf32>
    %336 = vector.broadcast %335 : vector<16x1xf32> to vector<16x1024xf32>
    %337 = arith.maximumf %333, %336 : vector<16x1024xf32>
    %338 = vector.broadcast %0 : vector<1x1024xf32> to vector<16x1024xf32>
    %339 = arith.mulf %337, %338 : vector<16x1024xf32>
    %c0_231 = arith.constant 0 : index
    %c0_232 = arith.constant 0 : index
    %c0_233 = arith.constant 0 : index
    %340 = vector.load %arg7[%c0_231, %c0_232, %c0_233] : memref<1x16x1024xf32, #tpu.memory_space<vmem>>, vector<1x16x1024xf32>
    %341 = vector.shape_cast %340 : vector<1x16x1024xf32> to vector<16x1024xf32>
    %342 = vector.shape_cast %339 : vector<16x1024xf32> to vector<1x16x1024xf32>
    tpu.vector_store %arg7[%c0_231, %c0_232, %c0_233], %342 {strides = array<i32>} : memref<1x16x1024xf32, #tpu.memory_space<vmem>>, vector<1x16x1024xf32>,
    return
  }
  func.func @transform_0(%arg0: i32) -> (i32, i32, i32) {
    %c0_i32 = arith.constant 0 : i32
    %c0_i32_0 = arith.constant 0 : i32
    %c0_i32_1 = arith.constant 0 : i32
    return %arg0, %c0_i32, %c0_i32_0 : i32, i32, i32
  }
  func.func @transform_1(%arg0: i32) -> (i32, i32) {
    %c0_i32 = arith.constant 0 : i32
    %c0_i32_0 = arith.constant 0 : i32
    %c0_i32_1 = arith.constant 0 : i32
    return %c0_i32, %c0_i32_0 : i32, i32
  }
  func.func @transform_2(%arg0: i32) -> (i32, i32, i32) {
    %c0_i32 = arith.constant 0 : i32
    %c0_i32_0 = arith.constant 0 : i32
    %c0_i32_1 = arith.constant 0 : i32
    %c0_i32_2 = arith.constant 0 : i32
    return %c0_i32, %c0_i32_0, %c0_i32_1 : i32, i32, i32
  }
  func.func @transform_3(%arg0: i32) -> (i32, i32, i32) {
    %c0_i32 = arith.constant 0 : i32
    %c0_i32_0 = arith.constant 0 : i32
    %c0_i32_1 = arith.constant 0 : i32
    %c0_i32_2 = arith.constant 0 : i32
    return %c0_i32, %c0_i32_0, %c0_i32_1 : i32, i32, i32
  }
  func.func @transform_4(%arg0: i32) -> (i32, i32, i32) {
    %c0_i32 = arith.constant 0 : i32
    %c0_i32_0 = arith.constant 0 : i32
    %c0_i32_1 = arith.constant 0 : i32
    %c0_i32_2 = arith.constant 0 : i32
    return %c0_i32, %c0_i32_0, %c0_i32_1 : i32, i32, i32
  }
  func.func @transform_5(%arg0: i32) -> (i32, i32, i32) {
    %c0_i32 = arith.constant 0 : i32
    %c0_i32_0 = arith.constant 0 : i32
    %c0_i32_1 = arith.constant 0 : i32
    %c0_i32_2 = arith.constant 0 : i32
    return %c0_i32, %c0_i32_0, %c0_i32_1 : i32, i32, i32
  }
  func.func @transform_6(%arg0: i32) -> (i32, i32, i32) {
    %c0_i32 = arith.constant 0 : i32
    %c0_i32_0 = arith.constant 0 : i32
    %c0_i32_1 = arith.constant 0 : i32
    return %arg0, %c0_i32, %c0_i32_0 : i32, i32, i32
  }
}

</mosaic_0001>

<llo_original>
// kernel: conv_block_forward.1
$region0: #{conv_block_forward.1}
  #allocation0 [shape = 'u32[]', space=smem, size = 0x4, offset = 0x4, fixed_abs, tag = 'smem constant byte address 0x4 - core index']
  #allocation1 [shape = 'u32[72,128]{1,0:T(1,128)}', space=vmem, size = 0x9000, scoped, tag = 'internal scratch']
  #allocation2 [shape = 'bf16[16,1280]{1,0:T(8,128)(2,1)}', space=vmem, size = 0xa000, scoped, tag = 'scratch operand']
  %s0 = inlined_call_operand.vmem [shape: bf16[2,16,1280], index: 0, kind: input, shape index: {}]
  %s1 = inlined_call_operand.vmem [shape: f32[1,1024], index: 1, kind: input, shape index: {}]
  %s2 = inlined_call_operand.vmem [shape: bf16[27,16,16], index: 2, kind: input, shape index: {}]
  %s3 = inlined_call_operand.vmem [shape: f32[4,16,1], index: 3, kind: input, shape index: {}]
  %s4 = inlined_call_operand.vmem [shape: bf16[27,16,16], index: 4, kind: input, shape index: {}]
  %s5 = inlined_call_operand.vmem [shape: f32[4,16,1], index: 5, kind: input, shape index: {}]
  %s6 = inlined_call_operand.vmem [shape: f32[2,16,1024], index: 6, kind: output, shape index: {}]
  %s7 = sld [smem:[#allocation0]]
  $region57: #{conv_block_forward.1} parent=0
    _
  %s9 = ssub.s32 1, %s7
  %s10 = scalar_select 0, %s9, %s7
  loop: start=0, step=1, limit=4
  $region2: #{conv_block_forward.1} parent=0 // loop_pre_header
    _
  $region3: #{conv_block_forward.1} parent=0 // loop_header
    %s12 = sphi 0, %s16
    %p13 = scmp.ge.s32.totalorder %s12, 4
    %s22 = sphi 0, %s24
    %s25 = sphi 0, %s22
    %s26 = sphi 0, %s25
    %s42 = sphi 0, %s26
    %s46 = sphi 0, %s46
    %s48 = sphi 0, %s46
    %s49 = sphi 0, %s48
    %s63 = sphi 0, %s49
    %s67 = sphi 0, %s67
    %s69 = sphi 0, %s67
    %s70 = sphi 0, %s69
    %s84 = sphi 0, %s70
    %s88 = sphi 0, %s88
    %s90 = sphi 0, %s88
    %s91 = sphi 0, %s90
    %s105 = sphi 0, %s91
    %s109 = sphi 0, %s109
    %s111 = sphi 0, %s109
    %s112 = sphi 0, %s111
    %s126 = sphi 0, %s112
    %s130 = sphi 0, %s130
    %s132 = sphi 0, %s130
    %s133 = sphi 0, %s132
    %s147 = sphi 0, %s133
    %s153 = sphi 0, %s155
    %s156 = sphi 0, %s153
    %s157 = sphi 0, %s156
    %s173 = sphi 0, %s157
  $region4: #{conv_block_forward.1} parent=0 // loop_header_branch
    %15 = sbr.rel (%p13) target = $region8
  $region5: #{conv_block_forward.1} parent=0 // loop_body
    %s17 = ssub.s32 %s12, 1
    %s18 = ssub.s32 %s12, 2
    %s19 = sadd.s32 %s12, 1
    %s20 = ssub.s32 %s12, %s19
    %p21 = scmp.eq.s32.totalorder %s20, 0
    %s23 = sadd.s32 %s22, 1
    %s24 = scalar_select %p21, %s22, %s23
    %p27 = pneg %p21
    %p28 = scmp.eq.s32.totalorder %s12, 1
    %p29 = por %p27, %p28
    %p30 = scmp.ne.s32.totalorder %s22, %s25
    %p31 = scmp.eq.s32.totalorder %s12, 0
    %p32 = por %p30, %p31
    %p33 = scmp.ne.s32.totalorder %s22, %s25
    %p34 = scmp.eq.s32.totalorder %s17, 1
    %p35 = por %p33, %p34
    %p36 = scmp.ne.s32.totalorder %s25, %s26
    %p37 = scmp.eq.s32.totalorder %s17, 0
    %p38 = por %p36, %p37
    %p39 = scmp.ne.s32.totalorder %s25, %s26
    %p40 = scmp.eq.s32.totalorder %s18, 1
    %p41 = por %p39, %p40
    %p43 = scmp.ne.s32.totalorder %s26, %s42
    %p44 = scmp.eq.s32.totalorder %s18, 0
    %p45 = por %p43, %p44
    %s47 = sadd.s32 %s46, 1
    %p50 = scmp.eq.s32.totalorder %s12, 1
    %p51 = scmp.ne.s32.totalorder %s46, %s48
    %p52 = scmp.eq.s32.totalorder %s12, 0
    %p53 = por %p51, %p52
    %p54 = scmp.ne.s32.totalorder %s46, %s48
    %p55 = scmp.eq.s32.totalorder %s17, 1
    %p56 = por %p54, %p55
    %p57 = scmp.ne.s32.totalorder %s48, %s49
    %p58 = scmp.eq.s32.totalorder %s17, 0
    %p59 = por %p57, %p58
    %p60 = scmp.ne.s32.totalorder %s48, %s49
    %p61 = scmp.eq.s32.totalorder %s18, 1
    %p62 = por %p60, %p61
    %p64 = scmp.ne.s32.totalorder %s49, %s63
    %p65 = scmp.eq.s32.totalorder %s18, 0
    %p66 = por %p64, %p65
    %s68 = sadd.s32 %s67, 1
    %p71 = scmp.eq.s32.totalorder %s12, 1
    %p72 = scmp.ne.s32.totalorder %s67, %s69
    %p73 = scmp.eq.s32.totalorder %s12, 0
    %p74 = por %p72, %p73
    %p75 = scmp.ne.s32.totalorder %s67, %s69
    %p76 = scmp.eq.s32.totalorder %s17, 1
    %p77 = por %p75, %p76
    %p78 = scmp.ne.s32.totalorder %s69, %s70
    %p79 = scmp.eq.s32.totalorder %s17, 0
    %p80 = por %p78, %p79
    %p81 = scmp.ne.s32.totalorder %s69, %s70
    %p82 = scmp.eq.s32.totalorder %s18, 1
    %p83 = por %p81, %p82
    %p85 = scmp.ne.s32.totalorder %s70, %s84
    %p86 = scmp.eq.s32.totalorder %s18, 0
    %p87 = por %p85, %p86
    %s89 = sadd.s32 %s88, 1
    %p92 = scmp.eq.s32.totalorder %s12, 1
    %p93 = scmp.ne.s32.totalorder %s88, %s90
    %p94 = scmp.eq.s32.totalorder %s12, 0
    %p95 = por %p93, %p94
    %p96 = scmp.ne.s32.totalorder %s88, %s90
    %p97 = scmp.eq.s32.totalorder %s17, 1
    %p98 = por %p96, %p97
    %p99 = scmp.ne.s32.totalorder %s90, %s91
    %p100 = scmp.eq.s32.totalorder %s17, 0
    %p101 = por %p99, %p100
    %p102 = scmp.ne.s32.totalorder %s90, %s91
    %p103 = scmp.eq.s32.totalorder %s18, 1
    %p104 = por %p102, %p103
    %p106 = scmp.ne.s32.totalorder %s91, %s105
    %p107 = scmp.eq.s32.totalorder %s18, 0
    %p108 = por %p106, %p107
    %s110 = sadd.s32 %s109, 1
    %p113 = scmp.eq.s32.totalorder %s12, 1
    %p114 = scmp.ne.s32.totalorder %s109, %s111
    %p115 = scmp.eq.s32.totalorder %s12, 0
    %p116 = por %p114, %p115
    %p117 = scmp.ne.s32.totalorder %s109, %s111
    %p118 = scmp.eq.s32.totalorder %s17, 1
    %p119 = por %p117, %p118
    %p120 = scmp.ne.s32.totalorder %s111, %s112
    %p121 = scmp.eq.s32.totalorder %s17, 0
    %p122 = por %p120, %p121
    %p123 = scmp.ne.s32.totalorder %s111, %s112
    %p124 = scmp.eq.s32.totalorder %s18, 1
    %p125 = por %p123, %p124
    %p127 = scmp.ne.s32.totalorder %s112, %s126
    %p128 = scmp.eq.s32.totalorder %s18, 0
    %p129 = por %p127, %p128
    %s131 = sadd.s32 %s130, 1
    %p134 = scmp.eq.s32.totalorder %s12, 1
    %p135 = scmp.ne.s32.totalorder %s130, %s132
    %p136 = scmp.eq.s32.totalorder %s12, 0
    %p137 = por %p135, %p136
    %p138 = scmp.ne.s32.totalorder %s130, %s132
    %p139 = scmp.eq.s32.totalorder %s17, 1
    %p140 = por %p138, %p139
    %p141 = scmp.ne.s32.totalorder %s132, %s133
    %p142 = scmp.eq.s32.totalorder %s17, 0
    %p143 = por %p141, %p142
    %p144 = scmp.ne.s32.totalorder %s132, %s133
    %p145 = scmp.eq.s32.totalorder %s18, 1
    %p146 = por %p144, %p145
    %p148 = scmp.ne.s32.totalorder %s133, %s147
    %p149 = scmp.eq.s32.totalorder %s18, 0
    %p150 = por %p148, %p149
    %s151 = ssub.s32 %s12, %s19
    %p152 = scmp.eq.s32.totalorder %s151, 0
    %s154 = sadd.s32 %s153, 1
    %s155 = scalar_select %p152, %s153, %s154
    %p158 = pneg %p152
    %p159 = scmp.eq.s32.totalorder %s12, 1
    %p160 = por %p158, %p159
    %p161 = scmp.ne.s32.totalorder %s153, %s156
    %p162 = scmp.eq.s32.totalorder %s12, 0
    %p163 = por %p161, %p162
    %p164 = scmp.ne.s32.totalorder %s153, %s156
    %p165 = scmp.eq.s32.totalorder %s17, 1
    %p166 = por %p164, %p165
    %p167 = scmp.ne.s32.totalorder %s156, %s157
    %p168 = scmp.eq.s32.totalorder %s17, 0
    %p169 = por %p167, %p168
    %p170 = scmp.ne.s32.totalorder %s156, %s157
    %p171 = scmp.eq.s32.totalorder %s18, 1
    %p172 = por %p170, %p171
    %p174 = scmp.ne.s32.totalorder %s157, %s173
    %p175 = scmp.eq.s32.totalorder %s18, 0
    %p176 = por %p174, %p175
    %p177 = scmp.le.s32.totalorder 1, %s12
    %p178 = scmp.lt.s32.totalorder %s12, 3
    %p179 = pnand %p177, %p178
    %p180 = pneg %p179
    // Predicated region
    $region9: #{conv_block_forward.1} parent=5 // pred_check
      _
    $region10: #{conv_block_forward.1} parent=5 // pred_check_branch
      %182 = sbr.rel (%p179) target = $region12
    $region11: #{conv_block_forward.1} parent=5 // pred_region
      %s183 = ssub.s32 %s12, 1
      // Predicated region
      $region13: #{conv_block_forward.1} parent=11 // pred_check
        %p184 = pneg %p59
      $region14: #{conv_block_forward.1} parent=11 // pred_check_branch
        %186 = sbr.rel (%p184) target = $region16
      $region15: #{conv_block_forward.1} parent=11 // pred_region
        _
      $region16: #{conv_block_forward.1} parent=11 // pred_fallthru
        _
      // Predicated region
      $region17: #{conv_block_forward.1} parent=11 // pred_check
        %p187 = pneg %p80
      $region18: #{conv_block_forward.1} parent=11 // pred_check_branch
        %189 = sbr.rel (%p187) target = $region20
      $region19: #{conv_block_forward.1} parent=11 // pred_region
        _
      $region20: #{conv_block_forward.1} parent=11 // pred_fallthru
        _
      // Predicated region
      $region21: #{conv_block_forward.1} parent=11 // pred_check
        %p190 = pneg %p101
      $region22: #{conv_block_forward.1} parent=11 // pred_check_branch
        %192 = sbr.rel (%p190) target = $region24
      $region23: #{conv_block_forward.1} parent=11 // pred_region
        _
      $region24: #{conv_block_forward.1} parent=11 // pred_fallthru
        _
      // Predicated region
      $region25: #{conv_block_forward.1} parent=11 // pred_check
        %p193 = pneg %p122
      $region26: #{conv_block_forward.1} parent=11 // pred_check_branch
        %195 = sbr.rel (%p193) target = $region28
      $region27: #{conv_block_forward.1} parent=11 // pred_region
        _
      $region28: #{conv_block_forward.1} parent=11 // pred_fallthru
        _
      // Predicated region
      $region29: #{conv_block_forward.1} parent=11 // pred_check
        %p196 = pneg %p143
      $region30: #{conv_block_forward.1} parent=11 // pred_check_branch
        %198 = sbr.rel (%p196) target = $region32
      $region31: #{conv_block_forward.1} parent=11 // pred_region
        _
      $region32: #{conv_block_forward.1} parent=11 // pred_fallthru
        _
    $region12: #{conv_block_forward.1} parent=5 // pred_fallthru
      _
    %p199 = scmp.lt.s32.totalorder %s12, 2
    // Predicated region
    $region33: #{conv_block_forward.1} parent=5 // pred_check
      %p200 = pneg %p199
    $region34: #{conv_block_forward.1} parent=5 // pred_check_branch
      %202 = sbr.rel (%p200) target = $region36
    $region35: #{conv_block_forward.1} parent=5 // pred_region
      // Predicated region
      $region37: #{conv_block_forward.1} parent=35 // pred_check
        %p203 = pneg %p32
      $region38: #{conv_block_forward.1} parent=35 // pred_check_branch
        %205 = sbr.rel (%p203) target = $region40
      $region39: #{conv_block_forward.1} parent=35 // pred_region
        %p206 = scmp.lt.s32.totalorder %s12, 1
        %s207 = scalar_select %p206, %s12, 1
        %s208 = smul.addr %s207, 20
        %s209 = smul.addr %s208, 4
        %s210 = scalar_lea.vmem %s0, %s209
      $region40: #{conv_block_forward.1} parent=35 // pred_fallthru
        _
    $region36: #{conv_block_forward.1} parent=5 // pred_fallthru
      _
    %p211 = scmp.le.s32.totalorder 1, %s12
    %p212 = scmp.lt.s32.totalorder %s12, 3
    %p213 = pnand %p211, %p212
    %p214 = pneg %p213
    // Predicated region
    $region41: #{conv_block_forward.1} parent=5 // pred_check
      _
    $region42: #{conv_block_forward.1} parent=5 // pred_check_branch
      %216 = sbr.rel (%p213) target = $region44
    $region43: #{conv_block_forward.1} parent=5 // pred_region
      %s217 = ssub.s32 %s12, 1
      %p218 = scmp.lt.s32.totalorder %s17, 1
      %s219 = scalar_select %p218, %s17, 1
      %s220 = smul.addr %s219, 20
      %s221 = smul.addr %s220, 4
      %s222 = scalar_lea.vmem %s0, %s221
      %p223 = pneg %p38
      %p224 = pneg %p35
      %p225 = pneg %p59
      %p226 = pneg %p56
      %p227 = pneg %p80
      %p228 = pneg %p77
      %p229 = pneg %p101
      %p230 = pneg %p98
      %p231 = pneg %p122
      %p232 = pneg %p119
      %p233 = pneg %p143
      %p234 = pneg %p140
      %p235 = pneg %p169
      %p236 = pneg %p166
      %p237 = scmp.lt.s32.totalorder %s17, 1
      %s238 = scalar_select %p237, %s17, 1
      %s239 = smul.addr %s238, 16
      %s240 = smul.addr %s239, 8
      %s241 = scalar_lea.vmem %s6, %s240
      %p242 = scmp.lt.s32.totalorder %s17, 1
      %s243 = scalar_select %p242, %s17, 1
      %s244 = smul.addr %s243, 20
      %s245 = smul.addr %s244, 4
      %s246 = scalar_lea.vmem %s0, %s245
      %p247 = scmp.lt.s32.totalorder %s17, 1
      %s248 = scalar_select %p247, %s17, 1
      %s249 = smul.addr %s248, 16
      %s250 = smul.addr %s249, 8
      %s251 = scalar_lea.vmem %s6, %s250
      %v253 = vld [vmem:[%s1] sm:$0xff]
      %254 = vst [vmem:[#allocation2] sm:$0xff] 0
      %255 = vst [vmem:[#allocation2 + $0x8] sm:$0xff] 0
      %256 = vst [vmem:[#allocation2 + $0x10] sm:$0xff] 0
      %257 = vst [vmem:[#allocation2 + $0x18] sm:$0xff] 0
      %258 = vst [vmem:[#allocation2 + $0x20] sm:$0xff] 0
      %259 = vst [vmem:[#allocation2 + $0x28] sm:$0xff] 0
      %260 = vst [vmem:[#allocation2 + $0x30] sm:$0xff] 0
      %261 = vst [vmem:[#allocation2 + $0x38] sm:$0xff] 0
      %262 = vst [vmem:[#allocation2 + $0x40] sm:$0xff] 0
      %263 = vst [vmem:[#allocation2 + $0x48] sm:$0xff] 0
      %v264 = vld [vmem:[%s246] sm:$0xff]
      %v265 = vld [vmem:[%s246 + $0x8] sm:$0xff]
      %v266 = vld [vmem:[%s246 + $0x10] sm:$0xff]
      %v267 = vld [vmem:[%s246 + $0x18] sm:$0xff]
      %v268 = vld [vmem:[%s246 + $0x20] sm:$0xff]
      %v269 = vld [vmem:[%s246 + $0x28] sm:$0xff]
      %v270 = vld [vmem:[%s246 + $0x30] sm:$0xff]
      %v271 = vld [vmem:[%s246 + $0x38] sm:$0xff]
      %v272 = vld [vmem:[%s246 + $0x40] sm:$0xff]
      %v273 = vld [vmem:[%s246 + $0x48] sm:$0xff]
      %v274 = vld [vmem:[%s2] sm:$0xf]
      %v275 = vld [vmem:[%s2 + $0x4] sm:$0xf]
      %s276 = scalar_lea.vmem %s2, 8
      %v277 = vld [vmem:[%s276] sm:$0xf]
      %v278 = vld [vmem:[%s276 + $0x4] sm:$0xf]
      %v281 = vunpack.c.l.b16 %v277
      %v282 = vunpack.c.l.b16 %v278
      %v283 = vpack.c.b16 %v282, %v281
      %v294 = vunpack.c.l.b16 %v264
      %v295 = vunpack.c.h.b16 %v264
      %v296 = vunpack.c.l.b16 %v265
      %v297 = vunpack.c.h.b16 %v265
      %v298 = vunpack.c.l.b16 %v266
      %v299 = vunpack.c.h.b16 %v266
      %v300 = vunpack.c.l.b16 %v267
      %v301 = vunpack.c.h.b16 %v267
      %v302 = vunpack.c.l.b16 %v268
      %v303 = vunpack.c.l.b16 %v269
      %v304 = vunpack.c.h.b16 %v269
      %v305 = vunpack.c.l.b16 %v270
      %v306 = vunpack.c.h.b16 %v270
      %v307 = vunpack.c.l.b16 %v271
      %v308 = vunpack.c.h.b16 %v271
      %v309 = vunpack.c.l.b16 %v272
      %v310 = vunpack.c.h.b16 %v272
      %v311 = vunpack.c.l.b16 %v273
      %v312 = vpack.c.b16 %v303, %v294
      %v313 = vpack.c.b16 %v304, %v295
      %v314 = vpack.c.b16 %v305, %v296
      %v315 = vpack.c.b16 %v306, %v297
      %v316 = vpack.c.b16 %v307, %v298
      %v317 = vpack.c.b16 %v308, %v299
      %v318 = vpack.c.b16 %v309, %v300
      %v319 = vpack.c.b16 %v310, %v301
      %v320 = vpack.c.b16 %v311, %v302
      %321 = vrot.lane.b32.xlu0 %v312, 110
      %v322 = vpop.permute.xlu0 %321
      %323 = vrot.lane.b32.xlu0 %v313, 110
      %v324 = vpop.permute.xlu0 %323
      %325 = vrot.lane.b32.xlu0 %v314, 110
      %v326 = vpop.permute.xlu0 %325
      %327 = vrot.lane.b32.xlu0 %v315, 110
      %v328 = vpop.permute.xlu0 %327
      %329 = vrot.lane.b32.xlu0 %v316, 110
      %v330 = vpop.permute.xlu0 %329
      %331 = vrot.lane.b32.xlu0 %v317, 110
      %v332 = vpop.permute.xlu0 %331
      %333 = vrot.lane.b32.xlu0 %v318, 110
      %v334 = vpop.permute.xlu0 %333
      %335 = vrot.lane.b32.xlu0 %v319, 110
      %v336 = vpop.permute.xlu0 %335
      %337 = vrot.lane.b32.xlu0 %v320, 110
      %v338 = vpop.permute.xlu0 %337
      %vm339 = vcmask 900096
      %v340 = vsel %vm339, %v322, %v324
      %v341 = vsel %vm339, %v324, %v326
      %v342 = vsel %vm339, %v326, %v328
      %v343 = vsel %vm339, %v328, %v330
      %v344 = vsel %vm339, %v330, %v332
      %v345 = vsel %vm339, %v332, %v334
      %v346 = vsel %vm339, %v334, %v336
      %v347 = vsel %vm339, %v336, %v338
      %vm356 = vcmask 130048
      %v358 = vsel %vm356, %v283, 0
      %360 = vmatpush.bf16.msra.mxu0 0
      %361 = vmatpush.bf16.msra.mxu0 0
      %362 = vmatpush.bf16.msra.mxu0 0
      %363 = vmatpush.bf16.msra.mxu0 0
      %364 = vmatpush.bf16.msra.mxu0 0
      %365 = vmatpush.bf16.msra.mxu0 0
      %366 = vmatpush.bf16.msra.mxu0 0
      %367 = vmatpush.bf16.msra.mxu0 %v340
      %368 = vmatmul.bf16.gmra.mxu0 %v358
      %v369 = vpop.f32.mrf.mxu0
      %v370 = vadd.f32 0.0, %v369
      %v371 = vpop.f32.mrf.mxu0
      %v372 = vadd.f32 0.0, %v371
      %373 = vdwg.mxu0
      %374 = vmatpush.bf16.msra.mxu0 0
      %375 = vmatpush.bf16.msra.mxu0 0
      %376 = vmatpush.bf16.msra.mxu0 0
      %377 = vmatpush.bf16.msra.mxu0 0
      %378 = vmatpush.bf16.msra.mxu0 0
      %379 = vmatpush.bf16.msra.mxu0 0
      %380 = vmatpush.bf16.msra.mxu0 0
      %381 = vmatpush.bf16.msra.mxu0 %v341
      %382 = vmatmul.bf16.gmra.mxu0 %v358
      %v383 = vpop.f32.mrf.mxu0
      %v384 = vadd.f32 0.0, %v383
      %v385 = vpop.f32.mrf.mxu0
      %v386 = vadd.f32 0.0, %v385
      %387 = vdwg.mxu0
      %388 = vmatpush.bf16.msra.mxu0 0
      %389 = vmatpush.bf16.msra.mxu0 0
      %390 = vmatpush.bf16.msra.mxu0 0
      %391 = vmatpush.bf16.msra.mxu0 0
      %392 = vmatpush.bf16.msra.mxu0 0
      %393 = vmatpush.bf16.msra.mxu0 0
      %394 = vmatpush.bf16.msra.mxu0 0
      %395 = vmatpush.bf16.msra.mxu0 %v342
      %396 = vmatmul.bf16.gmra.mxu0 %v358
      %v397 = vpop.f32.mrf.mxu0
      %v398 = vadd.f32 0.0, %v397
      %v399 = vpop.f32.mrf.mxu0
      %v400 = vadd.f32 0.0, %v399
      %401 = vdwg.mxu0
      %402 = vmatpush.bf16.msra.mxu0 0
      %403 = vmatpush.bf16.msra.mxu0 0
      %404 = vmatpush.bf16.msra.mxu0 0
      %405 = vmatpush.bf16.msra.mxu0 0
      %406 = vmatpush.bf16.msra.mxu0 0
      %407 = vmatpush.bf16.msra.mxu0 0
      %408 = vmatpush.bf16.msra.mxu0 0
      %409 = vmatpush.bf16.msra.mxu0 %v343
      %410 = vmatmul.bf16.gmra.mxu0 %v358
      %v411 = vpop.f32.mrf.mxu0
      %v412 = vadd.f32 0.0, %v411
      %v413 = vpop.f32.mrf.mxu0
      %v414 = vadd.f32 0.0, %v413
      %415 = vdwg.mxu0
      %416 = vmatpush.bf16.msra.mxu0 0
      %417 = vmatpush.bf16.msra.mxu0 0
      %418 = vmatpush.bf16.msra.mxu0 0
      %419 = vmatpush.bf16.msra.mxu0 0
      %420 = vmatpush.bf16.msra.mxu0 0
      %421 = vmatpush.bf16.msra.mxu0 0
      %422 = vmatpush.bf16.msra.mxu0 0
      %423 = vmatpush.bf16.msra.mxu0 %v344
      %424 = vmatmul.bf16.gmra.mxu0 %v358
      %v425 = vpop.f32.mrf.mxu0
      %v426 = vadd.f32 0.0, %v425
      %v427 = vpop.f32.mrf.mxu0
      %v428 = vadd.f32 0.0, %v427
      %429 = vdwg.mxu0
      %430 = vmatpush.bf16.msra.mxu0 0
      %431 = vmatpush.bf16.msra.mxu0 0
      %432 = vmatpush.bf16.msra.mxu0 0
      %433 = vmatpush.bf16.msra.mxu0 0
      %434 = vmatpush.bf16.msra.mxu0 0
      %435 = vmatpush.bf16.msra.mxu0 0
      %436 = vmatpush.bf16.msra.mxu0 0
      %437 = vmatpush.bf16.msra.mxu0 %v345
      %438 = vmatmul.bf16.gmra.mxu0 %v358
      %v439 = vpop.f32.mrf.mxu0
      %v440 = vadd.f32 0.0, %v439
      %v441 = vpop.f32.mrf.mxu0
      %v442 = vadd.f32 0.0, %v441
      %443 = vdwg.mxu0
      %444 = vmatpush.bf16.msra.mxu0 0
      %445 = vmatpush.bf16.msra.mxu0 0
      %446 = vmatpush.bf16.msra.mxu0 0
      %447 = vmatpush.bf16.msra.mxu0 0
      %448 = vmatpush.bf16.msra.mxu0 0
      %449 = vmatpush.bf16.msra.mxu0 0
      %450 = vmatpush.bf16.msra.mxu0 0
      %451 = vmatpush.bf16.msra.mxu0 %v346
      %452 = vmatmul.bf16.gmra.mxu0 %v358
      %v453 = vpop.f32.mrf.mxu0
      %v454 = vadd.f32 0.0, %v453
      %v455 = vpop.f32.mrf.mxu0
      %v456 = vadd.f32 0.0, %v455
      %457 = vdwg.mxu0
      %458 = vmatpush.bf16.msra.mxu0 0
      %459 = vmatpush.bf16.msra.mxu0 0
      %460 = vmatpush.bf16.msra.mxu0 0
      %461 = vmatpush.bf16.msra.mxu0 0
      %462 = vmatpush.bf16.msra.mxu0 0
      %463 = vmatpush.bf16.msra.mxu0 0
      %464 = vmatpush.bf16.msra.mxu0 0
      %465 = vmatpush.bf16.msra.mxu0 %v347
      %466 = vmatmul.bf16.gmra.mxu0 %v358
      %v467 = vpop.f32.mrf.mxu0
      %v468 = vadd.f32 0.0, %v467
      %v469 = vpop.f32.mrf.mxu0
      %v470 = vadd.f32 0.0, %v469
      %471 = vdwg.mxu0
      %v474 = vunpack.c.l.b16 %v274
      %v475 = vunpack.c.l.b16 %v275
      %v476 = vpack.c.b16 %v475, %v474
      %477 = vrot.lane.b32.xlu0 %v312, 111
      %v478 = vpop.permute.xlu0 %477
      %479 = vrot.lane.b32.xlu0 %v313, 111
      %v480 = vpop.permute.xlu0 %479
      %481 = vrot.lane.b32.xlu0 %v314, 111
      %v482 = vpop.permute.xlu0 %481
      %483 = vrot.lane.b32.xlu0 %v315, 111
      %v484 = vpop.permute.xlu0 %483
      %485 = vrot.lane.b32.xlu0 %v316, 111
      %v486 = vpop.permute.xlu0 %485
      %487 = vrot.lane.b32.xlu0 %v317, 111
      %v488 = vpop.permute.xlu0 %487
      %489 = vrot.lane.b32.xlu0 %v318, 111
      %v490 = vpop.permute.xlu0 %489
      %491 = vrot.lane.b32.xlu0 %v319, 111
      %v492 = vpop.permute.xlu0 %491
      %493 = vrot.lane.b32.xlu0 %v320, 111
      %v494 = vpop.permute.xlu0 %493
      %vm495 = vcmask 908288
      %v496 = vsel %vm495, %v478, %v480
      %v497 = vsel %vm495, %v480, %v482
      %v498 = vsel %vm495, %v482, %v484
      %v499 = vsel %vm495, %v484, %v486
      %v500 = vsel %vm495, %v486, %v488
      %v501 = vsel %vm495, %v488, %v490
      %v502 = vsel %vm495, %v490, %v492
      %v503 = vsel %vm495, %v492, %v494
      %v513 = vsel %vm356, %v476, 0
      %515 = vmatpush.bf16.msra.mxu0 0
      %516 = vmatpush.bf16.msra.mxu0 0
      %517 = vmatpush.bf16.msra.mxu0 0
      %518 = vmatpush.bf16.msra.mxu0 0
      %519 = vmatpush.bf16.msra.mxu0 0
      %520 = vmatpush.bf16.msra.mxu0 0
      %521 = vmatpush.bf16.msra.mxu0 0
      %522 = vmatpush.bf16.msra.mxu0 %v496
      %523 = vmatmul.bf16.gmra.mxu0 %v513
      %v524 = vpop.f32.mrf.mxu0
      %v525 = vadd.f32 %v370, %v524
      %v526 = vpop.f32.mrf.mxu0
      %v527 = vadd.f32 %v372, %v526
      %528 = vdwg.mxu0
      %529 = vmatpush.bf16.msra.mxu0 0
      %530 = vmatpush.bf16.msra.mxu0 0
      %531 = vmatpush.bf16.msra.mxu0 0
      %532 = vmatpush.bf16.msra.mxu0 0
      %533 = vmatpush.bf16.msra.mxu0 0
      %534 = vmatpush.bf16.msra.mxu0 0
      %535 = vmatpush.bf16.msra.mxu0 0
      %536 = vmatpush.bf16.msra.mxu0 %v497
      %537 = vmatmul.bf16.gmra.mxu0 %v513
      %v538 = vpop.f32.mrf.mxu0
      %v539 = vadd.f32 %v384, %v538
      %v540 = vpop.f32.mrf.mxu0
      %v541 = vadd.f32 %v386, %v540
      %542 = vdwg.mxu0
      %543 = vmatpush.bf16.msra.mxu0 0
      %544 = vmatpush.bf16.msra.mxu0 0
      %545 = vmatpush.bf16.msra.mxu0 0
      %546 = vmatpush.bf16.msra.mxu0 0
      %547 = vmatpush.bf16.msra.mxu0 0
      %548 = vmatpush.bf16.msra.mxu0 0
      %549 = vmatpush.bf16.msra.mxu0 0
      %550 = vmatpush.bf16.msra.mxu0 %v498
      %551 = vmatmul.bf16.gmra.mxu0 %v513
      %v552 = vpop.f32.mrf.mxu0
      %v553 = vadd.f32 %v398, %v552
      %v554 = vpop.f32.mrf.mxu0
      %v555 = vadd.f32 %v400, %v554
      %556 = vdwg.mxu0
      %557 = vmatpush.bf16.msra.mxu0 0
      %558 = vmatpush.bf16.msra.mxu0 0
      %559 = vmatpush.bf16.msra.mxu0 0
      %560 = vmatpush.bf16.msra.mxu0 0
      %561 = vmatpush.bf16.msra.mxu0 0
      %562 = vmatpush.bf16.msra.mxu0 0
      %563 = vmatpush.bf16.msra.mxu0 0
      %564 = vmatpush.bf16.msra.mxu0 %v499
      %565 = vmatmul.bf16.gmra.mxu0 %v513
      %v566 = vpop.f32.mrf.mxu0
      %v567 = vadd.f32 %v412, %v566
      %v568 = vpop.f32.mrf.mxu0
      %v569 = vadd.f32 %v414, %v568
      %570 = vdwg.mxu0
      %571 = vmatpush.bf16.msra.mxu0 0
      %572 = vmatpush.bf16.msra.mxu0 0
      %573 = vmatpush.bf16.msra.mxu0 0
      %574 = vmatpush.bf16.msra.mxu0 0
      %575 = vmatpush.bf16.msra.mxu0 0
      %576 = vmatpush.bf16.msra.mxu0 0
      %577 = vmatpush.bf16.msra.mxu0 0
      %578 = vmatpush.bf16.msra.mxu0 %v500
      %579 = vmatmul.bf16.gmra.mxu0 %v513
      %v580 = vpop.f32.mrf.mxu0
      %v581 = vadd.f32 %v426, %v580
      %v582 = vpop.f32.mrf.mxu0
      %v583 = vadd.f32 %v428, %v582
      %584 = vdwg.mxu0
      %585 = vmatpush.bf16.msra.mxu0 0
      %586 = vmatpush.bf16.msra.mxu0 0
      %587 = vmatpush.bf16.msra.mxu0 0
      %588 = vmatpush.bf16.msra.mxu0 0
      %589 = vmatpush.bf16.msra.mxu0 0
      %590 = vmatpush.bf16.msra.mxu0 0
      %591 = vmatpush.bf16.msra.mxu0 0
      %592 = vmatpush.bf16.msra.mxu0 %v501
      %593 = vmatmul.bf16.gmra.mxu0 %v513
      %v594 = vpop.f32.mrf.mxu0
      %v595 = vadd.f32 %v440, %v594
      %v596 = vpop.f32.mrf.mxu0
      %v597 = vadd.f32 %v442, %v596
      %598 = vdwg.mxu0
      %599 = vmatpush.bf16.msra.mxu0 0
      %600 = vmatpush.bf16.msra.mxu0 0
      %601 = vmatpush.bf16.msra.mxu0 0
      %602 = vmatpush.bf16.msra.mxu0 0
      %603 = vmatpush.bf16.msra.mxu0 0
      %604 = vmatpush.bf16.msra.mxu0 0
      %605 = vmatpush.bf16.msra.mxu0 0
      %606 = vmatpush.bf16.msra.mxu0 %v502
      %607 = vmatmul.bf16.gmra.mxu0 %v513
      %v608 = vpop.f32.mrf.mxu0
      %v609 = vadd.f32 %v454, %v608
      %v610 = vpop.f32.mrf.mxu0
      %v611 = vadd.f32 %v456, %v610
      %612 = vdwg.mxu0
      %613 = vmatpush.bf16.msra.mxu0 0
      %614 = vmatpush.bf16.msra.mxu0 0
      %615 = vmatpush.bf16.msra.mxu0 0
      %616 = vmatpush.bf16.msra.mxu0 0
      %617 = vmatpush.bf16.msra.mxu0 0
      %618 = vmatpush.bf16.msra.mxu0 0
      %619 = vmatpush.bf16.msra.mxu0 0
      %620 = vmatpush.bf16.msra.mxu0 %v503
      %621 = vmatmul.bf16.gmra.mxu0 %v513
      %v622 = vpop.f32.mrf.mxu0
      %v623 = vadd.f32 %v468, %v622
      %v624 = vpop.f32.mrf.mxu0
      %v625 = vadd.f32 %v470, %v624
      %626 = vdwg.mxu0
      %s627 = scalar_lea.vmem %s2, 16
      %v628 = vld [vmem:[%s627] sm:$0xf]
      %v629 = vld [vmem:[%s627 + $0x4] sm:$0xf]
      %v632 = vunpack.c.l.b16 %v628
      %v633 = vunpack.c.l.b16 %v629
      %v634 = vpack.c.b16 %v633, %v632
      %635 = vrot.lane.b32.xlu0 %v312, 109
      %v636 = vpop.permute.xlu0 %635
      %637 = vrot.lane.b32.xlu0 %v313, 109
      %v638 = vpop.permute.xlu0 %637
      %639 = vrot.lane.b32.xlu0 %v314, 109
      %v640 = vpop.permute.xlu0 %639
      %641 = vrot.lane.b32.xlu0 %v315, 109
      %v642 = vpop.permute.xlu0 %641
      %643 = vrot.lane.b32.xlu0 %v316, 109
      %v644 = vpop.permute.xlu0 %643
      %645 = vrot.lane.b32.xlu0 %v317, 109
      %v646 = vpop.permute.xlu0 %645
      %647 = vrot.lane.b32.xlu0 %v318, 109
      %v648 = vpop.permute.xlu0 %647
      %649 = vrot.lane.b32.xlu0 %v319, 109
      %v650 = vpop.permute.xlu0 %649
      %651 = vrot.lane.b32.xlu0 %v320, 109
      %v652 = vpop.permute.xlu0 %651
      %vm653 = vcmask 891904
      %v654 = vsel %vm653, %v636, %v638
      %v655 = vsel %vm653, %v638, %v640
      %v656 = vsel %vm653, %v640, %v642
      %v657 = vsel %vm653, %v642, %v644
      %v658 = vsel %vm653, %v644, %v646
      %v659 = vsel %vm653, %v646, %v648
      %v660 = vsel %vm653, %v648, %v650
      %v661 = vsel %vm653, %v650, %v652
      %v671 = vsel %vm356, %v634, 0
      %673 = vmatpush.bf16.msra.mxu0 0
      %674 = vmatpush.bf16.msra.mxu0 0
      %675 = vmatpush.bf16.msra.mxu0 0
      %676 = vmatpush.bf16.msra.mxu0 0
      %677 = vmatpush.bf16.msra.mxu0 0
      %678 = vmatpush.bf16.msra.mxu0 0
      %679 = vmatpush.bf16.msra.mxu0 0
      %680 = vmatpush.bf16.msra.mxu0 %v654
      %681 = vmatmul.bf16.gmra.mxu0 %v671
      %v682 = vpop.f32.mrf.mxu0
      %v683 = vadd.f32 0.0, %v682
      %v684 = vpop.f32.mrf.mxu0
      %v685 = vadd.f32 0.0, %v684
      %686 = vdwg.mxu0
      %687 = vmatpush.bf16.msra.mxu0 0
      %688 = vmatpush.bf16.msra.mxu0 0
      %689 = vmatpush.bf16.msra.mxu0 0
      %690 = vmatpush.bf16.msra.mxu0 0
      %691 = vmatpush.bf16.msra.mxu0 0
      %692 = vmatpush.bf16.msra.mxu0 0
      %693 = vmatpush.bf16.msra.mxu0 0
      %694 = vmatpush.bf16.msra.mxu0 %v655
      %695 = vmatmul.bf16.gmra.mxu0 %v671
      %v696 = vpop.f32.mrf.mxu0
      %v697 = vadd.f32 0.0, %v696
      %v698 = vpop.f32.mrf.mxu0
      %v699 = vadd.f32 0.0, %v698
      %700 = vdwg.mxu0
      %701 = vmatpush.bf16.msra.mxu0 0
      %702 = vmatpush.bf16.msra.mxu0 0
      %703 = vmatpush.bf16.msra.mxu0 0
      %704 = vmatpush.bf16.msra.mxu0 0
      %705 = vmatpush.bf16.msra.mxu0 0
      %706 = vmatpush.bf16.msra.mxu0 0
      %707 = vmatpush.bf16.msra.mxu0 0
      %708 = vmatpush.bf16.msra.mxu0 %v656
      %709 = vmatmul.bf16.gmra.mxu0 %v671
      %v710 = vpop.f32.mrf.mxu0
      %v711 = vadd.f32 0.0, %v710
      %v712 = vpop.f32.mrf.mxu0
      %v713 = vadd.f32 0.0, %v712
      %714 = vdwg.mxu0
      %715 = vmatpush.bf16.msra.mxu0 0
      %716 = vmatpush.bf16.msra.mxu0 0
      %717 = vmatpush.bf16.msra.mxu0 0
      %718 = vmatpush.bf16.msra.mxu0 0
      %719 = vmatpush.bf16.msra.mxu0 0
      %720 = vmatpush.bf16.msra.mxu0 0
      %721 = vmatpush.bf16.msra.mxu0 0
      %722 = vmatpush.bf16.msra.mxu0 %v657
      %723 = vmatmul.bf16.gmra.mxu0 %v671
      %v724 = vpop.f32.mrf.mxu0
      %v725 = vadd.f32 0.0, %v724
      %v726 = vpop.f32.mrf.mxu0
      %v727 = vadd.f32 0.0, %v726
      %728 = vdwg.mxu0
      %729 = vmatpush.bf16.msra.mxu0 0
      %730 = vmatpush.bf16.msra.mxu0 0
      %731 = vmatpush.bf16.msra.mxu0 0
      %732 = vmatpush.bf16.msra.mxu0 0
      %733 = vmatpush.bf16.msra.mxu0 0
      %734 = vmatpush.bf16.msra.mxu0 0
      %735 = vmatpush.bf16.msra.mxu0 0
      %736 = vmatpush.bf16.msra.mxu0 %v658
      %737 = vmatmul.bf16.gmra.mxu0 %v671
      %v738 = vpop.f32.mrf.mxu0
      %v739 = vadd.f32 0.0, %v738
      %v740 = vpop.f32.mrf.mxu0
      %v741 = vadd.f32 0.0, %v740
      %742 = vdwg.mxu0
      %743 = vmatpush.bf16.msra.mxu0 0
      %744 = vmatpush.bf16.msra.mxu0 0
      %745 = vmatpush.bf16.msra.mxu0 0
      %746 = vmatpush.bf16.msra.mxu0 0
      %747 = vmatpush.bf16.msra.mxu0 0
      %748 = vmatpush.bf16.msra.mxu0 0
      %749 = vmatpush.bf16.msra.mxu0 0
      %750 = vmatpush.bf16.msra.mxu0 %v659
      %751 = vmatmul.bf16.gmra.mxu0 %v671
      %v752 = vpop.f32.mrf.mxu0
      %v753 = vadd.f32 0.0, %v752
      %v754 = vpop.f32.mrf.mxu0
      %v755 = vadd.f32 0.0, %v754
      %756 = vdwg.mxu0
      %757 = vmatpush.bf16.msra.mxu0 0
      %758 = vmatpush.bf16.msra.mxu0 0
      %759 = vmatpush.bf16.msra.mxu0 0
      %760 = vmatpush.bf16.msra.mxu0 0
      %761 = vmatpush.bf16.msra.mxu0 0
      %762 = vmatpush.bf16.msra.mxu0 0
      %763 = vmatpush.bf16.msra.mxu0 0
      %764 = vmatpush.bf16.msra.mxu0 %v660
      %765 = vmatmul.bf16.gmra.mxu0 %v671
      %v766 = vpop.f32.mrf.mxu0
      %v767 = vadd.f32 0.0, %v766
      %v768 = vpop.f32.mrf.mxu0
      %v769 = vadd.f32 0.0, %v768
      %770 = vdwg.mxu0
      %771 = vmatpush.bf16.msra.mxu0 0
      %772 = vmatpush.bf16.msra.mxu0 0
      %773 = vmatpush.bf16.msra.mxu0 0
      %774 = vmatpush.bf16.msra.mxu0 0
      %775 = vmatpush.bf16.msra.mxu0 0
      %776 = vmatpush.bf16.msra.mxu0 0
      %777 = vmatpush.bf16.msra.mxu0 0
      %778 = vmatpush.bf16.msra.mxu0 %v661
      %779 = vmatmul.bf16.gmra.mxu0 %v671
      %v780 = vpop.f32.mrf.mxu0
      %v781 = vadd.f32 0.0, %v780
      %v782 = vpop.f32.mrf.mxu0
      %v783 = vadd.f32 0.0, %v782
      %784 = vdwg.mxu0
      %v785 = vadd.f32 %v525, %v683
      %v786 = vadd.f32 %v539, %v697
      %v787 = vadd.f32 %v553, %v711
      %v788 = vadd.f32 %v567, %v725
      %v789 = vadd.f32 %v581, %v739
      %v790 = vadd.f32 %v595, %v753
      %v791 = vadd.f32 %v609, %v767
      %v792 = vadd.f32 %v623, %v781
      %v793 = vadd.f32 %v527, %v685
      %v794 = vadd.f32 %v541, %v699
      %v795 = vadd.f32 %v555, %v713
      %v796 = vadd.f32 %v569, %v727
      %v797 = vadd.f32 %v583, %v741
      %v798 = vadd.f32 %v597, %v755
      %v799 = vadd.f32 %v611, %v769
      %v800 = vadd.f32 %v625, %v783
      %s801 = scalar_lea.vmem %s2, 24
      %v802 = vld [vmem:[%s801] sm:$0xf]
      %v803 = vld [vmem:[%s801 + $0x4] sm:$0xf]
      %v806 = vunpack.c.l.b16 %v802
      %v807 = vunpack.c.l.b16 %v803
      %v808 = vpack.c.b16 %v807, %v806
      %809 = vrot.lane.b32.xlu0 %v312, 101
      %v810 = vpop.permute.xlu0 %809
      %811 = vrot.lane.b32.xlu0 %v313, 101
      %v812 = vpop.permute.xlu0 %811
      %813 = vrot.lane.b32.xlu0 %v314, 101
      %v814 = vpop.permute.xlu0 %813
      %815 = vrot.lane.b32.xlu0 %v315, 101
      %v816 = vpop.permute.xlu0 %815
      %817 = vrot.lane.b32.xlu0 %v316, 101
      %v818 = vpop.permute.xlu0 %817
      %819 = vrot.lane.b32.xlu0 %v317, 101
      %v820 = vpop.permute.xlu0 %819
      %821 = vrot.lane.b32.xlu0 %v318, 101
      %v822 = vpop.permute.xlu0 %821
      %823 = vrot.lane.b32.xlu0 %v319, 101
      %v824 = vpop.permute.xlu0 %823
      %825 = vrot.lane.b32.xlu0 %v320, 101
      %v826 = vpop.permute.xlu0 %825
      %vm827 = vcmask 826368
      %v828 = vsel %vm827, %v810, %v812
      %v829 = vsel %vm827, %v812, %v814
      %v830 = vsel %vm827, %v814, %v816
      %v831 = vsel %vm827, %v816, %v818
      %v832 = vsel %vm827, %v818, %v820
      %v833 = vsel %vm827, %v820, %v822
      %v834 = vsel %vm827, %v822, %v824
      %v835 = vsel %vm827, %v824, %v826
      %v845 = vsel %vm356, %v808, 0
      %847 = vmatpush.bf16.msra.mxu0 0
      %848 = vmatpush.bf16.msra.mxu0 0
      %849 = vmatpush.bf16.msra.mxu0 0
      %850 = vmatpush.bf16.msra.mxu0 0
      %851 = vmatpush.bf16.msra.mxu0 0
      %852 = vmatpush.bf16.msra.mxu0 0
      %853 = vmatpush.bf16.msra.mxu0 0
      %854 = vmatpush.bf16.msra.mxu0 %v828
      %855 = vmatmul.bf16.gmra.mxu0 %v845
      %v856 = vpop.f32.mrf.mxu0
      %v857 = vadd.f32 0.0, %v856
      %v858 = vpop.f32.mrf.mxu0
      %v859 = vadd.f32 0.0, %v858
      %860 = vdwg.mxu0
      %861 = vmatpush.bf16.msra.mxu0 0
      %862 = vmatpush.bf16.msra.mxu0 0
      %863 = vmatpush.bf16.msra.mxu0 0
      %864 = vmatpush.bf16.msra.mxu0 0
      %865 = vmatpush.bf16.msra.mxu0 0
      %866 = vmatpush.bf16.msra.mxu0 0
      %867 = vmatpush.bf16.msra.mxu0 0
      %868 = vmatpush.bf16.msra.mxu0 %v829
      %869 = vmatmul.bf16.gmra.mxu0 %v845
      %v870 = vpop.f32.mrf.mxu0
      %v871 = vadd.f32 0.0, %v870
      %v872 = vpop.f32.mrf.mxu0
      %v873 = vadd.f32 0.0, %v872
      %874 = vdwg.mxu0
      %875 = vmatpush.bf16.msra.mxu0 0
      %876 = vmatpush.bf16.msra.mxu0 0
      %877 = vmatpush.bf16.msra.mxu0 0
      %878 = vmatpush.bf16.msra.mxu0 0
      %879 = vmatpush.bf16.msra.mxu0 0
      %880 = vmatpush.bf16.msra.mxu0 0
      %881 = vmatpush.bf16.msra.mxu0 0
      %882 = vmatpush.bf16.msra.mxu0 %v830
      %883 = vmatmul.bf16.gmra.mxu0 %v845
      %v884 = vpop.f32.mrf.mxu0
      %v885 = vadd.f32 0.0, %v884
      %v886 = vpop.f32.mrf.mxu0
      %v887 = vadd.f32 0.0, %v886
      %888 = vdwg.mxu0
      %889 = vmatpush.bf16.msra.mxu0 0
      %890 = vmatpush.bf16.msra.mxu0 0
      %891 = vmatpush.bf16.msra.mxu0 0
      %892 = vmatpush.bf16.msra.mxu0 0
      %893 = vmatpush.bf16.msra.mxu0 0
      %894 = vmatpush.bf16.msra.mxu0 0
      %895 = vmatpush.bf16.msra.mxu0 0
      %896 = vmatpush.bf16.msra.mxu0 %v831
      %897 = vmatmul.bf16.gmra.mxu0 %v845
      %v898 = vpop.f32.mrf.mxu0
      %v899 = vadd.f32 0.0, %v898
      %v900 = vpop.f32.mrf.mxu0
      %v901 = vadd.f32 0.0, %v900
      %902 = vdwg.mxu0
      %903 = vmatpush.bf16.msra.mxu0 0
      %904 = vmatpush.bf16.msra.mxu0 0
      %905 = vmatpush.bf16.msra.mxu0 0
      %906 = vmatpush.bf16.msra.mxu0 0
      %907 = vmatpush.bf16.msra.mxu0 0
      %908 = vmatpush.bf16.msra.mxu0 0
      %909 = vmatpush.bf16.msra.mxu0 0
      %910 = vmatpush.bf16.msra.mxu0 %v832
      %911 = vmatmul.bf16.gmra.mxu0 %v845
      %v912 = vpop.f32.mrf.mxu0
      %v913 = vadd.f32 0.0, %v912
      %v914 = vpop.f32.mrf.mxu0
      %v915 = vadd.f32 0.0, %v914
      %916 = vdwg.mxu0
      %917 = vmatpush.bf16.msra.mxu0 0
      %918 = vmatpush.bf16.msra.mxu0 0
      %919 = vmatpush.bf16.msra.mxu0 0
      %920 = vmatpush.bf16.msra.mxu0 0
      %921 = vmatpush.bf16.msra.mxu0 0
      %922 = vmatpush.bf16.msra.mxu0 0
      %923 = vmatpush.bf16.msra.mxu0 0
      %924 = vmatpush.bf16.msra.mxu0 %v833
      %925 = vmatmul.bf16.gmra.mxu0 %v845
      %v926 = vpop.f32.mrf.mxu0
      %v927 = vadd.f32 0.0, %v926
      %v928 = vpop.f32.mrf.mxu0
      %v929 = vadd.f32 0.0, %v928
      %930 = vdwg.mxu0
      %931 = vmatpush.bf16.msra.mxu0 0
      %932 = vmatpush.bf16.msra.mxu0 0
      %933 = vmatpush.bf16.msra.mxu0 0
      %934 = vmatpush.bf16.msra.mxu0 0
      %935 = vmatpush.bf16.msra.mxu0 0
      %936 = vmatpush.bf16.msra.mxu0 0
      %937 = vmatpush.bf16.msra.mxu0 0
      %938 = vmatpush.bf16.msra.mxu0 %v834
      %939 = vmatmul.bf16.gmra.mxu0 %v845
      %v940 = vpop.f32.mrf.mxu0
      %v941 = vadd.f32 0.0, %v940
      %v942 = vpop.f32.mrf.mxu0
      %v943 = vadd.f32 0.0, %v942
      %944 = vdwg.mxu0
      %945 = vmatpush.bf16.msra.mxu0 0
      %946 = vmatpush.bf16.msra.mxu0 0
      %947 = vmatpush.bf16.msra.mxu0 0
      %948 = vmatpush.bf16.msra.mxu0 0
      %949 = vmatpush.bf16.msra.mxu0 0
      %950 = vmatpush.bf16.msra.mxu0 0
      %951 = vmatpush.bf16.msra.mxu0 0
      %952 = vmatpush.bf16.msra.mxu0 %v835
      %953 = vmatmul.bf16.gmra.mxu0 %v845
      %v954 = vpop.f32.mrf.mxu0
      %v955 = vadd.f32 0.0, %v954
      %v956 = vpop.f32.mrf.mxu0
      %v957 = vadd.f32 0.0, %v956
      %958 = vdwg.mxu0
      %v959 = vadd.f32 %v785, %v857
      %v960 = vadd.f32 %v786, %v871
      %v961 = vadd.f32 %v787, %v885
      %v962 = vadd.f32 %v788, %v899
      %v963 = vadd.f32 %v789, %v913
      %v964 = vadd.f32 %v790, %v927
      %v965 = vadd.f32 %v791, %v941
      %v966 = vadd.f32 %v792, %v955
      %v967 = vadd.f32 %v793, %v859
      %v968 = vadd.f32 %v794, %v873
      %v969 = vadd.f32 %v795, %v887
      %v970 = vadd.f32 %v796, %v901
      %v971 = vadd.f32 %v797, %v915
      %v972 = vadd.f32 %v798, %v929
      %v973 = vadd.f32 %v799, %v943
      %v974 = vadd.f32 %v800, %v957
      %s975 = scalar_lea.vmem %s2, 32
      %v976 = vld [vmem:[%s975] sm:$0xf]
      %v977 = vld [vmem:[%s975 + $0x4] sm:$0xf]
      %v980 = vunpack.c.l.b16 %v976
      %v981 = vunpack.c.l.b16 %v977
      %v982 = vpack.c.b16 %v981, %v980
      %983 = vrot.lane.b32.xlu0 %v312, 100
      %v984 = vpop.permute.xlu0 %983
      %985 = vrot.lane.b32.xlu0 %v313, 100
      %v986 = vpop.permute.xlu0 %985
      %987 = vrot.lane.b32.xlu0 %v314, 100
      %v988 = vpop.permute.xlu0 %987
      %989 = vrot.lane.b32.xlu0 %v315, 100
      %v990 = vpop.permute.xlu0 %989
      %991 = vrot.lane.b32.xlu0 %v316, 100
      %v992 = vpop.permute.xlu0 %991
      %993 = vrot.lane.b32.xlu0 %v317, 100
      %v994 = vpop.permute.xlu0 %993
      %995 = vrot.lane.b32.xlu0 %v318, 100
      %v996 = vpop.permute.xlu0 %995
      %997 = vrot.lane.b32.xlu0 %v319, 100
      %v998 = vpop.permute.xlu0 %997
      %999 = vrot.lane.b32.xlu0 %v320, 100
      %v1000 = vpop.permute.xlu0 %999
      %vm1001 = vcmask 818176
      %v1002 = vsel %vm1001, %v984, %v986
      %v1003 = vsel %vm1001, %v986, %v988
      %v1004 = vsel %vm1001, %v988, %v990
      %v1005 = vsel %vm1001, %v990, %v992
      %v1006 = vsel %vm1001, %v992, %v994
      %v1007 = vsel %vm1001, %v994, %v996
      %v1008 = vsel %vm1001, %v996, %v998
      %v1009 = vsel %vm1001, %v998, %v1000
      %v1019 = vsel %vm356, %v982, 0
      %1021 = vmatpush.bf16.msra.mxu0 0
      %1022 = vmatpush.bf16.msra.mxu0 0
      %1023 = vmatpush.bf16.msra.mxu0 0
      %1024 = vmatpush.bf16.msra.mxu0 0
      %1025 = vmatpush.bf16.msra.mxu0 0
      %1026 = vmatpush.bf16.msra.mxu0 0
      %1027 = vmatpush.bf16.msra.mxu0 0
      %1028 = vmatpush.bf16.msra.mxu0 %v1002
      %1029 = vmatmul.bf16.gmra.mxu0 %v1019
      %v1030 = vpop.f32.mrf.mxu0
      %v1031 = vadd.f32 0.0, %v1030
      %v1032 = vpop.f32.mrf.mxu0
      %v1033 = vadd.f32 0.0, %v1032
      %1034 = vdwg.mxu0
      %1035 = vmatpush.bf16.msra.mxu0 0
      %1036 = vmatpush.bf16.msra.mxu0 0
      %1037 = vmatpush.bf16.msra.mxu0 0
      %1038 = vmatpush.bf16.msra.mxu0 0
      %1039 = vmatpush.bf16.msra.mxu0 0
      %1040 = vmatpush.bf16.msra.mxu0 0
      %1041 = vmatpush.bf16.msra.mxu0 0
      %1042 = vmatpush.bf16.msra.mxu0 %v1003
      %1043 = vmatmul.bf16.gmra.mxu0 %v1019
      %v1044 = vpop.f32.mrf.mxu0
      %v1045 = vadd.f32 0.0, %v1044
      %v1046 = vpop.f32.mrf.mxu0
      %v1047 = vadd.f32 0.0, %v1046
      %1048 = vdwg.mxu0
      %1049 = vmatpush.bf16.msra.mxu0 0
      %1050 = vmatpush.bf16.msra.mxu0 0
      %1051 = vmatpush.bf16.msra.mxu0 0
      %1052 = vmatpush.bf16.msra.mxu0 0
      %1053 = vmatpush.bf16.msra.mxu0 0
      %1054 = vmatpush.bf16.msra.mxu0 0
      %1055 = vmatpush.bf16.msra.mxu0 0
      %1056 = vmatpush.bf16.msra.mxu0 %v1004
      %1057 = vmatmul.bf16.gmra.mxu0 %v1019
      %v1058 = vpop.f32.mrf.mxu0
      %v1059 = vadd.f32 0.0, %v1058
      %v1060 = vpop.f32.mrf.mxu0
      %v1061 = vadd.f32 0.0, %v1060
      %1062 = vdwg.mxu0
      %1063 = vmatpush.bf16.msra.mxu0 0
      %1064 = vmatpush.bf16.msra.mxu0 0
      %1065 = vmatpush.bf16.msra.mxu0 0
      %1066 = vmatpush.bf16.msra.mxu0 0
      %1067 = vmatpush.bf16.msra.mxu0 0
      %1068 = vmatpush.bf16.msra.mxu0 0
      %1069 = vmatpush.bf16.msra.mxu0 0
      %1070 = vmatpush.bf16.msra.mxu0 %v1005
      %1071 = vmatmul.bf16.gmra.mxu0 %v1019
      %v1072 = vpop.f32.mrf.mxu0
      %v1073 = vadd.f32 0.0, %v1072
      %v1074 = vpop.f32.mrf.mxu0
      %v1075 = vadd.f32 0.0, %v1074
      %1076 = vdwg.mxu0
      %1077 = vmatpush.bf16.msra.mxu0 0
      %1078 = vmatpush.bf16.msra.mxu0 0
      %1079 = vmatpush.bf16.msra.mxu0 0
      %1080 = vmatpush.bf16.msra.mxu0 0
      %1081 = vmatpush.bf16.msra.mxu0 0
      %1082 = vmatpush.bf16.msra.mxu0 0
      %1083 = vmatpush.bf16.msra.mxu0 0
      %1084 = vmatpush.bf16.msra.mxu0 %v1006
      %1085 = vmatmul.bf16.gmra.mxu0 %v1019
      %v1086 = vpop.f32.mrf.mxu0
      %v1087 = vadd.f32 0.0, %v1086
      %v1088 = vpop.f32.mrf.mxu0
      %v1089 = vadd.f32 0.0, %v1088
      %1090 = vdwg.mxu0
      %1091 = vmatpush.bf16.msra.mxu0 0
      %1092 = vmatpush.bf16.msra.mxu0 0
      %1093 = vmatpush.bf16.msra.mxu0 0
      %1094 = vmatpush.bf16.msra.mxu0 0
      %1095 = vmatpush.bf16.msra.mxu0 0
      %1096 = vmatpush.bf16.msra.mxu0 0
      %1097 = vmatpush.bf16.msra.mxu0 0
      %1098 = vmatpush.bf16.msra.mxu0 %v1007
      %1099 = vmatmul.bf16.gmra.mxu0 %v1019
      %v1100 = vpop.f32.mrf.mxu0
      %v1101 = vadd.f32 0.0, %v1100
      %v1102 = vpop.f32.mrf.mxu0
      %v1103 = vadd.f32 0.0, %v1102
      %1104 = vdwg.mxu0
      %1105 = vmatpush.bf16.msra.mxu0 0
      %1106 = vmatpush.bf16.msra.mxu0 0
      %1107 = vmatpush.bf16.msra.mxu0 0
      %1108 = vmatpush.bf16.msra.mxu0 0
      %1109 = vmatpush.bf16.msra.mxu0 0
      %1110 = vmatpush.bf16.msra.mxu0 0
      %1111 = vmatpush.bf16.msra.mxu0 0
      %1112 = vmatpush.bf16.msra.mxu0 %v1008
      %1113 = vmatmul.bf16.gmra.mxu0 %v1019
      %v1114 = vpop.f32.mrf.mxu0
      %v1115 = vadd.f32 0.0, %v1114
      %v1116 = vpop.f32.mrf.mxu0
      %v1117 = vadd.f32 0.0, %v1116
      %1118 = vdwg.mxu0
      %1119 = vmatpush.bf16.msra.mxu0 0
      %1120 = vmatpush.bf16.msra.mxu0 0
      %1121 = vmatpush.bf16.msra.mxu0 0
      %1122 = vmatpush.bf16.msra.mxu0 0
      %1123 = vmatpush.bf16.msra.mxu0 0
      %1124 = vmatpush.bf16.msra.mxu0 0
      %1125 = vmatpush.bf16.msra.mxu0 0
      %1126 = vmatpush.bf16.msra.mxu0 %v1009
      %1127 = vmatmul.bf16.gmra.mxu0 %v1019
      %v1128 = vpop.f32.mrf.mxu0
      %v1129 = vadd.f32 0.0, %v1128
      %v1130 = vpop.f32.mrf.mxu0
      %v1131 = vadd.f32 0.0, %v1130
      %1132 = vdwg.mxu0
      %v1133 = vadd.f32 %v959, %v1031
      %v1134 = vadd.f32 %v960, %v1045
      %v1135 = vadd.f32 %v961, %v1059
      %v1136 = vadd.f32 %v962, %v1073
      %v1137 = vadd.f32 %v963, %v1087
      %v1138 = vadd.f32 %v964, %v1101
      %v1139 = vadd.f32 %v965, %v1115
      %v1140 = vadd.f32 %v966, %v1129
      %v1141 = vadd.f32 %v967, %v1033
      %v1142 = vadd.f32 %v968, %v1047
      %v1143 = vadd.f32 %v969, %v1061
      %v1144 = vadd.f32 %v970, %v1075
      %v1145 = vadd.f32 %v971, %v1089
      %v1146 = vadd.f32 %v972, %v1103
      %v1147 = vadd.f32 %v973, %v1117
      %v1148 = vadd.f32 %v974, %v1131
      %s1149 = scalar_lea.vmem %s2, 40
      %v1150 = vld [vmem:[%s1149] sm:$0xf]
      %v1151 = vld [vmem:[%s1149 + $0x4] sm:$0xf]
      %v1154 = vunpack.c.l.b16 %v1150
      %v1155 = vunpack.c.l.b16 %v1151
      %v1156 = vpack.c.b16 %v1155, %v1154
      %1157 = vrot.lane.b32.xlu0 %v312, 99
      %v1158 = vpop.permute.xlu0 %1157
      %1159 = vrot.lane.b32.xlu0 %v313, 99
      %v1160 = vpop.permute.xlu0 %1159
      %1161 = vrot.lane.b32.xlu0 %v314, 99
      %v1162 = vpop.permute.xlu0 %1161
      %1163 = vrot.lane.b32.xlu0 %v315, 99
      %v1164 = vpop.permute.xlu0 %1163
      %1165 = vrot.lane.b32.xlu0 %v316, 99
      %v1166 = vpop.permute.xlu0 %1165
      %1167 = vrot.lane.b32.xlu0 %v317, 99
      %v1168 = vpop.permute.xlu0 %1167
      %1169 = vrot.lane.b32.xlu0 %v318, 99
      %v1170 = vpop.permute.xlu0 %1169
      %1171 = vrot.lane.b32.xlu0 %v319, 99
      %v1172 = vpop.permute.xlu0 %1171
      %1173 = vrot.lane.b32.xlu0 %v320, 99
      %v1174 = vpop.permute.xlu0 %1173
      %vm1175 = vcmask 809984
      %v1176 = vsel %vm1175, %v1158, %v1160
      %v1177 = vsel %vm1175, %v1160, %v1162
      %v1178 = vsel %vm1175, %v1162, %v1164
      %v1179 = vsel %vm1175, %v1164, %v1166
      %v1180 = vsel %vm1175, %v1166, %v1168
      %v1181 = vsel %vm1175, %v1168, %v1170
      %v1182 = vsel %vm1175, %v1170, %v1172
      %v1183 = vsel %vm1175, %v1172, %v1174
      %v1193 = vsel %vm356, %v1156, 0
      %1195 = vmatpush.bf16.msra.mxu0 0
      %1196 = vmatpush.bf16.msra.mxu0 0
      %1197 = vmatpush.bf16.msra.mxu0 0
      %1198 = vmatpush.bf16.msra.mxu0 0
      %1199 = vmatpush.bf16.msra.mxu0 0
      %1200 = vmatpush.bf16.msra.mxu0 0
      %1201 = vmatpush.bf16.msra.mxu0 0
      %1202 = vmatpush.bf16.msra.mxu0 %v1176
      %1203 = vmatmul.bf16.gmra.mxu0 %v1193
      %v1204 = vpop.f32.mrf.mxu0
      %v1205 = vadd.f32 0.0, %v1204
      %v1206 = vpop.f32.mrf.mxu0
      %v1207 = vadd.f32 0.0, %v1206
      %1208 = vdwg.mxu0
      %1209 = vmatpush.bf16.msra.mxu0 0
      %1210 = vmatpush.bf16.msra.mxu0 0
      %1211 = vmatpush.bf16.msra.mxu0 0
      %1212 = vmatpush.bf16.msra.mxu0 0
      %1213 = vmatpush.bf16.msra.mxu0 0
      %1214 = vmatpush.bf16.msra.mxu0 0
      %1215 = vmatpush.bf16.msra.mxu0 0
      %1216 = vmatpush.bf16.msra.mxu0 %v1177
      %1217 = vmatmul.bf16.gmra.mxu0 %v1193
      %v1218 = vpop.f32.mrf.mxu0
      %v1219 = vadd.f32 0.0, %v1218
      %v1220 = vpop.f32.mrf.mxu0
      %v1221 = vadd.f32 0.0, %v1220
      %1222 = vdwg.mxu0
      %1223 = vmatpush.bf16.msra.mxu0 0
      %1224 = vmatpush.bf16.msra.mxu0 0
      %1225 = vmatpush.bf16.msra.mxu0 0
      %1226 = vmatpush.bf16.msra.mxu0 0
      %1227 = vmatpush.bf16.msra.mxu0 0
      %1228 = vmatpush.bf16.msra.mxu0 0
      %1229 = vmatpush.bf16.msra.mxu0 0
      %1230 = vmatpush.bf16.msra.mxu0 %v1178
      %1231 = vmatmul.bf16.gmra.mxu0 %v1193
      %v1232 = vpop.f32.mrf.mxu0
      %v1233 = vadd.f32 0.0, %v1232
      %v1234 = vpop.f32.mrf.mxu0
      %v1235 = vadd.f32 0.0, %v1234
      %1236 = vdwg.mxu0
      %1237 = vmatpush.bf16.msra.mxu0 0
      %1238 = vmatpush.bf16.msra.mxu0 0
      %1239 = vmatpush.bf16.msra.mxu0 0
      %1240 = vmatpush.bf16.msra.mxu0 0
      %1241 = vmatpush.bf16.msra.mxu0 0
      %1242 = vmatpush.bf16.msra.mxu0 0
      %1243 = vmatpush.bf16.msra.mxu0 0
      %1244 = vmatpush.bf16.msra.mxu0 %v1179
      %1245 = vmatmul.bf16.gmra.mxu0 %v1193
      %v1246 = vpop.f32.mrf.mxu0
      %v1247 = vadd.f32 0.0, %v1246
      %v1248 = vpop.f32.mrf.mxu0
      %v1249 = vadd.f32 0.0, %v1248
      %1250 = vdwg.mxu0
      %1251 = vmatpush.bf16.msra.mxu0 0
      %1252 = vmatpush.bf16.msra.mxu0 0
      %1253 = vmatpush.bf16.msra.mxu0 0
      %1254 = vmatpush.bf16.msra.mxu0 0
      %1255 = vmatpush.bf16.msra.mxu0 0
      %1256 = vmatpush.bf16.msra.mxu0 0
      %1257 = vmatpush.bf16.msra.mxu0 0
      %1258 = vmatpush.bf16.msra.mxu0 %v1180
      %1259 = vmatmul.bf16.gmra.mxu0 %v1193
      %v1260 = vpop.f32.mrf.mxu0
      %v1261 = vadd.f32 0.0, %v1260
      %v1262 = vpop.f32.mrf.mxu0
      %v1263 = vadd.f32 0.0, %v1262
      %1264 = vdwg.mxu0
      %1265 = vmatpush.bf16.msra.mxu0 0
      %1266 = vmatpush.bf16.msra.mxu0 0
      %1267 = vmatpush.bf16.msra.mxu0 0
      %1268 = vmatpush.bf16.msra.mxu0 0
      %1269 = vmatpush.bf16.msra.mxu0 0
      %1270 = vmatpush.bf16.msra.mxu0 0
      %1271 = vmatpush.bf16.msra.mxu0 0
      %1272 = vmatpush.bf16.msra.mxu0 %v1181
      %1273 = vmatmul.bf16.gmra.mxu0 %v1193
      %v1274 = vpop.f32.mrf.mxu0
      %v1275 = vadd.f32 0.0, %v1274
      %v1276 = vpop.f32.mrf.mxu0
      %v1277 = vadd.f32 0.0, %v1276
      %1278 = vdwg.mxu0
      %1279 = vmatpush.bf16.msra.mxu0 0
      %1280 = vmatpush.bf16.msra.mxu0 0
      %1281 = vmatpush.bf16.msra.mxu0 0
      %1282 = vmatpush.bf16.msra.mxu0 0
      %1283 = vmatpush.bf16.msra.mxu0 0
      %1284 = vmatpush.bf16.msra.mxu0 0
      %1285 = vmatpush.bf16.msra.mxu0 0
      %1286 = vmatpush.bf16.msra.mxu0 %v1182
      %1287 = vmatmul.bf16.gmra.mxu0 %v1193
      %v1288 = vpop.f32.mrf.mxu0
      %v1289 = vadd.f32 0.0, %v1288
      %v1290 = vpop.f32.mrf.mxu0
      %v1291 = vadd.f32 0.0, %v1290
      %1292 = vdwg.mxu0
      %1293 = vmatpush.bf16.msra.mxu0 0
      %1294 = vmatpush.bf16.msra.mxu0 0
      %1295 = vmatpush.bf16.msra.mxu0 0
      %1296 = vmatpush.bf16.msra.mxu0 0
      %1297 = vmatpush.bf16.msra.mxu0 0
      %1298 = vmatpush.bf16.msra.mxu0 0
      %1299 = vmatpush.bf16.msra.mxu0 0
      %1300 = vmatpush.bf16.msra.mxu0 %v1183
      %1301 = vmatmul.bf16.gmra.mxu0 %v1193
      %v1302 = vpop.f32.mrf.mxu0
      %v1303 = vadd.f32 0.0, %v1302
      %v1304 = vpop.f32.mrf.mxu0
      %v1305 = vadd.f32 0.0, %v1304
      %1306 = vdwg.mxu0
      %v1307 = vadd.f32 %v1133, %v1205
      %v1308 = vadd.f32 %v1134, %v1219
      %v1309 = vadd.f32 %v1135, %v1233
      %v1310 = vadd.f32 %v1136, %v1247
      %v1311 = vadd.f32 %v1137, %v1261
      %v1312 = vadd.f32 %v1138, %v1275
      %v1313 = vadd.f32 %v1139, %v1289
      %v1314 = vadd.f32 %v1140, %v1303
      %v1315 = vadd.f32 %v1141, %v1207
      %v1316 = vadd.f32 %v1142, %v1221
      %v1317 = vadd.f32 %v1143, %v1235
      %v1318 = vadd.f32 %v1144, %v1249
      %v1319 = vadd.f32 %v1145, %v1263
      %v1320 = vadd.f32 %v1146, %v1277
      %v1321 = vadd.f32 %v1147, %v1291
      %v1322 = vadd.f32 %v1148, %v1305
      %s1323 = scalar_lea.vmem %s2, 48
      %v1324 = vld [vmem:[%s1323] sm:$0xf]
      %v1325 = vld [vmem:[%s1323 + $0x4] sm:$0xf]
      %v1328 = vunpack.c.l.b16 %v1324
      %v1329 = vunpack.c.l.b16 %v1325
      %v1330 = vpack.c.b16 %v1329, %v1328
      %1331 = vrot.lane.b32.xlu0 %v312, 91
      %v1332 = vpop.permute.xlu0 %1331
      %1333 = vrot.lane.b32.xlu0 %v313, 91
      %v1334 = vpop.permute.xlu0 %1333
      %1335 = vrot.lane.b32.xlu0 %v314, 91
      %v1336 = vpop.permute.xlu0 %1335
      %1337 = vrot.lane.b32.xlu0 %v315, 91
      %v1338 = vpop.permute.xlu0 %1337
      %1339 = vrot.lane.b32.xlu0 %v316, 91
      %v1340 = vpop.permute.xlu0 %1339
      %1341 = vrot.lane.b32.xlu0 %v317, 91
      %v1342 = vpop.permute.xlu0 %1341
      %1343 = vrot.lane.b32.xlu0 %v318, 91
      %v1344 = vpop.permute.xlu0 %1343
      %1345 = vrot.lane.b32.xlu0 %v319, 91
      %v1346 = vpop.permute.xlu0 %1345
      %1347 = vrot.lane.b32.xlu0 %v320, 91
      %v1348 = vpop.permute.xlu0 %1347
      %vm1349 = vcmask 744448
      %v1350 = vsel %vm1349, %v1332, %v1334
      %v1351 = vsel %vm1349, %v1334, %v1336
      %v1352 = vsel %vm1349, %v1336, %v1338
      %v1353 = vsel %vm1349, %v1338, %v1340
      %v1354 = vsel %vm1349, %v1340, %v1342
      %v1355 = vsel %vm1349, %v1342, %v1344
      %v1356 = vsel %vm1349, %v1344, %v1346
      %v1357 = vsel %vm1349, %v1346, %v1348
      %v1367 = vsel %vm356, %v1330, 0
      %1369 = vmatpush.bf16.msra.mxu0 0
      %1370 = vmatpush.bf16.msra.mxu0 0
      %1371 = vmatpush.bf16.msra.mxu0 0
      %1372 = vmatpush.bf16.msra.mxu0 0
      %1373 = vmatpush.bf16.msra.mxu0 0
      %1374 = vmatpush.bf16.msra.mxu0 0
      %1375 = vmatpush.bf16.msra.mxu0 0
      %1376 = vmatpush.bf16.msra.mxu0 %v1350
      %1377 = vmatmul.bf16.gmra.mxu0 %v1367
      %v1378 = vpop.f32.mrf.mxu0
      %v1379 = vadd.f32 0.0, %v1378
      %v1380 = vpop.f32.mrf.mxu0
      %v1381 = vadd.f32 0.0, %v1380
      %1382 = vdwg.mxu0
      %1383 = vmatpush.bf16.msra.mxu0 0
      %1384 = vmatpush.bf16.msra.mxu0 0
      %1385 = vmatpush.bf16.msra.mxu0 0
      %1386 = vmatpush.bf16.msra.mxu0 0
      %1387 = vmatpush.bf16.msra.mxu0 0
      %1388 = vmatpush.bf16.msra.mxu0 0
      %1389 = vmatpush.bf16.msra.mxu0 0
      %1390 = vmatpush.bf16.msra.mxu0 %v1351
      %1391 = vmatmul.bf16.gmra.mxu0 %v1367
      %v1392 = vpop.f32.mrf.mxu0
      %v1393 = vadd.f32 0.0, %v1392
      %v1394 = vpop.f32.mrf.mxu0
      %v1395 = vadd.f32 0.0, %v1394
      %1396 = vdwg.mxu0
      %1397 = vmatpush.bf16.msra.mxu0 0
      %1398 = vmatpush.bf16.msra.mxu0 0
      %1399 = vmatpush.bf16.msra.mxu0 0
      %1400 = vmatpush.bf16.msra.mxu0 0
      %1401 = vmatpush.bf16.msra.mxu0 0
      %1402 = vmatpush.bf16.msra.mxu0 0
      %1403 = vmatpush.bf16.msra.mxu0 0
      %1404 = vmatpush.bf16.msra.mxu0 %v1352
      %1405 = vmatmul.bf16.gmra.mxu0 %v1367
      %v1406 = vpop.f32.mrf.mxu0
      %v1407 = vadd.f32 0.0, %v1406
      %v1408 = vpop.f32.mrf.mxu0
      %v1409 = vadd.f32 0.0, %v1408
      %1410 = vdwg.mxu0
      %1411 = vmatpush.bf16.msra.mxu0 0
      %1412 = vmatpush.bf16.msra.mxu0 0
      %1413 = vmatpush.bf16.msra.mxu0 0
      %1414 = vmatpush.bf16.msra.mxu0 0
      %1415 = vmatpush.bf16.msra.mxu0 0
      %1416 = vmatpush.bf16.msra.mxu0 0
      %1417 = vmatpush.bf16.msra.mxu0 0
      %1418 = vmatpush.bf16.msra.mxu0 %v1353
      %1419 = vmatmul.bf16.gmra.mxu0 %v1367
      %v1420 = vpop.f32.mrf.mxu0
      %v1421 = vadd.f32 0.0, %v1420
      %v1422 = vpop.f32.mrf.mxu0
      %v1423 = vadd.f32 0.0, %v1422
      %1424 = vdwg.mxu0
      %1425 = vmatpush.bf16.msra.mxu0 0
      %1426 = vmatpush.bf16.msra.mxu0 0
      %1427 = vmatpush.bf16.msra.mxu0 0
      %1428 = vmatpush.bf16.msra.mxu0 0
      %1429 = vmatpush.bf16.msra.mxu0 0
      %1430 = vmatpush.bf16.msra.mxu0 0
      %1431 = vmatpush.bf16.msra.mxu0 0
      %1432 = vmatpush.bf16.msra.mxu0 %v1354
      %1433 = vmatmul.bf16.gmra.mxu0 %v1367
      %v1434 = vpop.f32.mrf.mxu0
      %v1435 = vadd.f32 0.0, %v1434
      %v1436 = vpop.f32.mrf.mxu0
      %v1437 = vadd.f32 0.0, %v1436
      %1438 = vdwg.mxu0
      %1439 = vmatpush.bf16.msra.mxu0 0
      %1440 = vmatpush.bf16.msra.mxu0 0
      %1441 = vmatpush.bf16.msra.mxu0 0
      %1442 = vmatpush.bf16.msra.mxu0 0
      %1443 = vmatpush.bf16.msra.mxu0 0
      %1444 = vmatpush.bf16.msra.mxu0 0
      %1445 = vmatpush.bf16.msra.mxu0 0
      %1446 = vmatpush.bf16.msra.mxu0 %v1355
      %1447 = vmatmul.bf16.gmra.mxu0 %v1367
      %v1448 = vpop.f32.mrf.mxu0
      %v1449 = vadd.f32 0.0, %v1448
      %v1450 = vpop.f32.mrf.mxu0
      %v1451 = vadd.f32 0.0, %v1450
      %1452 = vdwg.mxu0
      %1453 = vmatpush.bf16.msra.mxu0 0
      %1454 = vmatpush.bf16.msra.mxu0 0
      %1455 = vmatpush.bf16.msra.mxu0 0
      %1456 = vmatpush.bf16.msra.mxu0 0
      %1457 = vmatpush.bf16.msra.mxu0 0
      %1458 = vmatpush.bf16.msra.mxu0 0
      %1459 = vmatpush.bf16.msra.mxu0 0
      %1460 = vmatpush.bf16.msra.mxu0 %v1356
      %1461 = vmatmul.bf16.gmra.mxu0 %v1367
      %v1462 = vpop.f32.mrf.mxu0
      %v1463 = vadd.f32 0.0, %v1462
      %v1464 = vpop.f32.mrf.mxu0
      %v1465 = vadd.f32 0.0, %v1464
      %1466 = vdwg.mxu0
      %1467 = vmatpush.bf16.msra.mxu0 0
      %1468 = vmatpush.bf16.msra.mxu0 0
      %1469 = vmatpush.bf16.msra.mxu0 0
      %1470 = vmatpush.bf16.msra.mxu0 0
      %1471 = vmatpush.bf16.msra.mxu0 0
      %1472 = vmatpush.bf16.msra.mxu0 0
      %1473 = vmatpush.bf16.msra.mxu0 0
      %1474 = vmatpush.bf16.msra.mxu0 %v1357
      %1475 = vmatmul.bf16.gmra.mxu0 %v1367
      %v1476 = vpop.f32.mrf.mxu0
      %v1477 = vadd.f32 0.0, %v1476
      %v1478 = vpop.f32.mrf.mxu0
      %v1479 = vadd.f32 0.0, %v1478
      %1480 = vdwg.mxu0
      %v1481 = vadd.f32 %v1307, %v1379
      %v1482 = vadd.f32 %v1308, %v1393
      %v1483 = vadd.f32 %v1309, %v1407
      %v1484 = vadd.f32 %v1310, %v1421
      %v1485 = vadd.f32 %v1311, %v1435
      %v1486 = vadd.f32 %v1312, %v1449
      %v1487 = vadd.f32 %v1313, %v1463
      %v1488 = vadd.f32 %v1314, %v1477
      %v1489 = vadd.f32 %v1315, %v1381
      %v1490 = vadd.f32 %v1316, %v1395
      %v1491 = vadd.f32 %v1317, %v1409
      %v1492 = vadd.f32 %v1318, %v1423
      %v1493 = vadd.f32 %v1319, %v1437
      %v1494 = vadd.f32 %v1320, %v1451
      %v1495 = vadd.f32 %v1321, %v1465
      %v1496 = vadd.f32 %v1322, %v1479
      %s1497 = scalar_lea.vmem %s2, 56
      %v1498 = vld [vmem:[%s1497] sm:$0xf]
      %v1499 = vld [vmem:[%s1497 + $0x4] sm:$0xf]
      %v1502 = vunpack.c.l.b16 %v1498
      %v1503 = vunpack.c.l.b16 %v1499
      %v1504 = vpack.c.b16 %v1503, %v1502
      %1505 = vrot.lane.b32.xlu0 %v312, 90
      %v1506 = vpop.permute.xlu0 %1505
      %1507 = vrot.lane.b32.xlu0 %v313, 90
      %v1508 = vpop.permute.xlu0 %1507
      %1509 = vrot.lane.b32.xlu0 %v314, 90
      %v1510 = vpop.permute.xlu0 %1509
      %1511 = vrot.lane.b32.xlu0 %v315, 90
      %v1512 = vpop.permute.xlu0 %1511
      %1513 = vrot.lane.b32.xlu0 %v316, 90
      %v1514 = vpop.permute.xlu0 %1513
      %1515 = vrot.lane.b32.xlu0 %v317, 90
      %v1516 = vpop.permute.xlu0 %1515
      %1517 = vrot.lane.b32.xlu0 %v318, 90
      %v1518 = vpop.permute.xlu0 %1517
      %1519 = vrot.lane.b32.xlu0 %v319, 90
      %v1520 = vpop.permute.xlu0 %1519
      %1521 = vrot.lane.b32.xlu0 %v320, 90
      %v1522 = vpop.permute.xlu0 %1521
      %vm1523 = vcmask 736256
      %v1524 = vsel %vm1523, %v1506, %v1508
      %v1525 = vsel %vm1523, %v1508, %v1510
      %v1526 = vsel %vm1523, %v1510, %v1512
      %v1527 = vsel %vm1523, %v1512, %v1514
      %v1528 = vsel %vm1523, %v1514, %v1516
      %v1529 = vsel %vm1523, %v1516, %v1518
      %v1530 = vsel %vm1523, %v1518, %v1520
      %v1531 = vsel %vm1523, %v1520, %v1522
      %v1541 = vsel %vm356, %v1504, 0
      %1543 = vmatpush.bf16.msra.mxu0 0
      %1544 = vmatpush.bf16.msra.mxu0 0
      %1545 = vmatpush.bf16.msra.mxu0 0
      %1546 = vmatpush.bf16.msra.mxu0 0
      %1547 = vmatpush.bf16.msra.mxu0 0
      %1548 = vmatpush.bf16.msra.mxu0 0
      %1549 = vmatpush.bf16.msra.mxu0 0
      %1550 = vmatpush.bf16.msra.mxu0 %v1524
      %1551 = vmatmul.bf16.gmra.mxu0 %v1541
      %v1552 = vpop.f32.mrf.mxu0
      %v1553 = vadd.f32 0.0, %v1552
      %v1554 = vpop.f32.mrf.mxu0
      %v1555 = vadd.f32 0.0, %v1554
      %1556 = vdwg.mxu0
      %1557 = vmatpush.bf16.msra.mxu0 0
      %1558 = vmatpush.bf16.msra.mxu0 0
      %1559 = vmatpush.bf16.msra.mxu0 0
      %1560 = vmatpush.bf16.msra.mxu0 0
      %1561 = vmatpush.bf16.msra.mxu0 0
      %1562 = vmatpush.bf16.msra.mxu0 0
      %1563 = vmatpush.bf16.msra.mxu0 0
      %1564 = vmatpush.bf16.msra.mxu0 %v1525
      %1565 = vmatmul.bf16.gmra.mxu0 %v1541
      %v1566 = vpop.f32.mrf.mxu0
      %v1567 = vadd.f32 0.0, %v1566
      %v1568 = vpop.f32.mrf.mxu0
      %v1569 = vadd.f32 0.0, %v1568
      %1570 = vdwg.mxu0
      %1571 = vmatpush.bf16.msra.mxu0 0
      %1572 = vmatpush.bf16.msra.mxu0 0
      %1573 = vmatpush.bf16.msra.mxu0 0
      %1574 = vmatpush.bf16.msra.mxu0 0
      %1575 = vmatpush.bf16.msra.mxu0 0
      %1576 = vmatpush.bf16.msra.mxu0 0
      %1577 = vmatpush.bf16.msra.mxu0 0
      %1578 = vmatpush.bf16.msra.mxu0 %v1526
      %1579 = vmatmul.bf16.gmra.mxu0 %v1541
      %v1580 = vpop.f32.mrf.mxu0
      %v1581 = vadd.f32 0.0, %v1580
      %v1582 = vpop.f32.mrf.mxu0
      %v1583 = vadd.f32 0.0, %v1582
      %1584 = vdwg.mxu0
      %1585 = vmatpush.bf16.msra.mxu0 0
      %1586 = vmatpush.bf16.msra.mxu0 0
      %1587 = vmatpush.bf16.msra.mxu0 0
      %1588 = vmatpush.bf16.msra.mxu0 0
      %1589 = vmatpush.bf16.msra.mxu0 0
      %1590 = vmatpush.bf16.msra.mxu0 0
      %1591 = vmatpush.bf16.msra.mxu0 0
      %1592 = vmatpush.bf16.msra.mxu0 %v1527
      %1593 = vmatmul.bf16.gmra.mxu0 %v1541
      %v1594 = vpop.f32.mrf.mxu0
      %v1595 = vadd.f32 0.0, %v1594
      %v1596 = vpop.f32.mrf.mxu0
      %v1597 = vadd.f32 0.0, %v1596
      %1598 = vdwg.mxu0
      %1599 = vmatpush.bf16.msra.mxu0 0
      %1600 = vmatpush.bf16.msra.mxu0 0
      %1601 = vmatpush.bf16.msra.mxu0 0
      %1602 = vmatpush.bf16.msra.mxu0 0
      %1603 = vmatpush.bf16.msra.mxu0 0
      %1604 = vmatpush.bf16.msra.mxu0 0
      %1605 = vmatpush.bf16.msra.mxu0 0
      %1606 = vmatpush.bf16.msra.mxu0 %v1528
      %1607 = vmatmul.bf16.gmra.mxu0 %v1541
      %v1608 = vpop.f32.mrf.mxu0
      %v1609 = vadd.f32 0.0, %v1608
      %v1610 = vpop.f32.mrf.mxu0
      %v1611 = vadd.f32 0.0, %v1610
      %1612 = vdwg.mxu0
      %1613 = vmatpush.bf16.msra.mxu0 0
      %1614 = vmatpush.bf16.msra.mxu0 0
      %1615 = vmatpush.bf16.msra.mxu0 0
      %1616 = vmatpush.bf16.msra.mxu0 0
      %1617 = vmatpush.bf16.msra.mxu0 0
      %1618 = vmatpush.bf16.msra.mxu0 0
      %1619 = vmatpush.bf16.msra.mxu0 0
      %1620 = vmatpush.bf16.msra.mxu0 %v1529
      %1621 = vmatmul.bf16.gmra.mxu0 %v1541
      %v1622 = vpop.f32.mrf.mxu0
      %v1623 = vadd.f32 0.0, %v1622
      %v1624 = vpop.f32.mrf.mxu0
      %v1625 = vadd.f32 0.0, %v1624
      %1626 = vdwg.mxu0
      %1627 = vmatpush.bf16.msra.mxu0 0
      %1628 = vmatpush.bf16.msra.mxu0 0
      %1629 = vmatpush.bf16.msra.mxu0 0
      %1630 = vmatpush.bf16.msra.mxu0 0
      %1631 = vmatpush.bf16.msra.mxu0 0
      %1632 = vmatpush.bf16.msra.mxu0 0
      %1633 = vmatpush.bf16.msra.mxu0 0
      %1634 = vmatpush.bf16.msra.mxu0 %v1530
      %1635 = vmatmul.bf16.gmra.mxu0 %v1541
      %v1636 = vpop.f32.mrf.mxu0
      %v1637 = vadd.f32 0.0, %v1636
      %v1638 = vpop.f32.mrf.mxu0
      %v1639 = vadd.f32 0.0, %v1638
      %1640 = vdwg.mxu0
      %1641 = vmatpush.bf16.msra.mxu0 0
      %1642 = vmatpush.bf16.msra.mxu0 0
      %1643 = vmatpush.bf16.msra.mxu0 0
      %1644 = vmatpush.bf16.msra.mxu0 0
      %1645 = vmatpush.bf16.msra.mxu0 0
      %1646 = vmatpush.bf16.msra.mxu0 0
      %1647 = vmatpush.bf16.msra.mxu0 0
      %1648 = vmatpush.bf16.msra.mxu0 %v1531
      %1649 = vmatmul.bf16.gmra.mxu0 %v1541
      %v1650 = vpop.f32.mrf.mxu0
      %v1651 = vadd.f32 0.0, %v1650
      %v1652 = vpop.f32.mrf.mxu0
      %v1653 = vadd.f32 0.0, %v1652
      %1654 = vdwg.mxu0
      %v1655 = vadd.f32 %v1481, %v1553
      %v1656 = vadd.f32 %v1482, %v1567
      %v1657 = vadd.f32 %v1483, %v1581
      %v1658 = vadd.f32 %v1484, %v1595
      %v1659 = vadd.f32 %v1485, %v1609
      %v1660 = vadd.f32 %v1486, %v1623
      %v1661 = vadd.f32 %v1487, %v1637
      %v1662 = vadd.f32 %v1488, %v1651
      %v1663 = vadd.f32 %v1489, %v1555
      %v1664 = vadd.f32 %v1490, %v1569
      %v1665 = vadd.f32 %v1491, %v1583
      %v1666 = vadd.f32 %v1492, %v1597
      %v1667 = vadd.f32 %v1493, %v1611
      %v1668 = vadd.f32 %v1494, %v1625
      %v1669 = vadd.f32 %v1495, %v1639
      %v1670 = vadd.f32 %v1496, %v1653
      %s1671 = scalar_lea.vmem %s2, 64
      %v1672 = vld [vmem:[%s1671] sm:$0xf]
      %v1673 = vld [vmem:[%s1671 + $0x4] sm:$0xf]
      %v1676 = vunpack.c.l.b16 %v1672
      %v1677 = vunpack.c.l.b16 %v1673
      %v1678 = vpack.c.b16 %v1677, %v1676
      %1679 = vrot.lane.b32.xlu0 %v312, 89
      %v1680 = vpop.permute.xlu0 %1679
      %1681 = vrot.lane.b32.xlu0 %v313, 89
      %v1682 = vpop.permute.xlu0 %1681
      %1683 = vrot.lane.b32.xlu0 %v314, 89
      %v1684 = vpop.permute.xlu0 %1683
      %1685 = vrot.lane.b32.xlu0 %v315, 89
      %v1686 = vpop.permute.xlu0 %1685
      %1687 = vrot.lane.b32.xlu0 %v316, 89
      %v1688 = vpop.permute.xlu0 %1687
      %1689 = vrot.lane.b32.xlu0 %v317, 89
      %v1690 = vpop.permute.xlu0 %1689
      %1691 = vrot.lane.b32.xlu0 %v318, 89
      %v1692 = vpop.permute.xlu0 %1691
      %1693 = vrot.lane.b32.xlu0 %v319, 89
      %v1694 = vpop.permute.xlu0 %1693
      %1695 = vrot.lane.b32.xlu0 %v320, 89
      %v1696 = vpop.permute.xlu0 %1695
      %vm1697 = vcmask 728064
      %v1698 = vsel %vm1697, %v1680, %v1682
      %v1699 = vsel %vm1697, %v1682, %v1684
      %v1700 = vsel %vm1697, %v1684, %v1686
      %v1701 = vsel %vm1697, %v1686, %v1688
      %v1702 = vsel %vm1697, %v1688, %v1690
      %v1703 = vsel %vm1697, %v1690, %v1692
      %v1704 = vsel %vm1697, %v1692, %v1694
      %v1705 = vsel %vm1697, %v1694, %v1696
      %v1715 = vsel %vm356, %v1678, 0
      %1717 = vmatpush.bf16.msra.mxu0 0
      %1718 = vmatpush.bf16.msra.mxu0 0
      %1719 = vmatpush.bf16.msra.mxu0 0
      %1720 = vmatpush.bf16.msra.mxu0 0
      %1721 = vmatpush.bf16.msra.mxu0 0
      %1722 = vmatpush.bf16.msra.mxu0 0
      %1723 = vmatpush.bf16.msra.mxu0 0
      %1724 = vmatpush.bf16.msra.mxu0 %v1698
      %1725 = vmatmul.bf16.gmra.mxu0 %v1715
      %v1726 = vpop.f32.mrf.mxu0
      %v1727 = vadd.f32 0.0, %v1726
      %v1728 = vpop.f32.mrf.mxu0
      %v1729 = vadd.f32 0.0, %v1728
      %1730 = vdwg.mxu0
      %1731 = vmatpush.bf16.msra.mxu0 0
      %1732 = vmatpush.bf16.msra.mxu0 0
      %1733 = vmatpush.bf16.msra.mxu0 0
      %1734 = vmatpush.bf16.msra.mxu0 0
      %1735 = vmatpush.bf16.msra.mxu0 0
      %1736 = vmatpush.bf16.msra.mxu0 0
      %1737 = vmatpush.bf16.msra.mxu0 0
      %1738 = vmatpush.bf16.msra.mxu0 %v1699
      %1739 = vmatmul.bf16.gmra.mxu0 %v1715
      %v1740 = vpop.f32.mrf.mxu0
      %v1741 = vadd.f32 0.0, %v1740
      %v1742 = vpop.f32.mrf.mxu0
      %v1743 = vadd.f32 0.0, %v1742
      %1744 = vdwg.mxu0
      %1745 = vmatpush.bf16.msra.mxu0 0
      %1746 = vmatpush.bf16.msra.mxu0 0
      %1747 = vmatpush.bf16.msra.mxu0 0
      %1748 = vmatpush.bf16.msra.mxu0 0
      %1749 = vmatpush.bf16.msra.mxu0 0
      %1750 = vmatpush.bf16.msra.mxu0 0
      %1751 = vmatpush.bf16.msra.mxu0 0
      %1752 = vmatpush.bf16.msra.mxu0 %v1700
      %1753 = vmatmul.bf16.gmra.mxu0 %v1715
      %v1754 = vpop.f32.mrf.mxu0
      %v1755 = vadd.f32 0.0, %v1754
      %v1756 = vpop.f32.mrf.mxu0
      %v1757 = vadd.f32 0.0, %v1756
      %1758 = vdwg.mxu0
      %1759 = vmatpush.bf16.msra.mxu0 0
      %1760 = vmatpush.bf16.msra.mxu0 0
      %1761 = vmatpush.bf16.msra.mxu0 0
      %1762 = vmatpush.bf16.msra.mxu0 0
      %1763 = vmatpush.bf16.msra.mxu0 0
      %1764 = vmatpush.bf16.msra.mxu0 0
      %1765 = vmatpush.bf16.msra.mxu0 0
      %1766 = vmatpush.bf16.msra.mxu0 %v1701
      %1767 = vmatmul.bf16.gmra.mxu0 %v1715
      %v1768 = vpop.f32.mrf.mxu0
      %v1769 = vadd.f32 0.0, %v1768
      %v1770 = vpop.f32.mrf.mxu0
      %v1771 = vadd.f32 0.0, %v1770
      %1772 = vdwg.mxu0
      %1773 = vmatpush.bf16.msra.mxu0 0
      %1774 = vmatpush.bf16.msra.mxu0 0
      %1775 = vmatpush.bf16.msra.mxu0 0
      %1776 = vmatpush.bf16.msra.mxu0 0
      %1777 = vmatpush.bf16.msra.mxu0 0
      %1778 = vmatpush.bf16.msra.mxu0 0
      %1779 = vmatpush.bf16.msra.mxu0 0
      %1780 = vmatpush.bf16.msra.mxu0 %v1702
      %1781 = vmatmul.bf16.gmra.mxu0 %v1715
      %v1782 = vpop.f32.mrf.mxu0
      %v1783 = vadd.f32 0.0, %v1782
      %v1784 = vpop.f32.mrf.mxu0
      %v1785 = vadd.f32 0.0, %v1784
      %1786 = vdwg.mxu0
      %1787 = vmatpush.bf16.msra.mxu0 0
      %1788 = vmatpush.bf16.msra.mxu0 0
      %1789 = vmatpush.bf16.msra.mxu0 0
      %1790 = vmatpush.bf16.msra.mxu0 0
      %1791 = vmatpush.bf16.msra.mxu0 0
      %1792 = vmatpush.bf16.msra.mxu0 0
      %1793 = vmatpush.bf16.msra.mxu0 0
      %1794 = vmatpush.bf16.msra.mxu0 %v1703
      %1795 = vmatmul.bf16.gmra.mxu0 %v1715
      %v1796 = vpop.f32.mrf.mxu0
      %v1797 = vadd.f32 0.0, %v1796
      %v1798 = vpop.f32.mrf.mxu0
      %v1799 = vadd.f32 0.0, %v1798
      %1800 = vdwg.mxu0
      %1801 = vmatpush.bf16.msra.mxu0 0
      %1802 = vmatpush.bf16.msra.mxu0 0
      %1803 = vmatpush.bf16.msra.mxu0 0
      %1804 = vmatpush.bf16.msra.mxu0 0
      %1805 = vmatpush.bf16.msra.mxu0 0
      %1806 = vmatpush.bf16.msra.mxu0 0
      %1807 = vmatpush.bf16.msra.mxu0 0
      %1808 = vmatpush.bf16.msra.mxu0 %v1704
      %1809 = vmatmul.bf16.gmra.mxu0 %v1715
      %v1810 = vpop.f32.mrf.mxu0
      %v1811 = vadd.f32 0.0, %v1810
      %v1812 = vpop.f32.mrf.mxu0
      %v1813 = vadd.f32 0.0, %v1812
      %1814 = vdwg.mxu0
      %1815 = vmatpush.bf16.msra.mxu0 0
      %1816 = vmatpush.bf16.msra.mxu0 0
      %1817 = vmatpush.bf16.msra.mxu0 0
      %1818 = vmatpush.bf16.msra.mxu0 0
      %1819 = vmatpush.bf16.msra.mxu0 0
      %1820 = vmatpush.bf16.msra.mxu0 0
      %1821 = vmatpush.bf16.msra.mxu0 0
      %1822 = vmatpush.bf16.msra.mxu0 %v1705
      %1823 = vmatmul.bf16.gmra.mxu0 %v1715
      %v1824 = vpop.f32.mrf.mxu0
      %v1825 = vadd.f32 0.0, %v1824
      %v1826 = vpop.f32.mrf.mxu0
      %v1827 = vadd.f32 0.0, %v1826
      %1828 = vdwg.mxu0
      %v1829 = vadd.f32 %v1655, %v1727
      %v1830 = vadd.f32 %v1656, %v1741
      %v1831 = vadd.f32 %v1657, %v1755
      %v1832 = vadd.f32 %v1658, %v1769
      %v1833 = vadd.f32 %v1659, %v1783
      %v1834 = vadd.f32 %v1660, %v1797
      %v1835 = vadd.f32 %v1661, %v1811
      %v1836 = vadd.f32 %v1662, %v1825
      %v1837 = vadd.f32 %v1663, %v1729
      %v1838 = vadd.f32 %v1664, %v1743
      %v1839 = vadd.f32 %v1665, %v1757
      %v1840 = vadd.f32 %v1666, %v1771
      %v1841 = vadd.f32 %v1667, %v1785
      %v1842 = vadd.f32 %v1668, %v1799
      %v1843 = vadd.f32 %v1669, %v1813
      %v1844 = vadd.f32 %v1670, %v1827
      %s1845 = scalar_lea.vmem %s2, 72
      %v1846 = vld [vmem:[%s1845] sm:$0xf]
      %v1847 = vld [vmem:[%s1845 + $0x4] sm:$0xf]
      %v1850 = vunpack.c.l.b16 %v1846
      %v1851 = vunpack.c.l.b16 %v1847
      %v1852 = vpack.c.b16 %v1851, %v1850
      %1853 = vrot.lane.b32.xlu0 %v312, 11
      %v1854 = vpop.permute.xlu0 %1853
      %1855 = vrot.lane.b32.xlu0 %v313, 11
      %v1856 = vpop.permute.xlu0 %1855
      %1857 = vrot.lane.b32.xlu0 %v314, 11
      %v1858 = vpop.permute.xlu0 %1857
      %1859 = vrot.lane.b32.xlu0 %v315, 11
      %v1860 = vpop.permute.xlu0 %1859
      %1861 = vrot.lane.b32.xlu0 %v316, 11
      %v1862 = vpop.permute.xlu0 %1861
      %1863 = vrot.lane.b32.xlu0 %v317, 11
      %v1864 = vpop.permute.xlu0 %1863
      %1865 = vrot.lane.b32.xlu0 %v318, 11
      %v1866 = vpop.permute.xlu0 %1865
      %1867 = vrot.lane.b32.xlu0 %v319, 11
      %v1868 = vpop.permute.xlu0 %1867
      %1869 = vrot.lane.b32.xlu0 %v320, 11
      %v1870 = vpop.permute.xlu0 %1869
      %vm1871 = vcmask 89088
      %v1872 = vsel %vm1871, %v1854, %v1856
      %v1873 = vsel %vm1871, %v1856, %v1858
      %v1874 = vsel %vm1871, %v1858, %v1860
      %v1875 = vsel %vm1871, %v1860, %v1862
      %v1876 = vsel %vm1871, %v1862, %v1864
      %v1877 = vsel %vm1871, %v1864, %v1866
      %v1878 = vsel %vm1871, %v1866, %v1868
      %v1879 = vsel %vm1871, %v1868, %v1870
      %v1889 = vsel %vm356, %v1852, 0
      %1891 = vmatpush.bf16.msra.mxu0 0
      %1892 = vmatpush.bf16.msra.mxu0 0
      %1893 = vmatpush.bf16.msra.mxu0 0
      %1894 = vmatpush.bf16.msra.mxu0 0
      %1895 = vmatpush.bf16.msra.mxu0 0
      %1896 = vmatpush.bf16.msra.mxu0 0
      %1897 = vmatpush.bf16.msra.mxu0 0
      %1898 = vmatpush.bf16.msra.mxu0 %v1872
      %1899 = vmatmul.bf16.gmra.mxu0 %v1889
      %v1900 = vpop.f32.mrf.mxu0
      %v1901 = vadd.f32 0.0, %v1900
      %v1902 = vpop.f32.mrf.mxu0
      %v1903 = vadd.f32 0.0, %v1902
      %1904 = vdwg.mxu0
      %1905 = vmatpush.bf16.msra.mxu0 0
      %1906 = vmatpush.bf16.msra.mxu0 0
      %1907 = vmatpush.bf16.msra.mxu0 0
      %1908 = vmatpush.bf16.msra.mxu0 0
      %1909 = vmatpush.bf16.msra.mxu0 0
      %1910 = vmatpush.bf16.msra.mxu0 0
      %1911 = vmatpush.bf16.msra.mxu0 0
      %1912 = vmatpush.bf16.msra.mxu0 %v1873
      %1913 = vmatmul.bf16.gmra.mxu0 %v1889
      %v1914 = vpop.f32.mrf.mxu0
      %v1915 = vadd.f32 0.0, %v1914
      %v1916 = vpop.f32.mrf.mxu0
      %v1917 = vadd.f32 0.0, %v1916
      %1918 = vdwg.mxu0
      %1919 = vmatpush.bf16.msra.mxu0 0
      %1920 = vmatpush.bf16.msra.mxu0 0
      %1921 = vmatpush.bf16.msra.mxu0 0
      %1922 = vmatpush.bf16.msra.mxu0 0
      %1923 = vmatpush.bf16.msra.mxu0 0
      %1924 = vmatpush.bf16.msra.mxu0 0
      %1925 = vmatpush.bf16.msra.mxu0 0
      %1926 = vmatpush.bf16.msra.mxu0 %v1874
      %1927 = vmatmul.bf16.gmra.mxu0 %v1889
      %v1928 = vpop.f32.mrf.mxu0
      %v1929 = vadd.f32 0.0, %v1928
      %v1930 = vpop.f32.mrf.mxu0
      %v1931 = vadd.f32 0.0, %v1930
      %1932 = vdwg.mxu0
      %1933 = vmatpush.bf16.msra.mxu0 0
      %1934 = vmatpush.bf16.msra.mxu0 0
      %1935 = vmatpush.bf16.msra.mxu0 0
      %1936 = vmatpush.bf16.msra.mxu0 0
      %1937 = vmatpush.bf16.msra.mxu0 0
      %1938 = vmatpush.bf16.msra.mxu0 0
      %1939 = vmatpush.bf16.msra.mxu0 0
      %1940 = vmatpush.bf16.msra.mxu0 %v1875
      %1941 = vmatmul.bf16.gmra.mxu0 %v1889
      %v1942 = vpop.f32.mrf.mxu0
      %v1943 = vadd.f32 0.0, %v1942
      %v1944 = vpop.f32.mrf.mxu0
      %v1945 = vadd.f32 0.0, %v1944
      %1946 = vdwg.mxu0
      %1947 = vmatpush.bf16.msra.mxu0 0
      %1948 = vmatpush.bf16.msra.mxu0 0
      %1949 = vmatpush.bf16.msra.mxu0 0
      %1950 = vmatpush.bf16.msra.mxu0 0
      %1951 = vmatpush.bf16.msra.mxu0 0
      %1952 = vmatpush.bf16.msra.mxu0 0
      %1953 = vmatpush.bf16.msra.mxu0 0
      %1954 = vmatpush.bf16.msra.mxu0 %v1876
      %1955 = vmatmul.bf16.gmra.mxu0 %v1889
      %v1956 = vpop.f32.mrf.mxu0
      %v1957 = vadd.f32 0.0, %v1956
      %v1958 = vpop.f32.mrf.mxu0
      %v1959 = vadd.f32 0.0, %v1958
      %1960 = vdwg.mxu0
      %1961 = vmatpush.bf16.msra.mxu0 0
      %1962 = vmatpush.bf16.msra.mxu0 0
      %1963 = vmatpush.bf16.msra.mxu0 0
      %1964 = vmatpush.bf16.msra.mxu0 0
      %1965 = vmatpush.bf16.msra.mxu0 0
      %1966 = vmatpush.bf16.msra.mxu0 0
      %1967 = vmatpush.bf16.msra.mxu0 0
      %1968 = vmatpush.bf16.msra.mxu0 %v1877
      %1969 = vmatmul.bf16.gmra.mxu0 %v1889
      %v1970 = vpop.f32.mrf.mxu0
      %v1971 = vadd.f32 0.0, %v1970
      %v1972 = vpop.f32.mrf.mxu0
      %v1973 = vadd.f32 0.0, %v1972
      %1974 = vdwg.mxu0
      %1975 = vmatpush.bf16.msra.mxu0 0
      %1976 = vmatpush.bf16.msra.mxu0 0
      %1977 = vmatpush.bf16.msra.mxu0 0
      %1978 = vmatpush.bf16.msra.mxu0 0
      %1979 = vmatpush.bf16.msra.mxu0 0
      %1980 = vmatpush.bf16.msra.mxu0 0
      %1981 = vmatpush.bf16.msra.mxu0 0
      %1982 = vmatpush.bf16.msra.mxu0 %v1878
      %1983 = vmatmul.bf16.gmra.mxu0 %v1889
      %v1984 = vpop.f32.mrf.mxu0
      %v1985 = vadd.f32 0.0, %v1984
      %v1986 = vpop.f32.mrf.mxu0
      %v1987 = vadd.f32 0.0, %v1986
      %1988 = vdwg.mxu0
      %1989 = vmatpush.bf16.msra.mxu0 0
      %1990 = vmatpush.bf16.msra.mxu0 0
      %1991 = vmatpush.bf16.msra.mxu0 0
      %1992 = vmatpush.bf16.msra.mxu0 0
      %1993 = vmatpush.bf16.msra.mxu0 0
      %1994 = vmatpush.bf16.msra.mxu0 0
      %1995 = vmatpush.bf16.msra.mxu0 0
      %1996 = vmatpush.bf16.msra.mxu0 %v1879
      %1997 = vmatmul.bf16.gmra.mxu0 %v1889
      %v1998 = vpop.f32.mrf.mxu0
      %v1999 = vadd.f32 0.0, %v1998
      %v2000 = vpop.f32.mrf.mxu0
      %v2001 = vadd.f32 0.0, %v2000
      %2002 = vdwg.mxu0
      %v2003 = vadd.f32 %v1829, %v1901
      %v2004 = vadd.f32 %v1830, %v1915
      %v2005 = vadd.f32 %v1831, %v1929
      %v2006 = vadd.f32 %v1832, %v1943
      %v2007 = vadd.f32 %v1833, %v1957
      %v2008 = vadd.f32 %v1834, %v1971
      %v2009 = vadd.f32 %v1835, %v1985
      %v2010 = vadd.f32 %v1836, %v1999
      %v2011 = vadd.f32 %v1837, %v1903
      %v2012 = vadd.f32 %v1838, %v1917
      %v2013 = vadd.f32 %v1839, %v1931
      %v2014 = vadd.f32 %v1840, %v1945
      %v2015 = vadd.f32 %v1841, %v1959
      %v2016 = vadd.f32 %v1842, %v1973
      %v2017 = vadd.f32 %v1843, %v1987
      %v2018 = vadd.f32 %v1844, %v2001
      %s2019 = scalar_lea.vmem %s2, 80
      %v2020 = vld [vmem:[%s2019] sm:$0xf]
      %v2021 = vld [vmem:[%s2019 + $0x4] sm:$0xf]
      %v2024 = vunpack.c.l.b16 %v2020
      %v2025 = vunpack.c.l.b16 %v2021
      %v2026 = vpack.c.b16 %v2025, %v2024
      %2027 = vrot.lane.b32.xlu0 %v312, 10
      %v2028 = vpop.permute.xlu0 %2027
      %2029 = vrot.lane.b32.xlu0 %v313, 10
      %v2030 = vpop.permute.xlu0 %2029
      %2031 = vrot.lane.b32.xlu0 %v314, 10
      %v2032 = vpop.permute.xlu0 %2031
      %2033 = vrot.lane.b32.xlu0 %v315, 10
      %v2034 = vpop.permute.xlu0 %2033
      %2035 = vrot.lane.b32.xlu0 %v316, 10
      %v2036 = vpop.permute.xlu0 %2035
      %2037 = vrot.lane.b32.xlu0 %v317, 10
      %v2038 = vpop.permute.xlu0 %2037
      %2039 = vrot.lane.b32.xlu0 %v318, 10
      %v2040 = vpop.permute.xlu0 %2039
      %2041 = vrot.lane.b32.xlu0 %v319, 10
      %v2042 = vpop.permute.xlu0 %2041
      %2043 = vrot.lane.b32.xlu0 %v320, 10
      %v2044 = vpop.permute.xlu0 %2043
      %vm2045 = vcmask 80896
      %v2046 = vsel %vm2045, %v2028, %v2030
      %v2047 = vsel %vm2045, %v2030, %v2032
      %v2048 = vsel %vm2045, %v2032, %v2034
      %v2049 = vsel %vm2045, %v2034, %v2036
      %v2050 = vsel %vm2045, %v2036, %v2038
      %v2051 = vsel %vm2045, %v2038, %v2040
      %v2052 = vsel %vm2045, %v2040, %v2042
      %v2053 = vsel %vm2045, %v2042, %v2044
      %v2063 = vsel %vm356, %v2026, 0
      %2065 = vmatpush.bf16.msra.mxu0 0
      %2066 = vmatpush.bf16.msra.mxu0 0
      %2067 = vmatpush.bf16.msra.mxu0 0
      %2068 = vmatpush.bf16.msra.mxu0 0
      %2069 = vmatpush.bf16.msra.mxu0 0
      %2070 = vmatpush.bf16.msra.mxu0 0
      %2071 = vmatpush.bf16.msra.mxu0 0
      %2072 = vmatpush.bf16.msra.mxu0 %v2046
      %2073 = vmatmul.bf16.gmra.mxu0 %v2063
      %v2074 = vpop.f32.mrf.mxu0
      %v2075 = vadd.f32 0.0, %v2074
      %v2076 = vpop.f32.mrf.mxu0
      %v2077 = vadd.f32 0.0, %v2076
      %2078 = vdwg.mxu0
      %2079 = vmatpush.bf16.msra.mxu0 0
      %2080 = vmatpush.bf16.msra.mxu0 0
      %2081 = vmatpush.bf16.msra.mxu0 0
      %2082 = vmatpush.bf16.msra.mxu0 0
      %2083 = vmatpush.bf16.msra.mxu0 0
      %2084 = vmatpush.bf16.msra.mxu0 0
      %2085 = vmatpush.bf16.msra.mxu0 0
      %2086 = vmatpush.bf16.msra.mxu0 %v2047
      %2087 = vmatmul.bf16.gmra.mxu0 %v2063
      %v2088 = vpop.f32.mrf.mxu0
      %v2089 = vadd.f32 0.0, %v2088
      %v2090 = vpop.f32.mrf.mxu0
      %v2091 = vadd.f32 0.0, %v2090
      %2092 = vdwg.mxu0
      %2093 = vmatpush.bf16.msra.mxu0 0
      %2094 = vmatpush.bf16.msra.mxu0 0
      %2095 = vmatpush.bf16.msra.mxu0 0
      %2096 = vmatpush.bf16.msra.mxu0 0
      %2097 = vmatpush.bf16.msra.mxu0 0
      %2098 = vmatpush.bf16.msra.mxu0 0
      %2099 = vmatpush.bf16.msra.mxu0 0
      %2100 = vmatpush.bf16.msra.mxu0 %v2048
      %2101 = vmatmul.bf16.gmra.mxu0 %v2063
      %v2102 = vpop.f32.mrf.mxu0
      %v2103 = vadd.f32 0.0, %v2102
      %v2104 = vpop.f32.mrf.mxu0
      %v2105 = vadd.f32 0.0, %v2104
      %2106 = vdwg.mxu0
      %2107 = vmatpush.bf16.msra.mxu0 0
      %2108 = vmatpush.bf16.msra.mxu0 0
      %2109 = vmatpush.bf16.msra.mxu0 0
      %2110 = vmatpush.bf16.msra.mxu0 0
      %2111 = vmatpush.bf16.msra.mxu0 0
      %2112 = vmatpush.bf16.msra.mxu0 0
      %2113 = vmatpush.bf16.msra.mxu0 0
      %2114 = vmatpush.bf16.msra.mxu0 %v2049
      %2115 = vmatmul.bf16.gmra.mxu0 %v2063
      %v2116 = vpop.f32.mrf.mxu0
      %v2117 = vadd.f32 0.0, %v2116
      %v2118 = vpop.f32.mrf.mxu0
      %v2119 = vadd.f32 0.0, %v2118
      %2120 = vdwg.mxu0
      %2121 = vmatpush.bf16.msra.mxu0 0
      %2122 = vmatpush.bf16.msra.mxu0 0
      %2123 = vmatpush.bf16.msra.mxu0 0
      %2124 = vmatpush.bf16.msra.mxu0 0
      %2125 = vmatpush.bf16.msra.mxu0 0
      %2126 = vmatpush.bf16.msra.mxu0 0
      %2127 = vmatpush.bf16.msra.mxu0 0
      %2128 = vmatpush.bf16.msra.mxu0 %v2050
      %2129 = vmatmul.bf16.gmra.mxu0 %v2063
      %v2130 = vpop.f32.mrf.mxu0
      %v2131 = vadd.f32 0.0, %v2130
      %v2132 = vpop.f32.mrf.mxu0
      %v2133 = vadd.f32 0.0, %v2132
      %2134 = vdwg.mxu0
      %2135 = vmatpush.bf16.msra.mxu0 0
      %2136 = vmatpush.bf16.msra.mxu0 0
      %2137 = vmatpush.bf16.msra.mxu0 0
      %2138 = vmatpush.bf16.msra.mxu0 0
      %2139 = vmatpush.bf16.msra.mxu0 0
      %2140 = vmatpush.bf16.msra.mxu0 0
      %2141 = vmatpush.bf16.msra.mxu0 0
      %2142 = vmatpush.bf16.msra.mxu0 %v2051
      %2143 = vmatmul.bf16.gmra.mxu0 %v2063
      %v2144 = vpop.f32.mrf.mxu0
      %v2145 = vadd.f32 0.0, %v2144
      %v2146 = vpop.f32.mrf.mxu0
      %v2147 = vadd.f32 0.0, %v2146
      %2148 = vdwg.mxu0
      %2149 = vmatpush.bf16.msra.mxu0 0
      %2150 = vmatpush.bf16.msra.mxu0 0
      %2151 = vmatpush.bf16.msra.mxu0 0
      %2152 = vmatpush.bf16.msra.mxu0 0
      %2153 = vmatpush.bf16.msra.mxu0 0
      %2154 = vmatpush.bf16.msra.mxu0 0
      %2155 = vmatpush.bf16.msra.mxu0 0
      %2156 = vmatpush.bf16.msra.mxu0 %v2052
      %2157 = vmatmul.bf16.gmra.mxu0 %v2063
      %v2158 = vpop.f32.mrf.mxu0
      %v2159 = vadd.f32 0.0, %v2158
      %v2160 = vpop.f32.mrf.mxu0
      %v2161 = vadd.f32 0.0, %v2160
      %2162 = vdwg.mxu0
      %2163 = vmatpush.bf16.msra.mxu0 0
      %2164 = vmatpush.bf16.msra.mxu0 0
      %2165 = vmatpush.bf16.msra.mxu0 0
      %2166 = vmatpush.bf16.msra.mxu0 0
      %2167 = vmatpush.bf16.msra.mxu0 0
      %2168 = vmatpush.bf16.msra.mxu0 0
      %2169 = vmatpush.bf16.msra.mxu0 0
      %2170 = vmatpush.bf16.msra.mxu0 %v2053
      %2171 = vmatmul.bf16.gmra.mxu0 %v2063
      %v2172 = vpop.f32.mrf.mxu0
      %v2173 = vadd.f32 0.0, %v2172
      %v2174 = vpop.f32.mrf.mxu0
      %v2175 = vadd.f32 0.0, %v2174
      %2176 = vdwg.mxu0
      %v2177 = vadd.f32 %v2003, %v2075
      %v2178 = vadd.f32 %v2004, %v2089
      %v2179 = vadd.f32 %v2005, %v2103
      %v2180 = vadd.f32 %v2006, %v2117
      %v2181 = vadd.f32 %v2007, %v2131
      %v2182 = vadd.f32 %v2008, %v2145
      %v2183 = vadd.f32 %v2009, %v2159
      %v2184 = vadd.f32 %v2010, %v2173
      %v2185 = vadd.f32 %v2011, %v2077
      %v2186 = vadd.f32 %v2012, %v2091
      %v2187 = vadd.f32 %v2013, %v2105
      %v2188 = vadd.f32 %v2014, %v2119
      %v2189 = vadd.f32 %v2015, %v2133
      %v2190 = vadd.f32 %v2016, %v2147
      %v2191 = vadd.f32 %v2017, %v2161
      %v2192 = vadd.f32 %v2018, %v2175
      %s2193 = scalar_lea.vmem %s2, 88
      %v2194 = vld [vmem:[%s2193] sm:$0xf]
      %v2195 = vld [vmem:[%s2193 + $0x4] sm:$0xf]
      %v2198 = vunpack.c.l.b16 %v2194
      %v2199 = vunpack.c.l.b16 %v2195
      %v2200 = vpack.c.b16 %v2199, %v2198
      %2201 = vrot.lane.b32.xlu0 %v312, 9
      %v2202 = vpop.permute.xlu0 %2201
      %2203 = vrot.lane.b32.xlu0 %v313, 9
      %v2204 = vpop.permute.xlu0 %2203
      %2205 = vrot.lane.b32.xlu0 %v314, 9
      %v2206 = vpop.permute.xlu0 %2205
      %2207 = vrot.lane.b32.xlu0 %v315, 9
      %v2208 = vpop.permute.xlu0 %2207
      %2209 = vrot.lane.b32.xlu0 %v316, 9
      %v2210 = vpop.permute.xlu0 %2209
      %2211 = vrot.lane.b32.xlu0 %v317, 9
      %v2212 = vpop.permute.xlu0 %2211
      %2213 = vrot.lane.b32.xlu0 %v318, 9
      %v2214 = vpop.permute.xlu0 %2213
      %2215 = vrot.lane.b32.xlu0 %v319, 9
      %v2216 = vpop.permute.xlu0 %2215
      %2217 = vrot.lane.b32.xlu0 %v320, 9
      %v2218 = vpop.permute.xlu0 %2217
      %vm2219 = vcmask 72704
      %v2220 = vsel %vm2219, %v2202, %v2204
      %v2221 = vsel %vm2219, %v2204, %v2206
      %v2222 = vsel %vm2219, %v2206, %v2208
      %v2223 = vsel %vm2219, %v2208, %v2210
      %v2224 = vsel %vm2219, %v2210, %v2212
      %v2225 = vsel %vm2219, %v2212, %v2214
      %v2226 = vsel %vm2219, %v2214, %v2216
      %v2227 = vsel %vm2219, %v2216, %v2218
      %v2237 = vsel %vm356, %v2200, 0
      %2239 = vmatpush.bf16.msra.mxu0 0
      %2240 = vmatpush.bf16.msra.mxu0 0
      %2241 = vmatpush.bf16.msra.mxu0 0
      %2242 = vmatpush.bf16.msra.mxu0 0
      %2243 = vmatpush.bf16.msra.mxu0 0
      %2244 = vmatpush.bf16.msra.mxu0 0
      %2245 = vmatpush.bf16.msra.mxu0 0
      %2246 = vmatpush.bf16.msra.mxu0 %v2220
      %2247 = vmatmul.bf16.gmra.mxu0 %v2237
      %v2248 = vpop.f32.mrf.mxu0
      %v2249 = vadd.f32 0.0, %v2248
      %v2250 = vpop.f32.mrf.mxu0
      %v2251 = vadd.f32 0.0, %v2250
      %2252 = vdwg.mxu0
      %2253 = vmatpush.bf16.msra.mxu0 0
      %2254 = vmatpush.bf16.msra.mxu0 0
      %2255 = vmatpush.bf16.msra.mxu0 0
      %2256 = vmatpush.bf16.msra.mxu0 0
      %2257 = vmatpush.bf16.msra.mxu0 0
      %2258 = vmatpush.bf16.msra.mxu0 0
      %2259 = vmatpush.bf16.msra.mxu0 0
      %2260 = vmatpush.bf16.msra.mxu0 %v2221
      %2261 = vmatmul.bf16.gmra.mxu0 %v2237
      %v2262 = vpop.f32.mrf.mxu0
      %v2263 = vadd.f32 0.0, %v2262
      %v2264 = vpop.f32.mrf.mxu0
      %v2265 = vadd.f32 0.0, %v2264
      %2266 = vdwg.mxu0
      %2267 = vmatpush.bf16.msra.mxu0 0
      %2268 = vmatpush.bf16.msra.mxu0 0
      %2269 = vmatpush.bf16.msra.mxu0 0
      %2270 = vmatpush.bf16.msra.mxu0 0
      %2271 = vmatpush.bf16.msra.mxu0 0
      %2272 = vmatpush.bf16.msra.mxu0 0
      %2273 = vmatpush.bf16.msra.mxu0 0
      %2274 = vmatpush.bf16.msra.mxu0 %v2222
      %2275 = vmatmul.bf16.gmra.mxu0 %v2237
      %v2276 = vpop.f32.mrf.mxu0
      %v2277 = vadd.f32 0.0, %v2276
      %v2278 = vpop.f32.mrf.mxu0
      %v2279 = vadd.f32 0.0, %v2278
      %2280 = vdwg.mxu0
      %2281 = vmatpush.bf16.msra.mxu0 0
      %2282 = vmatpush.bf16.msra.mxu0 0
      %2283 = vmatpush.bf16.msra.mxu0 0
      %2284 = vmatpush.bf16.msra.mxu0 0
      %2285 = vmatpush.bf16.msra.mxu0 0
      %2286 = vmatpush.bf16.msra.mxu0 0
      %2287 = vmatpush.bf16.msra.mxu0 0
      %2288 = vmatpush.bf16.msra.mxu0 %v2223
      %2289 = vmatmul.bf16.gmra.mxu0 %v2237
      %v2290 = vpop.f32.mrf.mxu0
      %v2291 = vadd.f32 0.0, %v2290
      %v2292 = vpop.f32.mrf.mxu0
      %v2293 = vadd.f32 0.0, %v2292
      %2294 = vdwg.mxu0
      %2295 = vmatpush.bf16.msra.mxu0 0
      %2296 = vmatpush.bf16.msra.mxu0 0
      %2297 = vmatpush.bf16.msra.mxu0 0
      %2298 = vmatpush.bf16.msra.mxu0 0
      %2299 = vmatpush.bf16.msra.mxu0 0
      %2300 = vmatpush.bf16.msra.mxu0 0
      %2301 = vmatpush.bf16.msra.mxu0 0
      %2302 = vmatpush.bf16.msra.mxu0 %v2224
      %2303 = vmatmul.bf16.gmra.mxu0 %v2237
      %v2304 = vpop.f32.mrf.mxu0
      %v2305 = vadd.f32 0.0, %v2304
      %v2306 = vpop.f32.mrf.mxu0
      %v2307 = vadd.f32 0.0, %v2306
      %2308 = vdwg.mxu0
      %2309 = vmatpush.bf16.msra.mxu0 0
      %2310 = vmatpush.bf16.msra.mxu0 0
      %2311 = vmatpush.bf16.msra.mxu0 0
      %2312 = vmatpush.bf16.msra.mxu0 0
      %2313 = vmatpush.bf16.msra.mxu0 0
      %2314 = vmatpush.bf16.msra.mxu0 0
      %2315 = vmatpush.bf16.msra.mxu0 0
      %2316 = vmatpush.bf16.msra.mxu0 %v2225
      %2317 = vmatmul.bf16.gmra.mxu0 %v2237
      %v2318 = vpop.f32.mrf.mxu0
      %v2319 = vadd.f32 0.0, %v2318
      %v2320 = vpop.f32.mrf.mxu0
      %v2321 = vadd.f32 0.0, %v2320
      %2322 = vdwg.mxu0
      %2323 = vmatpush.bf16.msra.mxu0 0
      %2324 = vmatpush.bf16.msra.mxu0 0
      %2325 = vmatpush.bf16.msra.mxu0 0
      %2326 = vmatpush.bf16.msra.mxu0 0
      %2327 = vmatpush.bf16.msra.mxu0 0
      %2328 = vmatpush.bf16.msra.mxu0 0
      %2329 = vmatpush.bf16.msra.mxu0 0
      %2330 = vmatpush.bf16.msra.mxu0 %v2226
      %2331 = vmatmul.bf16.gmra.mxu0 %v2237
      %v2332 = vpop.f32.mrf.mxu0
      %v2333 = vadd.f32 0.0, %v2332
      %v2334 = vpop.f32.mrf.mxu0
      %v2335 = vadd.f32 0.0, %v2334
      %2336 = vdwg.mxu0
      %2337 = vmatpush.bf16.msra.mxu0 0
      %2338 = vmatpush.bf16.msra.mxu0 0
      %2339 = vmatpush.bf16.msra.mxu0 0
      %2340 = vmatpush.bf16.msra.mxu0 0
      %2341 = vmatpush.bf16.msra.mxu0 0
      %2342 = vmatpush.bf16.msra.mxu0 0
      %2343 = vmatpush.bf16.msra.mxu0 0
      %2344 = vmatpush.bf16.msra.mxu0 %v2227
      %2345 = vmatmul.bf16.gmra.mxu0 %v2237
      %v2346 = vpop.f32.mrf.mxu0
      %v2347 = vadd.f32 0.0, %v2346
      %v2348 = vpop.f32.mrf.mxu0
      %v2349 = vadd.f32 0.0, %v2348
      %2350 = vdwg.mxu0
      %v2351 = vadd.f32 %v2177, %v2249
      %v2352 = vadd.f32 %v2178, %v2263
      %v2353 = vadd.f32 %v2179, %v2277
      %v2354 = vadd.f32 %v2180, %v2291
      %v2355 = vadd.f32 %v2181, %v2305
      %v2356 = vadd.f32 %v2182, %v2319
      %v2357 = vadd.f32 %v2183, %v2333
      %v2358 = vadd.f32 %v2184, %v2347
      %v2359 = vadd.f32 %v2185, %v2251
      %v2360 = vadd.f32 %v2186, %v2265
      %v2361 = vadd.f32 %v2187, %v2279
      %v2362 = vadd.f32 %v2188, %v2293
      %v2363 = vadd.f32 %v2189, %v2307
      %v2364 = vadd.f32 %v2190, %v2321
      %v2365 = vadd.f32 %v2191, %v2335
      %v2366 = vadd.f32 %v2192, %v2349
      %s2367 = scalar_lea.vmem %s2, 96
      %v2368 = vld [vmem:[%s2367] sm:$0xf]
      %v2369 = vld [vmem:[%s2367 + $0x4] sm:$0xf]
      %v2372 = vunpack.c.l.b16 %v2368
      %v2373 = vunpack.c.l.b16 %v2369
      %v2374 = vpack.c.b16 %v2373, %v2372
      %2375 = vrot.lane.b32.xlu0 %v312, 1
      %v2376 = vpop.permute.xlu0 %2375
      %2377 = vrot.lane.b32.xlu0 %v313, 1
      %v2378 = vpop.permute.xlu0 %2377
      %2379 = vrot.lane.b32.xlu0 %v314, 1
      %v2380 = vpop.permute.xlu0 %2379
      %2381 = vrot.lane.b32.xlu0 %v315, 1
      %v2382 = vpop.permute.xlu0 %2381
      %2383 = vrot.lane.b32.xlu0 %v316, 1
      %v2384 = vpop.permute.xlu0 %2383
      %2385 = vrot.lane.b32.xlu0 %v317, 1
      %v2386 = vpop.permute.xlu0 %2385
      %2387 = vrot.lane.b32.xlu0 %v318, 1
      %v2388 = vpop.permute.xlu0 %2387
      %2389 = vrot.lane.b32.xlu0 %v319, 1
      %v2390 = vpop.permute.xlu0 %2389
      %2391 = vrot.lane.b32.xlu0 %v320, 1
      %v2392 = vpop.permute.xlu0 %2391
      %vm2393 = vcmask 7168
      %v2394 = vsel %vm2393, %v2376, %v2378
      %v2395 = vsel %vm2393, %v2378, %v2380
      %v2396 = vsel %vm2393, %v2380, %v2382
      %v2397 = vsel %vm2393, %v2382, %v2384
      %v2398 = vsel %vm2393, %v2384, %v2386
      %v2399 = vsel %vm2393, %v2386, %v2388
      %v2400 = vsel %vm2393, %v2388, %v2390
      %v2401 = vsel %vm2393, %v2390, %v2392
      %v2411 = vsel %vm356, %v2374, 0
      %2413 = vmatpush.bf16.msra.mxu0 0
      %2414 = vmatpush.bf16.msra.mxu0 0
      %2415 = vmatpush.bf16.msra.mxu0 0
      %2416 = vmatpush.bf16.msra.mxu0 0
      %2417 = vmatpush.bf16.msra.mxu0 0
      %2418 = vmatpush.bf16.msra.mxu0 0
      %2419 = vmatpush.bf16.msra.mxu0 0
      %2420 = vmatpush.bf16.msra.mxu0 %v2394
      %2421 = vmatmul.bf16.gmra.mxu0 %v2411
      %v2422 = vpop.f32.mrf.mxu0
      %v2423 = vadd.f32 0.0, %v2422
      %v2424 = vpop.f32.mrf.mxu0
      %v2425 = vadd.f32 0.0, %v2424
      %2426 = vdwg.mxu0
      %2427 = vmatpush.bf16.msra.mxu0 0
      %2428 = vmatpush.bf16.msra.mxu0 0
      %2429 = vmatpush.bf16.msra.mxu0 0
      %2430 = vmatpush.bf16.msra.mxu0 0
      %2431 = vmatpush.bf16.msra.mxu0 0
      %2432 = vmatpush.bf16.msra.mxu0 0
      %2433 = vmatpush.bf16.msra.mxu0 0
      %2434 = vmatpush.bf16.msra.mxu0 %v2395
      %2435 = vmatmul.bf16.gmra.mxu0 %v2411
      %v2436 = vpop.f32.mrf.mxu0
      %v2437 = vadd.f32 0.0, %v2436
      %v2438 = vpop.f32.mrf.mxu0
      %v2439 = vadd.f32 0.0, %v2438
      %2440 = vdwg.mxu0
      %2441 = vmatpush.bf16.msra.mxu0 0
      %2442 = vmatpush.bf16.msra.mxu0 0
      %2443 = vmatpush.bf16.msra.mxu0 0
      %2444 = vmatpush.bf16.msra.mxu0 0
      %2445 = vmatpush.bf16.msra.mxu0 0
      %2446 = vmatpush.bf16.msra.mxu0 0
      %2447 = vmatpush.bf16.msra.mxu0 0
      %2448 = vmatpush.bf16.msra.mxu0 %v2396
      %2449 = vmatmul.bf16.gmra.mxu0 %v2411
      %v2450 = vpop.f32.mrf.mxu0
      %v2451 = vadd.f32 0.0, %v2450
      %v2452 = vpop.f32.mrf.mxu0
      %v2453 = vadd.f32 0.0, %v2452
      %2454 = vdwg.mxu0
      %2455 = vmatpush.bf16.msra.mxu0 0
      %2456 = vmatpush.bf16.msra.mxu0 0
      %2457 = vmatpush.bf16.msra.mxu0 0
      %2458 = vmatpush.bf16.msra.mxu0 0
      %2459 = vmatpush.bf16.msra.mxu0 0
      %2460 = vmatpush.bf16.msra.mxu0 0
      %2461 = vmatpush.bf16.msra.mxu0 0
      %2462 = vmatpush.bf16.msra.mxu0 %v2397
      %2463 = vmatmul.bf16.gmra.mxu0 %v2411
      %v2464 = vpop.f32.mrf.mxu0
      %v2465 = vadd.f32 0.0, %v2464
      %v2466 = vpop.f32.mrf.mxu0
      %v2467 = vadd.f32 0.0, %v2466
      %2468 = vdwg.mxu0
      %2469 = vmatpush.bf16.msra.mxu0 0
      %2470 = vmatpush.bf16.msra.mxu0 0
      %2471 = vmatpush.bf16.msra.mxu0 0
      %2472 = vmatpush.bf16.msra.mxu0 0
      %2473 = vmatpush.bf16.msra.mxu0 0
      %2474 = vmatpush.bf16.msra.mxu0 0
      %2475 = vmatpush.bf16.msra.mxu0 0
      %2476 = vmatpush.bf16.msra.mxu0 %v2398
      %2477 = vmatmul.bf16.gmra.mxu0 %v2411
      %v2478 = vpop.f32.mrf.mxu0
      %v2479 = vadd.f32 0.0, %v2478
      %v2480 = vpop.f32.mrf.mxu0
      %v2481 = vadd.f32 0.0, %v2480
      %2482 = vdwg.mxu0
      %2483 = vmatpush.bf16.msra.mxu0 0
      %2484 = vmatpush.bf16.msra.mxu0 0
      %2485 = vmatpush.bf16.msra.mxu0 0
      %2486 = vmatpush.bf16.msra.mxu0 0
      %2487 = vmatpush.bf16.msra.mxu0 0
      %2488 = vmatpush.bf16.msra.mxu0 0
      %2489 = vmatpush.bf16.msra.mxu0 0
      %2490 = vmatpush.bf16.msra.mxu0 %v2399
      %2491 = vmatmul.bf16.gmra.mxu0 %v2411
      %v2492 = vpop.f32.mrf.mxu0
      %v2493 = vadd.f32 0.0, %v2492
      %v2494 = vpop.f32.mrf.mxu0
      %v2495 = vadd.f32 0.0, %v2494
      %2496 = vdwg.mxu0
      %2497 = vmatpush.bf16.msra.mxu0 0
      %2498 = vmatpush.bf16.msra.mxu0 0
      %2499 = vmatpush.bf16.msra.mxu0 0
      %2500 = vmatpush.bf16.msra.mxu0 0
      %2501 = vmatpush.bf16.msra.mxu0 0
      %2502 = vmatpush.bf16.msra.mxu0 0
      %2503 = vmatpush.bf16.msra.mxu0 0
      %2504 = vmatpush.bf16.msra.mxu0 %v2400
      %2505 = vmatmul.bf16.gmra.mxu0 %v2411
      %v2506 = vpop.f32.mrf.mxu0
      %v2507 = vadd.f32 0.0, %v2506
      %v2508 = vpop.f32.mrf.mxu0
      %v2509 = vadd.f32 0.0, %v2508
      %2510 = vdwg.mxu0
      %2511 = vmatpush.bf16.msra.mxu0 0
      %2512 = vmatpush.bf16.msra.mxu0 0
      %2513 = vmatpush.bf16.msra.mxu0 0
      %2514 = vmatpush.bf16.msra.mxu0 0
      %2515 = vmatpush.bf16.msra.mxu0 0
      %2516 = vmatpush.bf16.msra.mxu0 0
      %2517 = vmatpush.bf16.msra.mxu0 0
      %2518 = vmatpush.bf16.msra.mxu0 %v2401
      %2519 = vmatmul.bf16.gmra.mxu0 %v2411
      %v2520 = vpop.f32.mrf.mxu0
      %v2521 = vadd.f32 0.0, %v2520
      %v2522 = vpop.f32.mrf.mxu0
      %v2523 = vadd.f32 0.0, %v2522
      %2524 = vdwg.mxu0
      %v2525 = vadd.f32 %v2351, %v2423
      %v2526 = vadd.f32 %v2352, %v2437
      %v2527 = vadd.f32 %v2353, %v2451
      %v2528 = vadd.f32 %v2354, %v2465
      %v2529 = vadd.f32 %v2355, %v2479
      %v2530 = vadd.f32 %v2356, %v2493
      %v2531 = vadd.f32 %v2357, %v2507
      %v2532 = vadd.f32 %v2358, %v2521
      %v2533 = vadd.f32 %v2359, %v2425
      %v2534 = vadd.f32 %v2360, %v2439
      %v2535 = vadd.f32 %v2361, %v2453
      %v2536 = vadd.f32 %v2362, %v2467
      %v2537 = vadd.f32 %v2363, %v2481
      %v2538 = vadd.f32 %v2364, %v2495
      %v2539 = vadd.f32 %v2365, %v2509
      %v2540 = vadd.f32 %v2366, %v2523
      %s2541 = scalar_lea.vmem %s2, 104
      %v2542 = vld [vmem:[%s2541] sm:$0xf]
      %v2543 = vld [vmem:[%s2541 + $0x4] sm:$0xf]
      %v2546 = vunpack.c.l.b16 %v2542
      %v2547 = vunpack.c.l.b16 %v2543
      %v2548 = vpack.c.b16 %v2547, %v2546
      %v2558 = vsel %vm356, %v2548, 0
      %2560 = vmatpush.bf16.msra.mxu0 0
      %2561 = vmatpush.bf16.msra.mxu0 0
      %2562 = vmatpush.bf16.msra.mxu0 0
      %2563 = vmatpush.bf16.msra.mxu0 0
      %2564 = vmatpush.bf16.msra.mxu0 0
      %2565 = vmatpush.bf16.msra.mxu0 0
      %2566 = vmatpush.bf16.msra.mxu0 0
      %2567 = vmatpush.bf16.msra.mxu0 %v313
      %2568 = vmatmul.bf16.gmra.mxu0 %v2558
      %v2569 = vpop.f32.mrf.mxu0
      %v2570 = vadd.f32 0.0, %v2569
      %v2571 = vpop.f32.mrf.mxu0
      %v2572 = vadd.f32 0.0, %v2571
      %2573 = vdwg.mxu0
      %2574 = vmatpush.bf16.msra.mxu0 0
      %2575 = vmatpush.bf16.msra.mxu0 0
      %2576 = vmatpush.bf16.msra.mxu0 0
      %2577 = vmatpush.bf16.msra.mxu0 0
      %2578 = vmatpush.bf16.msra.mxu0 0
      %2579 = vmatpush.bf16.msra.mxu0 0
      %2580 = vmatpush.bf16.msra.mxu0 0
      %2581 = vmatpush.bf16.msra.mxu0 %v314
      %2582 = vmatmul.bf16.gmra.mxu0 %v2558
      %v2583 = vpop.f32.mrf.mxu0
      %v2584 = vadd.f32 0.0, %v2583
      %v2585 = vpop.f32.mrf.mxu0
      %v2586 = vadd.f32 0.0, %v2585
      %2587 = vdwg.mxu0
      %2588 = vmatpush.bf16.msra.mxu0 0
      %2589 = vmatpush.bf16.msra.mxu0 0
      %2590 = vmatpush.bf16.msra.mxu0 0
      %2591 = vmatpush.bf16.msra.mxu0 0
      %2592 = vmatpush.bf16.msra.mxu0 0
      %2593 = vmatpush.bf16.msra.mxu0 0
      %2594 = vmatpush.bf16.msra.mxu0 0
      %2595 = vmatpush.bf16.msra.mxu0 %v315
      %2596 = vmatmul.bf16.gmra.mxu0 %v2558
      %v2597 = vpop.f32.mrf.mxu0
      %v2598 = vadd.f32 0.0, %v2597
      %v2599 = vpop.f32.mrf.mxu0
      %v2600 = vadd.f32 0.0, %v2599
      %2601 = vdwg.mxu0
      %2602 = vmatpush.bf16.msra.mxu0 0
      %2603 = vmatpush.bf16.msra.mxu0 0
      %2604 = vmatpush.bf16.msra.mxu0 0
      %2605 = vmatpush.bf16.msra.mxu0 0
      %2606 = vmatpush.bf16.msra.mxu0 0
      %2607 = vmatpush.bf16.msra.mxu0 0
      %2608 = vmatpush.bf16.msra.mxu0 0
      %2609 = vmatpush.bf16.msra.mxu0 %v316
      %2610 = vmatmul.bf16.gmra.mxu0 %v2558
      %v2611 = vpop.f32.mrf.mxu0
      %v2612 = vadd.f32 0.0, %v2611
      %v2613 = vpop.f32.mrf.mxu0
      %v2614 = vadd.f32 0.0, %v2613
      %2615 = vdwg.mxu0
      %2616 = vmatpush.bf16.msra.mxu0 0
      %2617 = vmatpush.bf16.msra.mxu0 0
      %2618 = vmatpush.bf16.msra.mxu0 0
      %2619 = vmatpush.bf16.msra.mxu0 0
      %2620 = vmatpush.bf16.msra.mxu0 0
      %2621 = vmatpush.bf16.msra.mxu0 0
      %2622 = vmatpush.bf16.msra.mxu0 0
      %2623 = vmatpush.bf16.msra.mxu0 %v317
      %2624 = vmatmul.bf16.gmra.mxu0 %v2558
      %v2625 = vpop.f32.mrf.mxu0
      %v2626 = vadd.f32 0.0, %v2625
      %v2627 = vpop.f32.mrf.mxu0
      %v2628 = vadd.f32 0.0, %v2627
      %2629 = vdwg.mxu0
      %2630 = vmatpush.bf16.msra.mxu0 0
      %2631 = vmatpush.bf16.msra.mxu0 0
      %2632 = vmatpush.bf16.msra.mxu0 0
      %2633 = vmatpush.bf16.msra.mxu0 0
      %2634 = vmatpush.bf16.msra.mxu0 0
      %2635 = vmatpush.bf16.msra.mxu0 0
      %2636 = vmatpush.bf16.msra.mxu0 0
      %2637 = vmatpush.bf16.msra.mxu0 %v318
      %2638 = vmatmul.bf16.gmra.mxu0 %v2558
      %v2639 = vpop.f32.mrf.mxu0
      %v2640 = vadd.f32 0.0, %v2639
      %v2641 = vpop.f32.mrf.mxu0
      %v2642 = vadd.f32 0.0, %v2641
      %2643 = vdwg.mxu0
      %2644 = vmatpush.bf16.msra.mxu0 0
      %2645 = vmatpush.bf16.msra.mxu0 0
      %2646 = vmatpush.bf16.msra.mxu0 0
      %2647 = vmatpush.bf16.msra.mxu0 0
      %2648 = vmatpush.bf16.msra.mxu0 0
      %2649 = vmatpush.bf16.msra.mxu0 0
      %2650 = vmatpush.bf16.msra.mxu0 0
      %2651 = vmatpush.bf16.msra.mxu0 %v319
      %2652 = vmatmul.bf16.gmra.mxu0 %v2558
      %v2653 = vpop.f32.mrf.mxu0
      %v2654 = vadd.f32 0.0, %v2653
      %v2655 = vpop.f32.mrf.mxu0
      %v2656 = vadd.f32 0.0, %v2655
      %2657 = vdwg.mxu0
      %2658 = vmatpush.bf16.msra.mxu0 0
      %2659 = vmatpush.bf16.msra.mxu0 0
      %2660 = vmatpush.bf16.msra.mxu0 0
      %2661 = vmatpush.bf16.msra.mxu0 0
      %2662 = vmatpush.bf16.msra.mxu0 0
      %2663 = vmatpush.bf16.msra.mxu0 0
      %2664 = vmatpush.bf16.msra.mxu0 0
      %2665 = vmatpush.bf16.msra.mxu0 %v320
      %2666 = vmatmul.bf16.gmra.mxu0 %v2558
      %v2667 = vpop.f32.mrf.mxu0
      %v2668 = vadd.f32 0.0, %v2667
      %v2669 = vpop.f32.mrf.mxu0
      %v2670 = vadd.f32 0.0, %v2669
      %2671 = vdwg.mxu0
      %v2672 = vadd.f32 %v2525, %v2570
      %v2673 = vadd.f32 %v2526, %v2584
      %v2674 = vadd.f32 %v2527, %v2598
      %v2675 = vadd.f32 %v2528, %v2612
      %v2676 = vadd.f32 %v2529, %v2626
      %v2677 = vadd.f32 %v2530, %v2640
      %v2678 = vadd.f32 %v2531, %v2654
      %v2679 = vadd.f32 %v2532, %v2668
      %v2680 = vadd.f32 %v2533, %v2572
      %v2681 = vadd.f32 %v2534, %v2586
      %v2682 = vadd.f32 %v2535, %v2600
      %v2683 = vadd.f32 %v2536, %v2614
      %v2684 = vadd.f32 %v2537, %v2628
      %v2685 = vadd.f32 %v2538, %v2642
      %v2686 = vadd.f32 %v2539, %v2656
      %v2687 = vadd.f32 %v2540, %v2670
      %s2688 = scalar_lea.vmem %s2, 112
      %v2689 = vld [vmem:[%s2688] sm:$0xf]
      %v2690 = vld [vmem:[%s2688 + $0x4] sm:$0xf]
      %v2693 = vunpack.c.l.b16 %v2689
      %v2694 = vunpack.c.l.b16 %v2690
      %v2695 = vpack.c.b16 %v2694, %v2693
      %v2696 = vunpack.c.h.b16 %v268
      %v2697 = vunpack.c.h.b16 %v273
      %v2698 = vpack.c.b16 %v2697, %v2696
      %2699 = vrot.lane.b32.xlu0 %v313, 127
      %v2700 = vpop.permute.xlu0 %2699
      %2701 = vrot.lane.b32.xlu0 %v314, 127
      %v2702 = vpop.permute.xlu0 %2701
      %2703 = vrot.lane.b32.xlu0 %v315, 127
      %v2704 = vpop.permute.xlu0 %2703
      %2705 = vrot.lane.b32.xlu0 %v316, 127
      %v2706 = vpop.permute.xlu0 %2705
      %2707 = vrot.lane.b32.xlu0 %v317, 127
      %v2708 = vpop.permute.xlu0 %2707
      %2709 = vrot.lane.b32.xlu0 %v318, 127
      %v2710 = vpop.permute.xlu0 %2709
      %2711 = vrot.lane.b32.xlu0 %v319, 127
      %v2712 = vpop.permute.xlu0 %2711
      %2713 = vrot.lane.b32.xlu0 %v320, 127
      %v2714 = vpop.permute.xlu0 %2713
      %2715 = vrot.lane.b32.xlu0 %v2698, 127
      %v2716 = vpop.permute.xlu0 %2715
      %vm2717 = vcmask 1039360
      %v2718 = vsel %vm2717, %v2700, %v2702
      %v2719 = vsel %vm2717, %v2702, %v2704
      %v2720 = vsel %vm2717, %v2704, %v2706
      %v2721 = vsel %vm2717, %v2706, %v2708
      %v2722 = vsel %vm2717, %v2708, %v2710
      %v2723 = vsel %vm2717, %v2710, %v2712
      %v2724 = vsel %vm2717, %v2712, %v2714
      %v2725 = vsel %vm2717, %v2714, %v2716
      %v2735 = vsel %vm356, %v2695, 0
      %2737 = vmatpush.bf16.msra.mxu0 0
      %2738 = vmatpush.bf16.msra.mxu0 0
      %2739 = vmatpush.bf16.msra.mxu0 0
      %2740 = vmatpush.bf16.msra.mxu0 0
      %2741 = vmatpush.bf16.msra.mxu0 0
      %2742 = vmatpush.bf16.msra.mxu0 0
      %2743 = vmatpush.bf16.msra.mxu0 0
      %2744 = vmatpush.bf16.msra.mxu0 %v2718
      %2745 = vmatmul.bf16.gmra.mxu0 %v2735
      %v2746 = vpop.f32.mrf.mxu0
      %v2747 = vadd.f32 0.0, %v2746
      %v2748 = vpop.f32.mrf.mxu0
      %v2749 = vadd.f32 0.0, %v2748
      %2750 = vdwg.mxu0
      %2751 = vmatpush.bf16.msra.mxu0 0
      %2752 = vmatpush.bf16.msra.mxu0 0
      %2753 = vmatpush.bf16.msra.mxu0 0
      %2754 = vmatpush.bf16.msra.mxu0 0
      %2755 = vmatpush.bf16.msra.mxu0 0
      %2756 = vmatpush.bf16.msra.mxu0 0
      %2757 = vmatpush.bf16.msra.mxu0 0
      %2758 = vmatpush.bf16.msra.mxu0 %v2719
      %2759 = vmatmul.bf16.gmra.mxu0 %v2735
      %v2760 = vpop.f32.mrf.mxu0
      %v2761 = vadd.f32 0.0, %v2760
      %v2762 = vpop.f32.mrf.mxu0
      %v2763 = vadd.f32 0.0, %v2762
      %2764 = vdwg.mxu0
      %2765 = vmatpush.bf16.msra.mxu0 0
      %2766 = vmatpush.bf16.msra.mxu0 0
      %2767 = vmatpush.bf16.msra.mxu0 0
      %2768 = vmatpush.bf16.msra.mxu0 0
      %2769 = vmatpush.bf16.msra.mxu0 0
      %2770 = vmatpush.bf16.msra.mxu0 0
      %2771 = vmatpush.bf16.msra.mxu0 0
      %2772 = vmatpush.bf16.msra.mxu0 %v2720
      %2773 = vmatmul.bf16.gmra.mxu0 %v2735
      %v2774 = vpop.f32.mrf.mxu0
      %v2775 = vadd.f32 0.0, %v2774
      %v2776 = vpop.f32.mrf.mxu0
      %v2777 = vadd.f32 0.0, %v2776
      %2778 = vdwg.mxu0
      %2779 = vmatpush.bf16.msra.mxu0 0
      %2780 = vmatpush.bf16.msra.mxu0 0
      %2781 = vmatpush.bf16.msra.mxu0 0
      %2782 = vmatpush.bf16.msra.mxu0 0
      %2783 = vmatpush.bf16.msra.mxu0 0
      %2784 = vmatpush.bf16.msra.mxu0 0
      %2785 = vmatpush.bf16.msra.mxu0 0
      %2786 = vmatpush.bf16.msra.mxu0 %v2721
      %2787 = vmatmul.bf16.gmra.mxu0 %v2735
      %v2788 = vpop.f32.mrf.mxu0
      %v2789 = vadd.f32 0.0, %v2788
      %v2790 = vpop.f32.mrf.mxu0
      %v2791 = vadd.f32 0.0, %v2790
      %2792 = vdwg.mxu0
      %2793 = vmatpush.bf16.msra.mxu0 0
      %2794 = vmatpush.bf16.msra.mxu0 0
      %2795 = vmatpush.bf16.msra.mxu0 0
      %2796 = vmatpush.bf16.msra.mxu0 0
      %2797 = vmatpush.bf16.msra.mxu0 0
      %2798 = vmatpush.bf16.msra.mxu0 0
      %2799 = vmatpush.bf16.msra.mxu0 0
      %2800 = vmatpush.bf16.msra.mxu0 %v2722
      %2801 = vmatmul.bf16.gmra.mxu0 %v2735
      %v2802 = vpop.f32.mrf.mxu0
      %v2803 = vadd.f32 0.0, %v2802
      %v2804 = vpop.f32.mrf.mxu0
      %v2805 = vadd.f32 0.0, %v2804
      %2806 = vdwg.mxu0
      %2807 = vmatpush.bf16.msra.mxu0 0
      %2808 = vmatpush.bf16.msra.mxu0 0
      %2809 = vmatpush.bf16.msra.mxu0 0
      %2810 = vmatpush.bf16.msra.mxu0 0
      %2811 = vmatpush.bf16.msra.mxu0 0
      %2812 = vmatpush.bf16.msra.mxu0 0
      %2813 = vmatpush.bf16.msra.mxu0 0
      %2814 = vmatpush.bf16.msra.mxu0 %v2723
      %2815 = vmatmul.bf16.gmra.mxu0 %v2735
      %v2816 = vpop.f32.mrf.mxu0
      %v2817 = vadd.f32 0.0, %v2816
      %v2818 = vpop.f32.mrf.mxu0
      %v2819 = vadd.f32 0.0, %v2818
      %2820 = vdwg.mxu0
      %2821 = vmatpush.bf16.msra.mxu0 0
      %2822 = vmatpush.bf16.msra.mxu0 0
      %2823 = vmatpush.bf16.msra.mxu0 0
      %2824 = vmatpush.bf16.msra.mxu0 0
      %2825 = vmatpush.bf16.msra.mxu0 0
      %2826 = vmatpush.bf16.msra.mxu0 0
      %2827 = vmatpush.bf16.msra.mxu0 0
      %2828 = vmatpush.bf16.msra.mxu0 %v2724
      %2829 = vmatmul.bf16.gmra.mxu0 %v2735
      %v2830 = vpop.f32.mrf.mxu0
      %v2831 = vadd.f32 0.0, %v2830
      %v2832 = vpop.f32.mrf.mxu0
      %v2833 = vadd.f32 0.0, %v2832
      %2834 = vdwg.mxu0
      %2835 = vmatpush.bf16.msra.mxu0 0
      %2836 = vmatpush.bf16.msra.mxu0 0
      %2837 = vmatpush.bf16.msra.mxu0 0
      %2838 = vmatpush.bf16.msra.mxu0 0
      %2839 = vmatpush.bf16.msra.mxu0 0
      %2840 = vmatpush.bf16.msra.mxu0 0
      %2841 = vmatpush.bf16.msra.mxu0 0
      %2842 = vmatpush.bf16.msra.mxu0 %v2725
      %2843 = vmatmul.bf16.gmra.mxu0 %v2735
      %v2844 = vpop.f32.mrf.mxu0
      %v2845 = vadd.f32 0.0, %v2844
      %v2846 = vpop.f32.mrf.mxu0
      %v2847 = vadd.f32 0.0, %v2846
      %2848 = vdwg.mxu0
      %v2849 = vadd.f32 %v2672, %v2747
      %v2850 = vadd.f32 %v2673, %v2761
      %v2851 = vadd.f32 %v2674, %v2775
      %v2852 = vadd.f32 %v2675, %v2789
      %v2853 = vadd.f32 %v2676, %v2803
      %v2854 = vadd.f32 %v2677, %v2817
      %v2855 = vadd.f32 %v2678, %v2831
      %v2856 = vadd.f32 %v2679, %v2845
      %v2857 = vadd.f32 %v2680, %v2749
      %v2858 = vadd.f32 %v2681, %v2763
      %v2859 = vadd.f32 %v2682, %v2777
      %v2860 = vadd.f32 %v2683, %v2791
      %v2861 = vadd.f32 %v2684, %v2805
      %v2862 = vadd.f32 %v2685, %v2819
      %v2863 = vadd.f32 %v2686, %v2833
      %v2864 = vadd.f32 %v2687, %v2847
      %s2865 = scalar_lea.vmem %s2, 120
      %v2866 = vld [vmem:[%s2865] sm:$0xf]
      %v2867 = vld [vmem:[%s2865 + $0x4] sm:$0xf]
      %v2870 = vunpack.c.l.b16 %v2866
      %v2871 = vunpack.c.l.b16 %v2867
      %v2872 = vpack.c.b16 %v2871, %v2870
      %2873 = vrot.lane.b32.xlu0 %v313, 119
      %v2874 = vpop.permute.xlu0 %2873
      %2875 = vrot.lane.b32.xlu0 %v314, 119
      %v2876 = vpop.permute.xlu0 %2875
      %2877 = vrot.lane.b32.xlu0 %v315, 119
      %v2878 = vpop.permute.xlu0 %2877
      %2879 = vrot.lane.b32.xlu0 %v316, 119
      %v2880 = vpop.permute.xlu0 %2879
      %2881 = vrot.lane.b32.xlu0 %v317, 119
      %v2882 = vpop.permute.xlu0 %2881
      %2883 = vrot.lane.b32.xlu0 %v318, 119
      %v2884 = vpop.permute.xlu0 %2883
      %2885 = vrot.lane.b32.xlu0 %v319, 119
      %v2886 = vpop.permute.xlu0 %2885
      %2887 = vrot.lane.b32.xlu0 %v320, 119
      %v2888 = vpop.permute.xlu0 %2887
      %2889 = vrot.lane.b32.xlu0 %v2698, 119
      %v2890 = vpop.permute.xlu0 %2889
      %vm2891 = vcmask 973824
      %v2892 = vsel %vm2891, %v2874, %v2876
      %v2893 = vsel %vm2891, %v2876, %v2878
      %v2894 = vsel %vm2891, %v2878, %v2880
      %v2895 = vsel %vm2891, %v2880, %v2882
      %v2896 = vsel %vm2891, %v2882, %v2884
      %v2897 = vsel %vm2891, %v2884, %v2886
      %v2898 = vsel %vm2891, %v2886, %v2888
      %v2899 = vsel %vm2891, %v2888, %v2890
      %v2909 = vsel %vm356, %v2872, 0
      %2911 = vmatpush.bf16.msra.mxu0 0
      %2912 = vmatpush.bf16.msra.mxu0 0
      %2913 = vmatpush.bf16.msra.mxu0 0
      %2914 = vmatpush.bf16.msra.mxu0 0
      %2915 = vmatpush.bf16.msra.mxu0 0
      %2916 = vmatpush.bf16.msra.mxu0 0
      %2917 = vmatpush.bf16.msra.mxu0 0
      %2918 = vmatpush.bf16.msra.mxu0 %v2892
      %2919 = vmatmul.bf16.gmra.mxu0 %v2909
      %v2920 = vpop.f32.mrf.mxu0
      %v2921 = vadd.f32 0.0, %v2920
      %v2922 = vpop.f32.mrf.mxu0
      %v2923 = vadd.f32 0.0, %v2922
      %2924 = vdwg.mxu0
      %2925 = vmatpush.bf16.msra.mxu0 0
      %2926 = vmatpush.bf16.msra.mxu0 0
      %2927 = vmatpush.bf16.msra.mxu0 0
      %2928 = vmatpush.bf16.msra.mxu0 0
      %2929 = vmatpush.bf16.msra.mxu0 0
      %2930 = vmatpush.bf16.msra.mxu0 0
      %2931 = vmatpush.bf16.msra.mxu0 0
      %2932 = vmatpush.bf16.msra.mxu0 %v2893
      %2933 = vmatmul.bf16.gmra.mxu0 %v2909
      %v2934 = vpop.f32.mrf.mxu0
      %v2935 = vadd.f32 0.0, %v2934
      %v2936 = vpop.f32.mrf.mxu0
      %v2937 = vadd.f32 0.0, %v2936
      %2938 = vdwg.mxu0
      %2939 = vmatpush.bf16.msra.mxu0 0
      %2940 = vmatpush.bf16.msra.mxu0 0
      %2941 = vmatpush.bf16.msra.mxu0 0
      %2942 = vmatpush.bf16.msra.mxu0 0
      %2943 = vmatpush.bf16.msra.mxu0 0
      %2944 = vmatpush.bf16.msra.mxu0 0
      %2945 = vmatpush.bf16.msra.mxu0 0
      %2946 = vmatpush.bf16.msra.mxu0 %v2894
      %2947 = vmatmul.bf16.gmra.mxu0 %v2909
      %v2948 = vpop.f32.mrf.mxu0
      %v2949 = vadd.f32 0.0, %v2948
      %v2950 = vpop.f32.mrf.mxu0
      %v2951 = vadd.f32 0.0, %v2950
      %2952 = vdwg.mxu0
      %2953 = vmatpush.bf16.msra.mxu0 0
      %2954 = vmatpush.bf16.msra.mxu0 0
      %2955 = vmatpush.bf16.msra.mxu0 0
      %2956 = vmatpush.bf16.msra.mxu0 0
      %2957 = vmatpush.bf16.msra.mxu0 0
      %2958 = vmatpush.bf16.msra.mxu0 0
      %2959 = vmatpush.bf16.msra.mxu0 0
      %2960 = vmatpush.bf16.msra.mxu0 %v2895
      %2961 = vmatmul.bf16.gmra.mxu0 %v2909
      %v2962 = vpop.f32.mrf.mxu0
      %v2963 = vadd.f32 0.0, %v2962
      %v2964 = vpop.f32.mrf.mxu0
      %v2965 = vadd.f32 0.0, %v2964
      %2966 = vdwg.mxu0
      %2967 = vmatpush.bf16.msra.mxu0 0
      %2968 = vmatpush.bf16.msra.mxu0 0
      %2969 = vmatpush.bf16.msra.mxu0 0
      %2970 = vmatpush.bf16.msra.mxu0 0
      %2971 = vmatpush.bf16.msra.mxu0 0
      %2972 = vmatpush.bf16.msra.mxu0 0
      %2973 = vmatpush.bf16.msra.mxu0 0
      %2974 = vmatpush.bf16.msra.mxu0 %v2896
      %2975 = vmatmul.bf16.gmra.mxu0 %v2909
      %v2976 = vpop.f32.mrf.mxu0
      %v2977 = vadd.f32 0.0, %v2976
      %v2978 = vpop.f32.mrf.mxu0
      %v2979 = vadd.f32 0.0, %v2978
      %2980 = vdwg.mxu0
      %2981 = vmatpush.bf16.msra.mxu0 0
      %2982 = vmatpush.bf16.msra.mxu0 0
      %2983 = vmatpush.bf16.msra.mxu0 0
      %2984 = vmatpush.bf16.msra.mxu0 0
      %2985 = vmatpush.bf16.msra.mxu0 0
      %2986 = vmatpush.bf16.msra.mxu0 0
      %2987 = vmatpush.bf16.msra.mxu0 0
      %2988 = vmatpush.bf16.msra.mxu0 %v2897
      %2989 = vmatmul.bf16.gmra.mxu0 %v2909
      %v2990 = vpop.f32.mrf.mxu0
      %v2991 = vadd.f32 0.0, %v2990
      %v2992 = vpop.f32.mrf.mxu0
      %v2993 = vadd.f32 0.0, %v2992
      %2994 = vdwg.mxu0
      %2995 = vmatpush.bf16.msra.mxu0 0
      %2996 = vmatpush.bf16.msra.mxu0 0
      %2997 = vmatpush.bf16.msra.mxu0 0
      %2998 = vmatpush.bf16.msra.mxu0 0
      %2999 = vmatpush.bf16.msra.mxu0 0
      %3000 = vmatpush.bf16.msra.mxu0 0
      %3001 = vmatpush.bf16.msra.mxu0 0
      %3002 = vmatpush.bf16.msra.mxu0 %v2898
      %3003 = vmatmul.bf16.gmra.mxu0 %v2909
      %v3004 = vpop.f32.mrf.mxu0
      %v3005 = vadd.f32 0.0, %v3004
      %v3006 = vpop.f32.mrf.mxu0
      %v3007 = vadd.f32 0.0, %v3006
      %3008 = vdwg.mxu0
      %3009 = vmatpush.bf16.msra.mxu0 0
      %3010 = vmatpush.bf16.msra.mxu0 0
      %3011 = vmatpush.bf16.msra.mxu0 0
      %3012 = vmatpush.bf16.msra.mxu0 0
      %3013 = vmatpush.bf16.msra.mxu0 0
      %3014 = vmatpush.bf16.msra.mxu0 0
      %3015 = vmatpush.bf16.msra.mxu0 0
      %3016 = vmatpush.bf16.msra.mxu0 %v2899
      %3017 = vmatmul.bf16.gmra.mxu0 %v2909
      %v3018 = vpop.f32.mrf.mxu0
      %v3019 = vadd.f32 0.0, %v3018
      %v3020 = vpop.f32.mrf.mxu0
      %v3021 = vadd.f32 0.0, %v3020
      %3022 = vdwg.mxu0
      %v3023 = vadd.f32 %v2849, %v2921
      %v3024 = vadd.f32 %v2850, %v2935
      %v3025 = vadd.f32 %v2851, %v2949
      %v3026 = vadd.f32 %v2852, %v2963
      %v3027 = vadd.f32 %v2853, %v2977
      %v3028 = vadd.f32 %v2854, %v2991
      %v3029 = vadd.f32 %v2855, %v3005
      %v3030 = vadd.f32 %v2856, %v3019
      %v3031 = vadd.f32 %v2857, %v2923
      %v3032 = vadd.f32 %v2858, %v2937
      %v3033 = vadd.f32 %v2859, %v2951
      %v3034 = vadd.f32 %v2860, %v2965
      %v3035 = vadd.f32 %v2861, %v2979
      %v3036 = vadd.f32 %v2862, %v2993
      %v3037 = vadd.f32 %v2863, %v3007
      %v3038 = vadd.f32 %v2864, %v3021
      %s3039 = scalar_lea.vmem %s2, 128
      %v3040 = vld [vmem:[%s3039] sm:$0xf]
      %v3041 = vld [vmem:[%s3039 + $0x4] sm:$0xf]
      %v3044 = vunpack.c.l.b16 %v3040
      %v3045 = vunpack.c.l.b16 %v3041
      %v3046 = vpack.c.b16 %v3045, %v3044
      %3047 = vrot.lane.b32.xlu0 %v313, 118
      %v3048 = vpop.permute.xlu0 %3047
      %3049 = vrot.lane.b32.xlu0 %v314, 118
      %v3050 = vpop.permute.xlu0 %3049
      %3051 = vrot.lane.b32.xlu0 %v315, 118
      %v3052 = vpop.permute.xlu0 %3051
      %3053 = vrot.lane.b32.xlu0 %v316, 118
      %v3054 = vpop.permute.xlu0 %3053
      %3055 = vrot.lane.b32.xlu0 %v317, 118
      %v3056 = vpop.permute.xlu0 %3055
      %3057 = vrot.lane.b32.xlu0 %v318, 118
      %v3058 = vpop.permute.xlu0 %3057
      %3059 = vrot.lane.b32.xlu0 %v319, 118
      %v3060 = vpop.permute.xlu0 %3059
      %3061 = vrot.lane.b32.xlu0 %v320, 118
      %v3062 = vpop.permute.xlu0 %3061
      %3063 = vrot.lane.b32.xlu0 %v2698, 118
      %v3064 = vpop.permute.xlu0 %3063
      %vm3065 = vcmask 965632
      %v3066 = vsel %vm3065, %v3048, %v3050
      %v3067 = vsel %vm3065, %v3050, %v3052
      %v3068 = vsel %vm3065, %v3052, %v3054
      %v3069 = vsel %vm3065, %v3054, %v3056
      %v3070 = vsel %vm3065, %v3056, %v3058
      %v3071 = vsel %vm3065, %v3058, %v3060
      %v3072 = vsel %vm3065, %v3060, %v3062
      %v3073 = vsel %vm3065, %v3062, %v3064
      %v3083 = vsel %vm356, %v3046, 0
      %3085 = vmatpush.bf16.msra.mxu0 0
      %3086 = vmatpush.bf16.msra.mxu0 0
      %3087 = vmatpush.bf16.msra.mxu0 0
      %3088 = vmatpush.bf16.msra.mxu0 0
      %3089 = vmatpush.bf16.msra.mxu0 0
      %3090 = vmatpush.bf16.msra.mxu0 0
      %3091 = vmatpush.bf16.msra.mxu0 0
      %3092 = vmatpush.bf16.msra.mxu0 %v3066
      %3093 = vmatmul.bf16.gmra.mxu0 %v3083
      %v3094 = vpop.f32.mrf.mxu0
      %v3095 = vadd.f32 0.0, %v3094
      %v3096 = vpop.f32.mrf.mxu0
      %v3097 = vadd.f32 0.0, %v3096
      %3098 = vdwg.mxu0
      %3099 = vmatpush.bf16.msra.mxu0 0
      %3100 = vmatpush.bf16.msra.mxu0 0
      %3101 = vmatpush.bf16.msra.mxu0 0
      %3102 = vmatpush.bf16.msra.mxu0 0
      %3103 = vmatpush.bf16.msra.mxu0 0
      %3104 = vmatpush.bf16.msra.mxu0 0
      %3105 = vmatpush.bf16.msra.mxu0 0
      %3106 = vmatpush.bf16.msra.mxu0 %v3067
      %3107 = vmatmul.bf16.gmra.mxu0 %v3083
      %v3108 = vpop.f32.mrf.mxu0
      %v3109 = vadd.f32 0.0, %v3108
      %v3110 = vpop.f32.mrf.mxu0
      %v3111 = vadd.f32 0.0, %v3110
      %3112 = vdwg.mxu0
      %3113 = vmatpush.bf16.msra.mxu0 0
      %3114 = vmatpush.bf16.msra.mxu0 0
      %3115 = vmatpush.bf16.msra.mxu0 0
      %3116 = vmatpush.bf16.msra.mxu0 0
      %3117 = vmatpush.bf16.msra.mxu0 0
      %3118 = vmatpush.bf16.msra.mxu0 0
      %3119 = vmatpush.bf16.msra.mxu0 0
      %3120 = vmatpush.bf16.msra.mxu0 %v3068
      %3121 = vmatmul.bf16.gmra.mxu0 %v3083
      %v3122 = vpop.f32.mrf.mxu0
      %v3123 = vadd.f32 0.0, %v3122
      %v3124 = vpop.f32.mrf.mxu0
      %v3125 = vadd.f32 0.0, %v3124
      %3126 = vdwg.mxu0
      %3127 = vmatpush.bf16.msra.mxu0 0
      %3128 = vmatpush.bf16.msra.mxu0 0
      %3129 = vmatpush.bf16.msra.mxu0 0
      %3130 = vmatpush.bf16.msra.mxu0 0
      %3131 = vmatpush.bf16.msra.mxu0 0
      %3132 = vmatpush.bf16.msra.mxu0 0
      %3133 = vmatpush.bf16.msra.mxu0 0
      %3134 = vmatpush.bf16.msra.mxu0 %v3069
      %3135 = vmatmul.bf16.gmra.mxu0 %v3083
      %v3136 = vpop.f32.mrf.mxu0
      %v3137 = vadd.f32 0.0, %v3136
      %v3138 = vpop.f32.mrf.mxu0
      %v3139 = vadd.f32 0.0, %v3138
      %3140 = vdwg.mxu0
      %3141 = vmatpush.bf16.msra.mxu0 0
      %3142 = vmatpush.bf16.msra.mxu0 0
      %3143 = vmatpush.bf16.msra.mxu0 0
      %3144 = vmatpush.bf16.msra.mxu0 0
      %3145 = vmatpush.bf16.msra.mxu0 0
      %3146 = vmatpush.bf16.msra.mxu0 0
      %3147 = vmatpush.bf16.msra.mxu0 0
      %3148 = vmatpush.bf16.msra.mxu0 %v3070
      %3149 = vmatmul.bf16.gmra.mxu0 %v3083
      %v3150 = vpop.f32.mrf.mxu0
      %v3151 = vadd.f32 0.0, %v3150
      %v3152 = vpop.f32.mrf.mxu0
      %v3153 = vadd.f32 0.0, %v3152
      %3154 = vdwg.mxu0
      %3155 = vmatpush.bf16.msra.mxu0 0
      %3156 = vmatpush.bf16.msra.mxu0 0
      %3157 = vmatpush.bf16.msra.mxu0 0
      %3158 = vmatpush.bf16.msra.mxu0 0
      %3159 = vmatpush.bf16.msra.mxu0 0
      %3160 = vmatpush.bf16.msra.mxu0 0
      %3161 = vmatpush.bf16.msra.mxu0 0
      %3162 = vmatpush.bf16.msra.mxu0 %v3071
      %3163 = vmatmul.bf16.gmra.mxu0 %v3083
      %v3164 = vpop.f32.mrf.mxu0
      %v3165 = vadd.f32 0.0, %v3164
      %v3166 = vpop.f32.mrf.mxu0
      %v3167 = vadd.f32 0.0, %v3166
      %3168 = vdwg.mxu0
      %3169 = vmatpush.bf16.msra.mxu0 0
      %3170 = vmatpush.bf16.msra.mxu0 0
      %3171 = vmatpush.bf16.msra.mxu0 0
      %3172 = vmatpush.bf16.msra.mxu0 0
      %3173 = vmatpush.bf16.msra.mxu0 0
      %3174 = vmatpush.bf16.msra.mxu0 0
      %3175 = vmatpush.bf16.msra.mxu0 0
      %3176 = vmatpush.bf16.msra.mxu0 %v3072
      %3177 = vmatmul.bf16.gmra.mxu0 %v3083
      %v3178 = vpop.f32.mrf.mxu0
      %v3179 = vadd.f32 0.0, %v3178
      %v3180 = vpop.f32.mrf.mxu0
      %v3181 = vadd.f32 0.0, %v3180
      %3182 = vdwg.mxu0
      %3183 = vmatpush.bf16.msra.mxu0 0
      %3184 = vmatpush.bf16.msra.mxu0 0
      %3185 = vmatpush.bf16.msra.mxu0 0
      %3186 = vmatpush.bf16.msra.mxu0 0
      %3187 = vmatpush.bf16.msra.mxu0 0
      %3188 = vmatpush.bf16.msra.mxu0 0
      %3189 = vmatpush.bf16.msra.mxu0 0
      %3190 = vmatpush.bf16.msra.mxu0 %v3073
      %3191 = vmatmul.bf16.gmra.mxu0 %v3083
      %v3192 = vpop.f32.mrf.mxu0
      %v3193 = vadd.f32 0.0, %v3192
      %v3194 = vpop.f32.mrf.mxu0
      %v3195 = vadd.f32 0.0, %v3194
      %3196 = vdwg.mxu0
      %v3197 = vadd.f32 %v3023, %v3095
      %v3198 = vadd.f32 %v3024, %v3109
      %v3199 = vadd.f32 %v3025, %v3123
      %v3200 = vadd.f32 %v3026, %v3137
      %v3201 = vadd.f32 %v3027, %v3151
      %v3202 = vadd.f32 %v3028, %v3165
      %v3203 = vadd.f32 %v3029, %v3179
      %v3204 = vadd.f32 %v3030, %v3193
      %v3205 = vadd.f32 %v3031, %v3097
      %v3206 = vadd.f32 %v3032, %v3111
      %v3207 = vadd.f32 %v3033, %v3125
      %v3208 = vadd.f32 %v3034, %v3139
      %v3209 = vadd.f32 %v3035, %v3153
      %v3210 = vadd.f32 %v3036, %v3167
      %v3211 = vadd.f32 %v3037, %v3181
      %v3212 = vadd.f32 %v3038, %v3195
      %s3213 = scalar_lea.vmem %s2, 136
      %v3214 = vld [vmem:[%s3213] sm:$0xf]
      %v3215 = vld [vmem:[%s3213 + $0x4] sm:$0xf]
      %v3218 = vunpack.c.l.b16 %v3214
      %v3219 = vunpack.c.l.b16 %v3215
      %v3220 = vpack.c.b16 %v3219, %v3218
      %3221 = vrot.lane.b32.xlu0 %v313, 117
      %v3222 = vpop.permute.xlu0 %3221
      %3223 = vrot.lane.b32.xlu0 %v314, 117
      %v3224 = vpop.permute.xlu0 %3223
      %3225 = vrot.lane.b32.xlu0 %v315, 117
      %v3226 = vpop.permute.xlu0 %3225
      %3227 = vrot.lane.b32.xlu0 %v316, 117
      %v3228 = vpop.permute.xlu0 %3227
      %3229 = vrot.lane.b32.xlu0 %v317, 117
      %v3230 = vpop.permute.xlu0 %3229
      %3231 = vrot.lane.b32.xlu0 %v318, 117
      %v3232 = vpop.permute.xlu0 %3231
      %3233 = vrot.lane.b32.xlu0 %v319, 117
      %v3234 = vpop.permute.xlu0 %3233
      %3235 = vrot.lane.b32.xlu0 %v320, 117
      %v3236 = vpop.permute.xlu0 %3235
      %3237 = vrot.lane.b32.xlu0 %v2698, 117
      %v3238 = vpop.permute.xlu0 %3237
      %vm3239 = vcmask 957440
      %v3240 = vsel %vm3239, %v3222, %v3224
      %v3241 = vsel %vm3239, %v3224, %v3226
      %v3242 = vsel %vm3239, %v3226, %v3228
      %v3243 = vsel %vm3239, %v3228, %v3230
      %v3244 = vsel %vm3239, %v3230, %v3232
      %v3245 = vsel %vm3239, %v3232, %v3234
      %v3246 = vsel %vm3239, %v3234, %v3236
      %v3247 = vsel %vm3239, %v3236, %v3238
      %v3257 = vsel %vm356, %v3220, 0
      %3259 = vmatpush.bf16.msra.mxu0 0
      %3260 = vmatpush.bf16.msra.mxu0 0
      %3261 = vmatpush.bf16.msra.mxu0 0
      %3262 = vmatpush.bf16.msra.mxu0 0
      %3263 = vmatpush.bf16.msra.mxu0 0
      %3264 = vmatpush.bf16.msra.mxu0 0
      %3265 = vmatpush.bf16.msra.mxu0 0
      %3266 = vmatpush.bf16.msra.mxu0 %v3240
      %3267 = vmatmul.bf16.gmra.mxu0 %v3257
      %v3268 = vpop.f32.mrf.mxu0
      %v3269 = vadd.f32 0.0, %v3268
      %v3270 = vpop.f32.mrf.mxu0
      %v3271 = vadd.f32 0.0, %v3270
      %3272 = vdwg.mxu0
      %3273 = vmatpush.bf16.msra.mxu0 0
      %3274 = vmatpush.bf16.msra.mxu0 0
      %3275 = vmatpush.bf16.msra.mxu0 0
      %3276 = vmatpush.bf16.msra.mxu0 0
      %3277 = vmatpush.bf16.msra.mxu0 0
      %3278 = vmatpush.bf16.msra.mxu0 0
      %3279 = vmatpush.bf16.msra.mxu0 0
      %3280 = vmatpush.bf16.msra.mxu0 %v3241
      %3281 = vmatmul.bf16.gmra.mxu0 %v3257
      %v3282 = vpop.f32.mrf.mxu0
      %v3283 = vadd.f32 0.0, %v3282
      %v3284 = vpop.f32.mrf.mxu0
      %v3285 = vadd.f32 0.0, %v3284
      %3286 = vdwg.mxu0
      %3287 = vmatpush.bf16.msra.mxu0 0
      %3288 = vmatpush.bf16.msra.mxu0 0
      %3289 = vmatpush.bf16.msra.mxu0 0
      %3290 = vmatpush.bf16.msra.mxu0 0
      %3291 = vmatpush.bf16.msra.mxu0 0
      %3292 = vmatpush.bf16.msra.mxu0 0
      %3293 = vmatpush.bf16.msra.mxu0 0
      %3294 = vmatpush.bf16.msra.mxu0 %v3242
      %3295 = vmatmul.bf16.gmra.mxu0 %v3257
      %v3296 = vpop.f32.mrf.mxu0
      %v3297 = vadd.f32 0.0, %v3296
      %v3298 = vpop.f32.mrf.mxu0
      %v3299 = vadd.f32 0.0, %v3298
      %3300 = vdwg.mxu0
      %3301 = vmatpush.bf16.msra.mxu0 0
      %3302 = vmatpush.bf16.msra.mxu0 0
      %3303 = vmatpush.bf16.msra.mxu0 0
      %3304 = vmatpush.bf16.msra.mxu0 0
      %3305 = vmatpush.bf16.msra.mxu0 0
      %3306 = vmatpush.bf16.msra.mxu0 0
      %3307 = vmatpush.bf16.msra.mxu0 0
      %3308 = vmatpush.bf16.msra.mxu0 %v3243
      %3309 = vmatmul.bf16.gmra.mxu0 %v3257
      %v3310 = vpop.f32.mrf.mxu0
      %v3311 = vadd.f32 0.0, %v3310
      %v3312 = vpop.f32.mrf.mxu0
      %v3313 = vadd.f32 0.0, %v3312
      %3314 = vdwg.mxu0
      %3315 = vmatpush.bf16.msra.mxu0 0
      %3316 = vmatpush.bf16.msra.mxu0 0
      %3317 = vmatpush.bf16.msra.mxu0 0
      %3318 = vmatpush.bf16.msra.mxu0 0
      %3319 = vmatpush.bf16.msra.mxu0 0
      %3320 = vmatpush.bf16.msra.mxu0 0
      %3321 = vmatpush.bf16.msra.mxu0 0
      %3322 = vmatpush.bf16.msra.mxu0 %v3244
      %3323 = vmatmul.bf16.gmra.mxu0 %v3257
      %v3324 = vpop.f32.mrf.mxu0
      %v3325 = vadd.f32 0.0, %v3324
      %v3326 = vpop.f32.mrf.mxu0
      %v3327 = vadd.f32 0.0, %v3326
      %3328 = vdwg.mxu0
      %3329 = vmatpush.bf16.msra.mxu0 0
      %3330 = vmatpush.bf16.msra.mxu0 0
      %3331 = vmatpush.bf16.msra.mxu0 0
      %3332 = vmatpush.bf16.msra.mxu0 0
      %3333 = vmatpush.bf16.msra.mxu0 0
      %3334 = vmatpush.bf16.msra.mxu0 0
      %3335 = vmatpush.bf16.msra.mxu0 0
      %3336 = vmatpush.bf16.msra.mxu0 %v3245
      %3337 = vmatmul.bf16.gmra.mxu0 %v3257
      %v3338 = vpop.f32.mrf.mxu0
      %v3339 = vadd.f32 0.0, %v3338
      %v3340 = vpop.f32.mrf.mxu0
      %v3341 = vadd.f32 0.0, %v3340
      %3342 = vdwg.mxu0
      %3343 = vmatpush.bf16.msra.mxu0 0
      %3344 = vmatpush.bf16.msra.mxu0 0
      %3345 = vmatpush.bf16.msra.mxu0 0
      %3346 = vmatpush.bf16.msra.mxu0 0
      %3347 = vmatpush.bf16.msra.mxu0 0
      %3348 = vmatpush.bf16.msra.mxu0 0
      %3349 = vmatpush.bf16.msra.mxu0 0
      %3350 = vmatpush.bf16.msra.mxu0 %v3246
      %3351 = vmatmul.bf16.gmra.mxu0 %v3257
      %v3352 = vpop.f32.mrf.mxu0
      %v3353 = vadd.f32 0.0, %v3352
      %v3354 = vpop.f32.mrf.mxu0
      %v3355 = vadd.f32 0.0, %v3354
      %3356 = vdwg.mxu0
      %3357 = vmatpush.bf16.msra.mxu0 0
      %3358 = vmatpush.bf16.msra.mxu0 0
      %3359 = vmatpush.bf16.msra.mxu0 0
      %3360 = vmatpush.bf16.msra.mxu0 0
      %3361 = vmatpush.bf16.msra.mxu0 0
      %3362 = vmatpush.bf16.msra.mxu0 0
      %3363 = vmatpush.bf16.msra.mxu0 0
      %3364 = vmatpush.bf16.msra.mxu0 %v3247
      %3365 = vmatmul.bf16.gmra.mxu0 %v3257
      %v3366 = vpop.f32.mrf.mxu0
      %v3367 = vadd.f32 0.0, %v3366
      %v3368 = vpop.f32.mrf.mxu0
      %v3369 = vadd.f32 0.0, %v3368
      %3370 = vdwg.mxu0
      %v3371 = vadd.f32 %v3197, %v3269
      %v3372 = vadd.f32 %v3198, %v3283
      %v3373 = vadd.f32 %v3199, %v3297
      %v3374 = vadd.f32 %v3200, %v3311
      %v3375 = vadd.f32 %v3201, %v3325
      %v3376 = vadd.f32 %v3202, %v3339
      %v3377 = vadd.f32 %v3203, %v3353
      %v3378 = vadd.f32 %v3204, %v3367
      %v3379 = vadd.f32 %v3205, %v3271
      %v3380 = vadd.f32 %v3206, %v3285
      %v3381 = vadd.f32 %v3207, %v3299
      %v3382 = vadd.f32 %v3208, %v3313
      %v3383 = vadd.f32 %v3209, %v3327
      %v3384 = vadd.f32 %v3210, %v3341
      %v3385 = vadd.f32 %v3211, %v3355
      %v3386 = vadd.f32 %v3212, %v3369
      %s3387 = scalar_lea.vmem %s2, 144
      %v3388 = vld [vmem:[%s3387] sm:$0xf]
      %v3389 = vld [vmem:[%s3387 + $0x4] sm:$0xf]
      %v3392 = vunpack.c.l.b16 %v3388
      %v3393 = vunpack.c.l.b16 %v3389
      %v3394 = vpack.c.b16 %v3393, %v3392
      %3395 = vrot.lane.b32.xlu0 %v313, 39
      %v3396 = vpop.permute.xlu0 %3395
      %3397 = vrot.lane.b32.xlu0 %v314, 39
      %v3398 = vpop.permute.xlu0 %3397
      %3399 = vrot.lane.b32.xlu0 %v315, 39
      %v3400 = vpop.permute.xlu0 %3399
      %3401 = vrot.lane.b32.xlu0 %v316, 39
      %v3402 = vpop.permute.xlu0 %3401
      %3403 = vrot.lane.b32.xlu0 %v317, 39
      %v3404 = vpop.permute.xlu0 %3403
      %3405 = vrot.lane.b32.xlu0 %v318, 39
      %v3406 = vpop.permute.xlu0 %3405
      %3407 = vrot.lane.b32.xlu0 %v319, 39
      %v3408 = vpop.permute.xlu0 %3407
      %3409 = vrot.lane.b32.xlu0 %v320, 39
      %v3410 = vpop.permute.xlu0 %3409
      %3411 = vrot.lane.b32.xlu0 %v2698, 39
      %v3412 = vpop.permute.xlu0 %3411
      %vm3413 = vcmask 318464
      %v3414 = vsel %vm3413, %v3396, %v3398
      %v3415 = vsel %vm3413, %v3398, %v3400
      %v3416 = vsel %vm3413, %v3400, %v3402
      %v3417 = vsel %vm3413, %v3402, %v3404
      %v3418 = vsel %vm3413, %v3404, %v3406
      %v3419 = vsel %vm3413, %v3406, %v3408
      %v3420 = vsel %vm3413, %v3408, %v3410
      %v3421 = vsel %vm3413, %v3410, %v3412
      %v3431 = vsel %vm356, %v3394, 0
      %3433 = vmatpush.bf16.msra.mxu0 0
      %3434 = vmatpush.bf16.msra.mxu0 0
      %3435 = vmatpush.bf16.msra.mxu0 0
      %3436 = vmatpush.bf16.msra.mxu0 0
      %3437 = vmatpush.bf16.msra.mxu0 0
      %3438 = vmatpush.bf16.msra.mxu0 0
      %3439 = vmatpush.bf16.msra.mxu0 0
      %3440 = vmatpush.bf16.msra.mxu0 %v3414
      %3441 = vmatmul.bf16.gmra.mxu0 %v3431
      %v3442 = vpop.f32.mrf.mxu0
      %v3443 = vadd.f32 0.0, %v3442
      %v3444 = vpop.f32.mrf.mxu0
      %v3445 = vadd.f32 0.0, %v3444
      %3446 = vdwg.mxu0
      %3447 = vmatpush.bf16.msra.mxu0 0
      %3448 = vmatpush.bf16.msra.mxu0 0
      %3449 = vmatpush.bf16.msra.mxu0 0
      %3450 = vmatpush.bf16.msra.mxu0 0
      %3451 = vmatpush.bf16.msra.mxu0 0
      %3452 = vmatpush.bf16.msra.mxu0 0
      %3453 = vmatpush.bf16.msra.mxu0 0
      %3454 = vmatpush.bf16.msra.mxu0 %v3415
      %3455 = vmatmul.bf16.gmra.mxu0 %v3431
      %v3456 = vpop.f32.mrf.mxu0
      %v3457 = vadd.f32 0.0, %v3456
      %v3458 = vpop.f32.mrf.mxu0
      %v3459 = vadd.f32 0.0, %v3458
      %3460 = vdwg.mxu0
      %3461 = vmatpush.bf16.msra.mxu0 0
      %3462 = vmatpush.bf16.msra.mxu0 0
      %3463 = vmatpush.bf16.msra.mxu0 0
      %3464 = vmatpush.bf16.msra.mxu0 0
      %3465 = vmatpush.bf16.msra.mxu0 0
      %3466 = vmatpush.bf16.msra.mxu0 0
      %3467 = vmatpush.bf16.msra.mxu0 0
      %3468 = vmatpush.bf16.msra.mxu0 %v3416
      %3469 = vmatmul.bf16.gmra.mxu0 %v3431
      %v3470 = vpop.f32.mrf.mxu0
      %v3471 = vadd.f32 0.0, %v3470
      %v3472 = vpop.f32.mrf.mxu0
      %v3473 = vadd.f32 0.0, %v3472
      %3474 = vdwg.mxu0
      %3475 = vmatpush.bf16.msra.mxu0 0
      %3476 = vmatpush.bf16.msra.mxu0 0
      %3477 = vmatpush.bf16.msra.mxu0 0
      %3478 = vmatpush.bf16.msra.mxu0 0
      %3479 = vmatpush.bf16.msra.mxu0 0
      %3480 = vmatpush.bf16.msra.mxu0 0
      %3481 = vmatpush.bf16.msra.mxu0 0
      %3482 = vmatpush.bf16.msra.mxu0 %v3417
      %3483 = vmatmul.bf16.gmra.mxu0 %v3431
      %v3484 = vpop.f32.mrf.mxu0
      %v3485 = vadd.f32 0.0, %v3484
      %v3486 = vpop.f32.mrf.mxu0
      %v3487 = vadd.f32 0.0, %v3486
      %3488 = vdwg.mxu0
      %3489 = vmatpush.bf16.msra.mxu0 0
      %3490 = vmatpush.bf16.msra.mxu0 0
      %3491 = vmatpush.bf16.msra.mxu0 0
      %3492 = vmatpush.bf16.msra.mxu0 0
      %3493 = vmatpush.bf16.msra.mxu0 0
      %3494 = vmatpush.bf16.msra.mxu0 0
      %3495 = vmatpush.bf16.msra.mxu0 0
      %3496 = vmatpush.bf16.msra.mxu0 %v3418
      %3497 = vmatmul.bf16.gmra.mxu0 %v3431
      %v3498 = vpop.f32.mrf.mxu0
      %v3499 = vadd.f32 0.0, %v3498
      %v3500 = vpop.f32.mrf.mxu0
      %v3501 = vadd.f32 0.0, %v3500
      %3502 = vdwg.mxu0
      %3503 = vmatpush.bf16.msra.mxu0 0
      %3504 = vmatpush.bf16.msra.mxu0 0
      %3505 = vmatpush.bf16.msra.mxu0 0
      %3506 = vmatpush.bf16.msra.mxu0 0
      %3507 = vmatpush.bf16.msra.mxu0 0
      %3508 = vmatpush.bf16.msra.mxu0 0
      %3509 = vmatpush.bf16.msra.mxu0 0
      %3510 = vmatpush.bf16.msra.mxu0 %v3419
      %3511 = vmatmul.bf16.gmra.mxu0 %v3431
      %v3512 = vpop.f32.mrf.mxu0
      %v3513 = vadd.f32 0.0, %v3512
      %v3514 = vpop.f32.mrf.mxu0
      %v3515 = vadd.f32 0.0, %v3514
      %3516 = vdwg.mxu0
      %3517 = vmatpush.bf16.msra.mxu0 0
      %3518 = vmatpush.bf16.msra.mxu0 0
      %3519 = vmatpush.bf16.msra.mxu0 0
      %3520 = vmatpush.bf16.msra.mxu0 0
      %3521 = vmatpush.bf16.msra.mxu0 0
      %3522 = vmatpush.bf16.msra.mxu0 0
      %3523 = vmatpush.bf16.msra.mxu0 0
      %3524 = vmatpush.bf16.msra.mxu0 %v3420
      %3525 = vmatmul.bf16.gmra.mxu0 %v3431
      %v3526 = vpop.f32.mrf.mxu0
      %v3527 = vadd.f32 0.0, %v3526
      %v3528 = vpop.f32.mrf.mxu0
      %v3529 = vadd.f32 0.0, %v3528
      %3530 = vdwg.mxu0
      %3531 = vmatpush.bf16.msra.mxu0 0
      %3532 = vmatpush.bf16.msra.mxu0 0
      %3533 = vmatpush.bf16.msra.mxu0 0
      %3534 = vmatpush.bf16.msra.mxu0 0
      %3535 = vmatpush.bf16.msra.mxu0 0
      %3536 = vmatpush.bf16.msra.mxu0 0
      %3537 = vmatpush.bf16.msra.mxu0 0
      %3538 = vmatpush.bf16.msra.mxu0 %v3421
      %3539 = vmatmul.bf16.gmra.mxu0 %v3431
      %v3540 = vpop.f32.mrf.mxu0
      %v3541 = vadd.f32 0.0, %v3540
      %v3542 = vpop.f32.mrf.mxu0
      %v3543 = vadd.f32 0.0, %v3542
      %3544 = vdwg.mxu0
      %v3545 = vadd.f32 %v3371, %v3443
      %v3546 = vadd.f32 %v3372, %v3457
      %v3547 = vadd.f32 %v3373, %v3471
      %v3548 = vadd.f32 %v3374, %v3485
      %v3549 = vadd.f32 %v3375, %v3499
      %v3550 = vadd.f32 %v3376, %v3513
      %v3551 = vadd.f32 %v3377, %v3527
      %v3552 = vadd.f32 %v3378, %v3541
      %v3553 = vadd.f32 %v3379, %v3445
      %v3554 = vadd.f32 %v3380, %v3459
      %v3555 = vadd.f32 %v3381, %v3473
      %v3556 = vadd.f32 %v3382, %v3487
      %v3557 = vadd.f32 %v3383, %v3501
      %v3558 = vadd.f32 %v3384, %v3515
      %v3559 = vadd.f32 %v3385, %v3529
      %v3560 = vadd.f32 %v3386, %v3543
      %s3561 = scalar_lea.vmem %s2, 152
      %v3562 = vld [vmem:[%s3561] sm:$0xf]
      %v3563 = vld [vmem:[%s3561 + $0x4] sm:$0xf]
      %v3566 = vunpack.c.l.b16 %v3562
      %v3567 = vunpack.c.l.b16 %v3563
      %v3568 = vpack.c.b16 %v3567, %v3566
      %3569 = vrot.lane.b32.xlu0 %v313, 38
      %v3570 = vpop.permute.xlu0 %3569
      %3571 = vrot.lane.b32.xlu0 %v314, 38
      %v3572 = vpop.permute.xlu0 %3571
      %3573 = vrot.lane.b32.xlu0 %v315, 38
      %v3574 = vpop.permute.xlu0 %3573
      %3575 = vrot.lane.b32.xlu0 %v316, 38
      %v3576 = vpop.permute.xlu0 %3575
      %3577 = vrot.lane.b32.xlu0 %v317, 38
      %v3578 = vpop.permute.xlu0 %3577
      %3579 = vrot.lane.b32.xlu0 %v318, 38
      %v3580 = vpop.permute.xlu0 %3579
      %3581 = vrot.lane.b32.xlu0 %v319, 38
      %v3582 = vpop.permute.xlu0 %3581
      %3583 = vrot.lane.b32.xlu0 %v320, 38
      %v3584 = vpop.permute.xlu0 %3583
      %3585 = vrot.lane.b32.xlu0 %v2698, 38
      %v3586 = vpop.permute.xlu0 %3585
      %vm3587 = vcmask 310272
      %v3588 = vsel %vm3587, %v3570, %v3572
      %v3589 = vsel %vm3587, %v3572, %v3574
      %v3590 = vsel %vm3587, %v3574, %v3576
      %v3591 = vsel %vm3587, %v3576, %v3578
      %v3592 = vsel %vm3587, %v3578, %v3580
      %v3593 = vsel %vm3587, %v3580, %v3582
      %v3594 = vsel %vm3587, %v3582, %v3584
      %v3595 = vsel %vm3587, %v3584, %v3586
      %v3605 = vsel %vm356, %v3568, 0
      %3607 = vmatpush.bf16.msra.mxu0 0
      %3608 = vmatpush.bf16.msra.mxu0 0
      %3609 = vmatpush.bf16.msra.mxu0 0
      %3610 = vmatpush.bf16.msra.mxu0 0
      %3611 = vmatpush.bf16.msra.mxu0 0
      %3612 = vmatpush.bf16.msra.mxu0 0
      %3613 = vmatpush.bf16.msra.mxu0 0
      %3614 = vmatpush.bf16.msra.mxu0 %v3588
      %3615 = vmatmul.bf16.gmra.mxu0 %v3605
      %v3616 = vpop.f32.mrf.mxu0
      %v3617 = vadd.f32 0.0, %v3616
      %v3618 = vpop.f32.mrf.mxu0
      %v3619 = vadd.f32 0.0, %v3618
      %3620 = vdwg.mxu0
      %3621 = vmatpush.bf16.msra.mxu0 0
      %3622 = vmatpush.bf16.msra.mxu0 0
      %3623 = vmatpush.bf16.msra.mxu0 0
      %3624 = vmatpush.bf16.msra.mxu0 0
      %3625 = vmatpush.bf16.msra.mxu0 0
      %3626 = vmatpush.bf16.msra.mxu0 0
      %3627 = vmatpush.bf16.msra.mxu0 0
      %3628 = vmatpush.bf16.msra.mxu0 %v3589
      %3629 = vmatmul.bf16.gmra.mxu0 %v3605
      %v3630 = vpop.f32.mrf.mxu0
      %v3631 = vadd.f32 0.0, %v3630
      %v3632 = vpop.f32.mrf.mxu0
      %v3633 = vadd.f32 0.0, %v3632
      %3634 = vdwg.mxu0
      %3635 = vmatpush.bf16.msra.mxu0 0
      %3636 = vmatpush.bf16.msra.mxu0 0
      %3637 = vmatpush.bf16.msra.mxu0 0
      %3638 = vmatpush.bf16.msra.mxu0 0
      %3639 = vmatpush.bf16.msra.mxu0 0
      %3640 = vmatpush.bf16.msra.mxu0 0
      %3641 = vmatpush.bf16.msra.mxu0 0
      %3642 = vmatpush.bf16.msra.mxu0 %v3590
      %3643 = vmatmul.bf16.gmra.mxu0 %v3605
      %v3644 = vpop.f32.mrf.mxu0
      %v3645 = vadd.f32 0.0, %v3644
      %v3646 = vpop.f32.mrf.mxu0
      %v3647 = vadd.f32 0.0, %v3646
      %3648 = vdwg.mxu0
      %3649 = vmatpush.bf16.msra.mxu0 0
      %3650 = vmatpush.bf16.msra.mxu0 0
      %3651 = vmatpush.bf16.msra.mxu0 0
      %3652 = vmatpush.bf16.msra.mxu0 0
      %3653 = vmatpush.bf16.msra.mxu0 0
      %3654 = vmatpush.bf16.msra.mxu0 0
      %3655 = vmatpush.bf16.msra.mxu0 0
      %3656 = vmatpush.bf16.msra.mxu0 %v3591
      %3657 = vmatmul.bf16.gmra.mxu0 %v3605
      %v3658 = vpop.f32.mrf.mxu0
      %v3659 = vadd.f32 0.0, %v3658
      %v3660 = vpop.f32.mrf.mxu0
      %v3661 = vadd.f32 0.0, %v3660
      %3662 = vdwg.mxu0
      %3663 = vmatpush.bf16.msra.mxu0 0
      %3664 = vmatpush.bf16.msra.mxu0 0
      %3665 = vmatpush.bf16.msra.mxu0 0
      %3666 = vmatpush.bf16.msra.mxu0 0
      %3667 = vmatpush.bf16.msra.mxu0 0
      %3668 = vmatpush.bf16.msra.mxu0 0
      %3669 = vmatpush.bf16.msra.mxu0 0
      %3670 = vmatpush.bf16.msra.mxu0 %v3592
      %3671 = vmatmul.bf16.gmra.mxu0 %v3605
      %v3672 = vpop.f32.mrf.mxu0
      %v3673 = vadd.f32 0.0, %v3672
      %v3674 = vpop.f32.mrf.mxu0
      %v3675 = vadd.f32 0.0, %v3674
      %3676 = vdwg.mxu0
      %3677 = vmatpush.bf16.msra.mxu0 0
      %3678 = vmatpush.bf16.msra.mxu0 0
      %3679 = vmatpush.bf16.msra.mxu0 0
      %3680 = vmatpush.bf16.msra.mxu0 0
      %3681 = vmatpush.bf16.msra.mxu0 0
      %3682 = vmatpush.bf16.msra.mxu0 0
      %3683 = vmatpush.bf16.msra.mxu0 0
      %3684 = vmatpush.bf16.msra.mxu0 %v3593
      %3685 = vmatmul.bf16.gmra.mxu0 %v3605
      %v3686 = vpop.f32.mrf.mxu0
      %v3687 = vadd.f32 0.0, %v3686
      %v3688 = vpop.f32.mrf.mxu0
      %v3689 = vadd.f32 0.0, %v3688
      %3690 = vdwg.mxu0
      %3691 = vmatpush.bf16.msra.mxu0 0
      %3692 = vmatpush.bf16.msra.mxu0 0
      %3693 = vmatpush.bf16.msra.mxu0 0
      %3694 = vmatpush.bf16.msra.mxu0 0
      %3695 = vmatpush.bf16.msra.mxu0 0
      %3696 = vmatpush.bf16.msra.mxu0 0
      %3697 = vmatpush.bf16.msra.mxu0 0
      %3698 = vmatpush.bf16.msra.mxu0 %v3594
      %3699 = vmatmul.bf16.gmra.mxu0 %v3605
      %v3700 = vpop.f32.mrf.mxu0
      %v3701 = vadd.f32 0.0, %v3700
      %v3702 = vpop.f32.mrf.mxu0
      %v3703 = vadd.f32 0.0, %v3702
      %3704 = vdwg.mxu0
      %3705 = vmatpush.bf16.msra.mxu0 0
      %3706 = vmatpush.bf16.msra.mxu0 0
      %3707 = vmatpush.bf16.msra.mxu0 0
      %3708 = vmatpush.bf16.msra.mxu0 0
      %3709 = vmatpush.bf16.msra.mxu0 0
      %3710 = vmatpush.bf16.msra.mxu0 0
      %3711 = vmatpush.bf16.msra.mxu0 0
      %3712 = vmatpush.bf16.msra.mxu0 %v3595
      %3713 = vmatmul.bf16.gmra.mxu0 %v3605
      %v3714 = vpop.f32.mrf.mxu0
      %v3715 = vadd.f32 0.0, %v3714
      %v3716 = vpop.f32.mrf.mxu0
      %v3717 = vadd.f32 0.0, %v3716
      %3718 = vdwg.mxu0
      %v3719 = vadd.f32 %v3545, %v3617
      %v3720 = vadd.f32 %v3546, %v3631
      %v3721 = vadd.f32 %v3547, %v3645
      %v3722 = vadd.f32 %v3548, %v3659
      %v3723 = vadd.f32 %v3549, %v3673
      %v3724 = vadd.f32 %v3550, %v3687
      %v3725 = vadd.f32 %v3551, %v3701
      %v3726 = vadd.f32 %v3552, %v3715
      %v3727 = vadd.f32 %v3553, %v3619
      %v3728 = vadd.f32 %v3554, %v3633
      %v3729 = vadd.f32 %v3555, %v3647
      %v3730 = vadd.f32 %v3556, %v3661
      %v3731 = vadd.f32 %v3557, %v3675
      %v3732 = vadd.f32 %v3558, %v3689
      %v3733 = vadd.f32 %v3559, %v3703
      %v3734 = vadd.f32 %v3560, %v3717
      %s3735 = scalar_lea.vmem %s2, 160
      %v3736 = vld [vmem:[%s3735] sm:$0xf]
      %v3737 = vld [vmem:[%s3735 + $0x4] sm:$0xf]
      %v3740 = vunpack.c.l.b16 %v3736
      %v3741 = vunpack.c.l.b16 %v3737
      %v3742 = vpack.c.b16 %v3741, %v3740
      %3743 = vrot.lane.b32.xlu0 %v313, 37
      %v3744 = vpop.permute.xlu0 %3743
      %3745 = vrot.lane.b32.xlu0 %v314, 37
      %v3746 = vpop.permute.xlu0 %3745
      %3747 = vrot.lane.b32.xlu0 %v315, 37
      %v3748 = vpop.permute.xlu0 %3747
      %3749 = vrot.lane.b32.xlu0 %v316, 37
      %v3750 = vpop.permute.xlu0 %3749
      %3751 = vrot.lane.b32.xlu0 %v317, 37
      %v3752 = vpop.permute.xlu0 %3751
      %3753 = vrot.lane.b32.xlu0 %v318, 37
      %v3754 = vpop.permute.xlu0 %3753
      %3755 = vrot.lane.b32.xlu0 %v319, 37
      %v3756 = vpop.permute.xlu0 %3755
      %3757 = vrot.lane.b32.xlu0 %v320, 37
      %v3758 = vpop.permute.xlu0 %3757
      %3759 = vrot.lane.b32.xlu0 %v2698, 37
      %v3760 = vpop.permute.xlu0 %3759
      %vm3761 = vcmask 302080
      %v3762 = vsel %vm3761, %v3744, %v3746
      %v3763 = vsel %vm3761, %v3746, %v3748
      %v3764 = vsel %vm3761, %v3748, %v3750
      %v3765 = vsel %vm3761, %v3750, %v3752
      %v3766 = vsel %vm3761, %v3752, %v3754
      %v3767 = vsel %vm3761, %v3754, %v3756
      %v3768 = vsel %vm3761, %v3756, %v3758
      %v3769 = vsel %vm3761, %v3758, %v3760
      %v3779 = vsel %vm356, %v3742, 0
      %3781 = vmatpush.bf16.msra.mxu0 0
      %3782 = vmatpush.bf16.msra.mxu0 0
      %3783 = vmatpush.bf16.msra.mxu0 0
      %3784 = vmatpush.bf16.msra.mxu0 0
      %3785 = vmatpush.bf16.msra.mxu0 0
      %3786 = vmatpush.bf16.msra.mxu0 0
      %3787 = vmatpush.bf16.msra.mxu0 0
      %3788 = vmatpush.bf16.msra.mxu0 %v3762
      %3789 = vmatmul.bf16.gmra.mxu0 %v3779
      %v3790 = vpop.f32.mrf.mxu0
      %v3791 = vadd.f32 0.0, %v3790
      %v3792 = vpop.f32.mrf.mxu0
      %v3793 = vadd.f32 0.0, %v3792
      %3794 = vdwg.mxu0
      %3795 = vmatpush.bf16.msra.mxu0 0
      %3796 = vmatpush.bf16.msra.mxu0 0
      %3797 = vmatpush.bf16.msra.mxu0 0
      %3798 = vmatpush.bf16.msra.mxu0 0
      %3799 = vmatpush.bf16.msra.mxu0 0
      %3800 = vmatpush.bf16.msra.mxu0 0
      %3801 = vmatpush.bf16.msra.mxu0 0
      %3802 = vmatpush.bf16.msra.mxu0 %v3763
      %3803 = vmatmul.bf16.gmra.mxu0 %v3779
      %v3804 = vpop.f32.mrf.mxu0
      %v3805 = vadd.f32 0.0, %v3804
      %v3806 = vpop.f32.mrf.mxu0
      %v3807 = vadd.f32 0.0, %v3806
      %3808 = vdwg.mxu0
      %3809 = vmatpush.bf16.msra.mxu0 0
      %3810 = vmatpush.bf16.msra.mxu0 0
      %3811 = vmatpush.bf16.msra.mxu0 0
      %3812 = vmatpush.bf16.msra.mxu0 0
      %3813 = vmatpush.bf16.msra.mxu0 0
      %3814 = vmatpush.bf16.msra.mxu0 0
      %3815 = vmatpush.bf16.msra.mxu0 0
      %3816 = vmatpush.bf16.msra.mxu0 %v3764
      %3817 = vmatmul.bf16.gmra.mxu0 %v3779
      %v3818 = vpop.f32.mrf.mxu0
      %v3819 = vadd.f32 0.0, %v3818
      %v3820 = vpop.f32.mrf.mxu0
      %v3821 = vadd.f32 0.0, %v3820
      %3822 = vdwg.mxu0
      %3823 = vmatpush.bf16.msra.mxu0 0
      %3824 = vmatpush.bf16.msra.mxu0 0
      %3825 = vmatpush.bf16.msra.mxu0 0
      %3826 = vmatpush.bf16.msra.mxu0 0
      %3827 = vmatpush.bf16.msra.mxu0 0
      %3828 = vmatpush.bf16.msra.mxu0 0
      %3829 = vmatpush.bf16.msra.mxu0 0
      %3830 = vmatpush.bf16.msra.mxu0 %v3765
      %3831 = vmatmul.bf16.gmra.mxu0 %v3779
      %v3832 = vpop.f32.mrf.mxu0
      %v3833 = vadd.f32 0.0, %v3832
      %v3834 = vpop.f32.mrf.mxu0
      %v3835 = vadd.f32 0.0, %v3834
      %3836 = vdwg.mxu0
      %3837 = vmatpush.bf16.msra.mxu0 0
      %3838 = vmatpush.bf16.msra.mxu0 0
      %3839 = vmatpush.bf16.msra.mxu0 0
      %3840 = vmatpush.bf16.msra.mxu0 0
      %3841 = vmatpush.bf16.msra.mxu0 0
      %3842 = vmatpush.bf16.msra.mxu0 0
      %3843 = vmatpush.bf16.msra.mxu0 0
      %3844 = vmatpush.bf16.msra.mxu0 %v3766
      %3845 = vmatmul.bf16.gmra.mxu0 %v3779
      %v3846 = vpop.f32.mrf.mxu0
      %v3847 = vadd.f32 0.0, %v3846
      %v3848 = vpop.f32.mrf.mxu0
      %v3849 = vadd.f32 0.0, %v3848
      %3850 = vdwg.mxu0
      %3851 = vmatpush.bf16.msra.mxu0 0
      %3852 = vmatpush.bf16.msra.mxu0 0
      %3853 = vmatpush.bf16.msra.mxu0 0
      %3854 = vmatpush.bf16.msra.mxu0 0
      %3855 = vmatpush.bf16.msra.mxu0 0
      %3856 = vmatpush.bf16.msra.mxu0 0
      %3857 = vmatpush.bf16.msra.mxu0 0
      %3858 = vmatpush.bf16.msra.mxu0 %v3767
      %3859 = vmatmul.bf16.gmra.mxu0 %v3779
      %v3860 = vpop.f32.mrf.mxu0
      %v3861 = vadd.f32 0.0, %v3860
      %v3862 = vpop.f32.mrf.mxu0
      %v3863 = vadd.f32 0.0, %v3862
      %3864 = vdwg.mxu0
      %3865 = vmatpush.bf16.msra.mxu0 0
      %3866 = vmatpush.bf16.msra.mxu0 0
      %3867 = vmatpush.bf16.msra.mxu0 0
      %3868 = vmatpush.bf16.msra.mxu0 0
      %3869 = vmatpush.bf16.msra.mxu0 0
      %3870 = vmatpush.bf16.msra.mxu0 0
      %3871 = vmatpush.bf16.msra.mxu0 0
      %3872 = vmatpush.bf16.msra.mxu0 %v3768
      %3873 = vmatmul.bf16.gmra.mxu0 %v3779
      %v3874 = vpop.f32.mrf.mxu0
      %v3875 = vadd.f32 0.0, %v3874
      %v3876 = vpop.f32.mrf.mxu0
      %v3877 = vadd.f32 0.0, %v3876
      %3878 = vdwg.mxu0
      %3879 = vmatpush.bf16.msra.mxu0 0
      %3880 = vmatpush.bf16.msra.mxu0 0
      %3881 = vmatpush.bf16.msra.mxu0 0
      %3882 = vmatpush.bf16.msra.mxu0 0
      %3883 = vmatpush.bf16.msra.mxu0 0
      %3884 = vmatpush.bf16.msra.mxu0 0
      %3885 = vmatpush.bf16.msra.mxu0 0
      %3886 = vmatpush.bf16.msra.mxu0 %v3769
      %3887 = vmatmul.bf16.gmra.mxu0 %v3779
      %v3888 = vpop.f32.mrf.mxu0
      %v3889 = vadd.f32 0.0, %v3888
      %v3890 = vpop.f32.mrf.mxu0
      %v3891 = vadd.f32 0.0, %v3890
      %3892 = vdwg.mxu0
      %v3893 = vadd.f32 %v3719, %v3791
      %v3894 = vadd.f32 %v3720, %v3805
      %v3895 = vadd.f32 %v3721, %v3819
      %v3896 = vadd.f32 %v3722, %v3833
      %v3897 = vadd.f32 %v3723, %v3847
      %v3898 = vadd.f32 %v3724, %v3861
      %v3899 = vadd.f32 %v3725, %v3875
      %v3900 = vadd.f32 %v3726, %v3889
      %v3901 = vadd.f32 %v3727, %v3793
      %v3902 = vadd.f32 %v3728, %v3807
      %v3903 = vadd.f32 %v3729, %v3821
      %v3904 = vadd.f32 %v3730, %v3835
      %v3905 = vadd.f32 %v3731, %v3849
      %v3906 = vadd.f32 %v3732, %v3863
      %v3907 = vadd.f32 %v3733, %v3877
      %v3908 = vadd.f32 %v3734, %v3891
      %s3909 = scalar_lea.vmem %s2, 168
      %v3910 = vld [vmem:[%s3909] sm:$0xf]
      %v3911 = vld [vmem:[%s3909 + $0x4] sm:$0xf]
      %v3914 = vunpack.c.l.b16 %v3910
      %v3915 = vunpack.c.l.b16 %v3911
      %v3916 = vpack.c.b16 %v3915, %v3914
      %3917 = vrot.lane.b32.xlu0 %v313, 29
      %v3918 = vpop.permute.xlu0 %3917
      %3919 = vrot.lane.b32.xlu0 %v314, 29
      %v3920 = vpop.permute.xlu0 %3919
      %3921 = vrot.lane.b32.xlu0 %v315, 29
      %v3922 = vpop.permute.xlu0 %3921
      %3923 = vrot.lane.b32.xlu0 %v316, 29
      %v3924 = vpop.permute.xlu0 %3923
      %3925 = vrot.lane.b32.xlu0 %v317, 29
      %v3926 = vpop.permute.xlu0 %3925
      %3927 = vrot.lane.b32.xlu0 %v318, 29
      %v3928 = vpop.permute.xlu0 %3927
      %3929 = vrot.lane.b32.xlu0 %v319, 29
      %v3930 = vpop.permute.xlu0 %3929
      %3931 = vrot.lane.b32.xlu0 %v320, 29
      %v3932 = vpop.permute.xlu0 %3931
      %3933 = vrot.lane.b32.xlu0 %v2698, 29
      %v3934 = vpop.permute.xlu0 %3933
      %vm3935 = vcmask 236544
      %v3936 = vsel %vm3935, %v3918, %v3920
      %v3937 = vsel %vm3935, %v3920, %v3922
      %v3938 = vsel %vm3935, %v3922, %v3924
      %v3939 = vsel %vm3935, %v3924, %v3926
      %v3940 = vsel %vm3935, %v3926, %v3928
      %v3941 = vsel %vm3935, %v3928, %v3930
      %v3942 = vsel %vm3935, %v3930, %v3932
      %v3943 = vsel %vm3935, %v3932, %v3934
      %v3953 = vsel %vm356, %v3916, 0
      %3955 = vmatpush.bf16.msra.mxu0 0
      %3956 = vmatpush.bf16.msra.mxu0 0
      %3957 = vmatpush.bf16.msra.mxu0 0
      %3958 = vmatpush.bf16.msra.mxu0 0
      %3959 = vmatpush.bf16.msra.mxu0 0
      %3960 = vmatpush.bf16.msra.mxu0 0
      %3961 = vmatpush.bf16.msra.mxu0 0
      %3962 = vmatpush.bf16.msra.mxu0 %v3936
      %3963 = vmatmul.bf16.gmra.mxu0 %v3953
      %v3964 = vpop.f32.mrf.mxu0
      %v3965 = vadd.f32 0.0, %v3964
      %v3966 = vpop.f32.mrf.mxu0
      %v3967 = vadd.f32 0.0, %v3966
      %3968 = vdwg.mxu0
      %3969 = vmatpush.bf16.msra.mxu0 0
      %3970 = vmatpush.bf16.msra.mxu0 0
      %3971 = vmatpush.bf16.msra.mxu0 0
      %3972 = vmatpush.bf16.msra.mxu0 0
      %3973 = vmatpush.bf16.msra.mxu0 0
      %3974 = vmatpush.bf16.msra.mxu0 0
      %3975 = vmatpush.bf16.msra.mxu0 0
      %3976 = vmatpush.bf16.msra.mxu0 %v3937
      %3977 = vmatmul.bf16.gmra.mxu0 %v3953
      %v3978 = vpop.f32.mrf.mxu0
      %v3979 = vadd.f32 0.0, %v3978
      %v3980 = vpop.f32.mrf.mxu0
      %v3981 = vadd.f32 0.0, %v3980
      %3982 = vdwg.mxu0
      %3983 = vmatpush.bf16.msra.mxu0 0
      %3984 = vmatpush.bf16.msra.mxu0 0
      %3985 = vmatpush.bf16.msra.mxu0 0
      %3986 = vmatpush.bf16.msra.mxu0 0
      %3987 = vmatpush.bf16.msra.mxu0 0
      %3988 = vmatpush.bf16.msra.mxu0 0
      %3989 = vmatpush.bf16.msra.mxu0 0
      %3990 = vmatpush.bf16.msra.mxu0 %v3938
      %3991 = vmatmul.bf16.gmra.mxu0 %v3953
      %v3992 = vpop.f32.mrf.mxu0
      %v3993 = vadd.f32 0.0, %v3992
      %v3994 = vpop.f32.mrf.mxu0
      %v3995 = vadd.f32 0.0, %v3994
      %3996 = vdwg.mxu0
      %3997 = vmatpush.bf16.msra.mxu0 0
      %3998 = vmatpush.bf16.msra.mxu0 0
      %3999 = vmatpush.bf16.msra.mxu0 0
      %4000 = vmatpush.bf16.msra.mxu0 0
      %4001 = vmatpush.bf16.msra.mxu0 0
      %4002 = vmatpush.bf16.msra.mxu0 0
      %4003 = vmatpush.bf16.msra.mxu0 0
      %4004 = vmatpush.bf16.msra.mxu0 %v3939
      %4005 = vmatmul.bf16.gmra.mxu0 %v3953
      %v4006 = vpop.f32.mrf.mxu0
      %v4007 = vadd.f32 0.0, %v4006
      %v4008 = vpop.f32.mrf.mxu0
      %v4009 = vadd.f32 0.0, %v4008
      %4010 = vdwg.mxu0
      %4011 = vmatpush.bf16.msra.mxu0 0
      %4012 = vmatpush.bf16.msra.mxu0 0
      %4013 = vmatpush.bf16.msra.mxu0 0
      %4014 = vmatpush.bf16.msra.mxu0 0
      %4015 = vmatpush.bf16.msra.mxu0 0
      %4016 = vmatpush.bf16.msra.mxu0 0
      %4017 = vmatpush.bf16.msra.mxu0 0
      %4018 = vmatpush.bf16.msra.mxu0 %v3940
      %4019 = vmatmul.bf16.gmra.mxu0 %v3953
      %v4020 = vpop.f32.mrf.mxu0
      %v4021 = vadd.f32 0.0, %v4020
      %v4022 = vpop.f32.mrf.mxu0
      %v4023 = vadd.f32 0.0, %v4022
      %4024 = vdwg.mxu0
      %4025 = vmatpush.bf16.msra.mxu0 0
      %4026 = vmatpush.bf16.msra.mxu0 0
      %4027 = vmatpush.bf16.msra.mxu0 0
      %4028 = vmatpush.bf16.msra.mxu0 0
      %4029 = vmatpush.bf16.msra.mxu0 0
      %4030 = vmatpush.bf16.msra.mxu0 0
      %4031 = vmatpush.bf16.msra.mxu0 0
      %4032 = vmatpush.bf16.msra.mxu0 %v3941
      %4033 = vmatmul.bf16.gmra.mxu0 %v3953
      %v4034 = vpop.f32.mrf.mxu0
      %v4035 = vadd.f32 0.0, %v4034
      %v4036 = vpop.f32.mrf.mxu0
      %v4037 = vadd.f32 0.0, %v4036
      %4038 = vdwg.mxu0
      %4039 = vmatpush.bf16.msra.mxu0 0
      %4040 = vmatpush.bf16.msra.mxu0 0
      %4041 = vmatpush.bf16.msra.mxu0 0
      %4042 = vmatpush.bf16.msra.mxu0 0
      %4043 = vmatpush.bf16.msra.mxu0 0
      %4044 = vmatpush.bf16.msra.mxu0 0
      %4045 = vmatpush.bf16.msra.mxu0 0
      %4046 = vmatpush.bf16.msra.mxu0 %v3942
      %4047 = vmatmul.bf16.gmra.mxu0 %v3953
      %v4048 = vpop.f32.mrf.mxu0
      %v4049 = vadd.f32 0.0, %v4048
      %v4050 = vpop.f32.mrf.mxu0
      %v4051 = vadd.f32 0.0, %v4050
      %4052 = vdwg.mxu0
      %4053 = vmatpush.bf16.msra.mxu0 0
      %4054 = vmatpush.bf16.msra.mxu0 0
      %4055 = vmatpush.bf16.msra.mxu0 0
      %4056 = vmatpush.bf16.msra.mxu0 0
      %4057 = vmatpush.bf16.msra.mxu0 0
      %4058 = vmatpush.bf16.msra.mxu0 0
      %4059 = vmatpush.bf16.msra.mxu0 0
      %4060 = vmatpush.bf16.msra.mxu0 %v3943
      %4061 = vmatmul.bf16.gmra.mxu0 %v3953
      %v4062 = vpop.f32.mrf.mxu0
      %v4063 = vadd.f32 0.0, %v4062
      %v4064 = vpop.f32.mrf.mxu0
      %v4065 = vadd.f32 0.0, %v4064
      %4066 = vdwg.mxu0
      %v4067 = vadd.f32 %v3893, %v3965
      %v4068 = vadd.f32 %v3894, %v3979
      %v4069 = vadd.f32 %v3895, %v3993
      %v4070 = vadd.f32 %v3896, %v4007
      %v4071 = vadd.f32 %v3897, %v4021
      %v4072 = vadd.f32 %v3898, %v4035
      %v4073 = vadd.f32 %v3899, %v4049
      %v4074 = vadd.f32 %v3900, %v4063
      %v4075 = vadd.f32 %v3901, %v3967
      %v4076 = vadd.f32 %v3902, %v3981
      %v4077 = vadd.f32 %v3903, %v3995
      %v4078 = vadd.f32 %v3904, %v4009
      %v4079 = vadd.f32 %v3905, %v4023
      %v4080 = vadd.f32 %v3906, %v4037
      %v4081 = vadd.f32 %v3907, %v4051
      %v4082 = vadd.f32 %v3908, %v4065
      %s4083 = scalar_lea.vmem %s2, 176
      %v4084 = vld [vmem:[%s4083] sm:$0xf]
      %v4085 = vld [vmem:[%s4083 + $0x4] sm:$0xf]
      %v4088 = vunpack.c.l.b16 %v4084
      %v4089 = vunpack.c.l.b16 %v4085
      %v4090 = vpack.c.b16 %v4089, %v4088
      %4091 = vrot.lane.b32.xlu0 %v313, 28
      %v4092 = vpop.permute.xlu0 %4091
      %4093 = vrot.lane.b32.xlu0 %v314, 28
      %v4094 = vpop.permute.xlu0 %4093
      %4095 = vrot.lane.b32.xlu0 %v315, 28
      %v4096 = vpop.permute.xlu0 %4095
      %4097 = vrot.lane.b32.xlu0 %v316, 28
      %v4098 = vpop.permute.xlu0 %4097
      %4099 = vrot.lane.b32.xlu0 %v317, 28
      %v4100 = vpop.permute.xlu0 %4099
      %4101 = vrot.lane.b32.xlu0 %v318, 28
      %v4102 = vpop.permute.xlu0 %4101
      %4103 = vrot.lane.b32.xlu0 %v319, 28
      %v4104 = vpop.permute.xlu0 %4103
      %4105 = vrot.lane.b32.xlu0 %v320, 28
      %v4106 = vpop.permute.xlu0 %4105
      %4107 = vrot.lane.b32.xlu0 %v2698, 28
      %v4108 = vpop.permute.xlu0 %4107
      %vm4109 = vcmask 228352
      %v4110 = vsel %vm4109, %v4092, %v4094
      %v4111 = vsel %vm4109, %v4094, %v4096
      %v4112 = vsel %vm4109, %v4096, %v4098
      %v4113 = vsel %vm4109, %v4098, %v4100
      %v4114 = vsel %vm4109, %v4100, %v4102
      %v4115 = vsel %vm4109, %v4102, %v4104
      %v4116 = vsel %vm4109, %v4104, %v4106
      %v4117 = vsel %vm4109, %v4106, %v4108
      %v4127 = vsel %vm356, %v4090, 0
      %4129 = vmatpush.bf16.msra.mxu0 0
      %4130 = vmatpush.bf16.msra.mxu0 0
      %4131 = vmatpush.bf16.msra.mxu0 0
      %4132 = vmatpush.bf16.msra.mxu0 0
      %4133 = vmatpush.bf16.msra.mxu0 0
      %4134 = vmatpush.bf16.msra.mxu0 0
      %4135 = vmatpush.bf16.msra.mxu0 0
      %4136 = vmatpush.bf16.msra.mxu0 %v4110
      %4137 = vmatmul.bf16.gmra.mxu0 %v4127
      %v4138 = vpop.f32.mrf.mxu0
      %v4139 = vadd.f32 0.0, %v4138
      %v4140 = vpop.f32.mrf.mxu0
      %v4141 = vadd.f32 0.0, %v4140
      %4142 = vdwg.mxu0
      %4143 = vmatpush.bf16.msra.mxu0 0
      %4144 = vmatpush.bf16.msra.mxu0 0
      %4145 = vmatpush.bf16.msra.mxu0 0
      %4146 = vmatpush.bf16.msra.mxu0 0
      %4147 = vmatpush.bf16.msra.mxu0 0
      %4148 = vmatpush.bf16.msra.mxu0 0
      %4149 = vmatpush.bf16.msra.mxu0 0
      %4150 = vmatpush.bf16.msra.mxu0 %v4111
      %4151 = vmatmul.bf16.gmra.mxu0 %v4127
      %v4152 = vpop.f32.mrf.mxu0
      %v4153 = vadd.f32 0.0, %v4152
      %v4154 = vpop.f32.mrf.mxu0
      %v4155 = vadd.f32 0.0, %v4154
      %4156 = vdwg.mxu0
      %4157 = vmatpush.bf16.msra.mxu0 0
      %4158 = vmatpush.bf16.msra.mxu0 0
      %4159 = vmatpush.bf16.msra.mxu0 0
      %4160 = vmatpush.bf16.msra.mxu0 0
      %4161 = vmatpush.bf16.msra.mxu0 0
      %4162 = vmatpush.bf16.msra.mxu0 0
      %4163 = vmatpush.bf16.msra.mxu0 0
      %4164 = vmatpush.bf16.msra.mxu0 %v4112
      %4165 = vmatmul.bf16.gmra.mxu0 %v4127
      %v4166 = vpop.f32.mrf.mxu0
      %v4167 = vadd.f32 0.0, %v4166
      %v4168 = vpop.f32.mrf.mxu0
      %v4169 = vadd.f32 0.0, %v4168
      %4170 = vdwg.mxu0
      %4171 = vmatpush.bf16.msra.mxu0 0
      %4172 = vmatpush.bf16.msra.mxu0 0
      %4173 = vmatpush.bf16.msra.mxu0 0
      %4174 = vmatpush.bf16.msra.mxu0 0
      %4175 = vmatpush.bf16.msra.mxu0 0
      %4176 = vmatpush.bf16.msra.mxu0 0
      %4177 = vmatpush.bf16.msra.mxu0 0
      %4178 = vmatpush.bf16.msra.mxu0 %v4113
      %4179 = vmatmul.bf16.gmra.mxu0 %v4127
      %v4180 = vpop.f32.mrf.mxu0
      %v4181 = vadd.f32 0.0, %v4180
      %v4182 = vpop.f32.mrf.mxu0
      %v4183 = vadd.f32 0.0, %v4182
      %4184 = vdwg.mxu0
      %4185 = vmatpush.bf16.msra.mxu0 0
      %4186 = vmatpush.bf16.msra.mxu0 0
      %4187 = vmatpush.bf16.msra.mxu0 0
      %4188 = vmatpush.bf16.msra.mxu0 0
      %4189 = vmatpush.bf16.msra.mxu0 0
      %4190 = vmatpush.bf16.msra.mxu0 0
      %4191 = vmatpush.bf16.msra.mxu0 0
      %4192 = vmatpush.bf16.msra.mxu0 %v4114
      %4193 = vmatmul.bf16.gmra.mxu0 %v4127
      %v4194 = vpop.f32.mrf.mxu0
      %v4195 = vadd.f32 0.0, %v4194
      %v4196 = vpop.f32.mrf.mxu0
      %v4197 = vadd.f32 0.0, %v4196
      %4198 = vdwg.mxu0
      %4199 = vmatpush.bf16.msra.mxu0 0
      %4200 = vmatpush.bf16.msra.mxu0 0
      %4201 = vmatpush.bf16.msra.mxu0 0
      %4202 = vmatpush.bf16.msra.mxu0 0
      %4203 = vmatpush.bf16.msra.mxu0 0
      %4204 = vmatpush.bf16.msra.mxu0 0
      %4205 = vmatpush.bf16.msra.mxu0 0
      %4206 = vmatpush.bf16.msra.mxu0 %v4115
      %4207 = vmatmul.bf16.gmra.mxu0 %v4127
      %v4208 = vpop.f32.mrf.mxu0
      %v4209 = vadd.f32 0.0, %v4208
      %v4210 = vpop.f32.mrf.mxu0
      %v4211 = vadd.f32 0.0, %v4210
      %4212 = vdwg.mxu0
      %4213 = vmatpush.bf16.msra.mxu0 0
      %4214 = vmatpush.bf16.msra.mxu0 0
      %4215 = vmatpush.bf16.msra.mxu0 0
      %4216 = vmatpush.bf16.msra.mxu0 0
      %4217 = vmatpush.bf16.msra.mxu0 0
      %4218 = vmatpush.bf16.msra.mxu0 0
      %4219 = vmatpush.bf16.msra.mxu0 0
      %4220 = vmatpush.bf16.msra.mxu0 %v4116
      %4221 = vmatmul.bf16.gmra.mxu0 %v4127
      %v4222 = vpop.f32.mrf.mxu0
      %v4223 = vadd.f32 0.0, %v4222
      %v4224 = vpop.f32.mrf.mxu0
      %v4225 = vadd.f32 0.0, %v4224
      %4226 = vdwg.mxu0
      %4227 = vmatpush.bf16.msra.mxu0 0
      %4228 = vmatpush.bf16.msra.mxu0 0
      %4229 = vmatpush.bf16.msra.mxu0 0
      %4230 = vmatpush.bf16.msra.mxu0 0
      %4231 = vmatpush.bf16.msra.mxu0 0
      %4232 = vmatpush.bf16.msra.mxu0 0
      %4233 = vmatpush.bf16.msra.mxu0 0
      %4234 = vmatpush.bf16.msra.mxu0 %v4117
      %4235 = vmatmul.bf16.gmra.mxu0 %v4127
      %v4236 = vpop.f32.mrf.mxu0
      %v4237 = vadd.f32 0.0, %v4236
      %v4238 = vpop.f32.mrf.mxu0
      %v4239 = vadd.f32 0.0, %v4238
      %4240 = vdwg.mxu0
      %v4241 = vadd.f32 %v4067, %v4139
      %v4242 = vadd.f32 %v4068, %v4153
      %v4243 = vadd.f32 %v4069, %v4167
      %v4244 = vadd.f32 %v4070, %v4181
      %v4245 = vadd.f32 %v4071, %v4195
      %v4246 = vadd.f32 %v4072, %v4209
      %v4247 = vadd.f32 %v4073, %v4223
      %v4248 = vadd.f32 %v4074, %v4237
      %v4249 = vadd.f32 %v4075, %v4141
      %v4250 = vadd.f32 %v4076, %v4155
      %v4251 = vadd.f32 %v4077, %v4169
      %v4252 = vadd.f32 %v4078, %v4183
      %v4253 = vadd.f32 %v4079, %v4197
      %v4254 = vadd.f32 %v4080, %v4211
      %v4255 = vadd.f32 %v4081, %v4225
      %v4256 = vadd.f32 %v4082, %v4239
      %s4257 = scalar_lea.vmem %s2, 184
      %v4258 = vld [vmem:[%s4257] sm:$0xf]
      %v4259 = vld [vmem:[%s4257 + $0x4] sm:$0xf]
      %v4262 = vunpack.c.l.b16 %v4258
      %v4263 = vunpack.c.l.b16 %v4259
      %v4264 = vpack.c.b16 %v4263, %v4262
      %4265 = vrot.lane.b32.xlu0 %v313, 27
      %v4266 = vpop.permute.xlu0 %4265
      %4267 = vrot.lane.b32.xlu0 %v314, 27
      %v4268 = vpop.permute.xlu0 %4267
      %4269 = vrot.lane.b32.xlu0 %v315, 27
      %v4270 = vpop.permute.xlu0 %4269
      %4271 = vrot.lane.b32.xlu0 %v316, 27
      %v4272 = vpop.permute.xlu0 %4271
      %4273 = vrot.lane.b32.xlu0 %v317, 27
      %v4274 = vpop.permute.xlu0 %4273
      %4275 = vrot.lane.b32.xlu0 %v318, 27
      %v4276 = vpop.permute.xlu0 %4275
      %4277 = vrot.lane.b32.xlu0 %v319, 27
      %v4278 = vpop.permute.xlu0 %4277
      %4279 = vrot.lane.b32.xlu0 %v320, 27
      %v4280 = vpop.permute.xlu0 %4279
      %4281 = vrot.lane.b32.xlu0 %v2698, 27
      %v4282 = vpop.permute.xlu0 %4281
      %vm4283 = vcmask 220160
      %v4284 = vsel %vm4283, %v4266, %v4268
      %v4285 = vsel %vm4283, %v4268, %v4270
      %v4286 = vsel %vm4283, %v4270, %v4272
      %v4287 = vsel %vm4283, %v4272, %v4274
      %v4288 = vsel %vm4283, %v4274, %v4276
      %v4289 = vsel %vm4283, %v4276, %v4278
      %v4290 = vsel %vm4283, %v4278, %v4280
      %v4291 = vsel %vm4283, %v4280, %v4282
      %v4301 = vsel %vm356, %v4264, 0
      %4303 = vmatpush.bf16.msra.mxu0 0
      %4304 = vmatpush.bf16.msra.mxu0 0
      %4305 = vmatpush.bf16.msra.mxu0 0
      %4306 = vmatpush.bf16.msra.mxu0 0
      %4307 = vmatpush.bf16.msra.mxu0 0
      %4308 = vmatpush.bf16.msra.mxu0 0
      %4309 = vmatpush.bf16.msra.mxu0 0
      %4310 = vmatpush.bf16.msra.mxu0 %v4284
      %4311 = vmatmul.bf16.gmra.mxu0 %v4301
      %v4312 = vpop.f32.mrf.mxu0
      %v4313 = vadd.f32 0.0, %v4312
      %v4314 = vpop.f32.mrf.mxu0
      %v4315 = vadd.f32 0.0, %v4314
      %4316 = vdwg.mxu0
      %4317 = vmatpush.bf16.msra.mxu0 0
      %4318 = vmatpush.bf16.msra.mxu0 0
      %4319 = vmatpush.bf16.msra.mxu0 0
      %4320 = vmatpush.bf16.msra.mxu0 0
      %4321 = vmatpush.bf16.msra.mxu0 0
      %4322 = vmatpush.bf16.msra.mxu0 0
      %4323 = vmatpush.bf16.msra.mxu0 0
      %4324 = vmatpush.bf16.msra.mxu0 %v4285
      %4325 = vmatmul.bf16.gmra.mxu0 %v4301
      %v4326 = vpop.f32.mrf.mxu0
      %v4327 = vadd.f32 0.0, %v4326
      %v4328 = vpop.f32.mrf.mxu0
      %v4329 = vadd.f32 0.0, %v4328
      %4330 = vdwg.mxu0
      %4331 = vmatpush.bf16.msra.mxu0 0
      %4332 = vmatpush.bf16.msra.mxu0 0
      %4333 = vmatpush.bf16.msra.mxu0 0
      %4334 = vmatpush.bf16.msra.mxu0 0
      %4335 = vmatpush.bf16.msra.mxu0 0
      %4336 = vmatpush.bf16.msra.mxu0 0
      %4337 = vmatpush.bf16.msra.mxu0 0
      %4338 = vmatpush.bf16.msra.mxu0 %v4286
      %4339 = vmatmul.bf16.gmra.mxu0 %v4301
      %v4340 = vpop.f32.mrf.mxu0
      %v4341 = vadd.f32 0.0, %v4340
      %v4342 = vpop.f32.mrf.mxu0
      %v4343 = vadd.f32 0.0, %v4342
      %4344 = vdwg.mxu0
      %4345 = vmatpush.bf16.msra.mxu0 0
      %4346 = vmatpush.bf16.msra.mxu0 0
      %4347 = vmatpush.bf16.msra.mxu0 0
      %4348 = vmatpush.bf16.msra.mxu0 0
      %4349 = vmatpush.bf16.msra.mxu0 0
      %4350 = vmatpush.bf16.msra.mxu0 0
      %4351 = vmatpush.bf16.msra.mxu0 0
      %4352 = vmatpush.bf16.msra.mxu0 %v4287
      %4353 = vmatmul.bf16.gmra.mxu0 %v4301
      %v4354 = vpop.f32.mrf.mxu0
      %v4355 = vadd.f32 0.0, %v4354
      %v4356 = vpop.f32.mrf.mxu0
      %v4357 = vadd.f32 0.0, %v4356
      %4358 = vdwg.mxu0
      %4359 = vmatpush.bf16.msra.mxu0 0
      %4360 = vmatpush.bf16.msra.mxu0 0
      %4361 = vmatpush.bf16.msra.mxu0 0
      %4362 = vmatpush.bf16.msra.mxu0 0
      %4363 = vmatpush.bf16.msra.mxu0 0
      %4364 = vmatpush.bf16.msra.mxu0 0
      %4365 = vmatpush.bf16.msra.mxu0 0
      %4366 = vmatpush.bf16.msra.mxu0 %v4288
      %4367 = vmatmul.bf16.gmra.mxu0 %v4301
      %v4368 = vpop.f32.mrf.mxu0
      %v4369 = vadd.f32 0.0, %v4368
      %v4370 = vpop.f32.mrf.mxu0
      %v4371 = vadd.f32 0.0, %v4370
      %4372 = vdwg.mxu0
      %4373 = vmatpush.bf16.msra.mxu0 0
      %4374 = vmatpush.bf16.msra.mxu0 0
      %4375 = vmatpush.bf16.msra.mxu0 0
      %4376 = vmatpush.bf16.msra.mxu0 0
      %4377 = vmatpush.bf16.msra.mxu0 0
      %4378 = vmatpush.bf16.msra.mxu0 0
      %4379 = vmatpush.bf16.msra.mxu0 0
      %4380 = vmatpush.bf16.msra.mxu0 %v4289
      %4381 = vmatmul.bf16.gmra.mxu0 %v4301
      %v4382 = vpop.f32.mrf.mxu0
      %v4383 = vadd.f32 0.0, %v4382
      %v4384 = vpop.f32.mrf.mxu0
      %v4385 = vadd.f32 0.0, %v4384
      %4386 = vdwg.mxu0
      %4387 = vmatpush.bf16.msra.mxu0 0
      %4388 = vmatpush.bf16.msra.mxu0 0
      %4389 = vmatpush.bf16.msra.mxu0 0
      %4390 = vmatpush.bf16.msra.mxu0 0
      %4391 = vmatpush.bf16.msra.mxu0 0
      %4392 = vmatpush.bf16.msra.mxu0 0
      %4393 = vmatpush.bf16.msra.mxu0 0
      %4394 = vmatpush.bf16.msra.mxu0 %v4290
      %4395 = vmatmul.bf16.gmra.mxu0 %v4301
      %v4396 = vpop.f32.mrf.mxu0
      %v4397 = vadd.f32 0.0, %v4396
      %v4398 = vpop.f32.mrf.mxu0
      %v4399 = vadd.f32 0.0, %v4398
      %4400 = vdwg.mxu0
      %4401 = vmatpush.bf16.msra.mxu0 0
      %4402 = vmatpush.bf16.msra.mxu0 0
      %4403 = vmatpush.bf16.msra.mxu0 0
      %4404 = vmatpush.bf16.msra.mxu0 0
      %4405 = vmatpush.bf16.msra.mxu0 0
      %4406 = vmatpush.bf16.msra.mxu0 0
      %4407 = vmatpush.bf16.msra.mxu0 0
      %4408 = vmatpush.bf16.msra.mxu0 %v4291
      %4409 = vmatmul.bf16.gmra.mxu0 %v4301
      %v4410 = vpop.f32.mrf.mxu0
      %v4411 = vadd.f32 0.0, %v4410
      %v4412 = vpop.f32.mrf.mxu0
      %v4413 = vadd.f32 0.0, %v4412
      %4414 = vdwg.mxu0
      %v4415 = vadd.f32 %v4241, %v4313
      %v4416 = vadd.f32 %v4242, %v4327
      %v4417 = vadd.f32 %v4243, %v4341
      %v4418 = vadd.f32 %v4244, %v4355
      %v4419 = vadd.f32 %v4245, %v4369
      %v4420 = vadd.f32 %v4246, %v4383
      %v4421 = vadd.f32 %v4247, %v4397
      %v4422 = vadd.f32 %v4248, %v4411
      %v4423 = vadd.f32 %v4249, %v4315
      %v4424 = vadd.f32 %v4250, %v4329
      %v4425 = vadd.f32 %v4251, %v4343
      %v4426 = vadd.f32 %v4252, %v4357
      %v4427 = vadd.f32 %v4253, %v4371
      %v4428 = vadd.f32 %v4254, %v4385
      %v4429 = vadd.f32 %v4255, %v4399
      %v4430 = vadd.f32 %v4256, %v4413
      %s4431 = scalar_lea.vmem %s2, 192
      %v4432 = vld [vmem:[%s4431] sm:$0xf]
      %v4433 = vld [vmem:[%s4431 + $0x4] sm:$0xf]
      %v4436 = vunpack.c.l.b16 %v4432
      %v4437 = vunpack.c.l.b16 %v4433
      %v4438 = vpack.c.b16 %v4437, %v4436
      %4439 = vrot.lane.b32.xlu0 %v313, 19
      %v4440 = vpop.permute.xlu0 %4439
      %4441 = vrot.lane.b32.xlu0 %v314, 19
      %v4442 = vpop.permute.xlu0 %4441
      %4443 = vrot.lane.b32.xlu0 %v315, 19
      %v4444 = vpop.permute.xlu0 %4443
      %4445 = vrot.lane.b32.xlu0 %v316, 19
      %v4446 = vpop.permute.xlu0 %4445
      %4447 = vrot.lane.b32.xlu0 %v317, 19
      %v4448 = vpop.permute.xlu0 %4447
      %4449 = vrot.lane.b32.xlu0 %v318, 19
      %v4450 = vpop.permute.xlu0 %4449
      %4451 = vrot.lane.b32.xlu0 %v319, 19
      %v4452 = vpop.permute.xlu0 %4451
      %4453 = vrot.lane.b32.xlu0 %v320, 19
      %v4454 = vpop.permute.xlu0 %4453
      %4455 = vrot.lane.b32.xlu0 %v2698, 19
      %v4456 = vpop.permute.xlu0 %4455
      %vm4457 = vcmask 154624
      %v4458 = vsel %vm4457, %v4440, %v4442
      %v4459 = vsel %vm4457, %v4442, %v4444
      %v4460 = vsel %vm4457, %v4444, %v4446
      %v4461 = vsel %vm4457, %v4446, %v4448
      %v4462 = vsel %vm4457, %v4448, %v4450
      %v4463 = vsel %vm4457, %v4450, %v4452
      %v4464 = vsel %vm4457, %v4452, %v4454
      %v4465 = vsel %vm4457, %v4454, %v4456
      %v4475 = vsel %vm356, %v4438, 0
      %4477 = vmatpush.bf16.msra.mxu0 0
      %4478 = vmatpush.bf16.msra.mxu0 0
      %4479 = vmatpush.bf16.msra.mxu0 0
      %4480 = vmatpush.bf16.msra.mxu0 0
      %4481 = vmatpush.bf16.msra.mxu0 0
      %4482 = vmatpush.bf16.msra.mxu0 0
      %4483 = vmatpush.bf16.msra.mxu0 0
      %4484 = vmatpush.bf16.msra.mxu0 %v4458
      %4485 = vmatmul.bf16.gmra.mxu0 %v4475
      %v4486 = vpop.f32.mrf.mxu0
      %v4487 = vadd.f32 0.0, %v4486
      %v4488 = vpop.f32.mrf.mxu0
      %v4489 = vadd.f32 0.0, %v4488
      %4490 = vdwg.mxu0
      %4491 = vmatpush.bf16.msra.mxu0 0
      %4492 = vmatpush.bf16.msra.mxu0 0
      %4493 = vmatpush.bf16.msra.mxu0 0
      %4494 = vmatpush.bf16.msra.mxu0 0
      %4495 = vmatpush.bf16.msra.mxu0 0
      %4496 = vmatpush.bf16.msra.mxu0 0
      %4497 = vmatpush.bf16.msra.mxu0 0
      %4498 = vmatpush.bf16.msra.mxu0 %v4459
      %4499 = vmatmul.bf16.gmra.mxu0 %v4475
      %v4500 = vpop.f32.mrf.mxu0
      %v4501 = vadd.f32 0.0, %v4500
      %v4502 = vpop.f32.mrf.mxu0
      %v4503 = vadd.f32 0.0, %v4502
      %4504 = vdwg.mxu0
      %4505 = vmatpush.bf16.msra.mxu0 0
      %4506 = vmatpush.bf16.msra.mxu0 0
      %4507 = vmatpush.bf16.msra.mxu0 0
      %4508 = vmatpush.bf16.msra.mxu0 0
      %4509 = vmatpush.bf16.msra.mxu0 0
      %4510 = vmatpush.bf16.msra.mxu0 0
      %4511 = vmatpush.bf16.msra.mxu0 0
      %4512 = vmatpush.bf16.msra.mxu0 %v4460
      %4513 = vmatmul.bf16.gmra.mxu0 %v4475
      %v4514 = vpop.f32.mrf.mxu0
      %v4515 = vadd.f32 0.0, %v4514
      %v4516 = vpop.f32.mrf.mxu0
      %v4517 = vadd.f32 0.0, %v4516
      %4518 = vdwg.mxu0
      %4519 = vmatpush.bf16.msra.mxu0 0
      %4520 = vmatpush.bf16.msra.mxu0 0
      %4521 = vmatpush.bf16.msra.mxu0 0
      %4522 = vmatpush.bf16.msra.mxu0 0
      %4523 = vmatpush.bf16.msra.mxu0 0
      %4524 = vmatpush.bf16.msra.mxu0 0
      %4525 = vmatpush.bf16.msra.mxu0 0
      %4526 = vmatpush.bf16.msra.mxu0 %v4461
      %4527 = vmatmul.bf16.gmra.mxu0 %v4475
      %v4528 = vpop.f32.mrf.mxu0
      %v4529 = vadd.f32 0.0, %v4528
      %v4530 = vpop.f32.mrf.mxu0
      %v4531 = vadd.f32 0.0, %v4530
      %4532 = vdwg.mxu0
      %4533 = vmatpush.bf16.msra.mxu0 0
      %4534 = vmatpush.bf16.msra.mxu0 0
      %4535 = vmatpush.bf16.msra.mxu0 0
      %4536 = vmatpush.bf16.msra.mxu0 0
      %4537 = vmatpush.bf16.msra.mxu0 0
      %4538 = vmatpush.bf16.msra.mxu0 0
      %4539 = vmatpush.bf16.msra.mxu0 0
      %4540 = vmatpush.bf16.msra.mxu0 %v4462
      %4541 = vmatmul.bf16.gmra.mxu0 %v4475
      %v4542 = vpop.f32.mrf.mxu0
      %v4543 = vadd.f32 0.0, %v4542
      %v4544 = vpop.f32.mrf.mxu0
      %v4545 = vadd.f32 0.0, %v4544
      %4546 = vdwg.mxu0
      %4547 = vmatpush.bf16.msra.mxu0 0
      %4548 = vmatpush.bf16.msra.mxu0 0
      %4549 = vmatpush.bf16.msra.mxu0 0
      %4550 = vmatpush.bf16.msra.mxu0 0
      %4551 = vmatpush.bf16.msra.mxu0 0
      %4552 = vmatpush.bf16.msra.mxu0 0
      %4553 = vmatpush.bf16.msra.mxu0 0
      %4554 = vmatpush.bf16.msra.mxu0 %v4463
      %4555 = vmatmul.bf16.gmra.mxu0 %v4475
      %v4556 = vpop.f32.mrf.mxu0
      %v4557 = vadd.f32 0.0, %v4556
      %v4558 = vpop.f32.mrf.mxu0
      %v4559 = vadd.f32 0.0, %v4558
      %4560 = vdwg.mxu0
      %4561 = vmatpush.bf16.msra.mxu0 0
      %4562 = vmatpush.bf16.msra.mxu0 0
      %4563 = vmatpush.bf16.msra.mxu0 0
      %4564 = vmatpush.bf16.msra.mxu0 0
      %4565 = vmatpush.bf16.msra.mxu0 0
      %4566 = vmatpush.bf16.msra.mxu0 0
      %4567 = vmatpush.bf16.msra.mxu0 0
      %4568 = vmatpush.bf16.msra.mxu0 %v4464
      %4569 = vmatmul.bf16.gmra.mxu0 %v4475
      %v4570 = vpop.f32.mrf.mxu0
      %v4571 = vadd.f32 0.0, %v4570
      %v4572 = vpop.f32.mrf.mxu0
      %v4573 = vadd.f32 0.0, %v4572
      %4574 = vdwg.mxu0
      %4575 = vmatpush.bf16.msra.mxu0 0
      %4576 = vmatpush.bf16.msra.mxu0 0
      %4577 = vmatpush.bf16.msra.mxu0 0
      %4578 = vmatpush.bf16.msra.mxu0 0
      %4579 = vmatpush.bf16.msra.mxu0 0
      %4580 = vmatpush.bf16.msra.mxu0 0
      %4581 = vmatpush.bf16.msra.mxu0 0
      %4582 = vmatpush.bf16.msra.mxu0 %v4465
      %4583 = vmatmul.bf16.gmra.mxu0 %v4475
      %v4584 = vpop.f32.mrf.mxu0
      %v4585 = vadd.f32 0.0, %v4584
      %v4586 = vpop.f32.mrf.mxu0
      %v4587 = vadd.f32 0.0, %v4586
      %4588 = vdwg.mxu0
      %v4589 = vadd.f32 %v4415, %v4487
      %v4590 = vadd.f32 %v4416, %v4501
      %v4591 = vadd.f32 %v4417, %v4515
      %v4592 = vadd.f32 %v4418, %v4529
      %v4593 = vadd.f32 %v4419, %v4543
      %v4594 = vadd.f32 %v4420, %v4557
      %v4595 = vadd.f32 %v4421, %v4571
      %v4596 = vadd.f32 %v4422, %v4585
      %v4597 = vadd.f32 %v4423, %v4489
      %v4598 = vadd.f32 %v4424, %v4503
      %v4599 = vadd.f32 %v4425, %v4517
      %v4600 = vadd.f32 %v4426, %v4531
      %v4601 = vadd.f32 %v4427, %v4545
      %v4602 = vadd.f32 %v4428, %v4559
      %v4603 = vadd.f32 %v4429, %v4573
      %v4604 = vadd.f32 %v4430, %v4587
      %s4605 = scalar_lea.vmem %s2, 200
      %v4606 = vld [vmem:[%s4605] sm:$0xf]
      %v4607 = vld [vmem:[%s4605 + $0x4] sm:$0xf]
      %v4610 = vunpack.c.l.b16 %v4606
      %v4611 = vunpack.c.l.b16 %v4607
      %v4612 = vpack.c.b16 %v4611, %v4610
      %4613 = vrot.lane.b32.xlu0 %v313, 18
      %v4614 = vpop.permute.xlu0 %4613
      %4615 = vrot.lane.b32.xlu0 %v314, 18
      %v4616 = vpop.permute.xlu0 %4615
      %4617 = vrot.lane.b32.xlu0 %v315, 18
      %v4618 = vpop.permute.xlu0 %4617
      %4619 = vrot.lane.b32.xlu0 %v316, 18
      %v4620 = vpop.permute.xlu0 %4619
      %4621 = vrot.lane.b32.xlu0 %v317, 18
      %v4622 = vpop.permute.xlu0 %4621
      %4623 = vrot.lane.b32.xlu0 %v318, 18
      %v4624 = vpop.permute.xlu0 %4623
      %4625 = vrot.lane.b32.xlu0 %v319, 18
      %v4626 = vpop.permute.xlu0 %4625
      %4627 = vrot.lane.b32.xlu0 %v320, 18
      %v4628 = vpop.permute.xlu0 %4627
      %4629 = vrot.lane.b32.xlu0 %v2698, 18
      %v4630 = vpop.permute.xlu0 %4629
      %vm4631 = vcmask 146432
      %v4632 = vsel %vm4631, %v4614, %v4616
      %v4633 = vsel %vm4631, %v4616, %v4618
      %v4634 = vsel %vm4631, %v4618, %v4620
      %v4635 = vsel %vm4631, %v4620, %v4622
      %v4636 = vsel %vm4631, %v4622, %v4624
      %v4637 = vsel %vm4631, %v4624, %v4626
      %v4638 = vsel %vm4631, %v4626, %v4628
      %v4639 = vsel %vm4631, %v4628, %v4630
      %v4649 = vsel %vm356, %v4612, 0
      %4651 = vmatpush.bf16.msra.mxu0 0
      %4652 = vmatpush.bf16.msra.mxu0 0
      %4653 = vmatpush.bf16.msra.mxu0 0
      %4654 = vmatpush.bf16.msra.mxu0 0
      %4655 = vmatpush.bf16.msra.mxu0 0
      %4656 = vmatpush.bf16.msra.mxu0 0
      %4657 = vmatpush.bf16.msra.mxu0 0
      %4658 = vmatpush.bf16.msra.mxu0 %v4632
      %4659 = vmatmul.bf16.gmra.mxu0 %v4649
      %v4660 = vpop.f32.mrf.mxu0
      %v4661 = vadd.f32 0.0, %v4660
      %v4662 = vpop.f32.mrf.mxu0
      %v4663 = vadd.f32 0.0, %v4662
      %4664 = vdwg.mxu0
      %4665 = vmatpush.bf16.msra.mxu0 0
      %4666 = vmatpush.bf16.msra.mxu0 0
      %4667 = vmatpush.bf16.msra.mxu0 0
      %4668 = vmatpush.bf16.msra.mxu0 0
      %4669 = vmatpush.bf16.msra.mxu0 0
      %4670 = vmatpush.bf16.msra.mxu0 0
      %4671 = vmatpush.bf16.msra.mxu0 0
      %4672 = vmatpush.bf16.msra.mxu0 %v4633
      %4673 = vmatmul.bf16.gmra.mxu0 %v4649
      %v4674 = vpop.f32.mrf.mxu0
      %v4675 = vadd.f32 0.0, %v4674
      %v4676 = vpop.f32.mrf.mxu0
      %v4677 = vadd.f32 0.0, %v4676
      %4678 = vdwg.mxu0
      %4679 = vmatpush.bf16.msra.mxu0 0
      %4680 = vmatpush.bf16.msra.mxu0 0
      %4681 = vmatpush.bf16.msra.mxu0 0
      %4682 = vmatpush.bf16.msra.mxu0 0
      %4683 = vmatpush.bf16.msra.mxu0 0
      %4684 = vmatpush.bf16.msra.mxu0 0
      %4685 = vmatpush.bf16.msra.mxu0 0
      %4686 = vmatpush.bf16.msra.mxu0 %v4634
      %4687 = vmatmul.bf16.gmra.mxu0 %v4649
      %v4688 = vpop.f32.mrf.mxu0
      %v4689 = vadd.f32 0.0, %v4688
      %v4690 = vpop.f32.mrf.mxu0
      %v4691 = vadd.f32 0.0, %v4690
      %4692 = vdwg.mxu0
      %4693 = vmatpush.bf16.msra.mxu0 0
      %4694 = vmatpush.bf16.msra.mxu0 0
      %4695 = vmatpush.bf16.msra.mxu0 0
      %4696 = vmatpush.bf16.msra.mxu0 0
      %4697 = vmatpush.bf16.msra.mxu0 0
      %4698 = vmatpush.bf16.msra.mxu0 0
      %4699 = vmatpush.bf16.msra.mxu0 0
      %4700 = vmatpush.bf16.msra.mxu0 %v4635
      %4701 = vmatmul.bf16.gmra.mxu0 %v4649
      %v4702 = vpop.f32.mrf.mxu0
      %v4703 = vadd.f32 0.0, %v4702
      %v4704 = vpop.f32.mrf.mxu0
      %v4705 = vadd.f32 0.0, %v4704
      %4706 = vdwg.mxu0
      %4707 = vmatpush.bf16.msra.mxu0 0
      %4708 = vmatpush.bf16.msra.mxu0 0
      %4709 = vmatpush.bf16.msra.mxu0 0
      %4710 = vmatpush.bf16.msra.mxu0 0
      %4711 = vmatpush.bf16.msra.mxu0 0
      %4712 = vmatpush.bf16.msra.mxu0 0
      %4713 = vmatpush.bf16.msra.mxu0 0
      %4714 = vmatpush.bf16.msra.mxu0 %v4636
      %4715 = vmatmul.bf16.gmra.mxu0 %v4649
      %v4716 = vpop.f32.mrf.mxu0
      %v4717 = vadd.f32 0.0, %v4716
      %v4718 = vpop.f32.mrf.mxu0
      %v4719 = vadd.f32 0.0, %v4718
      %4720 = vdwg.mxu0
      %4721 = vmatpush.bf16.msra.mxu0 0
      %4722 = vmatpush.bf16.msra.mxu0 0
      %4723 = vmatpush.bf16.msra.mxu0 0
      %4724 = vmatpush.bf16.msra.mxu0 0
      %4725 = vmatpush.bf16.msra.mxu0 0
      %4726 = vmatpush.bf16.msra.mxu0 0
      %4727 = vmatpush.bf16.msra.mxu0 0
      %4728 = vmatpush.bf16.msra.mxu0 %v4637
      %4729 = vmatmul.bf16.gmra.mxu0 %v4649
      %v4730 = vpop.f32.mrf.mxu0
      %v4731 = vadd.f32 0.0, %v4730
      %v4732 = vpop.f32.mrf.mxu0
      %v4733 = vadd.f32 0.0, %v4732
      %4734 = vdwg.mxu0
      %4735 = vmatpush.bf16.msra.mxu0 0
      %4736 = vmatpush.bf16.msra.mxu0 0
      %4737 = vmatpush.bf16.msra.mxu0 0
      %4738 = vmatpush.bf16.msra.mxu0 0
      %4739 = vmatpush.bf16.msra.mxu0 0
      %4740 = vmatpush.bf16.msra.mxu0 0
      %4741 = vmatpush.bf16.msra.mxu0 0
      %4742 = vmatpush.bf16.msra.mxu0 %v4638
      %4743 = vmatmul.bf16.gmra.mxu0 %v4649
      %v4744 = vpop.f32.mrf.mxu0
      %v4745 = vadd.f32 0.0, %v4744
      %v4746 = vpop.f32.mrf.mxu0
      %v4747 = vadd.f32 0.0, %v4746
      %4748 = vdwg.mxu0
      %4749 = vmatpush.bf16.msra.mxu0 0
      %4750 = vmatpush.bf16.msra.mxu0 0
      %4751 = vmatpush.bf16.msra.mxu0 0
      %4752 = vmatpush.bf16.msra.mxu0 0
      %4753 = vmatpush.bf16.msra.mxu0 0
      %4754 = vmatpush.bf16.msra.mxu0 0
      %4755 = vmatpush.bf16.msra.mxu0 0
      %4756 = vmatpush.bf16.msra.mxu0 %v4639
      %4757 = vmatmul.bf16.gmra.mxu0 %v4649
      %v4758 = vpop.f32.mrf.mxu0
      %v4759 = vadd.f32 0.0, %v4758
      %v4760 = vpop.f32.mrf.mxu0
      %v4761 = vadd.f32 0.0, %v4760
      %4762 = vdwg.mxu0
      %v4763 = vadd.f32 %v4589, %v4661
      %v4764 = vadd.f32 %v4590, %v4675
      %v4765 = vadd.f32 %v4591, %v4689
      %v4766 = vadd.f32 %v4592, %v4703
      %v4767 = vadd.f32 %v4593, %v4717
      %v4768 = vadd.f32 %v4594, %v4731
      %v4769 = vadd.f32 %v4595, %v4745
      %v4770 = vadd.f32 %v4596, %v4759
      %v4771 = vadd.f32 %v4597, %v4663
      %v4772 = vadd.f32 %v4598, %v4677
      %v4773 = vadd.f32 %v4599, %v4691
      %v4774 = vadd.f32 %v4600, %v4705
      %v4775 = vadd.f32 %v4601, %v4719
      %v4776 = vadd.f32 %v4602, %v4733
      %v4777 = vadd.f32 %v4603, %v4747
      %v4778 = vadd.f32 %v4604, %v4761
      %s4779 = scalar_lea.vmem %s2, 208
      %v4780 = vld [vmem:[%s4779] sm:$0xf]
      %v4781 = vld [vmem:[%s4779 + $0x4] sm:$0xf]
      %v4784 = vunpack.c.l.b16 %v4780
      %v4785 = vunpack.c.l.b16 %v4781
      %v4786 = vpack.c.b16 %v4785, %v4784
      %4787 = vrot.lane.b32.xlu0 %v313, 17
      %v4788 = vpop.permute.xlu0 %4787
      %4789 = vrot.lane.b32.xlu0 %v314, 17
      %v4790 = vpop.permute.xlu0 %4789
      %4791 = vrot.lane.b32.xlu0 %v315, 17
      %v4792 = vpop.permute.xlu0 %4791
      %4793 = vrot.lane.b32.xlu0 %v316, 17
      %v4794 = vpop.permute.xlu0 %4793
      %4795 = vrot.lane.b32.xlu0 %v317, 17
      %v4796 = vpop.permute.xlu0 %4795
      %4797 = vrot.lane.b32.xlu0 %v318, 17
      %v4798 = vpop.permute.xlu0 %4797
      %4799 = vrot.lane.b32.xlu0 %v319, 17
      %v4800 = vpop.permute.xlu0 %4799
      %4801 = vrot.lane.b32.xlu0 %v320, 17
      %v4802 = vpop.permute.xlu0 %4801
      %4803 = vrot.lane.b32.xlu0 %v2698, 17
      %v4804 = vpop.permute.xlu0 %4803
      %vm4805 = vcmask 138240
      %v4806 = vsel %vm4805, %v4788, %v4790
      %v4807 = vsel %vm4805, %v4790, %v4792
      %v4808 = vsel %vm4805, %v4792, %v4794
      %v4809 = vsel %vm4805, %v4794, %v4796
      %v4810 = vsel %vm4805, %v4796, %v4798
      %v4811 = vsel %vm4805, %v4798, %v4800
      %v4812 = vsel %vm4805, %v4800, %v4802
      %v4813 = vsel %vm4805, %v4802, %v4804
      %v4823 = vsel %vm356, %v4786, 0
      %4825 = vmatpush.bf16.msra.mxu0 0
      %4826 = vmatpush.bf16.msra.mxu0 0
      %4827 = vmatpush.bf16.msra.mxu0 0
      %4828 = vmatpush.bf16.msra.mxu0 0
      %4829 = vmatpush.bf16.msra.mxu0 0
      %4830 = vmatpush.bf16.msra.mxu0 0
      %4831 = vmatpush.bf16.msra.mxu0 0
      %4832 = vmatpush.bf16.msra.mxu0 %v4806
      %4833 = vmatmul.bf16.gmra.mxu0 %v4823
      %v4834 = vpop.f32.mrf.mxu0
      %v4835 = vadd.f32 0.0, %v4834
      %v4836 = vpop.f32.mrf.mxu0
      %v4837 = vadd.f32 0.0, %v4836
      %4838 = vdwg.mxu0
      %4839 = vmatpush.bf16.msra.mxu0 0
      %4840 = vmatpush.bf16.msra.mxu0 0
      %4841 = vmatpush.bf16.msra.mxu0 0
      %4842 = vmatpush.bf16.msra.mxu0 0
      %4843 = vmatpush.bf16.msra.mxu0 0
      %4844 = vmatpush.bf16.msra.mxu0 0
      %4845 = vmatpush.bf16.msra.mxu0 0
      %4846 = vmatpush.bf16.msra.mxu0 %v4807
      %4847 = vmatmul.bf16.gmra.mxu0 %v4823
      %v4848 = vpop.f32.mrf.mxu0
      %v4849 = vadd.f32 0.0, %v4848
      %v4850 = vpop.f32.mrf.mxu0
      %v4851 = vadd.f32 0.0, %v4850
      %4852 = vdwg.mxu0
      %4853 = vmatpush.bf16.msra.mxu0 0
      %4854 = vmatpush.bf16.msra.mxu0 0
      %4855 = vmatpush.bf16.msra.mxu0 0
      %4856 = vmatpush.bf16.msra.mxu0 0
      %4857 = vmatpush.bf16.msra.mxu0 0
      %4858 = vmatpush.bf16.msra.mxu0 0
      %4859 = vmatpush.bf16.msra.mxu0 0
      %4860 = vmatpush.bf16.msra.mxu0 %v4808
      %4861 = vmatmul.bf16.gmra.mxu0 %v4823
      %v4862 = vpop.f32.mrf.mxu0
      %v4863 = vadd.f32 0.0, %v4862
      %v4864 = vpop.f32.mrf.mxu0
      %v4865 = vadd.f32 0.0, %v4864
      %4866 = vdwg.mxu0
      %4867 = vmatpush.bf16.msra.mxu0 0
      %4868 = vmatpush.bf16.msra.mxu0 0
      %4869 = vmatpush.bf16.msra.mxu0 0
      %4870 = vmatpush.bf16.msra.mxu0 0
      %4871 = vmatpush.bf16.msra.mxu0 0
      %4872 = vmatpush.bf16.msra.mxu0 0
      %4873 = vmatpush.bf16.msra.mxu0 0
      %4874 = vmatpush.bf16.msra.mxu0 %v4809
      %4875 = vmatmul.bf16.gmra.mxu0 %v4823
      %v4876 = vpop.f32.mrf.mxu0
      %v4877 = vadd.f32 0.0, %v4876
      %v4878 = vpop.f32.mrf.mxu0
      %v4879 = vadd.f32 0.0, %v4878
      %4880 = vdwg.mxu0
      %4881 = vmatpush.bf16.msra.mxu0 0
      %4882 = vmatpush.bf16.msra.mxu0 0
      %4883 = vmatpush.bf16.msra.mxu0 0
      %4884 = vmatpush.bf16.msra.mxu0 0
      %4885 = vmatpush.bf16.msra.mxu0 0
      %4886 = vmatpush.bf16.msra.mxu0 0
      %4887 = vmatpush.bf16.msra.mxu0 0
      %4888 = vmatpush.bf16.msra.mxu0 %v4810
      %4889 = vmatmul.bf16.gmra.mxu0 %v4823
      %v4890 = vpop.f32.mrf.mxu0
      %v4891 = vadd.f32 0.0, %v4890
      %v4892 = vpop.f32.mrf.mxu0
      %v4893 = vadd.f32 0.0, %v4892
      %4894 = vdwg.mxu0
      %4895 = vmatpush.bf16.msra.mxu0 0
      %4896 = vmatpush.bf16.msra.mxu0 0
      %4897 = vmatpush.bf16.msra.mxu0 0
      %4898 = vmatpush.bf16.msra.mxu0 0
      %4899 = vmatpush.bf16.msra.mxu0 0
      %4900 = vmatpush.bf16.msra.mxu0 0
      %4901 = vmatpush.bf16.msra.mxu0 0
      %4902 = vmatpush.bf16.msra.mxu0 %v4811
      %4903 = vmatmul.bf16.gmra.mxu0 %v4823
      %v4904 = vpop.f32.mrf.mxu0
      %v4905 = vadd.f32 0.0, %v4904
      %v4906 = vpop.f32.mrf.mxu0
      %v4907 = vadd.f32 0.0, %v4906
      %4908 = vdwg.mxu0
      %4909 = vmatpush.bf16.msra.mxu0 0
      %4910 = vmatpush.bf16.msra.mxu0 0
      %4911 = vmatpush.bf16.msra.mxu0 0
      %4912 = vmatpush.bf16.msra.mxu0 0
      %4913 = vmatpush.bf16.msra.mxu0 0
      %4914 = vmatpush.bf16.msra.mxu0 0
      %4915 = vmatpush.bf16.msra.mxu0 0
      %4916 = vmatpush.bf16.msra.mxu0 %v4812
      %4917 = vmatmul.bf16.gmra.mxu0 %v4823
      %v4918 = vpop.f32.mrf.mxu0
      %v4919 = vadd.f32 0.0, %v4918
      %v4920 = vpop.f32.mrf.mxu0
      %v4921 = vadd.f32 0.0, %v4920
      %4922 = vdwg.mxu0
      %4923 = vmatpush.bf16.msra.mxu0 0
      %4924 = vmatpush.bf16.msra.mxu0 0
      %4925 = vmatpush.bf16.msra.mxu0 0
      %4926 = vmatpush.bf16.msra.mxu0 0
      %4927 = vmatpush.bf16.msra.mxu0 0
      %4928 = vmatpush.bf16.msra.mxu0 0
      %4929 = vmatpush.bf16.msra.mxu0 0
      %4930 = vmatpush.bf16.msra.mxu0 %v4813
      %4931 = vmatmul.bf16.gmra.mxu0 %v4823
      %v4932 = vpop.f32.mrf.mxu0
      %v4933 = vadd.f32 0.0, %v4932
      %v4934 = vpop.f32.mrf.mxu0
      %v4935 = vadd.f32 0.0, %v4934
      %4936 = vdwg.mxu0
      %v4937 = vadd.f32 %v4763, %v4835
      %v4938 = vadd.f32 %v4764, %v4849
      %v4939 = vadd.f32 %v4765, %v4863
      %v4940 = vadd.f32 %v4766, %v4877
      %v4941 = vadd.f32 %v4767, %v4891
      %v4942 = vadd.f32 %v4768, %v4905
      %v4943 = vadd.f32 %v4769, %v4919
      %v4944 = vadd.f32 %v4770, %v4933
      %v4945 = vadd.f32 %v4771, %v4837
      %v4946 = vadd.f32 %v4772, %v4851
      %v4947 = vadd.f32 %v4773, %v4865
      %v4948 = vadd.f32 %v4774, %v4879
      %v4949 = vadd.f32 %v4775, %v4893
      %v4950 = vadd.f32 %v4776, %v4907
      %v4951 = vadd.f32 %v4777, %v4921
      %v4952 = vadd.f32 %v4778, %v4935
      %v4953 = vld [vmem:[%s3] sm:$0xff]
      %v4954 = vld [vmem:[%s3 + $0x8] sm:$0xff]
      %4956 = vset.pattern.permute.xlu0 0
      %4957 = vperm.xlu0 %4956, %v4953
      %v4958 = vpop.permute.xlu0 %4957
      %4961 = vset.pattern.permute.xlu0 0
      %4962 = vperm.xlu0 %4961, %v4954
      %v4963 = vpop.permute.xlu0 %4962
      %v4965 = vadd.f32 %v4937, %v4958
      %v4966 = vadd.f32 %v4938, %v4958
      %v4967 = vadd.f32 %v4939, %v4958
      %v4968 = vadd.f32 %v4940, %v4958
      %v4969 = vadd.f32 %v4941, %v4958
      %v4970 = vadd.f32 %v4942, %v4958
      %v4971 = vadd.f32 %v4943, %v4958
      %v4972 = vadd.f32 %v4944, %v4958
      %v4973 = vadd.f32 %v4945, %v4963
      %v4974 = vadd.f32 %v4946, %v4963
      %v4975 = vadd.f32 %v4947, %v4963
      %v4976 = vadd.f32 %v4948, %v4963
      %v4977 = vadd.f32 %v4949, %v4963
      %v4978 = vadd.f32 %v4950, %v4963
      %v4979 = vadd.f32 %v4951, %v4963
      %v4980 = vadd.f32 %v4952, %v4963
      %v4982 = vperm.slane %v253, 0
      %v4983 = vperm.slane %v253, 1
      %v4984 = vperm.slane %v253, 2
      %v4985 = vperm.slane %v253, 3
      %v4986 = vperm.slane %v253, 4
      %v4987 = vperm.slane %v253, 5
      %v4988 = vperm.slane %v253, 6
      %v4989 = vperm.slane %v253, 7
      %v4998 = vmul.f32 %v4965, %v4982
      %v4999 = vmul.f32 %v4966, %v4983
      %v5000 = vmul.f32 %v4967, %v4984
      %v5001 = vmul.f32 %v4968, %v4985
      %v5002 = vmul.f32 %v4969, %v4986
      %v5003 = vmul.f32 %v4970, %v4987
      %v5004 = vmul.f32 %v4971, %v4988
      %v5005 = vmul.f32 %v4972, %v4989
      %v5006 = vmul.f32 %v4973, %v4982
      %v5007 = vmul.f32 %v4974, %v4983
      %v5008 = vmul.f32 %v4975, %v4984
      %v5009 = vmul.f32 %v4976, %v4985
      %v5010 = vmul.f32 %v4977, %v4986
      %v5011 = vmul.f32 %v4978, %v4987
      %v5012 = vmul.f32 %v4979, %v4988
      %v5013 = vmul.f32 %v4980, %v4989
      %v5014 = vmul.f32 %v4998, %v4998
      %v5015 = vmul.f32 %v4999, %v4999
      %v5016 = vmul.f32 %v5000, %v5000
      %v5017 = vmul.f32 %v5001, %v5001
      %v5018 = vmul.f32 %v5002, %v5002
      %v5019 = vmul.f32 %v5003, %v5003
      %v5020 = vmul.f32 %v5004, %v5004
      %v5021 = vmul.f32 %v5005, %v5005
      %v5022 = vmul.f32 %v5006, %v5006
      %v5023 = vmul.f32 %v5007, %v5007
      %v5024 = vmul.f32 %v5008, %v5008
      %v5025 = vmul.f32 %v5009, %v5009
      %v5026 = vmul.f32 %v5010, %v5010
      %v5027 = vmul.f32 %v5011, %v5011
      %v5028 = vmul.f32 %v5012, %v5012
      %v5029 = vmul.f32 %v5013, %v5013
      %v5030 = vadd.f32 %v5014, %v5015
      %v5031 = vadd.f32 %v5030, %v5016
      %v5032 = vadd.f32 %v5031, %v5017
      %v5033 = vadd.f32 %v5032, %v5018
      %v5034 = vadd.f32 %v5033, %v5019
      %v5035 = vadd.f32 %v5034, %v5020
      %v5036 = vadd.f32 %v5035, %v5021
      %5037 = vadd.xlane.f32.xlu0 %v5036
      %v5038 = vpop.xlane.xlu0 %5037
      %v5039 = vadd.f32 %v5022, %v5023
      %v5040 = vadd.f32 %v5039, %v5024
      %v5041 = vadd.f32 %v5040, %v5025
      %v5042 = vadd.f32 %v5041, %v5026
      %v5043 = vadd.f32 %v5042, %v5027
      %v5044 = vadd.f32 %v5043, %v5028
      %v5045 = vadd.f32 %v5044, %v5029
      %5046 = vadd.xlane.f32.xlu0 %v5045
      %v5047 = vpop.xlane.xlu0 %5046
      %v5048 = vmul.f32 %v5038, 0.001953125
      %v5049 = vmul.f32 %v5047, 0.001953125
      %v5050 = vadd.f32 %v5048, 1e-06
      %v5051 = vadd.f32 %v5049, 1e-06
      %v5052 = vrsqrt.pop %v5050
      %v5053 = vmul.f32 %v5052, %v5050
      %v5054 = vmul.f32 %v5053, %v5052
      %v5055 = vmul.f32 0.5, %v5054
      %v5056 = vsub.f32 1.5, %v5055
      %v5057 = vmul.f32 %v5052, %v5056
      %vm5058 = vweird.f32 %v5050
      %vm5059 = vweird.f32 %v5052
      %vm5060 = vmor %vm5058, %vm5059
      %v5061 = vsel %vm5060, %v5052, %v5057
      %v5062 = vrsqrt.pop %v5051
      %v5063 = vmul.f32 %v5062, %v5051
      %v5064 = vmul.f32 %v5063, %v5062
      %v5065 = vmul.f32 0.5, %v5064
      %v5066 = vsub.f32 1.5, %v5065
      %v5067 = vmul.f32 %v5062, %v5066
      %vm5068 = vweird.f32 %v5051
      %vm5069 = vweird.f32 %v5062
      %vm5070 = vmor %vm5068, %vm5069
      %v5071 = vsel %vm5070, %v5062, %v5067
      %v5072 = vmul.f32 %v4998, %v5061
      %v5073 = vmul.f32 %v4999, %v5061
      %v5074 = vmul.f32 %v5000, %v5061
      %v5075 = vmul.f32 %v5001, %v5061
      %v5076 = vmul.f32 %v5002, %v5061
      %v5077 = vmul.f32 %v5003, %v5061
      %v5078 = vmul.f32 %v5004, %v5061
      %v5079 = vmul.f32 %v5005, %v5061
      %v5080 = vmul.f32 %v5006, %v5071
      %v5081 = vmul.f32 %v5007, %v5071
      %v5082 = vmul.f32 %v5008, %v5071
      %v5083 = vmul.f32 %v5009, %v5071
      %v5084 = vmul.f32 %v5010, %v5071
      %v5085 = vmul.f32 %v5011, %v5071
      %v5086 = vmul.f32 %v5012, %v5071
      %v5087 = vmul.f32 %v5013, %v5071
      %s5088 = scalar_lea.vmem %s3, 16
      %v5089 = vld [vmem:[%s5088] sm:$0xff]
      %v5090 = vld [vmem:[%s5088 + $0x8] sm:$0xff]
      %5092 = vset.pattern.permute.xlu0 0
      %5093 = vperm.xlu0 %5092, %v5089
      %v5094 = vpop.permute.xlu0 %5093
      %5097 = vset.pattern.permute.xlu0 0
      %5098 = vperm.xlu0 %5097, %v5090
      %v5099 = vpop.permute.xlu0 %5098
      %v5101 = vmul.f32 %v5094, %v5072
      %v5102 = vmul.f32 %v5094, %v5073
      %v5103 = vmul.f32 %v5094, %v5074
      %v5104 = vmul.f32 %v5094, %v5075
      %v5105 = vmul.f32 %v5094, %v5076
      %v5106 = vmul.f32 %v5094, %v5077
      %v5107 = vmul.f32 %v5094, %v5078
      %v5108 = vmul.f32 %v5094, %v5079
      %v5109 = vmul.f32 %v5099, %v5080
      %v5110 = vmul.f32 %v5099, %v5081
      %v5111 = vmul.f32 %v5099, %v5082
      %v5112 = vmul.f32 %v5099, %v5083
      %v5113 = vmul.f32 %v5099, %v5084
      %v5114 = vmul.f32 %v5099, %v5085
      %v5115 = vmul.f32 %v5099, %v5086
      %v5116 = vmul.f32 %v5099, %v5087
      %s5117 = scalar_lea.vmem %s3, 32
      %v5118 = vld [vmem:[%s5117] sm:$0xff]
      %v5119 = vld [vmem:[%s5117 + $0x8] sm:$0xff]
      %5121 = vset.pattern.permute.xlu0 0
      %5122 = vperm.xlu0 %5121, %v5118
      %v5123 = vpop.permute.xlu0 %5122
      %5126 = vset.pattern.permute.xlu0 0
      %5127 = vperm.xlu0 %5126, %v5119
      %v5128 = vpop.permute.xlu0 %5127
      %v5130 = vadd.f32 %v5101, %v5123
      %v5131 = vadd.f32 %v5102, %v5123
      %v5132 = vadd.f32 %v5103, %v5123
      %v5133 = vadd.f32 %v5104, %v5123
      %v5134 = vadd.f32 %v5105, %v5123
      %v5135 = vadd.f32 %v5106, %v5123
      %v5136 = vadd.f32 %v5107, %v5123
      %v5137 = vadd.f32 %v5108, %v5123
      %v5138 = vadd.f32 %v5109, %v5128
      %v5139 = vadd.f32 %v5110, %v5128
      %v5140 = vadd.f32 %v5111, %v5128
      %v5141 = vadd.f32 %v5112, %v5128
      %v5142 = vadd.f32 %v5113, %v5128
      %v5143 = vadd.f32 %v5114, %v5128
      %v5144 = vadd.f32 %v5115, %v5128
      %v5145 = vadd.f32 %v5116, %v5128
      %s5146 = scalar_lea.vmem %s3, 48
      %v5147 = vld [vmem:[%s5146] sm:$0xff]
      %v5148 = vld [vmem:[%s5146 + $0x8] sm:$0xff]
      %5150 = vset.pattern.permute.xlu0 0
      %5151 = vperm.xlu0 %5150, %v5147
      %v5152 = vpop.permute.xlu0 %5151
      %5155 = vset.pattern.permute.xlu0 0
      %5156 = vperm.xlu0 %5155, %v5148
      %v5157 = vpop.permute.xlu0 %5156
      %v5159 = vmax.f32 %v5130, %v5152
      %v5160 = vmax.f32 %v5131, %v5152
      %v5161 = vmax.f32 %v5132, %v5152
      %v5162 = vmax.f32 %v5133, %v5152
      %v5163 = vmax.f32 %v5134, %v5152
      %v5164 = vmax.f32 %v5135, %v5152
      %v5165 = vmax.f32 %v5136, %v5152
      %v5166 = vmax.f32 %v5137, %v5152
      %v5167 = vmax.f32 %v5138, %v5157
      %v5168 = vmax.f32 %v5139, %v5157
      %v5169 = vmax.f32 %v5140, %v5157
      %v5170 = vmax.f32 %v5141, %v5157
      %v5171 = vmax.f32 %v5142, %v5157
      %v5172 = vmax.f32 %v5143, %v5157
      %v5173 = vmax.f32 %v5144, %v5157
      %v5174 = vmax.f32 %v5145, %v5157
      %v5175 = vmul.f32 %v5159, %v4982
      %v5176 = vmul.f32 %v5160, %v4983
      %v5177 = vmul.f32 %v5161, %v4984
      %v5178 = vmul.f32 %v5162, %v4985
      %v5179 = vmul.f32 %v5163, %v4986
      %v5180 = vmul.f32 %v5164, %v4987
      %v5181 = vmul.f32 %v5165, %v4988
      %v5182 = vmul.f32 %v5166, %v4989
      %v5183 = vmul.f32 %v5167, %v4982
      %v5184 = vmul.f32 %v5168, %v4983
      %v5185 = vmul.f32 %v5169, %v4984
      %v5186 = vmul.f32 %v5170, %v4985
      %v5187 = vmul.f32 %v5171, %v4986
      %v5188 = vmul.f32 %v5172, %v4987
      %v5189 = vmul.f32 %v5173, %v4988
      %v5190 = vmul.f32 %v5174, %v4989
      %v5191 = vpack.c.bf16 %v5176, %v5175
      %v5192 = vpack.c.bf16 %v5178, %v5177
      %v5193 = vpack.c.bf16 %v5180, %v5179
      %v5194 = vpack.c.bf16 %v5182, %v5181
      %v5195 = vpack.c.bf16 %v5184, %v5183
      %v5196 = vpack.c.bf16 %v5186, %v5185
      %v5197 = vpack.c.bf16 %v5188, %v5187
      %v5198 = vpack.c.bf16 %v5190, %v5189
      %5199 = vst [vmem:[#allocation2 + $0x4] sm:$0xff] %v5191
      %5200 = vst [vmem:[#allocation2 + $0xc] sm:$0xff] %v5192
      %5201 = vst [vmem:[#allocation2 + $0x14] sm:$0xff] %v5193
      %5202 = vst [vmem:[#allocation2 + $0x1c] sm:$0xff] %v5194
      %5203 = vst [vmem:[#allocation2 + $0x2c] sm:$0xff] %v5195
      %5204 = vst [vmem:[#allocation2 + $0x34] sm:$0xff] %v5196
      %5205 = vst [vmem:[#allocation2 + $0x3c] sm:$0xff] %v5197
      %5206 = vst [vmem:[#allocation2 + $0x44] sm:$0xff] %v5198
      %v5207 = vld [vmem:[#allocation2] sm:$0xff]
      %v5208 = vld [vmem:[#allocation2 + $0x8] sm:$0xff]
      %v5209 = vld [vmem:[#allocation2 + $0x10] sm:$0xff]
      %v5210 = vld [vmem:[#allocation2 + $0x18] sm:$0xff]
      %v5211 = vld [vmem:[#allocation2 + $0x20] sm:$0xff]
      %v5212 = vld [vmem:[#allocation2 + $0x28] sm:$0xff]
      %v5213 = vld [vmem:[#allocation2 + $0x30] sm:$0xff]
      %v5214 = vld [vmem:[#allocation2 + $0x38] sm:$0xff]
      %v5215 = vld [vmem:[#allocation2 + $0x40] sm:$0xff]
      %v5216 = vld [vmem:[#allocation2 + $0x48] sm:$0xff]
      %v5217 = vld [vmem:[%s4] sm:$0xf]
      %v5218 = vld [vmem:[%s4 + $0x4] sm:$0xf]
      %s5219 = scalar_lea.vmem %s4, 8
      %v5220 = vld [vmem:[%s5219] sm:$0xf]
      %v5221 = vld [vmem:[%s5219 + $0x4] sm:$0xf]
      %v5224 = vunpack.c.l.b16 %v5220
      %v5225 = vunpack.c.l.b16 %v5221
      %v5226 = vpack.c.b16 %v5225, %v5224
      %v5237 = vunpack.c.l.b16 %v5207
      %v5238 = vunpack.c.h.b16 %v5207
      %v5239 = vunpack.c.l.b16 %v5208
      %v5240 = vunpack.c.h.b16 %v5208
      %v5241 = vunpack.c.l.b16 %v5209
      %v5242 = vunpack.c.h.b16 %v5209
      %v5243 = vunpack.c.l.b16 %v5210
      %v5244 = vunpack.c.h.b16 %v5210
      %v5245 = vunpack.c.l.b16 %v5211
      %v5246 = vunpack.c.l.b16 %v5212
      %v5247 = vunpack.c.h.b16 %v5212
      %v5248 = vunpack.c.l.b16 %v5213
      %v5249 = vunpack.c.h.b16 %v5213
      %v5250 = vunpack.c.l.b16 %v5214
      %v5251 = vunpack.c.h.b16 %v5214
      %v5252 = vunpack.c.l.b16 %v5215
      %v5253 = vunpack.c.h.b16 %v5215
      %v5254 = vunpack.c.l.b16 %v5216
      %v5255 = vpack.c.b16 %v5246, %v5237
      %v5256 = vpack.c.b16 %v5247, %v5238
      %v5257 = vpack.c.b16 %v5248, %v5239
      %v5258 = vpack.c.b16 %v5249, %v5240
      %v5259 = vpack.c.b16 %v5250, %v5241
      %v5260 = vpack.c.b16 %v5251, %v5242
      %v5261 = vpack.c.b16 %v5252, %v5243
      %v5262 = vpack.c.b16 %v5253, %v5244
      %v5263 = vpack.c.b16 %v5254, %v5245
      %5264 = vrot.lane.b32.xlu0 %v5255, 110
      %v5265 = vpop.permute.xlu0 %5264
      %5266 = vrot.lane.b32.xlu0 %v5256, 110
      %v5267 = vpop.permute.xlu0 %5266
      %5268 = vrot.lane.b32.xlu0 %v5257, 110
      %v5269 = vpop.permute.xlu0 %5268
      %5270 = vrot.lane.b32.xlu0 %v5258, 110
      %v5271 = vpop.permute.xlu0 %5270
      %5272 = vrot.lane.b32.xlu0 %v5259, 110
      %v5273 = vpop.permute.xlu0 %5272
      %5274 = vrot.lane.b32.xlu0 %v5260, 110
      %v5275 = vpop.permute.xlu0 %5274
      %5276 = vrot.lane.b32.xlu0 %v5261, 110
      %v5277 = vpop.permute.xlu0 %5276
      %5278 = vrot.lane.b32.xlu0 %v5262, 110
      %v5279 = vpop.permute.xlu0 %5278
      %5280 = vrot.lane.b32.xlu0 %v5263, 110
      %v5281 = vpop.permute.xlu0 %5280
      %v5282 = vsel %vm339, %v5265, %v5267
      %v5283 = vsel %vm339, %v5267, %v5269
      %v5284 = vsel %vm339, %v5269, %v5271
      %v5285 = vsel %vm339, %v5271, %v5273
      %v5286 = vsel %vm339, %v5273, %v5275
      %v5287 = vsel %vm339, %v5275, %v5277
      %v5288 = vsel %vm339, %v5277, %v5279
      %v5289 = vsel %vm339, %v5279, %v5281
      %v5299 = vsel %vm356, %v5226, 0
      %5301 = vmatpush.bf16.msra.mxu0 0
      %5302 = vmatpush.bf16.msra.mxu0 0
      %5303 = vmatpush.bf16.msra.mxu0 0
      %5304 = vmatpush.bf16.msra.mxu0 0
      %5305 = vmatpush.bf16.msra.mxu0 0
      %5306 = vmatpush.bf16.msra.mxu0 0
      %5307 = vmatpush.bf16.msra.mxu0 0
      %5308 = vmatpush.bf16.msra.mxu0 %v5282
      %5309 = vmatmul.bf16.gmra.mxu0 %v5299
      %v5310 = vpop.f32.mrf.mxu0
      %v5311 = vadd.f32 0.0, %v5310
      %v5312 = vpop.f32.mrf.mxu0
      %v5313 = vadd.f32 0.0, %v5312
      %5314 = vdwg.mxu0
      %5315 = vmatpush.bf16.msra.mxu0 0
      %5316 = vmatpush.bf16.msra.mxu0 0
      %5317 = vmatpush.bf16.msra.mxu0 0
      %5318 = vmatpush.bf16.msra.mxu0 0
      %5319 = vmatpush.bf16.msra.mxu0 0
      %5320 = vmatpush.bf16.msra.mxu0 0
      %5321 = vmatpush.bf16.msra.mxu0 0
      %5322 = vmatpush.bf16.msra.mxu0 %v5283
      %5323 = vmatmul.bf16.gmra.mxu0 %v5299
      %v5324 = vpop.f32.mrf.mxu0
      %v5325 = vadd.f32 0.0, %v5324
      %v5326 = vpop.f32.mrf.mxu0
      %v5327 = vadd.f32 0.0, %v5326
      %5328 = vdwg.mxu0
      %5329 = vmatpush.bf16.msra.mxu0 0
      %5330 = vmatpush.bf16.msra.mxu0 0
      %5331 = vmatpush.bf16.msra.mxu0 0
      %5332 = vmatpush.bf16.msra.mxu0 0
      %5333 = vmatpush.bf16.msra.mxu0 0
      %5334 = vmatpush.bf16.msra.mxu0 0
      %5335 = vmatpush.bf16.msra.mxu0 0
      %5336 = vmatpush.bf16.msra.mxu0 %v5284
      %5337 = vmatmul.bf16.gmra.mxu0 %v5299
      %v5338 = vpop.f32.mrf.mxu0
      %v5339 = vadd.f32 0.0, %v5338
      %v5340 = vpop.f32.mrf.mxu0
      %v5341 = vadd.f32 0.0, %v5340
      %5342 = vdwg.mxu0
      %5343 = vmatpush.bf16.msra.mxu0 0
      %5344 = vmatpush.bf16.msra.mxu0 0
      %5345 = vmatpush.bf16.msra.mxu0 0
      %5346 = vmatpush.bf16.msra.mxu0 0
      %5347 = vmatpush.bf16.msra.mxu0 0
      %5348 = vmatpush.bf16.msra.mxu0 0
      %5349 = vmatpush.bf16.msra.mxu0 0
      %5350 = vmatpush.bf16.msra.mxu0 %v5285
      %5351 = vmatmul.bf16.gmra.mxu0 %v5299
      %v5352 = vpop.f32.mrf.mxu0
      %v5353 = vadd.f32 0.0, %v5352
      %v5354 = vpop.f32.mrf.mxu0
      %v5355 = vadd.f32 0.0, %v5354
      %5356 = vdwg.mxu0
      %5357 = vmatpush.bf16.msra.mxu0 0
      %5358 = vmatpush.bf16.msra.mxu0 0
      %5359 = vmatpush.bf16.msra.mxu0 0
      %5360 = vmatpush.bf16.msra.mxu0 0
      %5361 = vmatpush.bf16.msra.mxu0 0
      %5362 = vmatpush.bf16.msra.mxu0 0
      %5363 = vmatpush.bf16.msra.mxu0 0
      %5364 = vmatpush.bf16.msra.mxu0 %v5286
      %5365 = vmatmul.bf16.gmra.mxu0 %v5299
      %v5366 = vpop.f32.mrf.mxu0
      %v5367 = vadd.f32 0.0, %v5366
      %v5368 = vpop.f32.mrf.mxu0
      %v5369 = vadd.f32 0.0, %v5368
      %5370 = vdwg.mxu0
      %5371 = vmatpush.bf16.msra.mxu0 0
      %5372 = vmatpush.bf16.msra.mxu0 0
      %5373 = vmatpush.bf16.msra.mxu0 0
      %5374 = vmatpush.bf16.msra.mxu0 0
      %5375 = vmatpush.bf16.msra.mxu0 0
      %5376 = vmatpush.bf16.msra.mxu0 0
      %5377 = vmatpush.bf16.msra.mxu0 0
      %5378 = vmatpush.bf16.msra.mxu0 %v5287
      %5379 = vmatmul.bf16.gmra.mxu0 %v5299
      %v5380 = vpop.f32.mrf.mxu0
      %v5381 = vadd.f32 0.0, %v5380
      %v5382 = vpop.f32.mrf.mxu0
      %v5383 = vadd.f32 0.0, %v5382
      %5384 = vdwg.mxu0
      %5385 = vmatpush.bf16.msra.mxu0 0
      %5386 = vmatpush.bf16.msra.mxu0 0
      %5387 = vmatpush.bf16.msra.mxu0 0
      %5388 = vmatpush.bf16.msra.mxu0 0
      %5389 = vmatpush.bf16.msra.mxu0 0
      %5390 = vmatpush.bf16.msra.mxu0 0
      %5391 = vmatpush.bf16.msra.mxu0 0
      %5392 = vmatpush.bf16.msra.mxu0 %v5288
      %5393 = vmatmul.bf16.gmra.mxu0 %v5299
      %v5394 = vpop.f32.mrf.mxu0
      %v5395 = vadd.f32 0.0, %v5394
      %v5396 = vpop.f32.mrf.mxu0
      %v5397 = vadd.f32 0.0, %v5396
      %5398 = vdwg.mxu0
      %5399 = vmatpush.bf16.msra.mxu0 0
      %5400 = vmatpush.bf16.msra.mxu0 0
      %5401 = vmatpush.bf16.msra.mxu0 0
      %5402 = vmatpush.bf16.msra.mxu0 0
      %5403 = vmatpush.bf16.msra.mxu0 0
      %5404 = vmatpush.bf16.msra.mxu0 0
      %5405 = vmatpush.bf16.msra.mxu0 0
      %5406 = vmatpush.bf16.msra.mxu0 %v5289
      %5407 = vmatmul.bf16.gmra.mxu0 %v5299
      %v5408 = vpop.f32.mrf.mxu0
      %v5409 = vadd.f32 0.0, %v5408
      %v5410 = vpop.f32.mrf.mxu0
      %v5411 = vadd.f32 0.0, %v5410
      %5412 = vdwg.mxu0
      %v5415 = vunpack.c.l.b16 %v5217
      %v5416 = vunpack.c.l.b16 %v5218
      %v5417 = vpack.c.b16 %v5416, %v5415
      %5418 = vrot.lane.b32.xlu0 %v5255, 111
      %v5419 = vpop.permute.xlu0 %5418
      %5420 = vrot.lane.b32.xlu0 %v5256, 111
      %v5421 = vpop.permute.xlu0 %5420
      %5422 = vrot.lane.b32.xlu0 %v5257, 111
      %v5423 = vpop.permute.xlu0 %5422
      %5424 = vrot.lane.b32.xlu0 %v5258, 111
      %v5425 = vpop.permute.xlu0 %5424
      %5426 = vrot.lane.b32.xlu0 %v5259, 111
      %v5427 = vpop.permute.xlu0 %5426
      %5428 = vrot.lane.b32.xlu0 %v5260, 111
      %v5429 = vpop.permute.xlu0 %5428
      %5430 = vrot.lane.b32.xlu0 %v5261, 111
      %v5431 = vpop.permute.xlu0 %5430
      %5432 = vrot.lane.b32.xlu0 %v5262, 111
      %v5433 = vpop.permute.xlu0 %5432
      %5434 = vrot.lane.b32.xlu0 %v5263, 111
      %v5435 = vpop.permute.xlu0 %5434
      %v5436 = vsel %vm495, %v5419, %v5421
      %v5437 = vsel %vm495, %v5421, %v5423
      %v5438 = vsel %vm495, %v5423, %v5425
      %v5439 = vsel %vm495, %v5425, %v5427
      %v5440 = vsel %vm495, %v5427, %v5429
      %v5441 = vsel %vm495, %v5429, %v5431
      %v5442 = vsel %vm495, %v5431, %v5433
      %v5443 = vsel %vm495, %v5433, %v5435
      %v5453 = vsel %vm356, %v5417, 0
      %5455 = vmatpush.bf16.msra.mxu0 0
      %5456 = vmatpush.bf16.msra.mxu0 0
      %5457 = vmatpush.bf16.msra.mxu0 0
      %5458 = vmatpush.bf16.msra.mxu0 0
      %5459 = vmatpush.bf16.msra.mxu0 0
      %5460 = vmatpush.bf16.msra.mxu0 0
      %5461 = vmatpush.bf16.msra.mxu0 0
      %5462 = vmatpush.bf16.msra.mxu0 %v5436
      %5463 = vmatmul.bf16.gmra.mxu0 %v5453
      %v5464 = vpop.f32.mrf.mxu0
      %v5465 = vadd.f32 %v5311, %v5464
      %v5466 = vpop.f32.mrf.mxu0
      %v5467 = vadd.f32 %v5313, %v5466
      %5468 = vdwg.mxu0
      %5469 = vmatpush.bf16.msra.mxu0 0
      %5470 = vmatpush.bf16.msra.mxu0 0
      %5471 = vmatpush.bf16.msra.mxu0 0
      %5472 = vmatpush.bf16.msra.mxu0 0
      %5473 = vmatpush.bf16.msra.mxu0 0
      %5474 = vmatpush.bf16.msra.mxu0 0
      %5475 = vmatpush.bf16.msra.mxu0 0
      %5476 = vmatpush.bf16.msra.mxu0 %v5437
      %5477 = vmatmul.bf16.gmra.mxu0 %v5453
      %v5478 = vpop.f32.mrf.mxu0
      %v5479 = vadd.f32 %v5325, %v5478
      %v5480 = vpop.f32.mrf.mxu0
      %v5481 = vadd.f32 %v5327, %v5480
      %5482 = vdwg.mxu0
      %5483 = vmatpush.bf16.msra.mxu0 0
      %5484 = vmatpush.bf16.msra.mxu0 0
      %5485 = vmatpush.bf16.msra.mxu0 0
      %5486 = vmatpush.bf16.msra.mxu0 0
      %5487 = vmatpush.bf16.msra.mxu0 0
      %5488 = vmatpush.bf16.msra.mxu0 0
      %5489 = vmatpush.bf16.msra.mxu0 0
      %5490 = vmatpush.bf16.msra.mxu0 %v5438
      %5491 = vmatmul.bf16.gmra.mxu0 %v5453
      %v5492 = vpop.f32.mrf.mxu0
      %v5493 = vadd.f32 %v5339, %v5492
      %v5494 = vpop.f32.mrf.mxu0
      %v5495 = vadd.f32 %v5341, %v5494
      %5496 = vdwg.mxu0
      %5497 = vmatpush.bf16.msra.mxu0 0
      %5498 = vmatpush.bf16.msra.mxu0 0
      %5499 = vmatpush.bf16.msra.mxu0 0
      %5500 = vmatpush.bf16.msra.mxu0 0
      %5501 = vmatpush.bf16.msra.mxu0 0
      %5502 = vmatpush.bf16.msra.mxu0 0
      %5503 = vmatpush.bf16.msra.mxu0 0
      %5504 = vmatpush.bf16.msra.mxu0 %v5439
      %5505 = vmatmul.bf16.gmra.mxu0 %v5453
      %v5506 = vpop.f32.mrf.mxu0
      %v5507 = vadd.f32 %v5353, %v5506
      %v5508 = vpop.f32.mrf.mxu0
      %v5509 = vadd.f32 %v5355, %v5508
      %5510 = vdwg.mxu0
      %5511 = vmatpush.bf16.msra.mxu0 0
      %5512 = vmatpush.bf16.msra.mxu0 0
      %5513 = vmatpush.bf16.msra.mxu0 0
      %5514 = vmatpush.bf16.msra.mxu0 0
      %5515 = vmatpush.bf16.msra.mxu0 0
      %5516 = vmatpush.bf16.msra.mxu0 0
      %5517 = vmatpush.bf16.msra.mxu0 0
      %5518 = vmatpush.bf16.msra.mxu0 %v5440
      %5519 = vmatmul.bf16.gmra.mxu0 %v5453
      %v5520 = vpop.f32.mrf.mxu0
      %v5521 = vadd.f32 %v5367, %v5520
      %v5522 = vpop.f32.mrf.mxu0
      %v5523 = vadd.f32 %v5369, %v5522
      %5524 = vdwg.mxu0
      %5525 = vmatpush.bf16.msra.mxu0 0
      %5526 = vmatpush.bf16.msra.mxu0 0
      %5527 = vmatpush.bf16.msra.mxu0 0
      %5528 = vmatpush.bf16.msra.mxu0 0
      %5529 = vmatpush.bf16.msra.mxu0 0
      %5530 = vmatpush.bf16.msra.mxu0 0
      %5531 = vmatpush.bf16.msra.mxu0 0
      %5532 = vmatpush.bf16.msra.mxu0 %v5441
      %5533 = vmatmul.bf16.gmra.mxu0 %v5453
      %v5534 = vpop.f32.mrf.mxu0
      %v5535 = vadd.f32 %v5381, %v5534
      %v5536 = vpop.f32.mrf.mxu0
      %v5537 = vadd.f32 %v5383, %v5536
      %5538 = vdwg.mxu0
      %5539 = vmatpush.bf16.msra.mxu0 0
      %5540 = vmatpush.bf16.msra.mxu0 0
      %5541 = vmatpush.bf16.msra.mxu0 0
      %5542 = vmatpush.bf16.msra.mxu0 0
      %5543 = vmatpush.bf16.msra.mxu0 0
      %5544 = vmatpush.bf16.msra.mxu0 0
      %5545 = vmatpush.bf16.msra.mxu0 0
      %5546 = vmatpush.bf16.msra.mxu0 %v5442
      %5547 = vmatmul.bf16.gmra.mxu0 %v5453
      %v5548 = vpop.f32.mrf.mxu0
      %v5549 = vadd.f32 %v5395, %v5548
      %v5550 = vpop.f32.mrf.mxu0
      %v5551 = vadd.f32 %v5397, %v5550
      %5552 = vdwg.mxu0
      %5553 = vmatpush.bf16.msra.mxu0 0
      %5554 = vmatpush.bf16.msra.mxu0 0
      %5555 = vmatpush.bf16.msra.mxu0 0
      %5556 = vmatpush.bf16.msra.mxu0 0
      %5557 = vmatpush.bf16.msra.mxu0 0
      %5558 = vmatpush.bf16.msra.mxu0 0
      %5559 = vmatpush.bf16.msra.mxu0 0
      %5560 = vmatpush.bf16.msra.mxu0 %v5443
      %5561 = vmatmul.bf16.gmra.mxu0 %v5453
      %v5562 = vpop.f32.mrf.mxu0
      %v5563 = vadd.f32 %v5409, %v5562
      %v5564 = vpop.f32.mrf.mxu0
      %v5565 = vadd.f32 %v5411, %v5564
      %5566 = vdwg.mxu0
      %s5567 = scalar_lea.vmem %s4, 16
      %v5568 = vld [vmem:[%s5567] sm:$0xf]
      %v5569 = vld [vmem:[%s5567 + $0x4] sm:$0xf]
      %v5572 = vunpack.c.l.b16 %v5568
      %v5573 = vunpack.c.l.b16 %v5569
      %v5574 = vpack.c.b16 %v5573, %v5572
      %5575 = vrot.lane.b32.xlu0 %v5255, 109
      %v5576 = vpop.permute.xlu0 %5575
      %5577 = vrot.lane.b32.xlu0 %v5256, 109
      %v5578 = vpop.permute.xlu0 %5577
      %5579 = vrot.lane.b32.xlu0 %v5257, 109
      %v5580 = vpop.permute.xlu0 %5579
      %5581 = vrot.lane.b32.xlu0 %v5258, 109
      %v5582 = vpop.permute.xlu0 %5581
      %5583 = vrot.lane.b32.xlu0 %v5259, 109
      %v5584 = vpop.permute.xlu0 %5583
      %5585 = vrot.lane.b32.xlu0 %v5260, 109
      %v5586 = vpop.permute.xlu0 %5585
      %5587 = vrot.lane.b32.xlu0 %v5261, 109
      %v5588 = vpop.permute.xlu0 %5587
      %5589 = vrot.lane.b32.xlu0 %v5262, 109
      %v5590 = vpop.permute.xlu0 %5589
      %5591 = vrot.lane.b32.xlu0 %v5263, 109
      %v5592 = vpop.permute.xlu0 %5591
      %v5593 = vsel %vm653, %v5576, %v5578
      %v5594 = vsel %vm653, %v5578, %v5580
      %v5595 = vsel %vm653, %v5580, %v5582
      %v5596 = vsel %vm653, %v5582, %v5584
      %v5597 = vsel %vm653, %v5584, %v5586
      %v5598 = vsel %vm653, %v5586, %v5588
      %v5599 = vsel %vm653, %v5588, %v5590
      %v5600 = vsel %vm653, %v5590, %v5592
      %v5610 = vsel %vm356, %v5574, 0
      %5612 = vmatpush.bf16.msra.mxu0 0
      %5613 = vmatpush.bf16.msra.mxu0 0
      %5614 = vmatpush.bf16.msra.mxu0 0
      %5615 = vmatpush.bf16.msra.mxu0 0
      %5616 = vmatpush.bf16.msra.mxu0 0
      %5617 = vmatpush.bf16.msra.mxu0 0
      %5618 = vmatpush.bf16.msra.mxu0 0
      %5619 = vmatpush.bf16.msra.mxu0 %v5593
      %5620 = vmatmul.bf16.gmra.mxu0 %v5610
      %v5621 = vpop.f32.mrf.mxu0
      %v5622 = vadd.f32 0.0, %v5621
      %v5623 = vpop.f32.mrf.mxu0
      %v5624 = vadd.f32 0.0, %v5623
      %5625 = vdwg.mxu0
      %5626 = vmatpush.bf16.msra.mxu0 0
      %5627 = vmatpush.bf16.msra.mxu0 0
      %5628 = vmatpush.bf16.msra.mxu0 0
      %5629 = vmatpush.bf16.msra.mxu0 0
      %5630 = vmatpush.bf16.msra.mxu0 0
      %5631 = vmatpush.bf16.msra.mxu0 0
      %5632 = vmatpush.bf16.msra.mxu0 0
      %5633 = vmatpush.bf16.msra.mxu0 %v5594
      %5634 = vmatmul.bf16.gmra.mxu0 %v5610
      %v5635 = vpop.f32.mrf.mxu0
      %v5636 = vadd.f32 0.0, %v5635
      %v5637 = vpop.f32.mrf.mxu0
      %v5638 = vadd.f32 0.0, %v5637
      %5639 = vdwg.mxu0
      %5640 = vmatpush.bf16.msra.mxu0 0
      %5641 = vmatpush.bf16.msra.mxu0 0
      %5642 = vmatpush.bf16.msra.mxu0 0
      %5643 = vmatpush.bf16.msra.mxu0 0
      %5644 = vmatpush.bf16.msra.mxu0 0
      %5645 = vmatpush.bf16.msra.mxu0 0
      %5646 = vmatpush.bf16.msra.mxu0 0
      %5647 = vmatpush.bf16.msra.mxu0 %v5595
      %5648 = vmatmul.bf16.gmra.mxu0 %v5610
      %v5649 = vpop.f32.mrf.mxu0
      %v5650 = vadd.f32 0.0, %v5649
      %v5651 = vpop.f32.mrf.mxu0
      %v5652 = vadd.f32 0.0, %v5651
      %5653 = vdwg.mxu0
      %5654 = vmatpush.bf16.msra.mxu0 0
      %5655 = vmatpush.bf16.msra.mxu0 0
      %5656 = vmatpush.bf16.msra.mxu0 0
      %5657 = vmatpush.bf16.msra.mxu0 0
      %5658 = vmatpush.bf16.msra.mxu0 0
      %5659 = vmatpush.bf16.msra.mxu0 0
      %5660 = vmatpush.bf16.msra.mxu0 0
      %5661 = vmatpush.bf16.msra.mxu0 %v5596
      %5662 = vmatmul.bf16.gmra.mxu0 %v5610
      %v5663 = vpop.f32.mrf.mxu0
      %v5664 = vadd.f32 0.0, %v5663
      %v5665 = vpop.f32.mrf.mxu0
      %v5666 = vadd.f32 0.0, %v5665
      %5667 = vdwg.mxu0
      %5668 = vmatpush.bf16.msra.mxu0 0
      %5669 = vmatpush.bf16.msra.mxu0 0
      %5670 = vmatpush.bf16.msra.mxu0 0
      %5671 = vmatpush.bf16.msra.mxu0 0
      %5672 = vmatpush.bf16.msra.mxu0 0
      %5673 = vmatpush.bf16.msra.mxu0 0
      %5674 = vmatpush.bf16.msra.mxu0 0
      %5675 = vmatpush.bf16.msra.mxu0 %v5597
      %5676 = vmatmul.bf16.gmra.mxu0 %v5610
      %v5677 = vpop.f32.mrf.mxu0
      %v5678 = vadd.f32 0.0, %v5677
      %v5679 = vpop.f32.mrf.mxu0
      %v5680 = vadd.f32 0.0, %v5679
      %5681 = vdwg.mxu0
      %5682 = vmatpush.bf16.msra.mxu0 0
      %5683 = vmatpush.bf16.msra.mxu0 0
      %5684 = vmatpush.bf16.msra.mxu0 0
      %5685 = vmatpush.bf16.msra.mxu0 0
      %5686 = vmatpush.bf16.msra.mxu0 0
      %5687 = vmatpush.bf16.msra.mxu0 0
      %5688 = vmatpush.bf16.msra.mxu0 0
      %5689 = vmatpush.bf16.msra.mxu0 %v5598
      %5690 = vmatmul.bf16.gmra.mxu0 %v5610
      %v5691 = vpop.f32.mrf.mxu0
      %v5692 = vadd.f32 0.0, %v5691
      %v5693 = vpop.f32.mrf.mxu0
      %v5694 = vadd.f32 0.0, %v5693
      %5695 = vdwg.mxu0
      %5696 = vmatpush.bf16.msra.mxu0 0
      %5697 = vmatpush.bf16.msra.mxu0 0
      %5698 = vmatpush.bf16.msra.mxu0 0
      %5699 = vmatpush.bf16.msra.mxu0 0
      %5700 = vmatpush.bf16.msra.mxu0 0
      %5701 = vmatpush.bf16.msra.mxu0 0
      %5702 = vmatpush.bf16.msra.mxu0 0
      %5703 = vmatpush.bf16.msra.mxu0 %v5599
      %5704 = vmatmul.bf16.gmra.mxu0 %v5610
      %v5705 = vpop.f32.mrf.mxu0
      %v5706 = vadd.f32 0.0, %v5705
      %v5707 = vpop.f32.mrf.mxu0
      %v5708 = vadd.f32 0.0, %v5707
      %5709 = vdwg.mxu0
      %5710 = vmatpush.bf16.msra.mxu0 0
      %5711 = vmatpush.bf16.msra.mxu0 0
      %5712 = vmatpush.bf16.msra.mxu0 0
      %5713 = vmatpush.bf16.msra.mxu0 0
      %5714 = vmatpush.bf16.msra.mxu0 0
      %5715 = vmatpush.bf16.msra.mxu0 0
      %5716 = vmatpush.bf16.msra.mxu0 0
      %5717 = vmatpush.bf16.msra.mxu0 %v5600
      %5718 = vmatmul.bf16.gmra.mxu0 %v5610
      %v5719 = vpop.f32.mrf.mxu0
      %v5720 = vadd.f32 0.0, %v5719
      %v5721 = vpop.f32.mrf.mxu0
      %v5722 = vadd.f32 0.0, %v5721
      %5723 = vdwg.mxu0
      %v5724 = vadd.f32 %v5465, %v5622
      %v5725 = vadd.f32 %v5479, %v5636
      %v5726 = vadd.f32 %v5493, %v5650
      %v5727 = vadd.f32 %v5507, %v5664
      %v5728 = vadd.f32 %v5521, %v5678
      %v5729 = vadd.f32 %v5535, %v5692
      %v5730 = vadd.f32 %v5549, %v5706
      %v5731 = vadd.f32 %v5563, %v5720
      %v5732 = vadd.f32 %v5467, %v5624
      %v5733 = vadd.f32 %v5481, %v5638
      %v5734 = vadd.f32 %v5495, %v5652
      %v5735 = vadd.f32 %v5509, %v5666
      %v5736 = vadd.f32 %v5523, %v5680
      %v5737 = vadd.f32 %v5537, %v5694
      %v5738 = vadd.f32 %v5551, %v5708
      %v5739 = vadd.f32 %v5565, %v5722
      %s5740 = scalar_lea.vmem %s4, 24
      %v5741 = vld [vmem:[%s5740] sm:$0xf]
      %v5742 = vld [vmem:[%s5740 + $0x4] sm:$0xf]
      %v5745 = vunpack.c.l.b16 %v5741
      %v5746 = vunpack.c.l.b16 %v5742
      %v5747 = vpack.c.b16 %v5746, %v5745
      %5748 = vrot.lane.b32.xlu0 %v5255, 101
      %v5749 = vpop.permute.xlu0 %5748
      %5750 = vrot.lane.b32.xlu0 %v5256, 101
      %v5751 = vpop.permute.xlu0 %5750
      %5752 = vrot.lane.b32.xlu0 %v5257, 101
      %v5753 = vpop.permute.xlu0 %5752
      %5754 = vrot.lane.b32.xlu0 %v5258, 101
      %v5755 = vpop.permute.xlu0 %5754
      %5756 = vrot.lane.b32.xlu0 %v5259, 101
      %v5757 = vpop.permute.xlu0 %5756
      %5758 = vrot.lane.b32.xlu0 %v5260, 101
      %v5759 = vpop.permute.xlu0 %5758
      %5760 = vrot.lane.b32.xlu0 %v5261, 101
      %v5761 = vpop.permute.xlu0 %5760
      %5762 = vrot.lane.b32.xlu0 %v5262, 101
      %v5763 = vpop.permute.xlu0 %5762
      %5764 = vrot.lane.b32.xlu0 %v5263, 101
      %v5765 = vpop.permute.xlu0 %5764
      %v5766 = vsel %vm827, %v5749, %v5751
      %v5767 = vsel %vm827, %v5751, %v5753
      %v5768 = vsel %vm827, %v5753, %v5755
      %v5769 = vsel %vm827, %v5755, %v5757
      %v5770 = vsel %vm827, %v5757, %v5759
      %v5771 = vsel %vm827, %v5759, %v5761
      %v5772 = vsel %vm827, %v5761, %v5763
      %v5773 = vsel %vm827, %v5763, %v5765
      %v5783 = vsel %vm356, %v5747, 0
      %5785 = vmatpush.bf16.msra.mxu0 0
      %5786 = vmatpush.bf16.msra.mxu0 0
      %5787 = vmatpush.bf16.msra.mxu0 0
      %5788 = vmatpush.bf16.msra.mxu0 0
      %5789 = vmatpush.bf16.msra.mxu0 0
      %5790 = vmatpush.bf16.msra.mxu0 0
      %5791 = vmatpush.bf16.msra.mxu0 0
      %5792 = vmatpush.bf16.msra.mxu0 %v5766
      %5793 = vmatmul.bf16.gmra.mxu0 %v5783
      %v5794 = vpop.f32.mrf.mxu0
      %v5795 = vadd.f32 0.0, %v5794
      %v5796 = vpop.f32.mrf.mxu0
      %v5797 = vadd.f32 0.0, %v5796
      %5798 = vdwg.mxu0
      %5799 = vmatpush.bf16.msra.mxu0 0
      %5800 = vmatpush.bf16.msra.mxu0 0
      %5801 = vmatpush.bf16.msra.mxu0 0
      %5802 = vmatpush.bf16.msra.mxu0 0
      %5803 = vmatpush.bf16.msra.mxu0 0
      %5804 = vmatpush.bf16.msra.mxu0 0
      %5805 = vmatpush.bf16.msra.mxu0 0
      %5806 = vmatpush.bf16.msra.mxu0 %v5767
      %5807 = vmatmul.bf16.gmra.mxu0 %v5783
      %v5808 = vpop.f32.mrf.mxu0
      %v5809 = vadd.f32 0.0, %v5808
      %v5810 = vpop.f32.mrf.mxu0
      %v5811 = vadd.f32 0.0, %v5810
      %5812 = vdwg.mxu0
      %5813 = vmatpush.bf16.msra.mxu0 0
      %5814 = vmatpush.bf16.msra.mxu0 0
      %5815 = vmatpush.bf16.msra.mxu0 0
      %5816 = vmatpush.bf16.msra.mxu0 0
      %5817 = vmatpush.bf16.msra.mxu0 0
      %5818 = vmatpush.bf16.msra.mxu0 0
      %5819 = vmatpush.bf16.msra.mxu0 0
      %5820 = vmatpush.bf16.msra.mxu0 %v5768
      %5821 = vmatmul.bf16.gmra.mxu0 %v5783
      %v5822 = vpop.f32.mrf.mxu0
      %v5823 = vadd.f32 0.0, %v5822
      %v5824 = vpop.f32.mrf.mxu0
      %v5825 = vadd.f32 0.0, %v5824
      %5826 = vdwg.mxu0
      %5827 = vmatpush.bf16.msra.mxu0 0
      %5828 = vmatpush.bf16.msra.mxu0 0
      %5829 = vmatpush.bf16.msra.mxu0 0
      %5830 = vmatpush.bf16.msra.mxu0 0
      %5831 = vmatpush.bf16.msra.mxu0 0
      %5832 = vmatpush.bf16.msra.mxu0 0
      %5833 = vmatpush.bf16.msra.mxu0 0
      %5834 = vmatpush.bf16.msra.mxu0 %v5769
      %5835 = vmatmul.bf16.gmra.mxu0 %v5783
      %v5836 = vpop.f32.mrf.mxu0
      %v5837 = vadd.f32 0.0, %v5836
      %v5838 = vpop.f32.mrf.mxu0
      %v5839 = vadd.f32 0.0, %v5838
      %5840 = vdwg.mxu0
      %5841 = vmatpush.bf16.msra.mxu0 0
      %5842 = vmatpush.bf16.msra.mxu0 0
      %5843 = vmatpush.bf16.msra.mxu0 0
      %5844 = vmatpush.bf16.msra.mxu0 0
      %5845 = vmatpush.bf16.msra.mxu0 0
      %5846 = vmatpush.bf16.msra.mxu0 0
      %5847 = vmatpush.bf16.msra.mxu0 0
      %5848 = vmatpush.bf16.msra.mxu0 %v5770
      %5849 = vmatmul.bf16.gmra.mxu0 %v5783
      %v5850 = vpop.f32.mrf.mxu0
      %v5851 = vadd.f32 0.0, %v5850
      %v5852 = vpop.f32.mrf.mxu0
      %v5853 = vadd.f32 0.0, %v5852
      %5854 = vdwg.mxu0
      %5855 = vmatpush.bf16.msra.mxu0 0
      %5856 = vmatpush.bf16.msra.mxu0 0
      %5857 = vmatpush.bf16.msra.mxu0 0
      %5858 = vmatpush.bf16.msra.mxu0 0
      %5859 = vmatpush.bf16.msra.mxu0 0
      %5860 = vmatpush.bf16.msra.mxu0 0
      %5861 = vmatpush.bf16.msra.mxu0 0
      %5862 = vmatpush.bf16.msra.mxu0 %v5771
      %5863 = vmatmul.bf16.gmra.mxu0 %v5783
      %v5864 = vpop.f32.mrf.mxu0
      %v5865 = vadd.f32 0.0, %v5864
      %v5866 = vpop.f32.mrf.mxu0
      %v5867 = vadd.f32 0.0, %v5866
      %5868 = vdwg.mxu0
      %5869 = vmatpush.bf16.msra.mxu0 0
      %5870 = vmatpush.bf16.msra.mxu0 0
      %5871 = vmatpush.bf16.msra.mxu0 0
      %5872 = vmatpush.bf16.msra.mxu0 0
      %5873 = vmatpush.bf16.msra.mxu0 0
      %5874 = vmatpush.bf16.msra.mxu0 0
      %5875 = vmatpush.bf16.msra.mxu0 0
      %5876 = vmatpush.bf16.msra.mxu0 %v5772
      %5877 = vmatmul.bf16.gmra.mxu0 %v5783
      %v5878 = vpop.f32.mrf.mxu0
      %v5879 = vadd.f32 0.0, %v5878
      %v5880 = vpop.f32.mrf.mxu0
      %v5881 = vadd.f32 0.0, %v5880
      %5882 = vdwg.mxu0
      %5883 = vmatpush.bf16.msra.mxu0 0
      %5884 = vmatpush.bf16.msra.mxu0 0
      %5885 = vmatpush.bf16.msra.mxu0 0
      %5886 = vmatpush.bf16.msra.mxu0 0
      %5887 = vmatpush.bf16.msra.mxu0 0
      %5888 = vmatpush.bf16.msra.mxu0 0
      %5889 = vmatpush.bf16.msra.mxu0 0
      %5890 = vmatpush.bf16.msra.mxu0 %v5773
      %5891 = vmatmul.bf16.gmra.mxu0 %v5783
      %v5892 = vpop.f32.mrf.mxu0
      %v5893 = vadd.f32 0.0, %v5892
      %v5894 = vpop.f32.mrf.mxu0
      %v5895 = vadd.f32 0.0, %v5894
      %5896 = vdwg.mxu0
      %v5897 = vadd.f32 %v5724, %v5795
      %v5898 = vadd.f32 %v5725, %v5809
      %v5899 = vadd.f32 %v5726, %v5823
      %v5900 = vadd.f32 %v5727, %v5837
      %v5901 = vadd.f32 %v5728, %v5851
      %v5902 = vadd.f32 %v5729, %v5865
      %v5903 = vadd.f32 %v5730, %v5879
      %v5904 = vadd.f32 %v5731, %v5893
      %v5905 = vadd.f32 %v5732, %v5797
      %v5906 = vadd.f32 %v5733, %v5811
      %v5907 = vadd.f32 %v5734, %v5825
      %v5908 = vadd.f32 %v5735, %v5839
      %v5909 = vadd.f32 %v5736, %v5853
      %v5910 = vadd.f32 %v5737, %v5867
      %v5911 = vadd.f32 %v5738, %v5881
      %v5912 = vadd.f32 %v5739, %v5895
      %s5913 = scalar_lea.vmem %s4, 32
      %v5914 = vld [vmem:[%s5913] sm:$0xf]
      %v5915 = vld [vmem:[%s5913 + $0x4] sm:$0xf]
      %v5918 = vunpack.c.l.b16 %v5914
      %v5919 = vunpack.c.l.b16 %v5915
      %v5920 = vpack.c.b16 %v5919, %v5918
      %5921 = vrot.lane.b32.xlu0 %v5255, 100
      %v5922 = vpop.permute.xlu0 %5921
      %5923 = vrot.lane.b32.xlu0 %v5256, 100
      %v5924 = vpop.permute.xlu0 %5923
      %5925 = vrot.lane.b32.xlu0 %v5257, 100
      %v5926 = vpop.permute.xlu0 %5925
      %5927 = vrot.lane.b32.xlu0 %v5258, 100
      %v5928 = vpop.permute.xlu0 %5927
      %5929 = vrot.lane.b32.xlu0 %v5259, 100
      %v5930 = vpop.permute.xlu0 %5929
      %5931 = vrot.lane.b32.xlu0 %v5260, 100
      %v5932 = vpop.permute.xlu0 %5931
      %5933 = vrot.lane.b32.xlu0 %v5261, 100
      %v5934 = vpop.permute.xlu0 %5933
      %5935 = vrot.lane.b32.xlu0 %v5262, 100
      %v5936 = vpop.permute.xlu0 %5935
      %5937 = vrot.lane.b32.xlu0 %v5263, 100
      %v5938 = vpop.permute.xlu0 %5937
      %v5939 = vsel %vm1001, %v5922, %v5924
      %v5940 = vsel %vm1001, %v5924, %v5926
      %v5941 = vsel %vm1001, %v5926, %v5928
      %v5942 = vsel %vm1001, %v5928, %v5930
      %v5943 = vsel %vm1001, %v5930, %v5932
      %v5944 = vsel %vm1001, %v5932, %v5934
      %v5945 = vsel %vm1001, %v5934, %v5936
      %v5946 = vsel %vm1001, %v5936, %v5938
      %v5956 = vsel %vm356, %v5920, 0
      %5958 = vmatpush.bf16.msra.mxu0 0
      %5959 = vmatpush.bf16.msra.mxu0 0
      %5960 = vmatpush.bf16.msra.mxu0 0
      %5961 = vmatpush.bf16.msra.mxu0 0
      %5962 = vmatpush.bf16.msra.mxu0 0
      %5963 = vmatpush.bf16.msra.mxu0 0
      %5964 = vmatpush.bf16.msra.mxu0 0
      %5965 = vmatpush.bf16.msra.mxu0 %v5939
      %5966 = vmatmul.bf16.gmra.mxu0 %v5956
      %v5967 = vpop.f32.mrf.mxu0
      %v5968 = vadd.f32 0.0, %v5967
      %v5969 = vpop.f32.mrf.mxu0
      %v5970 = vadd.f32 0.0, %v5969
      %5971 = vdwg.mxu0
      %5972 = vmatpush.bf16.msra.mxu0 0
      %5973 = vmatpush.bf16.msra.mxu0 0
      %5974 = vmatpush.bf16.msra.mxu0 0
      %5975 = vmatpush.bf16.msra.mxu0 0
      %5976 = vmatpush.bf16.msra.mxu0 0
      %5977 = vmatpush.bf16.msra.mxu0 0
      %5978 = vmatpush.bf16.msra.mxu0 0
      %5979 = vmatpush.bf16.msra.mxu0 %v5940
      %5980 = vmatmul.bf16.gmra.mxu0 %v5956
      %v5981 = vpop.f32.mrf.mxu0
      %v5982 = vadd.f32 0.0, %v5981
      %v5983 = vpop.f32.mrf.mxu0
      %v5984 = vadd.f32 0.0, %v5983
      %5985 = vdwg.mxu0
      %5986 = vmatpush.bf16.msra.mxu0 0
      %5987 = vmatpush.bf16.msra.mxu0 0
      %5988 = vmatpush.bf16.msra.mxu0 0
      %5989 = vmatpush.bf16.msra.mxu0 0
      %5990 = vmatpush.bf16.msra.mxu0 0
      %5991 = vmatpush.bf16.msra.mxu0 0
      %5992 = vmatpush.bf16.msra.mxu0 0
      %5993 = vmatpush.bf16.msra.mxu0 %v5941
      %5994 = vmatmul.bf16.gmra.mxu0 %v5956
      %v5995 = vpop.f32.mrf.mxu0
      %v5996 = vadd.f32 0.0, %v5995
      %v5997 = vpop.f32.mrf.mxu0
      %v5998 = vadd.f32 0.0, %v5997
      %5999 = vdwg.mxu0
      %6000 = vmatpush.bf16.msra.mxu0 0
      %6001 = vmatpush.bf16.msra.mxu0 0
      %6002 = vmatpush.bf16.msra.mxu0 0
      %6003 = vmatpush.bf16.msra.mxu0 0
      %6004 = vmatpush.bf16.msra.mxu0 0
      %6005 = vmatpush.bf16.msra.mxu0 0
      %6006 = vmatpush.bf16.msra.mxu0 0
      %6007 = vmatpush.bf16.msra.mxu0 %v5942
      %6008 = vmatmul.bf16.gmra.mxu0 %v5956
      %v6009 = vpop.f32.mrf.mxu0
      %v6010 = vadd.f32 0.0, %v6009
      %v6011 = vpop.f32.mrf.mxu0
      %v6012 = vadd.f32 0.0, %v6011
      %6013 = vdwg.mxu0
      %6014 = vmatpush.bf16.msra.mxu0 0
      %6015 = vmatpush.bf16.msra.mxu0 0
      %6016 = vmatpush.bf16.msra.mxu0 0
      %6017 = vmatpush.bf16.msra.mxu0 0
      %6018 = vmatpush.bf16.msra.mxu0 0
      %6019 = vmatpush.bf16.msra.mxu0 0
      %6020 = vmatpush.bf16.msra.mxu0 0
      %6021 = vmatpush.bf16.msra.mxu0 %v5943
      %6022 = vmatmul.bf16.gmra.mxu0 %v5956
      %v6023 = vpop.f32.mrf.mxu0
      %v6024 = vadd.f32 0.0, %v6023
      %v6025 = vpop.f32.mrf.mxu0
      %v6026 = vadd.f32 0.0, %v6025
      %6027 = vdwg.mxu0
      %6028 = vmatpush.bf16.msra.mxu0 0
      %6029 = vmatpush.bf16.msra.mxu0 0
      %6030 = vmatpush.bf16.msra.mxu0 0
      %6031 = vmatpush.bf16.msra.mxu0 0
      %6032 = vmatpush.bf16.msra.mxu0 0
      %6033 = vmatpush.bf16.msra.mxu0 0
      %6034 = vmatpush.bf16.msra.mxu0 0
      %6035 = vmatpush.bf16.msra.mxu0 %v5944
      %6036 = vmatmul.bf16.gmra.mxu0 %v5956
      %v6037 = vpop.f32.mrf.mxu0
      %v6038 = vadd.f32 0.0, %v6037
      %v6039 = vpop.f32.mrf.mxu0
      %v6040 = vadd.f32 0.0, %v6039
      %6041 = vdwg.mxu0
      %6042 = vmatpush.bf16.msra.mxu0 0
      %6043 = vmatpush.bf16.msra.mxu0 0
      %6044 = vmatpush.bf16.msra.mxu0 0
      %6045 = vmatpush.bf16.msra.mxu0 0
      %6046 = vmatpush.bf16.msra.mxu0 0
      %6047 = vmatpush.bf16.msra.mxu0 0
      %6048 = vmatpush.bf16.msra.mxu0 0
      %6049 = vmatpush.bf16.msra.mxu0 %v5945
      %6050 = vmatmul.bf16.gmra.mxu0 %v5956
      %v6051 = vpop.f32.mrf.mxu0
      %v6052 = vadd.f32 0.0, %v6051
      %v6053 = vpop.f32.mrf.mxu0
      %v6054 = vadd.f32 0.0, %v6053
      %6055 = vdwg.mxu0
      %6056 = vmatpush.bf16.msra.mxu0 0
      %6057 = vmatpush.bf16.msra.mxu0 0
      %6058 = vmatpush.bf16.msra.mxu0 0
      %6059 = vmatpush.bf16.msra.mxu0 0
      %6060 = vmatpush.bf16.msra.mxu0 0
      %6061 = vmatpush.bf16.msra.mxu0 0
      %6062 = vmatpush.bf16.msra.mxu0 0
      %6063 = vmatpush.bf16.msra.mxu0 %v5946
      %6064 = vmatmul.bf16.gmra.mxu0 %v5956
      %v6065 = vpop.f32.mrf.mxu0
      %v6066 = vadd.f32 0.0, %v6065
      %v6067 = vpop.f32.mrf.mxu0
      %v6068 = vadd.f32 0.0, %v6067
      %6069 = vdwg.mxu0
      %v6070 = vadd.f32 %v5897, %v5968
      %v6071 = vadd.f32 %v5898, %v5982
      %v6072 = vadd.f32 %v5899, %v5996
      %v6073 = vadd.f32 %v5900, %v6010
      %v6074 = vadd.f32 %v5901, %v6024
      %v6075 = vadd.f32 %v5902, %v6038
      %v6076 = vadd.f32 %v5903, %v6052
      %v6077 = vadd.f32 %v5904, %v6066
      %v6078 = vadd.f32 %v5905, %v5970
      %v6079 = vadd.f32 %v5906, %v5984
      %v6080 = vadd.f32 %v5907, %v5998
      %v6081 = vadd.f32 %v5908, %v6012
      %v6082 = vadd.f32 %v5909, %v6026
      %v6083 = vadd.f32 %v5910, %v6040
      %v6084 = vadd.f32 %v5911, %v6054
      %v6085 = vadd.f32 %v5912, %v6068
      %s6086 = scalar_lea.vmem %s4, 40
      %v6087 = vld [vmem:[%s6086] sm:$0xf]
      %v6088 = vld [vmem:[%s6086 + $0x4] sm:$0xf]
      %v6091 = vunpack.c.l.b16 %v6087
      %v6092 = vunpack.c.l.b16 %v6088
      %v6093 = vpack.c.b16 %v6092, %v6091
      %6094 = vrot.lane.b32.xlu0 %v5255, 99
      %v6095 = vpop.permute.xlu0 %6094
      %6096 = vrot.lane.b32.xlu0 %v5256, 99
      %v6097 = vpop.permute.xlu0 %6096
      %6098 = vrot.lane.b32.xlu0 %v5257, 99
      %v6099 = vpop.permute.xlu0 %6098
      %6100 = vrot.lane.b32.xlu0 %v5258, 99
      %v6101 = vpop.permute.xlu0 %6100
      %6102 = vrot.lane.b32.xlu0 %v5259, 99
      %v6103 = vpop.permute.xlu0 %6102
      %6104 = vrot.lane.b32.xlu0 %v5260, 99
      %v6105 = vpop.permute.xlu0 %6104
      %6106 = vrot.lane.b32.xlu0 %v5261, 99
      %v6107 = vpop.permute.xlu0 %6106
      %6108 = vrot.lane.b32.xlu0 %v5262, 99
      %v6109 = vpop.permute.xlu0 %6108
      %6110 = vrot.lane.b32.xlu0 %v5263, 99
      %v6111 = vpop.permute.xlu0 %6110
      %v6112 = vsel %vm1175, %v6095, %v6097
      %v6113 = vsel %vm1175, %v6097, %v6099
      %v6114 = vsel %vm1175, %v6099, %v6101
      %v6115 = vsel %vm1175, %v6101, %v6103
      %v6116 = vsel %vm1175, %v6103, %v6105
      %v6117 = vsel %vm1175, %v6105, %v6107
      %v6118 = vsel %vm1175, %v6107, %v6109
      %v6119 = vsel %vm1175, %v6109, %v6111
      %v6129 = vsel %vm356, %v6093, 0
      %6131 = vmatpush.bf16.msra.mxu0 0
      %6132 = vmatpush.bf16.msra.mxu0 0
      %6133 = vmatpush.bf16.msra.mxu0 0
      %6134 = vmatpush.bf16.msra.mxu0 0
      %6135 = vmatpush.bf16.msra.mxu0 0
      %6136 = vmatpush.bf16.msra.mxu0 0
      %6137 = vmatpush.bf16.msra.mxu0 0
      %6138 = vmatpush.bf16.msra.mxu0 %v6112
      %6139 = vmatmul.bf16.gmra.mxu0 %v6129
      %v6140 = vpop.f32.mrf.mxu0
      %v6141 = vadd.f32 0.0, %v6140
      %v6142 = vpop.f32.mrf.mxu0
      %v6143 = vadd.f32 0.0, %v6142
      %6144 = vdwg.mxu0
      %6145 = vmatpush.bf16.msra.mxu0 0
      %6146 = vmatpush.bf16.msra.mxu0 0
      %6147 = vmatpush.bf16.msra.mxu0 0
      %6148 = vmatpush.bf16.msra.mxu0 0
      %6149 = vmatpush.bf16.msra.mxu0 0
      %6150 = vmatpush.bf16.msra.mxu0 0
      %6151 = vmatpush.bf16.msra.mxu0 0
      %6152 = vmatpush.bf16.msra.mxu0 %v6113
      %6153 = vmatmul.bf16.gmra.mxu0 %v6129
      %v6154 = vpop.f32.mrf.mxu0
      %v6155 = vadd.f32 0.0, %v6154
      %v6156 = vpop.f32.mrf.mxu0
      %v6157 = vadd.f32 0.0, %v6156
      %6158 = vdwg.mxu0
      %6159 = vmatpush.bf16.msra.mxu0 0
      %6160 = vmatpush.bf16.msra.mxu0 0
      %6161 = vmatpush.bf16.msra.mxu0 0
      %6162 = vmatpush.bf16.msra.mxu0 0
      %6163 = vmatpush.bf16.msra.mxu0 0
      %6164 = vmatpush.bf16.msra.mxu0 0
      %6165 = vmatpush.bf16.msra.mxu0 0
      %6166 = vmatpush.bf16.msra.mxu0 %v6114
      %6167 = vmatmul.bf16.gmra.mxu0 %v6129
      %v6168 = vpop.f32.mrf.mxu0
      %v6169 = vadd.f32 0.0, %v6168
      %v6170 = vpop.f32.mrf.mxu0
      %v6171 = vadd.f32 0.0, %v6170
      %6172 = vdwg.mxu0
      %6173 = vmatpush.bf16.msra.mxu0 0
      %6174 = vmatpush.bf16.msra.mxu0 0
      %6175 = vmatpush.bf16.msra.mxu0 0
      %6176 = vmatpush.bf16.msra.mxu0 0
      %6177 = vmatpush.bf16.msra.mxu0 0
      %6178 = vmatpush.bf16.msra.mxu0 0
      %6179 = vmatpush.bf16.msra.mxu0 0
      %6180 = vmatpush.bf16.msra.mxu0 %v6115
      %6181 = vmatmul.bf16.gmra.mxu0 %v6129
      %v6182 = vpop.f32.mrf.mxu0
      %v6183 = vadd.f32 0.0, %v6182
      %v6184 = vpop.f32.mrf.mxu0
      %v6185 = vadd.f32 0.0, %v6184
      %6186 = vdwg.mxu0
      %6187 = vmatpush.bf16.msra.mxu0 0
      %6188 = vmatpush.bf16.msra.mxu0 0
      %6189 = vmatpush.bf16.msra.mxu0 0
      %6190 = vmatpush.bf16.msra.mxu0 0
      %6191 = vmatpush.bf16.msra.mxu0 0
      %6192 = vmatpush.bf16.msra.mxu0 0
      %6193 = vmatpush.bf16.msra.mxu0 0
      %6194 = vmatpush.bf16.msra.mxu0 %v6116
      %6195 = vmatmul.bf16.gmra.mxu0 %v6129
      %v6196 = vpop.f32.mrf.mxu0
      %v6197 = vadd.f32 0.0, %v6196
      %v6198 = vpop.f32.mrf.mxu0
      %v6199 = vadd.f32 0.0, %v6198
      %6200 = vdwg.mxu0
      %6201 = vmatpush.bf16.msra.mxu0 0
      %6202 = vmatpush.bf16.msra.mxu0 0
      %6203 = vmatpush.bf16.msra.mxu0 0
      %6204 = vmatpush.bf16.msra.mxu0 0
      %6205 = vmatpush.bf16.msra.mxu0 0
      %6206 = vmatpush.bf16.msra.mxu0 0
      %6207 = vmatpush.bf16.msra.mxu0 0
      %6208 = vmatpush.bf16.msra.mxu0 %v6117
      %6209 = vmatmul.bf16.gmra.mxu0 %v6129
      %v6210 = vpop.f32.mrf.mxu0
      %v6211 = vadd.f32 0.0, %v6210
      %v6212 = vpop.f32.mrf.mxu0
      %v6213 = vadd.f32 0.0, %v6212
      %6214 = vdwg.mxu0
      %6215 = vmatpush.bf16.msra.mxu0 0
      %6216 = vmatpush.bf16.msra.mxu0 0
      %6217 = vmatpush.bf16.msra.mxu0 0
      %6218 = vmatpush.bf16.msra.mxu0 0
      %6219 = vmatpush.bf16.msra.mxu0 0
      %6220 = vmatpush.bf16.msra.mxu0 0
      %6221 = vmatpush.bf16.msra.mxu0 0
      %6222 = vmatpush.bf16.msra.mxu0 %v6118
      %6223 = vmatmul.bf16.gmra.mxu0 %v6129
      %v6224 = vpop.f32.mrf.mxu0
      %v6225 = vadd.f32 0.0, %v6224
      %v6226 = vpop.f32.mrf.mxu0
      %v6227 = vadd.f32 0.0, %v6226
      %6228 = vdwg.mxu0
      %6229 = vmatpush.bf16.msra.mxu0 0
      %6230 = vmatpush.bf16.msra.mxu0 0
      %6231 = vmatpush.bf16.msra.mxu0 0
      %6232 = vmatpush.bf16.msra.mxu0 0
      %6233 = vmatpush.bf16.msra.mxu0 0
      %6234 = vmatpush.bf16.msra.mxu0 0
      %6235 = vmatpush.bf16.msra.mxu0 0
      %6236 = vmatpush.bf16.msra.mxu0 %v6119
      %6237 = vmatmul.bf16.gmra.mxu0 %v6129
      %v6238 = vpop.f32.mrf.mxu0
      %v6239 = vadd.f32 0.0, %v6238
      %v6240 = vpop.f32.mrf.mxu0
      %v6241 = vadd.f32 0.0, %v6240
      %6242 = vdwg.mxu0
      %v6243 = vadd.f32 %v6070, %v6141
      %v6244 = vadd.f32 %v6071, %v6155
      %v6245 = vadd.f32 %v6072, %v6169
      %v6246 = vadd.f32 %v6073, %v6183
      %v6247 = vadd.f32 %v6074, %v6197
      %v6248 = vadd.f32 %v6075, %v6211
      %v6249 = vadd.f32 %v6076, %v6225
      %v6250 = vadd.f32 %v6077, %v6239
      %v6251 = vadd.f32 %v6078, %v6143
      %v6252 = vadd.f32 %v6079, %v6157
      %v6253 = vadd.f32 %v6080, %v6171
      %v6254 = vadd.f32 %v6081, %v6185
      %v6255 = vadd.f32 %v6082, %v6199
      %v6256 = vadd.f32 %v6083, %v6213
      %v6257 = vadd.f32 %v6084, %v6227
      %v6258 = vadd.f32 %v6085, %v6241
      %s6259 = scalar_lea.vmem %s4, 48
      %v6260 = vld [vmem:[%s6259] sm:$0xf]
      %v6261 = vld [vmem:[%s6259 + $0x4] sm:$0xf]
      %v6264 = vunpack.c.l.b16 %v6260
      %v6265 = vunpack.c.l.b16 %v6261
      %v6266 = vpack.c.b16 %v6265, %v6264
      %6267 = vrot.lane.b32.xlu0 %v5255, 91
      %v6268 = vpop.permute.xlu0 %6267
      %6269 = vrot.lane.b32.xlu0 %v5256, 91
      %v6270 = vpop.permute.xlu0 %6269
      %6271 = vrot.lane.b32.xlu0 %v5257, 91
      %v6272 = vpop.permute.xlu0 %6271
      %6273 = vrot.lane.b32.xlu0 %v5258, 91
      %v6274 = vpop.permute.xlu0 %6273
      %6275 = vrot.lane.b32.xlu0 %v5259, 91
      %v6276 = vpop.permute.xlu0 %6275
      %6277 = vrot.lane.b32.xlu0 %v5260, 91
      %v6278 = vpop.permute.xlu0 %6277
      %6279 = vrot.lane.b32.xlu0 %v5261, 91
      %v6280 = vpop.permute.xlu0 %6279
      %6281 = vrot.lane.b32.xlu0 %v5262, 91
      %v6282 = vpop.permute.xlu0 %6281
      %6283 = vrot.lane.b32.xlu0 %v5263, 91
      %v6284 = vpop.permute.xlu0 %6283
      %v6285 = vsel %vm1349, %v6268, %v6270
      %v6286 = vsel %vm1349, %v6270, %v6272
      %v6287 = vsel %vm1349, %v6272, %v6274
      %v6288 = vsel %vm1349, %v6274, %v6276
      %v6289 = vsel %vm1349, %v6276, %v6278
      %v6290 = vsel %vm1349, %v6278, %v6280
      %v6291 = vsel %vm1349, %v6280, %v6282
      %v6292 = vsel %vm1349, %v6282, %v6284
      %v6302 = vsel %vm356, %v6266, 0
      %6304 = vmatpush.bf16.msra.mxu0 0
      %6305 = vmatpush.bf16.msra.mxu0 0
      %6306 = vmatpush.bf16.msra.mxu0 0
      %6307 = vmatpush.bf16.msra.mxu0 0
      %6308 = vmatpush.bf16.msra.mxu0 0
      %6309 = vmatpush.bf16.msra.mxu0 0
      %6310 = vmatpush.bf16.msra.mxu0 0
      %6311 = vmatpush.bf16.msra.mxu0 %v6285
      %6312 = vmatmul.bf16.gmra.mxu0 %v6302
      %v6313 = vpop.f32.mrf.mxu0
      %v6314 = vadd.f32 0.0, %v6313
      %v6315 = vpop.f32.mrf.mxu0
      %v6316 = vadd.f32 0.0, %v6315
      %6317 = vdwg.mxu0
      %6318 = vmatpush.bf16.msra.mxu0 0
      %6319 = vmatpush.bf16.msra.mxu0 0
      %6320 = vmatpush.bf16.msra.mxu0 0
      %6321 = vmatpush.bf16.msra.mxu0 0
      %6322 = vmatpush.bf16.msra.mxu0 0
      %6323 = vmatpush.bf16.msra.mxu0 0
      %6324 = vmatpush.bf16.msra.mxu0 0
      %6325 = vmatpush.bf16.msra.mxu0 %v6286
      %6326 = vmatmul.bf16.gmra.mxu0 %v6302
      %v6327 = vpop.f32.mrf.mxu0
      %v6328 = vadd.f32 0.0, %v6327
      %v6329 = vpop.f32.mrf.mxu0
      %v6330 = vadd.f32 0.0, %v6329
      %6331 = vdwg.mxu0
      %6332 = vmatpush.bf16.msra.mxu0 0
      %6333 = vmatpush.bf16.msra.mxu0 0
      %6334 = vmatpush.bf16.msra.mxu0 0
      %6335 = vmatpush.bf16.msra.mxu0 0
      %6336 = vmatpush.bf16.msra.mxu0 0
      %6337 = vmatpush.bf16.msra.mxu0 0
      %6338 = vmatpush.bf16.msra.mxu0 0
      %6339 = vmatpush.bf16.msra.mxu0 %v6287
      %6340 = vmatmul.bf16.gmra.mxu0 %v6302
      %v6341 = vpop.f32.mrf.mxu0
      %v6342 = vadd.f32 0.0, %v6341
      %v6343 = vpop.f32.mrf.mxu0
      %v6344 = vadd.f32 0.0, %v6343
      %6345 = vdwg.mxu0
      %6346 = vmatpush.bf16.msra.mxu0 0
      %6347 = vmatpush.bf16.msra.mxu0 0
      %6348 = vmatpush.bf16.msra.mxu0 0
      %6349 = vmatpush.bf16.msra.mxu0 0
      %6350 = vmatpush.bf16.msra.mxu0 0
      %6351 = vmatpush.bf16.msra.mxu0 0
      %6352 = vmatpush.bf16.msra.mxu0 0
      %6353 = vmatpush.bf16.msra.mxu0 %v6288
      %6354 = vmatmul.bf16.gmra.mxu0 %v6302
      %v6355 = vpop.f32.mrf.mxu0
      %v6356 = vadd.f32 0.0, %v6355
      %v6357 = vpop.f32.mrf.mxu0
      %v6358 = vadd.f32 0.0, %v6357
      %6359 = vdwg.mxu0
      %6360 = vmatpush.bf16.msra.mxu0 0
      %6361 = vmatpush.bf16.msra.mxu0 0
      %6362 = vmatpush.bf16.msra.mxu0 0
      %6363 = vmatpush.bf16.msra.mxu0 0
      %6364 = vmatpush.bf16.msra.mxu0 0
      %6365 = vmatpush.bf16.msra.mxu0 0
      %6366 = vmatpush.bf16.msra.mxu0 0
      %6367 = vmatpush.bf16.msra.mxu0 %v6289
      %6368 = vmatmul.bf16.gmra.mxu0 %v6302
      %v6369 = vpop.f32.mrf.mxu0
      %v6370 = vadd.f32 0.0, %v6369
      %v6371 = vpop.f32.mrf.mxu0
      %v6372 = vadd.f32 0.0, %v6371
      %6373 = vdwg.mxu0
      %6374 = vmatpush.bf16.msra.mxu0 0
      %6375 = vmatpush.bf16.msra.mxu0 0
      %6376 = vmatpush.bf16.msra.mxu0 0
      %6377 = vmatpush.bf16.msra.mxu0 0
      %6378 = vmatpush.bf16.msra.mxu0 0
      %6379 = vmatpush.bf16.msra.mxu0 0
      %6380 = vmatpush.bf16.msra.mxu0 0
      %6381 = vmatpush.bf16.msra.mxu0 %v6290
      %6382 = vmatmul.bf16.gmra.mxu0 %v6302
      %v6383 = vpop.f32.mrf.mxu0
      %v6384 = vadd.f32 0.0, %v6383
      %v6385 = vpop.f32.mrf.mxu0
      %v6386 = vadd.f32 0.0, %v6385
      %6387 = vdwg.mxu0
      %6388 = vmatpush.bf16.msra.mxu0 0
      %6389 = vmatpush.bf16.msra.mxu0 0
      %6390 = vmatpush.bf16.msra.mxu0 0
      %6391 = vmatpush.bf16.msra.mxu0 0
      %6392 = vmatpush.bf16.msra.mxu0 0
      %6393 = vmatpush.bf16.msra.mxu0 0
      %6394 = vmatpush.bf16.msra.mxu0 0
      %6395 = vmatpush.bf16.msra.mxu0 %v6291
      %6396 = vmatmul.bf16.gmra.mxu0 %v6302
      %v6397 = vpop.f32.mrf.mxu0
      %v6398 = vadd.f32 0.0, %v6397
      %v6399 = vpop.f32.mrf.mxu0
      %v6400 = vadd.f32 0.0, %v6399
      %6401 = vdwg.mxu0
      %6402 = vmatpush.bf16.msra.mxu0 0
      %6403 = vmatpush.bf16.msra.mxu0 0
      %6404 = vmatpush.bf16.msra.mxu0 0
      %6405 = vmatpush.bf16.msra.mxu0 0
      %6406 = vmatpush.bf16.msra.mxu0 0
      %6407 = vmatpush.bf16.msra.mxu0 0
      %6408 = vmatpush.bf16.msra.mxu0 0
      %6409 = vmatpush.bf16.msra.mxu0 %v6292
      %6410 = vmatmul.bf16.gmra.mxu0 %v6302
      %v6411 = vpop.f32.mrf.mxu0
      %v6412 = vadd.f32 0.0, %v6411
      %v6413 = vpop.f32.mrf.mxu0
      %v6414 = vadd.f32 0.0, %v6413
      %6415 = vdwg.mxu0
      %v6416 = vadd.f32 %v6243, %v6314
      %v6417 = vadd.f32 %v6244, %v6328
      %v6418 = vadd.f32 %v6245, %v6342
      %v6419 = vadd.f32 %v6246, %v6356
      %v6420 = vadd.f32 %v6247, %v6370
      %v6421 = vadd.f32 %v6248, %v6384
      %v6422 = vadd.f32 %v6249, %v6398
      %v6423 = vadd.f32 %v6250, %v6412
      %v6424 = vadd.f32 %v6251, %v6316
      %v6425 = vadd.f32 %v6252, %v6330
      %v6426 = vadd.f32 %v6253, %v6344
      %v6427 = vadd.f32 %v6254, %v6358
      %v6428 = vadd.f32 %v6255, %v6372
      %v6429 = vadd.f32 %v6256, %v6386
      %v6430 = vadd.f32 %v6257, %v6400
      %v6431 = vadd.f32 %v6258, %v6414
      %s6432 = scalar_lea.vmem %s4, 56
      %v6433 = vld [vmem:[%s6432] sm:$0xf]
      %v6434 = vld [vmem:[%s6432 + $0x4] sm:$0xf]
      %v6437 = vunpack.c.l.b16 %v6433
      %v6438 = vunpack.c.l.b16 %v6434
      %v6439 = vpack.c.b16 %v6438, %v6437
      %6440 = vrot.lane.b32.xlu0 %v5255, 90
      %v6441 = vpop.permute.xlu0 %6440
      %6442 = vrot.lane.b32.xlu0 %v5256, 90
      %v6443 = vpop.permute.xlu0 %6442
      %6444 = vrot.lane.b32.xlu0 %v5257, 90
      %v6445 = vpop.permute.xlu0 %6444
      %6446 = vrot.lane.b32.xlu0 %v5258, 90
      %v6447 = vpop.permute.xlu0 %6446
      %6448 = vrot.lane.b32.xlu0 %v5259, 90
      %v6449 = vpop.permute.xlu0 %6448
      %6450 = vrot.lane.b32.xlu0 %v5260, 90
      %v6451 = vpop.permute.xlu0 %6450
      %6452 = vrot.lane.b32.xlu0 %v5261, 90
      %v6453 = vpop.permute.xlu0 %6452
      %6454 = vrot.lane.b32.xlu0 %v5262, 90
      %v6455 = vpop.permute.xlu0 %6454
      %6456 = vrot.lane.b32.xlu0 %v5263, 90
      %v6457 = vpop.permute.xlu0 %6456
      %v6458 = vsel %vm1523, %v6441, %v6443
      %v6459 = vsel %vm1523, %v6443, %v6445
      %v6460 = vsel %vm1523, %v6445, %v6447
      %v6461 = vsel %vm1523, %v6447, %v6449
      %v6462 = vsel %vm1523, %v6449, %v6451
      %v6463 = vsel %vm1523, %v6451, %v6453
      %v6464 = vsel %vm1523, %v6453, %v6455
      %v6465 = vsel %vm1523, %v6455, %v6457
      %v6475 = vsel %vm356, %v6439, 0
      %6477 = vmatpush.bf16.msra.mxu0 0
      %6478 = vmatpush.bf16.msra.mxu0 0
      %6479 = vmatpush.bf16.msra.mxu0 0
      %6480 = vmatpush.bf16.msra.mxu0 0
      %6481 = vmatpush.bf16.msra.mxu0 0
      %6482 = vmatpush.bf16.msra.mxu0 0
      %6483 = vmatpush.bf16.msra.mxu0 0
      %6484 = vmatpush.bf16.msra.mxu0 %v6458
      %6485 = vmatmul.bf16.gmra.mxu0 %v6475
      %v6486 = vpop.f32.mrf.mxu0
      %v6487 = vadd.f32 0.0, %v6486
      %v6488 = vpop.f32.mrf.mxu0
      %v6489 = vadd.f32 0.0, %v6488
      %6490 = vdwg.mxu0
      %6491 = vmatpush.bf16.msra.mxu0 0
      %6492 = vmatpush.bf16.msra.mxu0 0
      %6493 = vmatpush.bf16.msra.mxu0 0
      %6494 = vmatpush.bf16.msra.mxu0 0
      %6495 = vmatpush.bf16.msra.mxu0 0
      %6496 = vmatpush.bf16.msra.mxu0 0
      %6497 = vmatpush.bf16.msra.mxu0 0
      %6498 = vmatpush.bf16.msra.mxu0 %v6459
      %6499 = vmatmul.bf16.gmra.mxu0 %v6475
      %v6500 = vpop.f32.mrf.mxu0
      %v6501 = vadd.f32 0.0, %v6500
      %v6502 = vpop.f32.mrf.mxu0
      %v6503 = vadd.f32 0.0, %v6502
      %6504 = vdwg.mxu0
      %6505 = vmatpush.bf16.msra.mxu0 0
      %6506 = vmatpush.bf16.msra.mxu0 0
      %6507 = vmatpush.bf16.msra.mxu0 0
      %6508 = vmatpush.bf16.msra.mxu0 0
      %6509 = vmatpush.bf16.msra.mxu0 0
      %6510 = vmatpush.bf16.msra.mxu0 0
      %6511 = vmatpush.bf16.msra.mxu0 0
      %6512 = vmatpush.bf16.msra.mxu0 %v6460
      %6513 = vmatmul.bf16.gmra.mxu0 %v6475
      %v6514 = vpop.f32.mrf.mxu0
      %v6515 = vadd.f32 0.0, %v6514
      %v6516 = vpop.f32.mrf.mxu0
      %v6517 = vadd.f32 0.0, %v6516
      %6518 = vdwg.mxu0
      %6519 = vmatpush.bf16.msra.mxu0 0
      %6520 = vmatpush.bf16.msra.mxu0 0
      %6521 = vmatpush.bf16.msra.mxu0 0
      %6522 = vmatpush.bf16.msra.mxu0 0
      %6523 = vmatpush.bf16.msra.mxu0 0
      %6524 = vmatpush.bf16.msra.mxu0 0
      %6525 = vmatpush.bf16.msra.mxu0 0
      %6526 = vmatpush.bf16.msra.mxu0 %v6461
      %6527 = vmatmul.bf16.gmra.mxu0 %v6475
      %v6528 = vpop.f32.mrf.mxu0
      %v6529 = vadd.f32 0.0, %v6528
      %v6530 = vpop.f32.mrf.mxu0
      %v6531 = vadd.f32 0.0, %v6530
      %6532 = vdwg.mxu0
      %6533 = vmatpush.bf16.msra.mxu0 0
      %6534 = vmatpush.bf16.msra.mxu0 0
      %6535 = vmatpush.bf16.msra.mxu0 0
      %6536 = vmatpush.bf16.msra.mxu0 0
      %6537 = vmatpush.bf16.msra.mxu0 0
      %6538 = vmatpush.bf16.msra.mxu0 0
      %6539 = vmatpush.bf16.msra.mxu0 0
      %6540 = vmatpush.bf16.msra.mxu0 %v6462
      %6541 = vmatmul.bf16.gmra.mxu0 %v6475
      %v6542 = vpop.f32.mrf.mxu0
      %v6543 = vadd.f32 0.0, %v6542
      %v6544 = vpop.f32.mrf.mxu0
      %v6545 = vadd.f32 0.0, %v6544
      %6546 = vdwg.mxu0
      %6547 = vmatpush.bf16.msra.mxu0 0
      %6548 = vmatpush.bf16.msra.mxu0 0
      %6549 = vmatpush.bf16.msra.mxu0 0
      %6550 = vmatpush.bf16.msra.mxu0 0
      %6551 = vmatpush.bf16.msra.mxu0 0
      %6552 = vmatpush.bf16.msra.mxu0 0
      %6553 = vmatpush.bf16.msra.mxu0 0
      %6554 = vmatpush.bf16.msra.mxu0 %v6463
      %6555 = vmatmul.bf16.gmra.mxu0 %v6475
      %v6556 = vpop.f32.mrf.mxu0
      %v6557 = vadd.f32 0.0, %v6556
      %v6558 = vpop.f32.mrf.mxu0
      %v6559 = vadd.f32 0.0, %v6558
      %6560 = vdwg.mxu0
      %6561 = vmatpush.bf16.msra.mxu0 0
      %6562 = vmatpush.bf16.msra.mxu0 0
      %6563 = vmatpush.bf16.msra.mxu0 0
      %6564 = vmatpush.bf16.msra.mxu0 0
      %6565 = vmatpush.bf16.msra.mxu0 0
      %6566 = vmatpush.bf16.msra.mxu0 0
      %6567 = vmatpush.bf16.msra.mxu0 0
      %6568 = vmatpush.bf16.msra.mxu0 %v6464
      %6569 = vmatmul.bf16.gmra.mxu0 %v6475
      %v6570 = vpop.f32.mrf.mxu0
      %v6571 = vadd.f32 0.0, %v6570
      %v6572 = vpop.f32.mrf.mxu0
      %v6573 = vadd.f32 0.0, %v6572
      %6574 = vdwg.mxu0
      %6575 = vmatpush.bf16.msra.mxu0 0
      %6576 = vmatpush.bf16.msra.mxu0 0
      %6577 = vmatpush.bf16.msra.mxu0 0
      %6578 = vmatpush.bf16.msra.mxu0 0
      %6579 = vmatpush.bf16.msra.mxu0 0
      %6580 = vmatpush.bf16.msra.mxu0 0
      %6581 = vmatpush.bf16.msra.mxu0 0
      %6582 = vmatpush.bf16.msra.mxu0 %v6465
      %6583 = vmatmul.bf16.gmra.mxu0 %v6475
      %v6584 = vpop.f32.mrf.mxu0
      %v6585 = vadd.f32 0.0, %v6584
      %v6586 = vpop.f32.mrf.mxu0
      %v6587 = vadd.f32 0.0, %v6586
      %6588 = vdwg.mxu0
      %v6589 = vadd.f32 %v6416, %v6487
      %v6590 = vadd.f32 %v6417, %v6501
      %v6591 = vadd.f32 %v6418, %v6515
      %v6592 = vadd.f32 %v6419, %v6529
      %v6593 = vadd.f32 %v6420, %v6543
      %v6594 = vadd.f32 %v6421, %v6557
      %v6595 = vadd.f32 %v6422, %v6571
      %v6596 = vadd.f32 %v6423, %v6585
      %v6597 = vadd.f32 %v6424, %v6489
      %v6598 = vadd.f32 %v6425, %v6503
      %v6599 = vadd.f32 %v6426, %v6517
      %v6600 = vadd.f32 %v6427, %v6531
      %v6601 = vadd.f32 %v6428, %v6545
      %v6602 = vadd.f32 %v6429, %v6559
      %v6603 = vadd.f32 %v6430, %v6573
      %v6604 = vadd.f32 %v6431, %v6587
      %s6605 = scalar_lea.vmem %s4, 64
      %v6606 = vld [vmem:[%s6605] sm:$0xf]
      %v6607 = vld [vmem:[%s6605 + $0x4] sm:$0xf]
      %v6610 = vunpack.c.l.b16 %v6606
      %v6611 = vunpack.c.l.b16 %v6607
      %v6612 = vpack.c.b16 %v6611, %v6610
      %6613 = vrot.lane.b32.xlu0 %v5255, 89
      %v6614 = vpop.permute.xlu0 %6613
      %6615 = vrot.lane.b32.xlu0 %v5256, 89
      %v6616 = vpop.permute.xlu0 %6615
      %6617 = vrot.lane.b32.xlu0 %v5257, 89
      %v6618 = vpop.permute.xlu0 %6617
      %6619 = vrot.lane.b32.xlu0 %v5258, 89
      %v6620 = vpop.permute.xlu0 %6619
      %6621 = vrot.lane.b32.xlu0 %v5259, 89
      %v6622 = vpop.permute.xlu0 %6621
      %6623 = vrot.lane.b32.xlu0 %v5260, 89
      %v6624 = vpop.permute.xlu0 %6623
      %6625 = vrot.lane.b32.xlu0 %v5261, 89
      %v6626 = vpop.permute.xlu0 %6625
      %6627 = vrot.lane.b32.xlu0 %v5262, 89
      %v6628 = vpop.permute.xlu0 %6627
      %6629 = vrot.lane.b32.xlu0 %v5263, 89
      %v6630 = vpop.permute.xlu0 %6629
      %v6631 = vsel %vm1697, %v6614, %v6616
      %v6632 = vsel %vm1697, %v6616, %v6618
      %v6633 = vsel %vm1697, %v6618, %v6620
      %v6634 = vsel %vm1697, %v6620, %v6622
      %v6635 = vsel %vm1697, %v6622, %v6624
      %v6636 = vsel %vm1697, %v6624, %v6626
      %v6637 = vsel %vm1697, %v6626, %v6628
      %v6638 = vsel %vm1697, %v6628, %v6630
      %v6648 = vsel %vm356, %v6612, 0
      %6650 = vmatpush.bf16.msra.mxu0 0
      %6651 = vmatpush.bf16.msra.mxu0 0
      %6652 = vmatpush.bf16.msra.mxu0 0
      %6653 = vmatpush.bf16.msra.mxu0 0
      %6654 = vmatpush.bf16.msra.mxu0 0
      %6655 = vmatpush.bf16.msra.mxu0 0
      %6656 = vmatpush.bf16.msra.mxu0 0
      %6657 = vmatpush.bf16.msra.mxu0 %v6631
      %6658 = vmatmul.bf16.gmra.mxu0 %v6648
      %v6659 = vpop.f32.mrf.mxu0
      %v6660 = vadd.f32 0.0, %v6659
      %v6661 = vpop.f32.mrf.mxu0
      %v6662 = vadd.f32 0.0, %v6661
      %6663 = vdwg.mxu0
      %6664 = vmatpush.bf16.msra.mxu0 0
      %6665 = vmatpush.bf16.msra.mxu0 0
      %6666 = vmatpush.bf16.msra.mxu0 0
      %6667 = vmatpush.bf16.msra.mxu0 0
      %6668 = vmatpush.bf16.msra.mxu0 0
      %6669 = vmatpush.bf16.msra.mxu0 0
      %6670 = vmatpush.bf16.msra.mxu0 0
      %6671 = vmatpush.bf16.msra.mxu0 %v6632
      %6672 = vmatmul.bf16.gmra.mxu0 %v6648
      %v6673 = vpop.f32.mrf.mxu0
      %v6674 = vadd.f32 0.0, %v6673
      %v6675 = vpop.f32.mrf.mxu0
      %v6676 = vadd.f32 0.0, %v6675
      %6677 = vdwg.mxu0
      %6678 = vmatpush.bf16.msra.mxu0 0
      %6679 = vmatpush.bf16.msra.mxu0 0
      %6680 = vmatpush.bf16.msra.mxu0 0
      %6681 = vmatpush.bf16.msra.mxu0 0
      %6682 = vmatpush.bf16.msra.mxu0 0
      %6683 = vmatpush.bf16.msra.mxu0 0
      %6684 = vmatpush.bf16.msra.mxu0 0
      %6685 = vmatpush.bf16.msra.mxu0 %v6633
      %6686 = vmatmul.bf16.gmra.mxu0 %v6648
      %v6687 = vpop.f32.mrf.mxu0
      %v6688 = vadd.f32 0.0, %v6687
      %v6689 = vpop.f32.mrf.mxu0
      %v6690 = vadd.f32 0.0, %v6689
      %6691 = vdwg.mxu0
      %6692 = vmatpush.bf16.msra.mxu0 0
      %6693 = vmatpush.bf16.msra.mxu0 0
      %6694 = vmatpush.bf16.msra.mxu0 0
      %6695 = vmatpush.bf16.msra.mxu0 0
      %6696 = vmatpush.bf16.msra.mxu0 0
      %6697 = vmatpush.bf16.msra.mxu0 0
      %6698 = vmatpush.bf16.msra.mxu0 0
      %6699 = vmatpush.bf16.msra.mxu0 %v6634
      %6700 = vmatmul.bf16.gmra.mxu0 %v6648
      %v6701 = vpop.f32.mrf.mxu0
      %v6702 = vadd.f32 0.0, %v6701
      %v6703 = vpop.f32.mrf.mxu0
      %v6704 = vadd.f32 0.0, %v6703
      %6705 = vdwg.mxu0
      %6706 = vmatpush.bf16.msra.mxu0 0
      %6707 = vmatpush.bf16.msra.mxu0 0
      %6708 = vmatpush.bf16.msra.mxu0 0
      %6709 = vmatpush.bf16.msra.mxu0 0
      %6710 = vmatpush.bf16.msra.mxu0 0
      %6711 = vmatpush.bf16.msra.mxu0 0
      %6712 = vmatpush.bf16.msra.mxu0 0
      %6713 = vmatpush.bf16.msra.mxu0 %v6635
      %6714 = vmatmul.bf16.gmra.mxu0 %v6648
      %v6715 = vpop.f32.mrf.mxu0
      %v6716 = vadd.f32 0.0, %v6715
      %v6717 = vpop.f32.mrf.mxu0
      %v6718 = vadd.f32 0.0, %v6717
      %6719 = vdwg.mxu0
      %6720 = vmatpush.bf16.msra.mxu0 0
      %6721 = vmatpush.bf16.msra.mxu0 0
      %6722 = vmatpush.bf16.msra.mxu0 0
      %6723 = vmatpush.bf16.msra.mxu0 0
      %6724 = vmatpush.bf16.msra.mxu0 0
      %6725 = vmatpush.bf16.msra.mxu0 0
      %6726 = vmatpush.bf16.msra.mxu0 0
      %6727 = vmatpush.bf16.msra.mxu0 %v6636
      %6728 = vmatmul.bf16.gmra.mxu0 %v6648
      %v6729 = vpop.f32.mrf.mxu0
      %v6730 = vadd.f32 0.0, %v6729
      %v6731 = vpop.f32.mrf.mxu0
      %v6732 = vadd.f32 0.0, %v6731
      %6733 = vdwg.mxu0
      %6734 = vmatpush.bf16.msra.mxu0 0
      %6735 = vmatpush.bf16.msra.mxu0 0
      %6736 = vmatpush.bf16.msra.mxu0 0
      %6737 = vmatpush.bf16.msra.mxu0 0
      %6738 = vmatpush.bf16.msra.mxu0 0
      %6739 = vmatpush.bf16.msra.mxu0 0
      %6740 = vmatpush.bf16.msra.mxu0 0
      %6741 = vmatpush.bf16.msra.mxu0 %v6637
      %6742 = vmatmul.bf16.gmra.mxu0 %v6648
      %v6743 = vpop.f32.mrf.mxu0
      %v6744 = vadd.f32 0.0, %v6743
      %v6745 = vpop.f32.mrf.mxu0
      %v6746 = vadd.f32 0.0, %v6745
      %6747 = vdwg.mxu0
      %6748 = vmatpush.bf16.msra.mxu0 0
      %6749 = vmatpush.bf16.msra.mxu0 0
      %6750 = vmatpush.bf16.msra.mxu0 0
      %6751 = vmatpush.bf16.msra.mxu0 0
      %6752 = vmatpush.bf16.msra.mxu0 0
      %6753 = vmatpush.bf16.msra.mxu0 0
      %6754 = vmatpush.bf16.msra.mxu0 0
      %6755 = vmatpush.bf16.msra.mxu0 %v6638
      %6756 = vmatmul.bf16.gmra.mxu0 %v6648
      %v6757 = vpop.f32.mrf.mxu0
      %v6758 = vadd.f32 0.0, %v6757
      %v6759 = vpop.f32.mrf.mxu0
      %v6760 = vadd.f32 0.0, %v6759
      %6761 = vdwg.mxu0
      %v6762 = vadd.f32 %v6589, %v6660
      %v6763 = vadd.f32 %v6590, %v6674
      %v6764 = vadd.f32 %v6591, %v6688
      %v6765 = vadd.f32 %v6592, %v6702
      %v6766 = vadd.f32 %v6593, %v6716
      %v6767 = vadd.f32 %v6594, %v6730
      %v6768 = vadd.f32 %v6595, %v6744
      %v6769 = vadd.f32 %v6596, %v6758
      %v6770 = vadd.f32 %v6597, %v6662
      %v6771 = vadd.f32 %v6598, %v6676
      %v6772 = vadd.f32 %v6599, %v6690
      %v6773 = vadd.f32 %v6600, %v6704
      %v6774 = vadd.f32 %v6601, %v6718
      %v6775 = vadd.f32 %v6602, %v6732
      %v6776 = vadd.f32 %v6603, %v6746
      %v6777 = vadd.f32 %v6604, %v6760
      %s6778 = scalar_lea.vmem %s4, 72
      %v6779 = vld [vmem:[%s6778] sm:$0xf]
      %v6780 = vld [vmem:[%s6778 + $0x4] sm:$0xf]
      %v6783 = vunpack.c.l.b16 %v6779
      %v6784 = vunpack.c.l.b16 %v6780
      %v6785 = vpack.c.b16 %v6784, %v6783
      %6786 = vrot.lane.b32.xlu0 %v5255, 11
      %v6787 = vpop.permute.xlu0 %6786
      %6788 = vrot.lane.b32.xlu0 %v5256, 11
      %v6789 = vpop.permute.xlu0 %6788
      %6790 = vrot.lane.b32.xlu0 %v5257, 11
      %v6791 = vpop.permute.xlu0 %6790
      %6792 = vrot.lane.b32.xlu0 %v5258, 11
      %v6793 = vpop.permute.xlu0 %6792
      %6794 = vrot.lane.b32.xlu0 %v5259, 11
      %v6795 = vpop.permute.xlu0 %6794
      %6796 = vrot.lane.b32.xlu0 %v5260, 11
      %v6797 = vpop.permute.xlu0 %6796
      %6798 = vrot.lane.b32.xlu0 %v5261, 11
      %v6799 = vpop.permute.xlu0 %6798
      %6800 = vrot.lane.b32.xlu0 %v5262, 11
      %v6801 = vpop.permute.xlu0 %6800
      %6802 = vrot.lane.b32.xlu0 %v5263, 11
      %v6803 = vpop.permute.xlu0 %6802
      %v6804 = vsel %vm1871, %v6787, %v6789
      %v6805 = vsel %vm1871, %v6789, %v6791
      %v6806 = vsel %vm1871, %v6791, %v6793
      %v6807 = vsel %vm1871, %v6793, %v6795
      %v6808 = vsel %vm1871, %v6795, %v6797
      %v6809 = vsel %vm1871, %v6797, %v6799
      %v6810 = vsel %vm1871, %v6799, %v6801
      %v6811 = vsel %vm1871, %v6801, %v6803
      %v6821 = vsel %vm356, %v6785, 0
      %6823 = vmatpush.bf16.msra.mxu0 0
      %6824 = vmatpush.bf16.msra.mxu0 0
      %6825 = vmatpush.bf16.msra.mxu0 0
      %6826 = vmatpush.bf16.msra.mxu0 0
      %6827 = vmatpush.bf16.msra.mxu0 0
      %6828 = vmatpush.bf16.msra.mxu0 0
      %6829 = vmatpush.bf16.msra.mxu0 0
      %6830 = vmatpush.bf16.msra.mxu0 %v6804
      %6831 = vmatmul.bf16.gmra.mxu0 %v6821
      %v6832 = vpop.f32.mrf.mxu0
      %v6833 = vadd.f32 0.0, %v6832
      %v6834 = vpop.f32.mrf.mxu0
      %v6835 = vadd.f32 0.0, %v6834
      %6836 = vdwg.mxu0
      %6837 = vmatpush.bf16.msra.mxu0 0
      %6838 = vmatpush.bf16.msra.mxu0 0
      %6839 = vmatpush.bf16.msra.mxu0 0
      %6840 = vmatpush.bf16.msra.mxu0 0
      %6841 = vmatpush.bf16.msra.mxu0 0
      %6842 = vmatpush.bf16.msra.mxu0 0
      %6843 = vmatpush.bf16.msra.mxu0 0
      %6844 = vmatpush.bf16.msra.mxu0 %v6805
      %6845 = vmatmul.bf16.gmra.mxu0 %v6821
      %v6846 = vpop.f32.mrf.mxu0
      %v6847 = vadd.f32 0.0, %v6846
      %v6848 = vpop.f32.mrf.mxu0
      %v6849 = vadd.f32 0.0, %v6848
      %6850 = vdwg.mxu0
      %6851 = vmatpush.bf16.msra.mxu0 0
      %6852 = vmatpush.bf16.msra.mxu0 0
      %6853 = vmatpush.bf16.msra.mxu0 0
      %6854 = vmatpush.bf16.msra.mxu0 0
      %6855 = vmatpush.bf16.msra.mxu0 0
      %6856 = vmatpush.bf16.msra.mxu0 0
      %6857 = vmatpush.bf16.msra.mxu0 0
      %6858 = vmatpush.bf16.msra.mxu0 %v6806
      %6859 = vmatmul.bf16.gmra.mxu0 %v6821
      %v6860 = vpop.f32.mrf.mxu0
      %v6861 = vadd.f32 0.0, %v6860
      %v6862 = vpop.f32.mrf.mxu0
      %v6863 = vadd.f32 0.0, %v6862
      %6864 = vdwg.mxu0
      %6865 = vmatpush.bf16.msra.mxu0 0
      %6866 = vmatpush.bf16.msra.mxu0 0
      %6867 = vmatpush.bf16.msra.mxu0 0
      %6868 = vmatpush.bf16.msra.mxu0 0
      %6869 = vmatpush.bf16.msra.mxu0 0
      %6870 = vmatpush.bf16.msra.mxu0 0
      %6871 = vmatpush.bf16.msra.mxu0 0
      %6872 = vmatpush.bf16.msra.mxu0 %v6807
      %6873 = vmatmul.bf16.gmra.mxu0 %v6821
      %v6874 = vpop.f32.mrf.mxu0
      %v6875 = vadd.f32 0.0, %v6874
      %v6876 = vpop.f32.mrf.mxu0
      %v6877 = vadd.f32 0.0, %v6876
      %6878 = vdwg.mxu0
      %6879 = vmatpush.bf16.msra.mxu0 0
      %6880 = vmatpush.bf16.msra.mxu0 0
      %6881 = vmatpush.bf16.msra.mxu0 0
      %6882 = vmatpush.bf16.msra.mxu0 0
      %6883 = vmatpush.bf16.msra.mxu0 0
      %6884 = vmatpush.bf16.msra.mxu0 0
      %6885 = vmatpush.bf16.msra.mxu0 0
      %6886 = vmatpush.bf16.msra.mxu0 %v6808
      %6887 = vmatmul.bf16.gmra.mxu0 %v6821
      %v6888 = vpop.f32.mrf.mxu0
      %v6889 = vadd.f32 0.0, %v6888
      %v6890 = vpop.f32.mrf.mxu0
      %v6891 = vadd.f32 0.0, %v6890
      %6892 = vdwg.mxu0
      %6893 = vmatpush.bf16.msra.mxu0 0
      %6894 = vmatpush.bf16.msra.mxu0 0
      %6895 = vmatpush.bf16.msra.mxu0 0
      %6896 = vmatpush.bf16.msra.mxu0 0
      %6897 = vmatpush.bf16.msra.mxu0 0
      %6898 = vmatpush.bf16.msra.mxu0 0
      %6899 = vmatpush.bf16.msra.mxu0 0
      %6900 = vmatpush.bf16.msra.mxu0 %v6809
      %6901 = vmatmul.bf16.gmra.mxu0 %v6821
      %v6902 = vpop.f32.mrf.mxu0
      %v6903 = vadd.f32 0.0, %v6902
      %v6904 = vpop.f32.mrf.mxu0
      %v6905 = vadd.f32 0.0, %v6904
      %6906 = vdwg.mxu0
      %6907 = vmatpush.bf16.msra.mxu0 0
      %6908 = vmatpush.bf16.msra.mxu0 0
      %6909 = vmatpush.bf16.msra.mxu0 0
      %6910 = vmatpush.bf16.msra.mxu0 0
      %6911 = vmatpush.bf16.msra.mxu0 0
      %6912 = vmatpush.bf16.msra.mxu0 0
      %6913 = vmatpush.bf16.msra.mxu0 0
      %6914 = vmatpush.bf16.msra.mxu0 %v6810
      %6915 = vmatmul.bf16.gmra.mxu0 %v6821
      %v6916 = vpop.f32.mrf.mxu0
      %v6917 = vadd.f32 0.0, %v6916
      %v6918 = vpop.f32.mrf.mxu0
      %v6919 = vadd.f32 0.0, %v6918
      %6920 = vdwg.mxu0
      %6921 = vmatpush.bf16.msra.mxu0 0
      %6922 = vmatpush.bf16.msra.mxu0 0
      %6923 = vmatpush.bf16.msra.mxu0 0
      %6924 = vmatpush.bf16.msra.mxu0 0
      %6925 = vmatpush.bf16.msra.mxu0 0
      %6926 = vmatpush.bf16.msra.mxu0 0
      %6927 = vmatpush.bf16.msra.mxu0 0
      %6928 = vmatpush.bf16.msra.mxu0 %v6811
      %6929 = vmatmul.bf16.gmra.mxu0 %v6821
      %v6930 = vpop.f32.mrf.mxu0
      %v6931 = vadd.f32 0.0, %v6930
      %v6932 = vpop.f32.mrf.mxu0
      %v6933 = vadd.f32 0.0, %v6932
      %6934 = vdwg.mxu0
      %v6935 = vadd.f32 %v6762, %v6833
      %v6936 = vadd.f32 %v6763, %v6847
      %v6937 = vadd.f32 %v6764, %v6861
      %v6938 = vadd.f32 %v6765, %v6875
      %v6939 = vadd.f32 %v6766, %v6889
      %v6940 = vadd.f32 %v6767, %v6903
      %v6941 = vadd.f32 %v6768, %v6917
      %v6942 = vadd.f32 %v6769, %v6931
      %v6943 = vadd.f32 %v6770, %v6835
      %v6944 = vadd.f32 %v6771, %v6849
      %v6945 = vadd.f32 %v6772, %v6863
      %v6946 = vadd.f32 %v6773, %v6877
      %v6947 = vadd.f32 %v6774, %v6891
      %v6948 = vadd.f32 %v6775, %v6905
      %v6949 = vadd.f32 %v6776, %v6919
      %v6950 = vadd.f32 %v6777, %v6933
      %s6951 = scalar_lea.vmem %s4, 80
      %v6952 = vld [vmem:[%s6951] sm:$0xf]
      %v6953 = vld [vmem:[%s6951 + $0x4] sm:$0xf]
      %v6956 = vunpack.c.l.b16 %v6952
      %v6957 = vunpack.c.l.b16 %v6953
      %v6958 = vpack.c.b16 %v6957, %v6956
      %6959 = vrot.lane.b32.xlu0 %v5255, 10
      %v6960 = vpop.permute.xlu0 %6959
      %6961 = vrot.lane.b32.xlu0 %v5256, 10
      %v6962 = vpop.permute.xlu0 %6961
      %6963 = vrot.lane.b32.xlu0 %v5257, 10
      %v6964 = vpop.permute.xlu0 %6963
      %6965 = vrot.lane.b32.xlu0 %v5258, 10
      %v6966 = vpop.permute.xlu0 %6965
      %6967 = vrot.lane.b32.xlu0 %v5259, 10
      %v6968 = vpop.permute.xlu0 %6967
      %6969 = vrot.lane.b32.xlu0 %v5260, 10
      %v6970 = vpop.permute.xlu0 %6969
      %6971 = vrot.lane.b32.xlu0 %v5261, 10
      %v6972 = vpop.permute.xlu0 %6971
      %6973 = vrot.lane.b32.xlu0 %v5262, 10
      %v6974 = vpop.permute.xlu0 %6973
      %6975 = vrot.lane.b32.xlu0 %v5263, 10
      %v6976 = vpop.permute.xlu0 %6975
      %v6977 = vsel %vm2045, %v6960, %v6962
      %v6978 = vsel %vm2045, %v6962, %v6964
      %v6979 = vsel %vm2045, %v6964, %v6966
      %v6980 = vsel %vm2045, %v6966, %v6968
      %v6981 = vsel %vm2045, %v6968, %v6970
      %v6982 = vsel %vm2045, %v6970, %v6972
      %v6983 = vsel %vm2045, %v6972, %v6974
      %v6984 = vsel %vm2045, %v6974, %v6976
      %v6994 = vsel %vm356, %v6958, 0
      %6996 = vmatpush.bf16.msra.mxu0 0
      %6997 = vmatpush.bf16.msra.mxu0 0
      %6998 = vmatpush.bf16.msra.mxu0 0
      %6999 = vmatpush.bf16.msra.mxu0 0
      %7000 = vmatpush.bf16.msra.mxu0 0
      %7001 = vmatpush.bf16.msra.mxu0 0
      %7002 = vmatpush.bf16.msra.mxu0 0
      %7003 = vmatpush.bf16.msra.mxu0 %v6977
      %7004 = vmatmul.bf16.gmra.mxu0 %v6994
      %v7005 = vpop.f32.mrf.mxu0
      %v7006 = vadd.f32 0.0, %v7005
      %v7007 = vpop.f32.mrf.mxu0
      %v7008 = vadd.f32 0.0, %v7007
      %7009 = vdwg.mxu0
      %7010 = vmatpush.bf16.msra.mxu0 0
      %7011 = vmatpush.bf16.msra.mxu0 0
      %7012 = vmatpush.bf16.msra.mxu0 0
      %7013 = vmatpush.bf16.msra.mxu0 0
      %7014 = vmatpush.bf16.msra.mxu0 0
      %7015 = vmatpush.bf16.msra.mxu0 0
      %7016 = vmatpush.bf16.msra.mxu0 0
      %7017 = vmatpush.bf16.msra.mxu0 %v6978
      %7018 = vmatmul.bf16.gmra.mxu0 %v6994
      %v7019 = vpop.f32.mrf.mxu0
      %v7020 = vadd.f32 0.0, %v7019
      %v7021 = vpop.f32.mrf.mxu0
      %v7022 = vadd.f32 0.0, %v7021
      %7023 = vdwg.mxu0
      %7024 = vmatpush.bf16.msra.mxu0 0
      %7025 = vmatpush.bf16.msra.mxu0 0
      %7026 = vmatpush.bf16.msra.mxu0 0
      %7027 = vmatpush.bf16.msra.mxu0 0
      %7028 = vmatpush.bf16.msra.mxu0 0
      %7029 = vmatpush.bf16.msra.mxu0 0
      %7030 = vmatpush.bf16.msra.mxu0 0
      %7031 = vmatpush.bf16.msra.mxu0 %v6979
      %7032 = vmatmul.bf16.gmra.mxu0 %v6994
      %v7033 = vpop.f32.mrf.mxu0
      %v7034 = vadd.f32 0.0, %v7033
      %v7035 = vpop.f32.mrf.mxu0
      %v7036 = vadd.f32 0.0, %v7035
      %7037 = vdwg.mxu0
      %7038 = vmatpush.bf16.msra.mxu0 0
      %7039 = vmatpush.bf16.msra.mxu0 0
      %7040 = vmatpush.bf16.msra.mxu0 0
      %7041 = vmatpush.bf16.msra.mxu0 0
      %7042 = vmatpush.bf16.msra.mxu0 0
      %7043 = vmatpush.bf16.msra.mxu0 0
      %7044 = vmatpush.bf16.msra.mxu0 0
      %7045 = vmatpush.bf16.msra.mxu0 %v6980
      %7046 = vmatmul.bf16.gmra.mxu0 %v6994
      %v7047 = vpop.f32.mrf.mxu0
      %v7048 = vadd.f32 0.0, %v7047
      %v7049 = vpop.f32.mrf.mxu0
      %v7050 = vadd.f32 0.0, %v7049
      %7051 = vdwg.mxu0
      %7052 = vmatpush.bf16.msra.mxu0 0
      %7053 = vmatpush.bf16.msra.mxu0 0
      %7054 = vmatpush.bf16.msra.mxu0 0
      %7055 = vmatpush.bf16.msra.mxu0 0
      %7056 = vmatpush.bf16.msra.mxu0 0
      %7057 = vmatpush.bf16.msra.mxu0 0
      %7058 = vmatpush.bf16.msra.mxu0 0
      %7059 = vmatpush.bf16.msra.mxu0 %v6981
      %7060 = vmatmul.bf16.gmra.mxu0 %v6994
      %v7061 = vpop.f32.mrf.mxu0
      %v7062 = vadd.f32 0.0, %v7061
      %v7063 = vpop.f32.mrf.mxu0
      %v7064 = vadd.f32 0.0, %v7063
      %7065 = vdwg.mxu0
      %7066 = vmatpush.bf16.msra.mxu0 0
      %7067 = vmatpush.bf16.msra.mxu0 0
      %7068 = vmatpush.bf16.msra.mxu0 0
      %7069 = vmatpush.bf16.msra.mxu0 0
      %7070 = vmatpush.bf16.msra.mxu0 0
      %7071 = vmatpush.bf16.msra.mxu0 0
      %7072 = vmatpush.bf16.msra.mxu0 0
      %7073 = vmatpush.bf16.msra.mxu0 %v6982
      %7074 = vmatmul.bf16.gmra.mxu0 %v6994
      %v7075 = vpop.f32.mrf.mxu0
      %v7076 = vadd.f32 0.0, %v7075
      %v7077 = vpop.f32.mrf.mxu0
      %v7078 = vadd.f32 0.0, %v7077
      %7079 = vdwg.mxu0
      %7080 = vmatpush.bf16.msra.mxu0 0
      %7081 = vmatpush.bf16.msra.mxu0 0
      %7082 = vmatpush.bf16.msra.mxu0 0
      %7083 = vmatpush.bf16.msra.mxu0 0
      %7084 = vmatpush.bf16.msra.mxu0 0
      %7085 = vmatpush.bf16.msra.mxu0 0
      %7086 = vmatpush.bf16.msra.mxu0 0
      %7087 = vmatpush.bf16.msra.mxu0 %v6983
      %7088 = vmatmul.bf16.gmra.mxu0 %v6994
      %v7089 = vpop.f32.mrf.mxu0
      %v7090 = vadd.f32 0.0, %v7089
      %v7091 = vpop.f32.mrf.mxu0
      %v7092 = vadd.f32 0.0, %v7091
      %7093 = vdwg.mxu0
      %7094 = vmatpush.bf16.msra.mxu0 0
      %7095 = vmatpush.bf16.msra.mxu0 0
      %7096 = vmatpush.bf16.msra.mxu0 0
      %7097 = vmatpush.bf16.msra.mxu0 0
      %7098 = vmatpush.bf16.msra.mxu0 0
      %7099 = vmatpush.bf16.msra.mxu0 0
      %7100 = vmatpush.bf16.msra.mxu0 0
      %7101 = vmatpush.bf16.msra.mxu0 %v6984
      %7102 = vmatmul.bf16.gmra.mxu0 %v6994
      %v7103 = vpop.f32.mrf.mxu0
      %v7104 = vadd.f32 0.0, %v7103
      %v7105 = vpop.f32.mrf.mxu0
      %v7106 = vadd.f32 0.0, %v7105
      %7107 = vdwg.mxu0
      %v7108 = vadd.f32 %v6935, %v7006
      %v7109 = vadd.f32 %v6936, %v7020
      %v7110 = vadd.f32 %v6937, %v7034
      %v7111 = vadd.f32 %v6938, %v7048
      %v7112 = vadd.f32 %v6939, %v7062
      %v7113 = vadd.f32 %v6940, %v7076
      %v7114 = vadd.f32 %v6941, %v7090
      %v7115 = vadd.f32 %v6942, %v7104
      %v7116 = vadd.f32 %v6943, %v7008
      %v7117 = vadd.f32 %v6944, %v7022
      %v7118 = vadd.f32 %v6945, %v7036
      %v7119 = vadd.f32 %v6946, %v7050
      %v7120 = vadd.f32 %v6947, %v7064
      %v7121 = vadd.f32 %v6948, %v7078
      %v7122 = vadd.f32 %v6949, %v7092
      %v7123 = vadd.f32 %v6950, %v7106
      %s7124 = scalar_lea.vmem %s4, 88
      %v7125 = vld [vmem:[%s7124] sm:$0xf]
      %v7126 = vld [vmem:[%s7124 + $0x4] sm:$0xf]
      %v7129 = vunpack.c.l.b16 %v7125
      %v7130 = vunpack.c.l.b16 %v7126
      %v7131 = vpack.c.b16 %v7130, %v7129
      %7132 = vrot.lane.b32.xlu0 %v5255, 9
      %v7133 = vpop.permute.xlu0 %7132
      %7134 = vrot.lane.b32.xlu0 %v5256, 9
      %v7135 = vpop.permute.xlu0 %7134
      %7136 = vrot.lane.b32.xlu0 %v5257, 9
      %v7137 = vpop.permute.xlu0 %7136
      %7138 = vrot.lane.b32.xlu0 %v5258, 9
      %v7139 = vpop.permute.xlu0 %7138
      %7140 = vrot.lane.b32.xlu0 %v5259, 9
      %v7141 = vpop.permute.xlu0 %7140
      %7142 = vrot.lane.b32.xlu0 %v5260, 9
      %v7143 = vpop.permute.xlu0 %7142
      %7144 = vrot.lane.b32.xlu0 %v5261, 9
      %v7145 = vpop.permute.xlu0 %7144
      %7146 = vrot.lane.b32.xlu0 %v5262, 9
      %v7147 = vpop.permute.xlu0 %7146
      %7148 = vrot.lane.b32.xlu0 %v5263, 9
      %v7149 = vpop.permute.xlu0 %7148
      %v7150 = vsel %vm2219, %v7133, %v7135
      %v7151 = vsel %vm2219, %v7135, %v7137
      %v7152 = vsel %vm2219, %v7137, %v7139
      %v7153 = vsel %vm2219, %v7139, %v7141
      %v7154 = vsel %vm2219, %v7141, %v7143
      %v7155 = vsel %vm2219, %v7143, %v7145
      %v7156 = vsel %vm2219, %v7145, %v7147
      %v7157 = vsel %vm2219, %v7147, %v7149
      %v7167 = vsel %vm356, %v7131, 0
      %7169 = vmatpush.bf16.msra.mxu0 0
      %7170 = vmatpush.bf16.msra.mxu0 0
      %7171 = vmatpush.bf16.msra.mxu0 0
      %7172 = vmatpush.bf16.msra.mxu0 0
      %7173 = vmatpush.bf16.msra.mxu0 0
      %7174 = vmatpush.bf16.msra.mxu0 0
      %7175 = vmatpush.bf16.msra.mxu0 0
      %7176 = vmatpush.bf16.msra.mxu0 %v7150
      %7177 = vmatmul.bf16.gmra.mxu0 %v7167
      %v7178 = vpop.f32.mrf.mxu0
      %v7179 = vadd.f32 0.0, %v7178
      %v7180 = vpop.f32.mrf.mxu0
      %v7181 = vadd.f32 0.0, %v7180
      %7182 = vdwg.mxu0
      %7183 = vmatpush.bf16.msra.mxu0 0
      %7184 = vmatpush.bf16.msra.mxu0 0
      %7185 = vmatpush.bf16.msra.mxu0 0
      %7186 = vmatpush.bf16.msra.mxu0 0
      %7187 = vmatpush.bf16.msra.mxu0 0
      %7188 = vmatpush.bf16.msra.mxu0 0
      %7189 = vmatpush.bf16.msra.mxu0 0
      %7190 = vmatpush.bf16.msra.mxu0 %v7151
      %7191 = vmatmul.bf16.gmra.mxu0 %v7167
      %v7192 = vpop.f32.mrf.mxu0
      %v7193 = vadd.f32 0.0, %v7192
      %v7194 = vpop.f32.mrf.mxu0
      %v7195 = vadd.f32 0.0, %v7194
      %7196 = vdwg.mxu0
      %7197 = vmatpush.bf16.msra.mxu0 0
      %7198 = vmatpush.bf16.msra.mxu0 0
      %7199 = vmatpush.bf16.msra.mxu0 0
      %7200 = vmatpush.bf16.msra.mxu0 0
      %7201 = vmatpush.bf16.msra.mxu0 0
      %7202 = vmatpush.bf16.msra.mxu0 0
      %7203 = vmatpush.bf16.msra.mxu0 0
      %7204 = vmatpush.bf16.msra.mxu0 %v7152
      %7205 = vmatmul.bf16.gmra.mxu0 %v7167
      %v7206 = vpop.f32.mrf.mxu0
      %v7207 = vadd.f32 0.0, %v7206
      %v7208 = vpop.f32.mrf.mxu0
      %v7209 = vadd.f32 0.0, %v7208
      %7210 = vdwg.mxu0
      %7211 = vmatpush.bf16.msra.mxu0 0
      %7212 = vmatpush.bf16.msra.mxu0 0
      %7213 = vmatpush.bf16.msra.mxu0 0
      %7214 = vmatpush.bf16.msra.mxu0 0
      %7215 = vmatpush.bf16.msra.mxu0 0
      %7216 = vmatpush.bf16.msra.mxu0 0
      %7217 = vmatpush.bf16.msra.mxu0 0
      %7218 = vmatpush.bf16.msra.mxu0 %v7153
      %7219 = vmatmul.bf16.gmra.mxu0 %v7167
      %v7220 = vpop.f32.mrf.mxu0
      %v7221 = vadd.f32 0.0, %v7220
      %v7222 = vpop.f32.mrf.mxu0
      %v7223 = vadd.f32 0.0, %v7222
      %7224 = vdwg.mxu0
      %7225 = vmatpush.bf16.msra.mxu0 0
      %7226 = vmatpush.bf16.msra.mxu0 0
      %7227 = vmatpush.bf16.msra.mxu0 0
      %7228 = vmatpush.bf16.msra.mxu0 0
      %7229 = vmatpush.bf16.msra.mxu0 0
      %7230 = vmatpush.bf16.msra.mxu0 0
      %7231 = vmatpush.bf16.msra.mxu0 0
      %7232 = vmatpush.bf16.msra.mxu0 %v7154
      %7233 = vmatmul.bf16.gmra.mxu0 %v7167
      %v7234 = vpop.f32.mrf.mxu0
      %v7235 = vadd.f32 0.0, %v7234
      %v7236 = vpop.f32.mrf.mxu0
      %v7237 = vadd.f32 0.0, %v7236
      %7238 = vdwg.mxu0
      %7239 = vmatpush.bf16.msra.mxu0 0
      %7240 = vmatpush.bf16.msra.mxu0 0
      %7241 = vmatpush.bf16.msra.mxu0 0
      %7242 = vmatpush.bf16.msra.mxu0 0
      %7243 = vmatpush.bf16.msra.mxu0 0
      %7244 = vmatpush.bf16.msra.mxu0 0
      %7245 = vmatpush.bf16.msra.mxu0 0
      %7246 = vmatpush.bf16.msra.mxu0 %v7155
      %7247 = vmatmul.bf16.gmra.mxu0 %v7167
      %v7248 = vpop.f32.mrf.mxu0
      %v7249 = vadd.f32 0.0, %v7248
      %v7250 = vpop.f32.mrf.mxu0
      %v7251 = vadd.f32 0.0, %v7250
      %7252 = vdwg.mxu0
      %7253 = vmatpush.bf16.msra.mxu0 0
      %7254 = vmatpush.bf16.msra.mxu0 0
      %7255 = vmatpush.bf16.msra.mxu0 0
      %7256 = vmatpush.bf16.msra.mxu0 0
      %7257 = vmatpush.bf16.msra.mxu0 0
      %7258 = vmatpush.bf16.msra.mxu0 0
      %7259 = vmatpush.bf16.msra.mxu0 0
      %7260 = vmatpush.bf16.msra.mxu0 %v7156
      %7261 = vmatmul.bf16.gmra.mxu0 %v7167
      %v7262 = vpop.f32.mrf.mxu0
      %v7263 = vadd.f32 0.0, %v7262
      %v7264 = vpop.f32.mrf.mxu0
      %v7265 = vadd.f32 0.0, %v7264
      %7266 = vdwg.mxu0
      %7267 = vmatpush.bf16.msra.mxu0 0
      %7268 = vmatpush.bf16.msra.mxu0 0
      %7269 = vmatpush.bf16.msra.mxu0 0
      %7270 = vmatpush.bf16.msra.mxu0 0
      %7271 = vmatpush.bf16.msra.mxu0 0
      %7272 = vmatpush.bf16.msra.mxu0 0
      %7273 = vmatpush.bf16.msra.mxu0 0
      %7274 = vmatpush.bf16.msra.mxu0 %v7157
      %7275 = vmatmul.bf16.gmra.mxu0 %v7167
      %v7276 = vpop.f32.mrf.mxu0
      %v7277 = vadd.f32 0.0, %v7276
      %v7278 = vpop.f32.mrf.mxu0
      %v7279 = vadd.f32 0.0, %v7278
      %7280 = vdwg.mxu0
      %v7281 = vadd.f32 %v7108, %v7179
      %v7282 = vadd.f32 %v7109, %v7193
      %v7283 = vadd.f32 %v7110, %v7207
      %v7284 = vadd.f32 %v7111, %v7221
      %v7285 = vadd.f32 %v7112, %v7235
      %v7286 = vadd.f32 %v7113, %v7249
      %v7287 = vadd.f32 %v7114, %v7263
      %v7288 = vadd.f32 %v7115, %v7277
      %v7289 = vadd.f32 %v7116, %v7181
      %v7290 = vadd.f32 %v7117, %v7195
      %v7291 = vadd.f32 %v7118, %v7209
      %v7292 = vadd.f32 %v7119, %v7223
      %v7293 = vadd.f32 %v7120, %v7237
      %v7294 = vadd.f32 %v7121, %v7251
      %v7295 = vadd.f32 %v7122, %v7265
      %v7296 = vadd.f32 %v7123, %v7279
      %s7297 = scalar_lea.vmem %s4, 96
      %v7298 = vld [vmem:[%s7297] sm:$0xf]
      %v7299 = vld [vmem:[%s7297 + $0x4] sm:$0xf]
      %v7302 = vunpack.c.l.b16 %v7298
      %v7303 = vunpack.c.l.b16 %v7299
      %v7304 = vpack.c.b16 %v7303, %v7302
      %7305 = vrot.lane.b32.xlu0 %v5255, 1
      %v7306 = vpop.permute.xlu0 %7305
      %7307 = vrot.lane.b32.xlu0 %v5256, 1
      %v7308 = vpop.permute.xlu0 %7307
      %7309 = vrot.lane.b32.xlu0 %v5257, 1
      %v7310 = vpop.permute.xlu0 %7309
      %7311 = vrot.lane.b32.xlu0 %v5258, 1
      %v7312 = vpop.permute.xlu0 %7311
      %7313 = vrot.lane.b32.xlu0 %v5259, 1
      %v7314 = vpop.permute.xlu0 %7313
      %7315 = vrot.lane.b32.xlu0 %v5260, 1
      %v7316 = vpop.permute.xlu0 %7315
      %7317 = vrot.lane.b32.xlu0 %v5261, 1
      %v7318 = vpop.permute.xlu0 %7317
      %7319 = vrot.lane.b32.xlu0 %v5262, 1
      %v7320 = vpop.permute.xlu0 %7319
      %7321 = vrot.lane.b32.xlu0 %v5263, 1
      %v7322 = vpop.permute.xlu0 %7321
      %v7323 = vsel %vm2393, %v7306, %v7308
      %v7324 = vsel %vm2393, %v7308, %v7310
      %v7325 = vsel %vm2393, %v7310, %v7312
      %v7326 = vsel %vm2393, %v7312, %v7314
      %v7327 = vsel %vm2393, %v7314, %v7316
      %v7328 = vsel %vm2393, %v7316, %v7318
      %v7329 = vsel %vm2393, %v7318, %v7320
      %v7330 = vsel %vm2393, %v7320, %v7322
      %v7340 = vsel %vm356, %v7304, 0
      %7342 = vmatpush.bf16.msra.mxu0 0
      %7343 = vmatpush.bf16.msra.mxu0 0
      %7344 = vmatpush.bf16.msra.mxu0 0
      %7345 = vmatpush.bf16.msra.mxu0 0
      %7346 = vmatpush.bf16.msra.mxu0 0
      %7347 = vmatpush.bf16.msra.mxu0 0
      %7348 = vmatpush.bf16.msra.mxu0 0
      %7349 = vmatpush.bf16.msra.mxu0 %v7323
      %7350 = vmatmul.bf16.gmra.mxu0 %v7340
      %v7351 = vpop.f32.mrf.mxu0
      %v7352 = vadd.f32 0.0, %v7351
      %v7353 = vpop.f32.mrf.mxu0
      %v7354 = vadd.f32 0.0, %v7353
      %7355 = vdwg.mxu0
      %7356 = vmatpush.bf16.msra.mxu0 0
      %7357 = vmatpush.bf16.msra.mxu0 0
      %7358 = vmatpush.bf16.msra.mxu0 0
      %7359 = vmatpush.bf16.msra.mxu0 0
      %7360 = vmatpush.bf16.msra.mxu0 0
      %7361 = vmatpush.bf16.msra.mxu0 0
      %7362 = vmatpush.bf16.msra.mxu0 0
      %7363 = vmatpush.bf16.msra.mxu0 %v7324
      %7364 = vmatmul.bf16.gmra.mxu0 %v7340
      %v7365 = vpop.f32.mrf.mxu0
      %v7366 = vadd.f32 0.0, %v7365
      %v7367 = vpop.f32.mrf.mxu0
      %v7368 = vadd.f32 0.0, %v7367
      %7369 = vdwg.mxu0
      %7370 = vmatpush.bf16.msra.mxu0 0
      %7371 = vmatpush.bf16.msra.mxu0 0
      %7372 = vmatpush.bf16.msra.mxu0 0
      %7373 = vmatpush.bf16.msra.mxu0 0
      %7374 = vmatpush.bf16.msra.mxu0 0
      %7375 = vmatpush.bf16.msra.mxu0 0
      %7376 = vmatpush.bf16.msra.mxu0 0
      %7377 = vmatpush.bf16.msra.mxu0 %v7325
      %7378 = vmatmul.bf16.gmra.mxu0 %v7340
      %v7379 = vpop.f32.mrf.mxu0
      %v7380 = vadd.f32 0.0, %v7379
      %v7381 = vpop.f32.mrf.mxu0
      %v7382 = vadd.f32 0.0, %v7381
      %7383 = vdwg.mxu0
      %7384 = vmatpush.bf16.msra.mxu0 0
      %7385 = vmatpush.bf16.msra.mxu0 0
      %7386 = vmatpush.bf16.msra.mxu0 0
      %7387 = vmatpush.bf16.msra.mxu0 0
      %7388 = vmatpush.bf16.msra.mxu0 0
      %7389 = vmatpush.bf16.msra.mxu0 0
      %7390 = vmatpush.bf16.msra.mxu0 0
      %7391 = vmatpush.bf16.msra.mxu0 %v7326
      %7392 = vmatmul.bf16.gmra.mxu0 %v7340
      %v7393 = vpop.f32.mrf.mxu0
      %v7394 = vadd.f32 0.0, %v7393
      %v7395 = vpop.f32.mrf.mxu0
      %v7396 = vadd.f32 0.0, %v7395
      %7397 = vdwg.mxu0
      %7398 = vmatpush.bf16.msra.mxu0 0
      %7399 = vmatpush.bf16.msra.mxu0 0
      %7400 = vmatpush.bf16.msra.mxu0 0
      %7401 = vmatpush.bf16.msra.mxu0 0
      %7402 = vmatpush.bf16.msra.mxu0 0
      %7403 = vmatpush.bf16.msra.mxu0 0
      %7404 = vmatpush.bf16.msra.mxu0 0
      %7405 = vmatpush.bf16.msra.mxu0 %v7327
      %7406 = vmatmul.bf16.gmra.mxu0 %v7340
      %v7407 = vpop.f32.mrf.mxu0
      %v7408 = vadd.f32 0.0, %v7407
      %v7409 = vpop.f32.mrf.mxu0
      %v7410 = vadd.f32 0.0, %v7409
      %7411 = vdwg.mxu0
      %7412 = vmatpush.bf16.msra.mxu0 0
      %7413 = vmatpush.bf16.msra.mxu0 0
      %7414 = vmatpush.bf16.msra.mxu0 0
      %7415 = vmatpush.bf16.msra.mxu0 0
      %7416 = vmatpush.bf16.msra.mxu0 0
      %7417 = vmatpush.bf16.msra.mxu0 0
      %7418 = vmatpush.bf16.msra.mxu0 0
      %7419 = vmatpush.bf16.msra.mxu0 %v7328
      %7420 = vmatmul.bf16.gmra.mxu0 %v7340
      %v7421 = vpop.f32.mrf.mxu0
      %v7422 = vadd.f32 0.0, %v7421
      %v7423 = vpop.f32.mrf.mxu0
      %v7424 = vadd.f32 0.0, %v7423
      %7425 = vdwg.mxu0
      %7426 = vmatpush.bf16.msra.mxu0 0
      %7427 = vmatpush.bf16.msra.mxu0 0
      %7428 = vmatpush.bf16.msra.mxu0 0
      %7429 = vmatpush.bf16.msra.mxu0 0
      %7430 = vmatpush.bf16.msra.mxu0 0
      %7431 = vmatpush.bf16.msra.mxu0 0
      %7432 = vmatpush.bf16.msra.mxu0 0
      %7433 = vmatpush.bf16.msra.mxu0 %v7329
      %7434 = vmatmul.bf16.gmra.mxu0 %v7340
      %v7435 = vpop.f32.mrf.mxu0
      %v7436 = vadd.f32 0.0, %v7435
      %v7437 = vpop.f32.mrf.mxu0
      %v7438 = vadd.f32 0.0, %v7437
      %7439 = vdwg.mxu0
      %7440 = vmatpush.bf16.msra.mxu0 0
      %7441 = vmatpush.bf16.msra.mxu0 0
      %7442 = vmatpush.bf16.msra.mxu0 0
      %7443 = vmatpush.bf16.msra.mxu0 0
      %7444 = vmatpush.bf16.msra.mxu0 0
      %7445 = vmatpush.bf16.msra.mxu0 0
      %7446 = vmatpush.bf16.msra.mxu0 0
      %7447 = vmatpush.bf16.msra.mxu0 %v7330
      %7448 = vmatmul.bf16.gmra.mxu0 %v7340
      %v7449 = vpop.f32.mrf.mxu0
      %v7450 = vadd.f32 0.0, %v7449
      %v7451 = vpop.f32.mrf.mxu0
      %v7452 = vadd.f32 0.0, %v7451
      %7453 = vdwg.mxu0
      %v7454 = vadd.f32 %v7281, %v7352
      %v7455 = vadd.f32 %v7282, %v7366
      %v7456 = vadd.f32 %v7283, %v7380
      %v7457 = vadd.f32 %v7284, %v7394
      %v7458 = vadd.f32 %v7285, %v7408
      %v7459 = vadd.f32 %v7286, %v7422
      %v7460 = vadd.f32 %v7287, %v7436
      %v7461 = vadd.f32 %v7288, %v7450
      %v7462 = vadd.f32 %v7289, %v7354
      %v7463 = vadd.f32 %v7290, %v7368
      %v7464 = vadd.f32 %v7291, %v7382
      %v7465 = vadd.f32 %v7292, %v7396
      %v7466 = vadd.f32 %v7293, %v7410
      %v7467 = vadd.f32 %v7294, %v7424
      %v7468 = vadd.f32 %v7295, %v7438
      %v7469 = vadd.f32 %v7296, %v7452
      %s7470 = scalar_lea.vmem %s4, 104
      %v7471 = vld [vmem:[%s7470] sm:$0xf]
      %v7472 = vld [vmem:[%s7470 + $0x4] sm:$0xf]
      %v7475 = vunpack.c.l.b16 %v7471
      %v7476 = vunpack.c.l.b16 %v7472
      %v7477 = vpack.c.b16 %v7476, %v7475
      %v7487 = vsel %vm356, %v7477, 0
      %7489 = vmatpush.bf16.msra.mxu0 0
      %7490 = vmatpush.bf16.msra.mxu0 0
      %7491 = vmatpush.bf16.msra.mxu0 0
      %7492 = vmatpush.bf16.msra.mxu0 0
      %7493 = vmatpush.bf16.msra.mxu0 0
      %7494 = vmatpush.bf16.msra.mxu0 0
      %7495 = vmatpush.bf16.msra.mxu0 0
      %7496 = vmatpush.bf16.msra.mxu0 %v5256
      %7497 = vmatmul.bf16.gmra.mxu0 %v7487
      %v7498 = vpop.f32.mrf.mxu0
      %v7499 = vadd.f32 0.0, %v7498
      %v7500 = vpop.f32.mrf.mxu0
      %v7501 = vadd.f32 0.0, %v7500
      %7502 = vdwg.mxu0
      %7503 = vmatpush.bf16.msra.mxu0 0
      %7504 = vmatpush.bf16.msra.mxu0 0
      %7505 = vmatpush.bf16.msra.mxu0 0
      %7506 = vmatpush.bf16.msra.mxu0 0
      %7507 = vmatpush.bf16.msra.mxu0 0
      %7508 = vmatpush.bf16.msra.mxu0 0
      %7509 = vmatpush.bf16.msra.mxu0 0
      %7510 = vmatpush.bf16.msra.mxu0 %v5257
      %7511 = vmatmul.bf16.gmra.mxu0 %v7487
      %v7512 = vpop.f32.mrf.mxu0
      %v7513 = vadd.f32 0.0, %v7512
      %v7514 = vpop.f32.mrf.mxu0
      %v7515 = vadd.f32 0.0, %v7514
      %7516 = vdwg.mxu0
      %7517 = vmatpush.bf16.msra.mxu0 0
      %7518 = vmatpush.bf16.msra.mxu0 0
      %7519 = vmatpush.bf16.msra.mxu0 0
      %7520 = vmatpush.bf16.msra.mxu0 0
      %7521 = vmatpush.bf16.msra.mxu0 0
      %7522 = vmatpush.bf16.msra.mxu0 0
      %7523 = vmatpush.bf16.msra.mxu0 0
      %7524 = vmatpush.bf16.msra.mxu0 %v5258
      %7525 = vmatmul.bf16.gmra.mxu0 %v7487
      %v7526 = vpop.f32.mrf.mxu0
      %v7527 = vadd.f32 0.0, %v7526
      %v7528 = vpop.f32.mrf.mxu0
      %v7529 = vadd.f32 0.0, %v7528
      %7530 = vdwg.mxu0
      %7531 = vmatpush.bf16.msra.mxu0 0
      %7532 = vmatpush.bf16.msra.mxu0 0
      %7533 = vmatpush.bf16.msra.mxu0 0
      %7534 = vmatpush.bf16.msra.mxu0 0
      %7535 = vmatpush.bf16.msra.mxu0 0
      %7536 = vmatpush.bf16.msra.mxu0 0
      %7537 = vmatpush.bf16.msra.mxu0 0
      %7538 = vmatpush.bf16.msra.mxu0 %v5259
      %7539 = vmatmul.bf16.gmra.mxu0 %v7487
      %v7540 = vpop.f32.mrf.mxu0
      %v7541 = vadd.f32 0.0, %v7540
      %v7542 = vpop.f32.mrf.mxu0
      %v7543 = vadd.f32 0.0, %v7542
      %7544 = vdwg.mxu0
      %7545 = vmatpush.bf16.msra.mxu0 0
      %7546 = vmatpush.bf16.msra.mxu0 0
      %7547 = vmatpush.bf16.msra.mxu0 0
      %7548 = vmatpush.bf16.msra.mxu0 0
      %7549 = vmatpush.bf16.msra.mxu0 0
      %7550 = vmatpush.bf16.msra.mxu0 0
      %7551 = vmatpush.bf16.msra.mxu0 0
      %7552 = vmatpush.bf16.msra.mxu0 %v5260
      %7553 = vmatmul.bf16.gmra.mxu0 %v7487
      %v7554 = vpop.f32.mrf.mxu0
      %v7555 = vadd.f32 0.0, %v7554
      %v7556 = vpop.f32.mrf.mxu0
      %v7557 = vadd.f32 0.0, %v7556
      %7558 = vdwg.mxu0
      %7559 = vmatpush.bf16.msra.mxu0 0
      %7560 = vmatpush.bf16.msra.mxu0 0
      %7561 = vmatpush.bf16.msra.mxu0 0
      %7562 = vmatpush.bf16.msra.mxu0 0
      %7563 = vmatpush.bf16.msra.mxu0 0
      %7564 = vmatpush.bf16.msra.mxu0 0
      %7565 = vmatpush.bf16.msra.mxu0 0
      %7566 = vmatpush.bf16.msra.mxu0 %v5261
      %7567 = vmatmul.bf16.gmra.mxu0 %v7487
      %v7568 = vpop.f32.mrf.mxu0
      %v7569 = vadd.f32 0.0, %v7568
      %v7570 = vpop.f32.mrf.mxu0
      %v7571 = vadd.f32 0.0, %v7570
      %7572 = vdwg.mxu0
      %7573 = vmatpush.bf16.msra.mxu0 0
      %7574 = vmatpush.bf16.msra.mxu0 0
      %7575 = vmatpush.bf16.msra.mxu0 0
      %7576 = vmatpush.bf16.msra.mxu0 0
      %7577 = vmatpush.bf16.msra.mxu0 0
      %7578 = vmatpush.bf16.msra.mxu0 0
      %7579 = vmatpush.bf16.msra.mxu0 0
      %7580 = vmatpush.bf16.msra.mxu0 %v5262
      %7581 = vmatmul.bf16.gmra.mxu0 %v7487
      %v7582 = vpop.f32.mrf.mxu0
      %v7583 = vadd.f32 0.0, %v7582
      %v7584 = vpop.f32.mrf.mxu0
      %v7585 = vadd.f32 0.0, %v7584
      %7586 = vdwg.mxu0
      %7587 = vmatpush.bf16.msra.mxu0 0
      %7588 = vmatpush.bf16.msra.mxu0 0
      %7589 = vmatpush.bf16.msra.mxu0 0
      %7590 = vmatpush.bf16.msra.mxu0 0
      %7591 = vmatpush.bf16.msra.mxu0 0
      %7592 = vmatpush.bf16.msra.mxu0 0
      %7593 = vmatpush.bf16.msra.mxu0 0
      %7594 = vmatpush.bf16.msra.mxu0 %v5263
      %7595 = vmatmul.bf16.gmra.mxu0 %v7487
      %v7596 = vpop.f32.mrf.mxu0
      %v7597 = vadd.f32 0.0, %v7596
      %v7598 = vpop.f32.mrf.mxu0
      %v7599 = vadd.f32 0.0, %v7598
      %7600 = vdwg.mxu0
      %v7601 = vadd.f32 %v7454, %v7499
      %v7602 = vadd.f32 %v7455, %v7513
      %v7603 = vadd.f32 %v7456, %v7527
      %v7604 = vadd.f32 %v7457, %v7541
      %v7605 = vadd.f32 %v7458, %v7555
      %v7606 = vadd.f32 %v7459, %v7569
      %v7607 = vadd.f32 %v7460, %v7583
      %v7608 = vadd.f32 %v7461, %v7597
      %v7609 = vadd.f32 %v7462, %v7501
      %v7610 = vadd.f32 %v7463, %v7515
      %v7611 = vadd.f32 %v7464, %v7529
      %v7612 = vadd.f32 %v7465, %v7543
      %v7613 = vadd.f32 %v7466, %v7557
      %v7614 = vadd.f32 %v7467, %v7571
      %v7615 = vadd.f32 %v7468, %v7585
      %v7616 = vadd.f32 %v7469, %v7599
      %s7617 = scalar_lea.vmem %s4, 112
      %v7618 = vld [vmem:[%s7617] sm:$0xf]
      %v7619 = vld [vmem:[%s7617 + $0x4] sm:$0xf]
      %v7622 = vunpack.c.l.b16 %v7618
      %v7623 = vunpack.c.l.b16 %v7619
      %v7624 = vpack.c.b16 %v7623, %v7622
      %v7625 = vunpack.c.h.b16 %v5211
      %v7626 = vunpack.c.h.b16 %v5216
      %v7627 = vpack.c.b16 %v7626, %v7625
      %7628 = vrot.lane.b32.xlu0 %v5256, 127
      %v7629 = vpop.permute.xlu0 %7628
      %7630 = vrot.lane.b32.xlu0 %v5257, 127
      %v7631 = vpop.permute.xlu0 %7630
      %7632 = vrot.lane.b32.xlu0 %v5258, 127
      %v7633 = vpop.permute.xlu0 %7632
      %7634 = vrot.lane.b32.xlu0 %v5259, 127
      %v7635 = vpop.permute.xlu0 %7634
      %7636 = vrot.lane.b32.xlu0 %v5260, 127
      %v7637 = vpop.permute.xlu0 %7636
      %7638 = vrot.lane.b32.xlu0 %v5261, 127
      %v7639 = vpop.permute.xlu0 %7638
      %7640 = vrot.lane.b32.xlu0 %v5262, 127
      %v7641 = vpop.permute.xlu0 %7640
      %7642 = vrot.lane.b32.xlu0 %v5263, 127
      %v7643 = vpop.permute.xlu0 %7642
      %7644 = vrot.lane.b32.xlu0 %v7627, 127
      %v7645 = vpop.permute.xlu0 %7644
      %v7646 = vsel %vm2717, %v7629, %v7631
      %v7647 = vsel %vm2717, %v7631, %v7633
      %v7648 = vsel %vm2717, %v7633, %v7635
      %v7649 = vsel %vm2717, %v7635, %v7637
      %v7650 = vsel %vm2717, %v7637, %v7639
      %v7651 = vsel %vm2717, %v7639, %v7641
      %v7652 = vsel %vm2717, %v7641, %v7643
      %v7653 = vsel %vm2717, %v7643, %v7645
      %v7663 = vsel %vm356, %v7624, 0
      %7665 = vmatpush.bf16.msra.mxu0 0
      %7666 = vmatpush.bf16.msra.mxu0 0
      %7667 = vmatpush.bf16.msra.mxu0 0
      %7668 = vmatpush.bf16.msra.mxu0 0
      %7669 = vmatpush.bf16.msra.mxu0 0
      %7670 = vmatpush.bf16.msra.mxu0 0
      %7671 = vmatpush.bf16.msra.mxu0 0
      %7672 = vmatpush.bf16.msra.mxu0 %v7646
      %7673 = vmatmul.bf16.gmra.mxu0 %v7663
      %v7674 = vpop.f32.mrf.mxu0
      %v7675 = vadd.f32 0.0, %v7674
      %v7676 = vpop.f32.mrf.mxu0
      %v7677 = vadd.f32 0.0, %v7676
      %7678 = vdwg.mxu0
      %7679 = vmatpush.bf16.msra.mxu0 0
      %7680 = vmatpush.bf16.msra.mxu0 0
      %7681 = vmatpush.bf16.msra.mxu0 0
      %7682 = vmatpush.bf16.msra.mxu0 0
      %7683 = vmatpush.bf16.msra.mxu0 0
      %7684 = vmatpush.bf16.msra.mxu0 0
      %7685 = vmatpush.bf16.msra.mxu0 0
      %7686 = vmatpush.bf16.msra.mxu0 %v7647
      %7687 = vmatmul.bf16.gmra.mxu0 %v7663
      %v7688 = vpop.f32.mrf.mxu0
      %v7689 = vadd.f32 0.0, %v7688
      %v7690 = vpop.f32.mrf.mxu0
      %v7691 = vadd.f32 0.0, %v7690
      %7692 = vdwg.mxu0
      %7693 = vmatpush.bf16.msra.mxu0 0
      %7694 = vmatpush.bf16.msra.mxu0 0
      %7695 = vmatpush.bf16.msra.mxu0 0
      %7696 = vmatpush.bf16.msra.mxu0 0
      %7697 = vmatpush.bf16.msra.mxu0 0
      %7698 = vmatpush.bf16.msra.mxu0 0
      %7699 = vmatpush.bf16.msra.mxu0 0
      %7700 = vmatpush.bf16.msra.mxu0 %v7648
      %7701 = vmatmul.bf16.gmra.mxu0 %v7663
      %v7702 = vpop.f32.mrf.mxu0
      %v7703 = vadd.f32 0.0, %v7702
      %v7704 = vpop.f32.mrf.mxu0
      %v7705 = vadd.f32 0.0, %v7704
      %7706 = vdwg.mxu0
      %7707 = vmatpush.bf16.msra.mxu0 0
      %7708 = vmatpush.bf16.msra.mxu0 0
      %7709 = vmatpush.bf16.msra.mxu0 0
      %7710 = vmatpush.bf16.msra.mxu0 0
      %7711 = vmatpush.bf16.msra.mxu0 0
      %7712 = vmatpush.bf16.msra.mxu0 0
      %7713 = vmatpush.bf16.msra.mxu0 0
      %7714 = vmatpush.bf16.msra.mxu0 %v7649
      %7715 = vmatmul.bf16.gmra.mxu0 %v7663
      %v7716 = vpop.f32.mrf.mxu0
      %v7717 = vadd.f32 0.0, %v7716
      %v7718 = vpop.f32.mrf.mxu0
      %v7719 = vadd.f32 0.0, %v7718
      %7720 = vdwg.mxu0
      %7721 = vmatpush.bf16.msra.mxu0 0
      %7722 = vmatpush.bf16.msra.mxu0 0
      %7723 = vmatpush.bf16.msra.mxu0 0
      %7724 = vmatpush.bf16.msra.mxu0 0
      %7725 = vmatpush.bf16.msra.mxu0 0
      %7726 = vmatpush.bf16.msra.mxu0 0
      %7727 = vmatpush.bf16.msra.mxu0 0
      %7728 = vmatpush.bf16.msra.mxu0 %v7650
      %7729 = vmatmul.bf16.gmra.mxu0 %v7663
      %v7730 = vpop.f32.mrf.mxu0
      %v7731 = vadd.f32 0.0, %v7730
      %v7732 = vpop.f32.mrf.mxu0
      %v7733 = vadd.f32 0.0, %v7732
      %7734 = vdwg.mxu0
      %7735 = vmatpush.bf16.msra.mxu0 0
      %7736 = vmatpush.bf16.msra.mxu0 0
      %7737 = vmatpush.bf16.msra.mxu0 0
      %7738 = vmatpush.bf16.msra.mxu0 0
      %7739 = vmatpush.bf16.msra.mxu0 0
      %7740 = vmatpush.bf16.msra.mxu0 0
      %7741 = vmatpush.bf16.msra.mxu0 0
      %7742 = vmatpush.bf16.msra.mxu0 %v7651
      %7743 = vmatmul.bf16.gmra.mxu0 %v7663
      %v7744 = vpop.f32.mrf.mxu0
      %v7745 = vadd.f32 0.0, %v7744
      %v7746 = vpop.f32.mrf.mxu0
      %v7747 = vadd.f32 0.0, %v7746
      %7748 = vdwg.mxu0
      %7749 = vmatpush.bf16.msra.mxu0 0
      %7750 = vmatpush.bf16.msra.mxu0 0
      %7751 = vmatpush.bf16.msra.mxu0 0
      %7752 = vmatpush.bf16.msra.mxu0 0
      %7753 = vmatpush.bf16.msra.mxu0 0
      %7754 = vmatpush.bf16.msra.mxu0 0
      %7755 = vmatpush.bf16.msra.mxu0 0
      %7756 = vmatpush.bf16.msra.mxu0 %v7652
      %7757 = vmatmul.bf16.gmra.mxu0 %v7663
      %v7758 = vpop.f32.mrf.mxu0
      %v7759 = vadd.f32 0.0, %v7758
      %v7760 = vpop.f32.mrf.mxu0
      %v7761 = vadd.f32 0.0, %v7760
      %7762 = vdwg.mxu0
      %7763 = vmatpush.bf16.msra.mxu0 0
      %7764 = vmatpush.bf16.msra.mxu0 0
      %7765 = vmatpush.bf16.msra.mxu0 0
      %7766 = vmatpush.bf16.msra.mxu0 0
      %7767 = vmatpush.bf16.msra.mxu0 0
      %7768 = vmatpush.bf16.msra.mxu0 0
      %7769 = vmatpush.bf16.msra.mxu0 0
      %7770 = vmatpush.bf16.msra.mxu0 %v7653
      %7771 = vmatmul.bf16.gmra.mxu0 %v7663
      %v7772 = vpop.f32.mrf.mxu0
      %v7773 = vadd.f32 0.0, %v7772
      %v7774 = vpop.f32.mrf.mxu0
      %v7775 = vadd.f32 0.0, %v7774
      %7776 = vdwg.mxu0
      %v7777 = vadd.f32 %v7601, %v7675
      %v7778 = vadd.f32 %v7602, %v7689
      %v7779 = vadd.f32 %v7603, %v7703
      %v7780 = vadd.f32 %v7604, %v7717
      %v7781 = vadd.f32 %v7605, %v7731
      %v7782 = vadd.f32 %v7606, %v7745
      %v7783 = vadd.f32 %v7607, %v7759
      %v7784 = vadd.f32 %v7608, %v7773
      %v7785 = vadd.f32 %v7609, %v7677
      %v7786 = vadd.f32 %v7610, %v7691
      %v7787 = vadd.f32 %v7611, %v7705
      %v7788 = vadd.f32 %v7612, %v7719
      %v7789 = vadd.f32 %v7613, %v7733
      %v7790 = vadd.f32 %v7614, %v7747
      %v7791 = vadd.f32 %v7615, %v7761
      %v7792 = vadd.f32 %v7616, %v7775
      %s7793 = scalar_lea.vmem %s4, 120
      %v7794 = vld [vmem:[%s7793] sm:$0xf]
      %v7795 = vld [vmem:[%s7793 + $0x4] sm:$0xf]
      %v7798 = vunpack.c.l.b16 %v7794
      %v7799 = vunpack.c.l.b16 %v7795
      %v7800 = vpack.c.b16 %v7799, %v7798
      %7801 = vrot.lane.b32.xlu0 %v5256, 119
      %v7802 = vpop.permute.xlu0 %7801
      %7803 = vrot.lane.b32.xlu0 %v5257, 119
      %v7804 = vpop.permute.xlu0 %7803
      %7805 = vrot.lane.b32.xlu0 %v5258, 119
      %v7806 = vpop.permute.xlu0 %7805
      %7807 = vrot.lane.b32.xlu0 %v5259, 119
      %v7808 = vpop.permute.xlu0 %7807
      %7809 = vrot.lane.b32.xlu0 %v5260, 119
      %v7810 = vpop.permute.xlu0 %7809
      %7811 = vrot.lane.b32.xlu0 %v5261, 119
      %v7812 = vpop.permute.xlu0 %7811
      %7813 = vrot.lane.b32.xlu0 %v5262, 119
      %v7814 = vpop.permute.xlu0 %7813
      %7815 = vrot.lane.b32.xlu0 %v5263, 119
      %v7816 = vpop.permute.xlu0 %7815
      %7817 = vrot.lane.b32.xlu0 %v7627, 119
      %v7818 = vpop.permute.xlu0 %7817
      %v7819 = vsel %vm2891, %v7802, %v7804
      %v7820 = vsel %vm2891, %v7804, %v7806
      %v7821 = vsel %vm2891, %v7806, %v7808
      %v7822 = vsel %vm2891, %v7808, %v7810
      %v7823 = vsel %vm2891, %v7810, %v7812
      %v7824 = vsel %vm2891, %v7812, %v7814
      %v7825 = vsel %vm2891, %v7814, %v7816
      %v7826 = vsel %vm2891, %v7816, %v7818
      %v7836 = vsel %vm356, %v7800, 0
      %7838 = vmatpush.bf16.msra.mxu0 0
      %7839 = vmatpush.bf16.msra.mxu0 0
      %7840 = vmatpush.bf16.msra.mxu0 0
      %7841 = vmatpush.bf16.msra.mxu0 0
      %7842 = vmatpush.bf16.msra.mxu0 0
      %7843 = vmatpush.bf16.msra.mxu0 0
      %7844 = vmatpush.bf16.msra.mxu0 0
      %7845 = vmatpush.bf16.msra.mxu0 %v7819
      %7846 = vmatmul.bf16.gmra.mxu0 %v7836
      %v7847 = vpop.f32.mrf.mxu0
      %v7848 = vadd.f32 0.0, %v7847
      %v7849 = vpop.f32.mrf.mxu0
      %v7850 = vadd.f32 0.0, %v7849
      %7851 = vdwg.mxu0
      %7852 = vmatpush.bf16.msra.mxu0 0
      %7853 = vmatpush.bf16.msra.mxu0 0
      %7854 = vmatpush.bf16.msra.mxu0 0
      %7855 = vmatpush.bf16.msra.mxu0 0
      %7856 = vmatpush.bf16.msra.mxu0 0
      %7857 = vmatpush.bf16.msra.mxu0 0
      %7858 = vmatpush.bf16.msra.mxu0 0
      %7859 = vmatpush.bf16.msra.mxu0 %v7820
      %7860 = vmatmul.bf16.gmra.mxu0 %v7836
      %v7861 = vpop.f32.mrf.mxu0
      %v7862 = vadd.f32 0.0, %v7861
      %v7863 = vpop.f32.mrf.mxu0
      %v7864 = vadd.f32 0.0, %v7863
      %7865 = vdwg.mxu0
      %7866 = vmatpush.bf16.msra.mxu0 0
      %7867 = vmatpush.bf16.msra.mxu0 0
      %7868 = vmatpush.bf16.msra.mxu0 0
      %7869 = vmatpush.bf16.msra.mxu0 0
      %7870 = vmatpush.bf16.msra.mxu0 0
      %7871 = vmatpush.bf16.msra.mxu0 0
      %7872 = vmatpush.bf16.msra.mxu0 0
      %7873 = vmatpush.bf16.msra.mxu0 %v7821
      %7874 = vmatmul.bf16.gmra.mxu0 %v7836
      %v7875 = vpop.f32.mrf.mxu0
      %v7876 = vadd.f32 0.0, %v7875
      %v7877 = vpop.f32.mrf.mxu0
      %v7878 = vadd.f32 0.0, %v7877
      %7879 = vdwg.mxu0
      %7880 = vmatpush.bf16.msra.mxu0 0
      %7881 = vmatpush.bf16.msra.mxu0 0
      %7882 = vmatpush.bf16.msra.mxu0 0
      %7883 = vmatpush.bf16.msra.mxu0 0
      %7884 = vmatpush.bf16.msra.mxu0 0
      %7885 = vmatpush.bf16.msra.mxu0 0
      %7886 = vmatpush.bf16.msra.mxu0 0
      %7887 = vmatpush.bf16.msra.mxu0 %v7822
      %7888 = vmatmul.bf16.gmra.mxu0 %v7836
      %v7889 = vpop.f32.mrf.mxu0
      %v7890 = vadd.f32 0.0, %v7889
      %v7891 = vpop.f32.mrf.mxu0
      %v7892 = vadd.f32 0.0, %v7891
      %7893 = vdwg.mxu0
      %7894 = vmatpush.bf16.msra.mxu0 0
      %7895 = vmatpush.bf16.msra.mxu0 0
      %7896 = vmatpush.bf16.msra.mxu0 0
      %7897 = vmatpush.bf16.msra.mxu0 0
      %7898 = vmatpush.bf16.msra.mxu0 0
      %7899 = vmatpush.bf16.msra.mxu0 0
      %7900 = vmatpush.bf16.msra.mxu0 0
      %7901 = vmatpush.bf16.msra.mxu0 %v7823
      %7902 = vmatmul.bf16.gmra.mxu0 %v7836
      %v7903 = vpop.f32.mrf.mxu0
      %v7904 = vadd.f32 0.0, %v7903
      %v7905 = vpop.f32.mrf.mxu0
      %v7906 = vadd.f32 0.0, %v7905
      %7907 = vdwg.mxu0
      %7908 = vmatpush.bf16.msra.mxu0 0
      %7909 = vmatpush.bf16.msra.mxu0 0
      %7910 = vmatpush.bf16.msra.mxu0 0
      %7911 = vmatpush.bf16.msra.mxu0 0
      %7912 = vmatpush.bf16.msra.mxu0 0
      %7913 = vmatpush.bf16.msra.mxu0 0
      %7914 = vmatpush.bf16.msra.mxu0 0
      %7915 = vmatpush.bf16.msra.mxu0 %v7824
      %7916 = vmatmul.bf16.gmra.mxu0 %v7836
      %v7917 = vpop.f32.mrf.mxu0
      %v7918 = vadd.f32 0.0, %v7917
      %v7919 = vpop.f32.mrf.mxu0
      %v7920 = vadd.f32 0.0, %v7919
      %7921 = vdwg.mxu0
      %7922 = vmatpush.bf16.msra.mxu0 0
      %7923 = vmatpush.bf16.msra.mxu0 0
      %7924 = vmatpush.bf16.msra.mxu0 0
      %7925 = vmatpush.bf16.msra.mxu0 0
      %7926 = vmatpush.bf16.msra.mxu0 0
      %7927 = vmatpush.bf16.msra.mxu0 0
      %7928 = vmatpush.bf16.msra.mxu0 0
      %7929 = vmatpush.bf16.msra.mxu0 %v7825
      %7930 = vmatmul.bf16.gmra.mxu0 %v7836
      %v7931 = vpop.f32.mrf.mxu0
      %v7932 = vadd.f32 0.0, %v7931
      %v7933 = vpop.f32.mrf.mxu0
      %v7934 = vadd.f32 0.0, %v7933
      %7935 = vdwg.mxu0
      %7936 = vmatpush.bf16.msra.mxu0 0
      %7937 = vmatpush.bf16.msra.mxu0 0
      %7938 = vmatpush.bf16.msra.mxu0 0
      %7939 = vmatpush.bf16.msra.mxu0 0
      %7940 = vmatpush.bf16.msra.mxu0 0
      %7941 = vmatpush.bf16.msra.mxu0 0
      %7942 = vmatpush.bf16.msra.mxu0 0
      %7943 = vmatpush.bf16.msra.mxu0 %v7826
      %7944 = vmatmul.bf16.gmra.mxu0 %v7836
      %v7945 = vpop.f32.mrf.mxu0
      %v7946 = vadd.f32 0.0, %v7945
      %v7947 = vpop.f32.mrf.mxu0
      %v7948 = vadd.f32 0.0, %v7947
      %7949 = vdwg.mxu0
      %v7950 = vadd.f32 %v7777, %v7848
      %v7951 = vadd.f32 %v7778, %v7862
      %v7952 = vadd.f32 %v7779, %v7876
      %v7953 = vadd.f32 %v7780, %v7890
      %v7954 = vadd.f32 %v7781, %v7904
      %v7955 = vadd.f32 %v7782, %v7918
      %v7956 = vadd.f32 %v7783, %v7932
      %v7957 = vadd.f32 %v7784, %v7946
      %v7958 = vadd.f32 %v7785, %v7850
      %v7959 = vadd.f32 %v7786, %v7864
      %v7960 = vadd.f32 %v7787, %v7878
      %v7961 = vadd.f32 %v7788, %v7892
      %v7962 = vadd.f32 %v7789, %v7906
      %v7963 = vadd.f32 %v7790, %v7920
      %v7964 = vadd.f32 %v7791, %v7934
      %v7965 = vadd.f32 %v7792, %v7948
      %s7966 = scalar_lea.vmem %s4, 128
      %v7967 = vld [vmem:[%s7966] sm:$0xf]
      %v7968 = vld [vmem:[%s7966 + $0x4] sm:$0xf]
      %v7971 = vunpack.c.l.b16 %v7967
      %v7972 = vunpack.c.l.b16 %v7968
      %v7973 = vpack.c.b16 %v7972, %v7971
      %7974 = vrot.lane.b32.xlu0 %v5256, 118
      %v7975 = vpop.permute.xlu0 %7974
      %7976 = vrot.lane.b32.xlu0 %v5257, 118
      %v7977 = vpop.permute.xlu0 %7976
      %7978 = vrot.lane.b32.xlu0 %v5258, 118
      %v7979 = vpop.permute.xlu0 %7978
      %7980 = vrot.lane.b32.xlu0 %v5259, 118
      %v7981 = vpop.permute.xlu0 %7980
      %7982 = vrot.lane.b32.xlu0 %v5260, 118
      %v7983 = vpop.permute.xlu0 %7982
      %7984 = vrot.lane.b32.xlu0 %v5261, 118
      %v7985 = vpop.permute.xlu0 %7984
      %7986 = vrot.lane.b32.xlu0 %v5262, 118
      %v7987 = vpop.permute.xlu0 %7986
      %7988 = vrot.lane.b32.xlu0 %v5263, 118
      %v7989 = vpop.permute.xlu0 %7988
      %7990 = vrot.lane.b32.xlu0 %v7627, 118
      %v7991 = vpop.permute.xlu0 %7990
      %v7992 = vsel %vm3065, %v7975, %v7977
      %v7993 = vsel %vm3065, %v7977, %v7979
      %v7994 = vsel %vm3065, %v7979, %v7981
      %v7995 = vsel %vm3065, %v7981, %v7983
      %v7996 = vsel %vm3065, %v7983, %v7985
      %v7997 = vsel %vm3065, %v7985, %v7987
      %v7998 = vsel %vm3065, %v7987, %v7989
      %v7999 = vsel %vm3065, %v7989, %v7991
      %v8009 = vsel %vm356, %v7973, 0
      %8011 = vmatpush.bf16.msra.mxu0 0
      %8012 = vmatpush.bf16.msra.mxu0 0
      %8013 = vmatpush.bf16.msra.mxu0 0
      %8014 = vmatpush.bf16.msra.mxu0 0
      %8015 = vmatpush.bf16.msra.mxu0 0
      %8016 = vmatpush.bf16.msra.mxu0 0
      %8017 = vmatpush.bf16.msra.mxu0 0
      %8018 = vmatpush.bf16.msra.mxu0 %v7992
      %8019 = vmatmul.bf16.gmra.mxu0 %v8009
      %v8020 = vpop.f32.mrf.mxu0
      %v8021 = vadd.f32 0.0, %v8020
      %v8022 = vpop.f32.mrf.mxu0
      %v8023 = vadd.f32 0.0, %v8022
      %8024 = vdwg.mxu0
      %8025 = vmatpush.bf16.msra.mxu0 0
      %8026 = vmatpush.bf16.msra.mxu0 0
      %8027 = vmatpush.bf16.msra.mxu0 0
      %8028 = vmatpush.bf16.msra.mxu0 0
      %8029 = vmatpush.bf16.msra.mxu0 0
      %8030 = vmatpush.bf16.msra.mxu0 0
      %8031 = vmatpush.bf16.msra.mxu0 0
      %8032 = vmatpush.bf16.msra.mxu0 %v7993
      %8033 = vmatmul.bf16.gmra.mxu0 %v8009
      %v8034 = vpop.f32.mrf.mxu0
      %v8035 = vadd.f32 0.0, %v8034
      %v8036 = vpop.f32.mrf.mxu0
      %v8037 = vadd.f32 0.0, %v8036
      %8038 = vdwg.mxu0
      %8039 = vmatpush.bf16.msra.mxu0 0
      %8040 = vmatpush.bf16.msra.mxu0 0
      %8041 = vmatpush.bf16.msra.mxu0 0
      %8042 = vmatpush.bf16.msra.mxu0 0
      %8043 = vmatpush.bf16.msra.mxu0 0
      %8044 = vmatpush.bf16.msra.mxu0 0
      %8045 = vmatpush.bf16.msra.mxu0 0
      %8046 = vmatpush.bf16.msra.mxu0 %v7994
      %8047 = vmatmul.bf16.gmra.mxu0 %v8009
      %v8048 = vpop.f32.mrf.mxu0
      %v8049 = vadd.f32 0.0, %v8048
      %v8050 = vpop.f32.mrf.mxu0
      %v8051 = vadd.f32 0.0, %v8050
      %8052 = vdwg.mxu0
      %8053 = vmatpush.bf16.msra.mxu0 0
      %8054 = vmatpush.bf16.msra.mxu0 0
      %8055 = vmatpush.bf16.msra.mxu0 0
      %8056 = vmatpush.bf16.msra.mxu0 0
      %8057 = vmatpush.bf16.msra.mxu0 0
      %8058 = vmatpush.bf16.msra.mxu0 0
      %8059 = vmatpush.bf16.msra.mxu0 0
      %8060 = vmatpush.bf16.msra.mxu0 %v7995
      %8061 = vmatmul.bf16.gmra.mxu0 %v8009
      %v8062 = vpop.f32.mrf.mxu0
      %v8063 = vadd.f32 0.0, %v8062
      %v8064 = vpop.f32.mrf.mxu0
      %v8065 = vadd.f32 0.0, %v8064
      %8066 = vdwg.mxu0
      %8067 = vmatpush.bf16.msra.mxu0 0
      %8068 = vmatpush.bf16.msra.mxu0 0
      %8069 = vmatpush.bf16.msra.mxu0 0
      %8070 = vmatpush.bf16.msra.mxu0 0
      %8071 = vmatpush.bf16.msra.mxu0 0
      %8072 = vmatpush.bf16.msra.mxu0 0
      %8073 = vmatpush.bf16.msra.mxu0 0
      %8074 = vmatpush.bf16.msra.mxu0 %v7996
      %8075 = vmatmul.bf16.gmra.mxu0 %v8009
      %v8076 = vpop.f32.mrf.mxu0
      %v8077 = vadd.f32 0.0, %v8076
      %v8078 = vpop.f32.mrf.mxu0
      %v8079 = vadd.f32 0.0, %v8078
      %8080 = vdwg.mxu0
      %8081 = vmatpush.bf16.msra.mxu0 0
      %8082 = vmatpush.bf16.msra.mxu0 0
      %8083 = vmatpush.bf16.msra.mxu0 0
      %8084 = vmatpush.bf16.msra.mxu0 0
      %8085 = vmatpush.bf16.msra.mxu0 0
      %8086 = vmatpush.bf16.msra.mxu0 0
      %8087 = vmatpush.bf16.msra.mxu0 0
      %8088 = vmatpush.bf16.msra.mxu0 %v7997
      %8089 = vmatmul.bf16.gmra.mxu0 %v8009
      %v8090 = vpop.f32.mrf.mxu0
      %v8091 = vadd.f32 0.0, %v8090
      %v8092 = vpop.f32.mrf.mxu0
      %v8093 = vadd.f32 0.0, %v8092
      %8094 = vdwg.mxu0
      %8095 = vmatpush.bf16.msra.mxu0 0
      %8096 = vmatpush.bf16.msra.mxu0 0
      %8097 = vmatpush.bf16.msra.mxu0 0
      %8098 = vmatpush.bf16.msra.mxu0 0
      %8099 = vmatpush.bf16.msra.mxu0 0
      %8100 = vmatpush.bf16.msra.mxu0 0
      %8101 = vmatpush.bf16.msra.mxu0 0
      %8102 = vmatpush.bf16.msra.mxu0 %v7998
      %8103 = vmatmul.bf16.gmra.mxu0 %v8009
      %v8104 = vpop.f32.mrf.mxu0
      %v8105 = vadd.f32 0.0, %v8104
      %v8106 = vpop.f32.mrf.mxu0
      %v8107 = vadd.f32 0.0, %v8106
      %8108 = vdwg.mxu0
      %8109 = vmatpush.bf16.msra.mxu0 0
      %8110 = vmatpush.bf16.msra.mxu0 0
      %8111 = vmatpush.bf16.msra.mxu0 0
      %8112 = vmatpush.bf16.msra.mxu0 0
      %8113 = vmatpush.bf16.msra.mxu0 0
      %8114 = vmatpush.bf16.msra.mxu0 0
      %8115 = vmatpush.bf16.msra.mxu0 0
      %8116 = vmatpush.bf16.msra.mxu0 %v7999
      %8117 = vmatmul.bf16.gmra.mxu0 %v8009
      %v8118 = vpop.f32.mrf.mxu0
      %v8119 = vadd.f32 0.0, %v8118
      %v8120 = vpop.f32.mrf.mxu0
      %v8121 = vadd.f32 0.0, %v8120
      %8122 = vdwg.mxu0
      %v8123 = vadd.f32 %v7950, %v8021
      %v8124 = vadd.f32 %v7951, %v8035
      %v8125 = vadd.f32 %v7952, %v8049
      %v8126 = vadd.f32 %v7953, %v8063
      %v8127 = vadd.f32 %v7954, %v8077
      %v8128 = vadd.f32 %v7955, %v8091
      %v8129 = vadd.f32 %v7956, %v8105
      %v8130 = vadd.f32 %v7957, %v8119
      %v8131 = vadd.f32 %v7958, %v8023
      %v8132 = vadd.f32 %v7959, %v8037
      %v8133 = vadd.f32 %v7960, %v8051
      %v8134 = vadd.f32 %v7961, %v8065
      %v8135 = vadd.f32 %v7962, %v8079
      %v8136 = vadd.f32 %v7963, %v8093
      %v8137 = vadd.f32 %v7964, %v8107
      %v8138 = vadd.f32 %v7965, %v8121
      %s8139 = scalar_lea.vmem %s4, 136
      %v8140 = vld [vmem:[%s8139] sm:$0xf]
      %v8141 = vld [vmem:[%s8139 + $0x4] sm:$0xf]
      %v8144 = vunpack.c.l.b16 %v8140
      %v8145 = vunpack.c.l.b16 %v8141
      %v8146 = vpack.c.b16 %v8145, %v8144
      %8147 = vrot.lane.b32.xlu0 %v5256, 117
      %v8148 = vpop.permute.xlu0 %8147
      %8149 = vrot.lane.b32.xlu0 %v5257, 117
      %v8150 = vpop.permute.xlu0 %8149
      %8151 = vrot.lane.b32.xlu0 %v5258, 117
      %v8152 = vpop.permute.xlu0 %8151
      %8153 = vrot.lane.b32.xlu0 %v5259, 117
      %v8154 = vpop.permute.xlu0 %8153
      %8155 = vrot.lane.b32.xlu0 %v5260, 117
      %v8156 = vpop.permute.xlu0 %8155
      %8157 = vrot.lane.b32.xlu0 %v5261, 117
      %v8158 = vpop.permute.xlu0 %8157
      %8159 = vrot.lane.b32.xlu0 %v5262, 117
      %v8160 = vpop.permute.xlu0 %8159
      %8161 = vrot.lane.b32.xlu0 %v5263, 117
      %v8162 = vpop.permute.xlu0 %8161
      %8163 = vrot.lane.b32.xlu0 %v7627, 117
      %v8164 = vpop.permute.xlu0 %8163
      %v8165 = vsel %vm3239, %v8148, %v8150
      %v8166 = vsel %vm3239, %v8150, %v8152
      %v8167 = vsel %vm3239, %v8152, %v8154
      %v8168 = vsel %vm3239, %v8154, %v8156
      %v8169 = vsel %vm3239, %v8156, %v8158
      %v8170 = vsel %vm3239, %v8158, %v8160
      %v8171 = vsel %vm3239, %v8160, %v8162
      %v8172 = vsel %vm3239, %v8162, %v8164
      %v8182 = vsel %vm356, %v8146, 0
      %8184 = vmatpush.bf16.msra.mxu0 0
      %8185 = vmatpush.bf16.msra.mxu0 0
      %8186 = vmatpush.bf16.msra.mxu0 0
      %8187 = vmatpush.bf16.msra.mxu0 0
      %8188 = vmatpush.bf16.msra.mxu0 0
      %8189 = vmatpush.bf16.msra.mxu0 0
      %8190 = vmatpush.bf16.msra.mxu0 0
      %8191 = vmatpush.bf16.msra.mxu0 %v8165
      %8192 = vmatmul.bf16.gmra.mxu0 %v8182
      %v8193 = vpop.f32.mrf.mxu0
      %v8194 = vadd.f32 0.0, %v8193
      %v8195 = vpop.f32.mrf.mxu0
      %v8196 = vadd.f32 0.0, %v8195
      %8197 = vdwg.mxu0
      %8198 = vmatpush.bf16.msra.mxu0 0
      %8199 = vmatpush.bf16.msra.mxu0 0
      %8200 = vmatpush.bf16.msra.mxu0 0
      %8201 = vmatpush.bf16.msra.mxu0 0
      %8202 = vmatpush.bf16.msra.mxu0 0
      %8203 = vmatpush.bf16.msra.mxu0 0
      %8204 = vmatpush.bf16.msra.mxu0 0
      %8205 = vmatpush.bf16.msra.mxu0 %v8166
      %8206 = vmatmul.bf16.gmra.mxu0 %v8182
      %v8207 = vpop.f32.mrf.mxu0
      %v8208 = vadd.f32 0.0, %v8207
      %v8209 = vpop.f32.mrf.mxu0
      %v8210 = vadd.f32 0.0, %v8209
      %8211 = vdwg.mxu0
      %8212 = vmatpush.bf16.msra.mxu0 0
      %8213 = vmatpush.bf16.msra.mxu0 0
      %8214 = vmatpush.bf16.msra.mxu0 0
      %8215 = vmatpush.bf16.msra.mxu0 0
      %8216 = vmatpush.bf16.msra.mxu0 0
      %8217 = vmatpush.bf16.msra.mxu0 0
      %8218 = vmatpush.bf16.msra.mxu0 0
      %8219 = vmatpush.bf16.msra.mxu0 %v8167
      %8220 = vmatmul.bf16.gmra.mxu0 %v8182
      %v8221 = vpop.f32.mrf.mxu0
      %v8222 = vadd.f32 0.0, %v8221
      %v8223 = vpop.f32.mrf.mxu0
      %v8224 = vadd.f32 0.0, %v8223
      %8225 = vdwg.mxu0
      %8226 = vmatpush.bf16.msra.mxu0 0
      %8227 = vmatpush.bf16.msra.mxu0 0
      %8228 = vmatpush.bf16.msra.mxu0 0
      %8229 = vmatpush.bf16.msra.mxu0 0
      %8230 = vmatpush.bf16.msra.mxu0 0
      %8231 = vmatpush.bf16.msra.mxu0 0
      %8232 = vmatpush.bf16.msra.mxu0 0
      %8233 = vmatpush.bf16.msra.mxu0 %v8168
      %8234 = vmatmul.bf16.gmra.mxu0 %v8182
      %v8235 = vpop.f32.mrf.mxu0
      %v8236 = vadd.f32 0.0, %v8235
      %v8237 = vpop.f32.mrf.mxu0
      %v8238 = vadd.f32 0.0, %v8237
      %8239 = vdwg.mxu0
      %8240 = vmatpush.bf16.msra.mxu0 0
      %8241 = vmatpush.bf16.msra.mxu0 0
      %8242 = vmatpush.bf16.msra.mxu0 0
      %8243 = vmatpush.bf16.msra.mxu0 0
      %8244 = vmatpush.bf16.msra.mxu0 0
      %8245 = vmatpush.bf16.msra.mxu0 0
      %8246 = vmatpush.bf16.msra.mxu0 0
      %8247 = vmatpush.bf16.msra.mxu0 %v8169
      %8248 = vmatmul.bf16.gmra.mxu0 %v8182
      %v8249 = vpop.f32.mrf.mxu0
      %v8250 = vadd.f32 0.0, %v8249
      %v8251 = vpop.f32.mrf.mxu0
      %v8252 = vadd.f32 0.0, %v8251
      %8253 = vdwg.mxu0
      %8254 = vmatpush.bf16.msra.mxu0 0
      %8255 = vmatpush.bf16.msra.mxu0 0
      %8256 = vmatpush.bf16.msra.mxu0 0
      %8257 = vmatpush.bf16.msra.mxu0 0
      %8258 = vmatpush.bf16.msra.mxu0 0
      %8259 = vmatpush.bf16.msra.mxu0 0
      %8260 = vmatpush.bf16.msra.mxu0 0
      %8261 = vmatpush.bf16.msra.mxu0 %v8170
      %8262 = vmatmul.bf16.gmra.mxu0 %v8182
      %v8263 = vpop.f32.mrf.mxu0
      %v8264 = vadd.f32 0.0, %v8263
      %v8265 = vpop.f32.mrf.mxu0
      %v8266 = vadd.f32 0.0, %v8265
      %8267 = vdwg.mxu0
      %8268 = vmatpush.bf16.msra.mxu0 0
      %8269 = vmatpush.bf16.msra.mxu0 0
      %8270 = vmatpush.bf16.msra.mxu0 0
      %8271 = vmatpush.bf16.msra.mxu0 0
      %8272 = vmatpush.bf16.msra.mxu0 0
      %8273 = vmatpush.bf16.msra.mxu0 0
      %8274 = vmatpush.bf16.msra.mxu0 0
      %8275 = vmatpush.bf16.msra.mxu0 %v8171
      %8276 = vmatmul.bf16.gmra.mxu0 %v8182
      %v8277 = vpop.f32.mrf.mxu0
      %v8278 = vadd.f32 0.0, %v8277
      %v8279 = vpop.f32.mrf.mxu0
      %v8280 = vadd.f32 0.0, %v8279
      %8281 = vdwg.mxu0
      %8282 = vmatpush.bf16.msra.mxu0 0
      %8283 = vmatpush.bf16.msra.mxu0 0
      %8284 = vmatpush.bf16.msra.mxu0 0
      %8285 = vmatpush.bf16.msra.mxu0 0
      %8286 = vmatpush.bf16.msra.mxu0 0
      %8287 = vmatpush.bf16.msra.mxu0 0
      %8288 = vmatpush.bf16.msra.mxu0 0
      %8289 = vmatpush.bf16.msra.mxu0 %v8172
      %8290 = vmatmul.bf16.gmra.mxu0 %v8182
      %v8291 = vpop.f32.mrf.mxu0
      %v8292 = vadd.f32 0.0, %v8291
      %v8293 = vpop.f32.mrf.mxu0
      %v8294 = vadd.f32 0.0, %v8293
      %8295 = vdwg.mxu0
      %v8296 = vadd.f32 %v8123, %v8194
      %v8297 = vadd.f32 %v8124, %v8208
      %v8298 = vadd.f32 %v8125, %v8222
      %v8299 = vadd.f32 %v8126, %v8236
      %v8300 = vadd.f32 %v8127, %v8250
      %v8301 = vadd.f32 %v8128, %v8264
      %v8302 = vadd.f32 %v8129, %v8278
      %v8303 = vadd.f32 %v8130, %v8292
      %v8304 = vadd.f32 %v8131, %v8196
      %v8305 = vadd.f32 %v8132, %v8210
      %v8306 = vadd.f32 %v8133, %v8224
      %v8307 = vadd.f32 %v8134, %v8238
      %v8308 = vadd.f32 %v8135, %v8252
      %v8309 = vadd.f32 %v8136, %v8266
      %v8310 = vadd.f32 %v8137, %v8280
      %v8311 = vadd.f32 %v8138, %v8294
      %s8312 = scalar_lea.vmem %s4, 144
      %v8313 = vld [vmem:[%s8312] sm:$0xf]
      %v8314 = vld [vmem:[%s8312 + $0x4] sm:$0xf]
      %v8317 = vunpack.c.l.b16 %v8313
      %v8318 = vunpack.c.l.b16 %v8314
      %v8319 = vpack.c.b16 %v8318, %v8317
      %8320 = vrot.lane.b32.xlu0 %v5256, 39
      %v8321 = vpop.permute.xlu0 %8320
      %8322 = vrot.lane.b32.xlu0 %v5257, 39
      %v8323 = vpop.permute.xlu0 %8322
      %8324 = vrot.lane.b32.xlu0 %v5258, 39
      %v8325 = vpop.permute.xlu0 %8324
      %8326 = vrot.lane.b32.xlu0 %v5259, 39
      %v8327 = vpop.permute.xlu0 %8326
      %8328 = vrot.lane.b32.xlu0 %v5260, 39
      %v8329 = vpop.permute.xlu0 %8328
      %8330 = vrot.lane.b32.xlu0 %v5261, 39
      %v8331 = vpop.permute.xlu0 %8330
      %8332 = vrot.lane.b32.xlu0 %v5262, 39
      %v8333 = vpop.permute.xlu0 %8332
      %8334 = vrot.lane.b32.xlu0 %v5263, 39
      %v8335 = vpop.permute.xlu0 %8334
      %8336 = vrot.lane.b32.xlu0 %v7627, 39
      %v8337 = vpop.permute.xlu0 %8336
      %v8338 = vsel %vm3413, %v8321, %v8323
      %v8339 = vsel %vm3413, %v8323, %v8325
      %v8340 = vsel %vm3413, %v8325, %v8327
      %v8341 = vsel %vm3413, %v8327, %v8329
      %v8342 = vsel %vm3413, %v8329, %v8331
      %v8343 = vsel %vm3413, %v8331, %v8333
      %v8344 = vsel %vm3413, %v8333, %v8335
      %v8345 = vsel %vm3413, %v8335, %v8337
      %v8355 = vsel %vm356, %v8319, 0
      %8357 = vmatpush.bf16.msra.mxu0 0
      %8358 = vmatpush.bf16.msra.mxu0 0
      %8359 = vmatpush.bf16.msra.mxu0 0
      %8360 = vmatpush.bf16.msra.mxu0 0
      %8361 = vmatpush.bf16.msra.mxu0 0
      %8362 = vmatpush.bf16.msra.mxu0 0
      %8363 = vmatpush.bf16.msra.mxu0 0
      %8364 = vmatpush.bf16.msra.mxu0 %v8338
      %8365 = vmatmul.bf16.gmra.mxu0 %v8355
      %v8366 = vpop.f32.mrf.mxu0
      %v8367 = vadd.f32 0.0, %v8366
      %v8368 = vpop.f32.mrf.mxu0
      %v8369 = vadd.f32 0.0, %v8368
      %8370 = vdwg.mxu0
      %8371 = vmatpush.bf16.msra.mxu0 0
      %8372 = vmatpush.bf16.msra.mxu0 0
      %8373 = vmatpush.bf16.msra.mxu0 0
      %8374 = vmatpush.bf16.msra.mxu0 0
      %8375 = vmatpush.bf16.msra.mxu0 0
      %8376 = vmatpush.bf16.msra.mxu0 0
      %8377 = vmatpush.bf16.msra.mxu0 0
      %8378 = vmatpush.bf16.msra.mxu0 %v8339
      %8379 = vmatmul.bf16.gmra.mxu0 %v8355
      %v8380 = vpop.f32.mrf.mxu0
      %v8381 = vadd.f32 0.0, %v8380
      %v8382 = vpop.f32.mrf.mxu0
      %v8383 = vadd.f32 0.0, %v8382
      %8384 = vdwg.mxu0
      %8385 = vmatpush.bf16.msra.mxu0 0
      %8386 = vmatpush.bf16.msra.mxu0 0
      %8387 = vmatpush.bf16.msra.mxu0 0
      %8388 = vmatpush.bf16.msra.mxu0 0
      %8389 = vmatpush.bf16.msra.mxu0 0
      %8390 = vmatpush.bf16.msra.mxu0 0
      %8391 = vmatpush.bf16.msra.mxu0 0
      %8392 = vmatpush.bf16.msra.mxu0 %v8340
      %8393 = vmatmul.bf16.gmra.mxu0 %v8355
      %v8394 = vpop.f32.mrf.mxu0
      %v8395 = vadd.f32 0.0, %v8394
      %v8396 = vpop.f32.mrf.mxu0
      %v8397 = vadd.f32 0.0, %v8396
      %8398 = vdwg.mxu0
      %8399 = vmatpush.bf16.msra.mxu0 0
      %8400 = vmatpush.bf16.msra.mxu0 0
      %8401 = vmatpush.bf16.msra.mxu0 0
      %8402 = vmatpush.bf16.msra.mxu0 0
      %8403 = vmatpush.bf16.msra.mxu0 0
      %8404 = vmatpush.bf16.msra.mxu0 0
      %8405 = vmatpush.bf16.msra.mxu0 0
      %8406 = vmatpush.bf16.msra.mxu0 %v8341
      %8407 = vmatmul.bf16.gmra.mxu0 %v8355
      %v8408 = vpop.f32.mrf.mxu0
      %v8409 = vadd.f32 0.0, %v8408
      %v8410 = vpop.f32.mrf.mxu0
      %v8411 = vadd.f32 0.0, %v8410
      %8412 = vdwg.mxu0
      %8413 = vmatpush.bf16.msra.mxu0 0
      %8414 = vmatpush.bf16.msra.mxu0 0
      %8415 = vmatpush.bf16.msra.mxu0 0
      %8416 = vmatpush.bf16.msra.mxu0 0
      %8417 = vmatpush.bf16.msra.mxu0 0
      %8418 = vmatpush.bf16.msra.mxu0 0
      %8419 = vmatpush.bf16.msra.mxu0 0
      %8420 = vmatpush.bf16.msra.mxu0 %v8342
      %8421 = vmatmul.bf16.gmra.mxu0 %v8355
      %v8422 = vpop.f32.mrf.mxu0
      %v8423 = vadd.f32 0.0, %v8422
      %v8424 = vpop.f32.mrf.mxu0
      %v8425 = vadd.f32 0.0, %v8424
      %8426 = vdwg.mxu0
      %8427 = vmatpush.bf16.msra.mxu0 0
      %8428 = vmatpush.bf16.msra.mxu0 0
      %8429 = vmatpush.bf16.msra.mxu0 0
      %8430 = vmatpush.bf16.msra.mxu0 0
      %8431 = vmatpush.bf16.msra.mxu0 0
      %8432 = vmatpush.bf16.msra.mxu0 0
      %8433 = vmatpush.bf16.msra.mxu0 0
      %8434 = vmatpush.bf16.msra.mxu0 %v8343
      %8435 = vmatmul.bf16.gmra.mxu0 %v8355
      %v8436 = vpop.f32.mrf.mxu0
      %v8437 = vadd.f32 0.0, %v8436
      %v8438 = vpop.f32.mrf.mxu0
      %v8439 = vadd.f32 0.0, %v8438
      %8440 = vdwg.mxu0
      %8441 = vmatpush.bf16.msra.mxu0 0
      %8442 = vmatpush.bf16.msra.mxu0 0
      %8443 = vmatpush.bf16.msra.mxu0 0
      %8444 = vmatpush.bf16.msra.mxu0 0
      %8445 = vmatpush.bf16.msra.mxu0 0
      %8446 = vmatpush.bf16.msra.mxu0 0
      %8447 = vmatpush.bf16.msra.mxu0 0
      %8448 = vmatpush.bf16.msra.mxu0 %v8344
      %8449 = vmatmul.bf16.gmra.mxu0 %v8355
      %v8450 = vpop.f32.mrf.mxu0
      %v8451 = vadd.f32 0.0, %v8450
      %v8452 = vpop.f32.mrf.mxu0
      %v8453 = vadd.f32 0.0, %v8452
      %8454 = vdwg.mxu0
      %8455 = vmatpush.bf16.msra.mxu0 0
      %8456 = vmatpush.bf16.msra.mxu0 0
      %8457 = vmatpush.bf16.msra.mxu0 0
      %8458 = vmatpush.bf16.msra.mxu0 0
      %8459 = vmatpush.bf16.msra.mxu0 0
      %8460 = vmatpush.bf16.msra.mxu0 0
      %8461 = vmatpush.bf16.msra.mxu0 0
      %8462 = vmatpush.bf16.msra.mxu0 %v8345
      %8463 = vmatmul.bf16.gmra.mxu0 %v8355
      %v8464 = vpop.f32.mrf.mxu0
      %v8465 = vadd.f32 0.0, %v8464
      %v8466 = vpop.f32.mrf.mxu0
      %v8467 = vadd.f32 0.0, %v8466
      %8468 = vdwg.mxu0
      %v8469 = vadd.f32 %v8296, %v8367
      %v8470 = vadd.f32 %v8297, %v8381
      %v8471 = vadd.f32 %v8298, %v8395
      %v8472 = vadd.f32 %v8299, %v8409
      %v8473 = vadd.f32 %v8300, %v8423
      %v8474 = vadd.f32 %v8301, %v8437
      %v8475 = vadd.f32 %v8302, %v8451
      %v8476 = vadd.f32 %v8303, %v8465
      %v8477 = vadd.f32 %v8304, %v8369
      %v8478 = vadd.f32 %v8305, %v8383
      %v8479 = vadd.f32 %v8306, %v8397
      %v8480 = vadd.f32 %v8307, %v8411
      %v8481 = vadd.f32 %v8308, %v8425
      %v8482 = vadd.f32 %v8309, %v8439
      %v8483 = vadd.f32 %v8310, %v8453
      %v8484 = vadd.f32 %v8311, %v8467
      %s8485 = scalar_lea.vmem %s4, 152
      %v8486 = vld [vmem:[%s8485] sm:$0xf]
      %v8487 = vld [vmem:[%s8485 + $0x4] sm:$0xf]
      %v8490 = vunpack.c.l.b16 %v8486
      %v8491 = vunpack.c.l.b16 %v8487
      %v8492 = vpack.c.b16 %v8491, %v8490
      %8493 = vrot.lane.b32.xlu0 %v5256, 38
      %v8494 = vpop.permute.xlu0 %8493
      %8495 = vrot.lane.b32.xlu0 %v5257, 38
      %v8496 = vpop.permute.xlu0 %8495
      %8497 = vrot.lane.b32.xlu0 %v5258, 38
      %v8498 = vpop.permute.xlu0 %8497
      %8499 = vrot.lane.b32.xlu0 %v5259, 38
      %v8500 = vpop.permute.xlu0 %8499
      %8501 = vrot.lane.b32.xlu0 %v5260, 38
      %v8502 = vpop.permute.xlu0 %8501
      %8503 = vrot.lane.b32.xlu0 %v5261, 38
      %v8504 = vpop.permute.xlu0 %8503
      %8505 = vrot.lane.b32.xlu0 %v5262, 38
      %v8506 = vpop.permute.xlu0 %8505
      %8507 = vrot.lane.b32.xlu0 %v5263, 38
      %v8508 = vpop.permute.xlu0 %8507
      %8509 = vrot.lane.b32.xlu0 %v7627, 38
      %v8510 = vpop.permute.xlu0 %8509
      %v8511 = vsel %vm3587, %v8494, %v8496
      %v8512 = vsel %vm3587, %v8496, %v8498
      %v8513 = vsel %vm3587, %v8498, %v8500
      %v8514 = vsel %vm3587, %v8500, %v8502
      %v8515 = vsel %vm3587, %v8502, %v8504
      %v8516 = vsel %vm3587, %v8504, %v8506
      %v8517 = vsel %vm3587, %v8506, %v8508
      %v8518 = vsel %vm3587, %v8508, %v8510
      %v8528 = vsel %vm356, %v8492, 0
      %8530 = vmatpush.bf16.msra.mxu0 0
      %8531 = vmatpush.bf16.msra.mxu0 0
      %8532 = vmatpush.bf16.msra.mxu0 0
      %8533 = vmatpush.bf16.msra.mxu0 0
      %8534 = vmatpush.bf16.msra.mxu0 0
      %8535 = vmatpush.bf16.msra.mxu0 0
      %8536 = vmatpush.bf16.msra.mxu0 0
      %8537 = vmatpush.bf16.msra.mxu0 %v8511
      %8538 = vmatmul.bf16.gmra.mxu0 %v8528
      %v8539 = vpop.f32.mrf.mxu0
      %v8540 = vadd.f32 0.0, %v8539
      %v8541 = vpop.f32.mrf.mxu0
      %v8542 = vadd.f32 0.0, %v8541
      %8543 = vdwg.mxu0
      %8544 = vmatpush.bf16.msra.mxu0 0
      %8545 = vmatpush.bf16.msra.mxu0 0
      %8546 = vmatpush.bf16.msra.mxu0 0
      %8547 = vmatpush.bf16.msra.mxu0 0
      %8548 = vmatpush.bf16.msra.mxu0 0
      %8549 = vmatpush.bf16.msra.mxu0 0
      %8550 = vmatpush.bf16.msra.mxu0 0
      %8551 = vmatpush.bf16.msra.mxu0 %v8512
      %8552 = vmatmul.bf16.gmra.mxu0 %v8528
      %v8553 = vpop.f32.mrf.mxu0
      %v8554 = vadd.f32 0.0, %v8553
      %v8555 = vpop.f32.mrf.mxu0
      %v8556 = vadd.f32 0.0, %v8555
      %8557 = vdwg.mxu0
      %8558 = vmatpush.bf16.msra.mxu0 0
      %8559 = vmatpush.bf16.msra.mxu0 0
      %8560 = vmatpush.bf16.msra.mxu0 0
      %8561 = vmatpush.bf16.msra.mxu0 0
      %8562 = vmatpush.bf16.msra.mxu0 0
      %8563 = vmatpush.bf16.msra.mxu0 0
      %8564 = vmatpush.bf16.msra.mxu0 0
      %8565 = vmatpush.bf16.msra.mxu0 %v8513
      %8566 = vmatmul.bf16.gmra.mxu0 %v8528
      %v8567 = vpop.f32.mrf.mxu0
      %v8568 = vadd.f32 0.0, %v8567
      %v8569 = vpop.f32.mrf.mxu0
      %v8570 = vadd.f32 0.0, %v8569
      %8571 = vdwg.mxu0
      %8572 = vmatpush.bf16.msra.mxu0 0
      %8573 = vmatpush.bf16.msra.mxu0 0
      %8574 = vmatpush.bf16.msra.mxu0 0
      %8575 = vmatpush.bf16.msra.mxu0 0
      %8576 = vmatpush.bf16.msra.mxu0 0
      %8577 = vmatpush.bf16.msra.mxu0 0
      %8578 = vmatpush.bf16.msra.mxu0 0
      %8579 = vmatpush.bf16.msra.mxu0 %v8514
      %8580 = vmatmul.bf16.gmra.mxu0 %v8528
      %v8581 = vpop.f32.mrf.mxu0
      %v8582 = vadd.f32 0.0, %v8581
      %v8583 = vpop.f32.mrf.mxu0
      %v8584 = vadd.f32 0.0, %v8583
      %8585 = vdwg.mxu0
      %8586 = vmatpush.bf16.msra.mxu0 0
      %8587 = vmatpush.bf16.msra.mxu0 0
      %8588 = vmatpush.bf16.msra.mxu0 0
      %8589 = vmatpush.bf16.msra.mxu0 0
      %8590 = vmatpush.bf16.msra.mxu0 0
      %8591 = vmatpush.bf16.msra.mxu0 0
      %8592 = vmatpush.bf16.msra.mxu0 0
      %8593 = vmatpush.bf16.msra.mxu0 %v8515
      %8594 = vmatmul.bf16.gmra.mxu0 %v8528
      %v8595 = vpop.f32.mrf.mxu0
      %v8596 = vadd.f32 0.0, %v8595
      %v8597 = vpop.f32.mrf.mxu0
      %v8598 = vadd.f32 0.0, %v8597
      %8599 = vdwg.mxu0
      %8600 = vmatpush.bf16.msra.mxu0 0
      %8601 = vmatpush.bf16.msra.mxu0 0
      %8602 = vmatpush.bf16.msra.mxu0 0
      %8603 = vmatpush.bf16.msra.mxu0 0
      %8604 = vmatpush.bf16.msra.mxu0 0
      %8605 = vmatpush.bf16.msra.mxu0 0
      %8606 = vmatpush.bf16.msra.mxu0 0
      %8607 = vmatpush.bf16.msra.mxu0 %v8516
      %8608 = vmatmul.bf16.gmra.mxu0 %v8528
      %v8609 = vpop.f32.mrf.mxu0
      %v8610 = vadd.f32 0.0, %v8609
      %v8611 = vpop.f32.mrf.mxu0
      %v8612 = vadd.f32 0.0, %v8611
      %8613 = vdwg.mxu0
      %8614 = vmatpush.bf16.msra.mxu0 0
      %8615 = vmatpush.bf16.msra.mxu0 0
      %8616 = vmatpush.bf16.msra.mxu0 0
      %8617 = vmatpush.bf16.msra.mxu0 0
      %8618 = vmatpush.bf16.msra.mxu0 0
      %8619 = vmatpush.bf16.msra.mxu0 0
      %8620 = vmatpush.bf16.msra.mxu0 0
      %8621 = vmatpush.bf16.msra.mxu0 %v8517
      %8622 = vmatmul.bf16.gmra.mxu0 %v8528
      %v8623 = vpop.f32.mrf.mxu0
      %v8624 = vadd.f32 0.0, %v8623
      %v8625 = vpop.f32.mrf.mxu0
      %v8626 = vadd.f32 0.0, %v8625
      %8627 = vdwg.mxu0
      %8628 = vmatpush.bf16.msra.mxu0 0
      %8629 = vmatpush.bf16.msra.mxu0 0
      %8630 = vmatpush.bf16.msra.mxu0 0
      %8631 = vmatpush.bf16.msra.mxu0 0
      %8632 = vmatpush.bf16.msra.mxu0 0
      %8633 = vmatpush.bf16.msra.mxu0 0
      %8634 = vmatpush.bf16.msra.mxu0 0
      %8635 = vmatpush.bf16.msra.mxu0 %v8518
      %8636 = vmatmul.bf16.gmra.mxu0 %v8528
      %v8637 = vpop.f32.mrf.mxu0
      %v8638 = vadd.f32 0.0, %v8637
      %v8639 = vpop.f32.mrf.mxu0
      %v8640 = vadd.f32 0.0, %v8639
      %8641 = vdwg.mxu0
      %v8642 = vadd.f32 %v8469, %v8540
      %v8643 = vadd.f32 %v8470, %v8554
      %v8644 = vadd.f32 %v8471, %v8568
      %v8645 = vadd.f32 %v8472, %v8582
      %v8646 = vadd.f32 %v8473, %v8596
      %v8647 = vadd.f32 %v8474, %v8610
      %v8648 = vadd.f32 %v8475, %v8624
      %v8649 = vadd.f32 %v8476, %v8638
      %v8650 = vadd.f32 %v8477, %v8542
      %v8651 = vadd.f32 %v8478, %v8556
      %v8652 = vadd.f32 %v8479, %v8570
      %v8653 = vadd.f32 %v8480, %v8584
      %v8654 = vadd.f32 %v8481, %v8598
      %v8655 = vadd.f32 %v8482, %v8612
      %v8656 = vadd.f32 %v8483, %v8626
      %v8657 = vadd.f32 %v8484, %v8640
      %s8658 = scalar_lea.vmem %s4, 160
      %v8659 = vld [vmem:[%s8658] sm:$0xf]
      %v8660 = vld [vmem:[%s8658 + $0x4] sm:$0xf]
      %v8663 = vunpack.c.l.b16 %v8659
      %v8664 = vunpack.c.l.b16 %v8660
      %v8665 = vpack.c.b16 %v8664, %v8663
      %8666 = vrot.lane.b32.xlu0 %v5256, 37
      %v8667 = vpop.permute.xlu0 %8666
      %8668 = vrot.lane.b32.xlu0 %v5257, 37
      %v8669 = vpop.permute.xlu0 %8668
      %8670 = vrot.lane.b32.xlu0 %v5258, 37
      %v8671 = vpop.permute.xlu0 %8670
      %8672 = vrot.lane.b32.xlu0 %v5259, 37
      %v8673 = vpop.permute.xlu0 %8672
      %8674 = vrot.lane.b32.xlu0 %v5260, 37
      %v8675 = vpop.permute.xlu0 %8674
      %8676 = vrot.lane.b32.xlu0 %v5261, 37
      %v8677 = vpop.permute.xlu0 %8676
      %8678 = vrot.lane.b32.xlu0 %v5262, 37
      %v8679 = vpop.permute.xlu0 %8678
      %8680 = vrot.lane.b32.xlu0 %v5263, 37
      %v8681 = vpop.permute.xlu0 %8680
      %8682 = vrot.lane.b32.xlu0 %v7627, 37
      %v8683 = vpop.permute.xlu0 %8682
      %v8684 = vsel %vm3761, %v8667, %v8669
      %v8685 = vsel %vm3761, %v8669, %v8671
      %v8686 = vsel %vm3761, %v8671, %v8673
      %v8687 = vsel %vm3761, %v8673, %v8675
      %v8688 = vsel %vm3761, %v8675, %v8677
      %v8689 = vsel %vm3761, %v8677, %v8679
      %v8690 = vsel %vm3761, %v8679, %v8681
      %v8691 = vsel %vm3761, %v8681, %v8683
      %v8701 = vsel %vm356, %v8665, 0
      %8703 = vmatpush.bf16.msra.mxu0 0
      %8704 = vmatpush.bf16.msra.mxu0 0
      %8705 = vmatpush.bf16.msra.mxu0 0
      %8706 = vmatpush.bf16.msra.mxu0 0
      %8707 = vmatpush.bf16.msra.mxu0 0
      %8708 = vmatpush.bf16.msra.mxu0 0
      %8709 = vmatpush.bf16.msra.mxu0 0
      %8710 = vmatpush.bf16.msra.mxu0 %v8684
      %8711 = vmatmul.bf16.gmra.mxu0 %v8701
      %v8712 = vpop.f32.mrf.mxu0
      %v8713 = vadd.f32 0.0, %v8712
      %v8714 = vpop.f32.mrf.mxu0
      %v8715 = vadd.f32 0.0, %v8714
      %8716 = vdwg.mxu0
      %8717 = vmatpush.bf16.msra.mxu0 0
      %8718 = vmatpush.bf16.msra.mxu0 0
      %8719 = vmatpush.bf16.msra.mxu0 0
      %8720 = vmatpush.bf16.msra.mxu0 0
      %8721 = vmatpush.bf16.msra.mxu0 0
      %8722 = vmatpush.bf16.msra.mxu0 0
      %8723 = vmatpush.bf16.msra.mxu0 0
      %8724 = vmatpush.bf16.msra.mxu0 %v8685
      %8725 = vmatmul.bf16.gmra.mxu0 %v8701
      %v8726 = vpop.f32.mrf.mxu0
      %v8727 = vadd.f32 0.0, %v8726
      %v8728 = vpop.f32.mrf.mxu0
      %v8729 = vadd.f32 0.0, %v8728
      %8730 = vdwg.mxu0
      %8731 = vmatpush.bf16.msra.mxu0 0
      %8732 = vmatpush.bf16.msra.mxu0 0
      %8733 = vmatpush.bf16.msra.mxu0 0
      %8734 = vmatpush.bf16.msra.mxu0 0
      %8735 = vmatpush.bf16.msra.mxu0 0
      %8736 = vmatpush.bf16.msra.mxu0 0
      %8737 = vmatpush.bf16.msra.mxu0 0
      %8738 = vmatpush.bf16.msra.mxu0 %v8686
      %8739 = vmatmul.bf16.gmra.mxu0 %v8701
      %v8740 = vpop.f32.mrf.mxu0
      %v8741 = vadd.f32 0.0, %v8740
      %v8742 = vpop.f32.mrf.mxu0
      %v8743 = vadd.f32 0.0, %v8742
      %8744 = vdwg.mxu0
      %8745 = vmatpush.bf16.msra.mxu0 0
      %8746 = vmatpush.bf16.msra.mxu0 0
      %8747 = vmatpush.bf16.msra.mxu0 0
      %8748 = vmatpush.bf16.msra.mxu0 0
      %8749 = vmatpush.bf16.msra.mxu0 0
      %8750 = vmatpush.bf16.msra.mxu0 0
      %8751 = vmatpush.bf16.msra.mxu0 0
      %8752 = vmatpush.bf16.msra.mxu0 %v8687
      %8753 = vmatmul.bf16.gmra.mxu0 %v8701
      %v8754 = vpop.f32.mrf.mxu0
      %v8755 = vadd.f32 0.0, %v8754
      %v8756 = vpop.f32.mrf.mxu0
      %v8757 = vadd.f32 0.0, %v8756
      %8758 = vdwg.mxu0
      %8759 = vmatpush.bf16.msra.mxu0 0
      %8760 = vmatpush.bf16.msra.mxu0 0
      %8761 = vmatpush.bf16.msra.mxu0 0
      %8762 = vmatpush.bf16.msra.mxu0 0
      %8763 = vmatpush.bf16.msra.mxu0 0
      %8764 = vmatpush.bf16.msra.mxu0 0
      %8765 = vmatpush.bf16.msra.mxu0 0
      %8766 = vmatpush.bf16.msra.mxu0 %v8688
      %8767 = vmatmul.bf16.gmra.mxu0 %v8701
      %v8768 = vpop.f32.mrf.mxu0
      %v8769 = vadd.f32 0.0, %v8768
      %v8770 = vpop.f32.mrf.mxu0
      %v8771 = vadd.f32 0.0, %v8770
      %8772 = vdwg.mxu0
      %8773 = vmatpush.bf16.msra.mxu0 0
      %8774 = vmatpush.bf16.msra.mxu0 0
      %8775 = vmatpush.bf16.msra.mxu0 0
      %8776 = vmatpush.bf16.msra.mxu0 0
      %8777 = vmatpush.bf16.msra.mxu0 0
      %8778 = vmatpush.bf16.msra.mxu0 0
      %8779 = vmatpush.bf16.msra.mxu0 0
      %8780 = vmatpush.bf16.msra.mxu0 %v8689
      %8781 = vmatmul.bf16.gmra.mxu0 %v8701
      %v8782 = vpop.f32.mrf.mxu0
      %v8783 = vadd.f32 0.0, %v8782
      %v8784 = vpop.f32.mrf.mxu0
      %v8785 = vadd.f32 0.0, %v8784
      %8786 = vdwg.mxu0
      %8787 = vmatpush.bf16.msra.mxu0 0
      %8788 = vmatpush.bf16.msra.mxu0 0
      %8789 = vmatpush.bf16.msra.mxu0 0
      %8790 = vmatpush.bf16.msra.mxu0 0
      %8791 = vmatpush.bf16.msra.mxu0 0
      %8792 = vmatpush.bf16.msra.mxu0 0
      %8793 = vmatpush.bf16.msra.mxu0 0
      %8794 = vmatpush.bf16.msra.mxu0 %v8690
      %8795 = vmatmul.bf16.gmra.mxu0 %v8701
      %v8796 = vpop.f32.mrf.mxu0
      %v8797 = vadd.f32 0.0, %v8796
      %v8798 = vpop.f32.mrf.mxu0
      %v8799 = vadd.f32 0.0, %v8798
      %8800 = vdwg.mxu0
      %8801 = vmatpush.bf16.msra.mxu0 0
      %8802 = vmatpush.bf16.msra.mxu0 0
      %8803 = vmatpush.bf16.msra.mxu0 0
      %8804 = vmatpush.bf16.msra.mxu0 0
      %8805 = vmatpush.bf16.msra.mxu0 0
      %8806 = vmatpush.bf16.msra.mxu0 0
      %8807 = vmatpush.bf16.msra.mxu0 0
      %8808 = vmatpush.bf16.msra.mxu0 %v8691
      %8809 = vmatmul.bf16.gmra.mxu0 %v8701
      %v8810 = vpop.f32.mrf.mxu0
      %v8811 = vadd.f32 0.0, %v8810
      %v8812 = vpop.f32.mrf.mxu0
      %v8813 = vadd.f32 0.0, %v8812
      %8814 = vdwg.mxu0
      %v8815 = vadd.f32 %v8642, %v8713
      %v8816 = vadd.f32 %v8643, %v8727
      %v8817 = vadd.f32 %v8644, %v8741
      %v8818 = vadd.f32 %v8645, %v8755
      %v8819 = vadd.f32 %v8646, %v8769
      %v8820 = vadd.f32 %v8647, %v8783
      %v8821 = vadd.f32 %v8648, %v8797
      %v8822 = vadd.f32 %v8649, %v8811
      %v8823 = vadd.f32 %v8650, %v8715
      %v8824 = vadd.f32 %v8651, %v8729
      %v8825 = vadd.f32 %v8652, %v8743
      %v8826 = vadd.f32 %v8653, %v8757
      %v8827 = vadd.f32 %v8654, %v8771
      %v8828 = vadd.f32 %v8655, %v8785
      %v8829 = vadd.f32 %v8656, %v8799
      %v8830 = vadd.f32 %v8657, %v8813
      %s8831 = scalar_lea.vmem %s4, 168
      %v8832 = vld [vmem:[%s8831] sm:$0xf]
      %v8833 = vld [vmem:[%s8831 + $0x4] sm:$0xf]
      %v8836 = vunpack.c.l.b16 %v8832
      %v8837 = vunpack.c.l.b16 %v8833
      %v8838 = vpack.c.b16 %v8837, %v8836
      %8839 = vrot.lane.b32.xlu0 %v5256, 29
      %v8840 = vpop.permute.xlu0 %8839
      %8841 = vrot.lane.b32.xlu0 %v5257, 29
      %v8842 = vpop.permute.xlu0 %8841
      %8843 = vrot.lane.b32.xlu0 %v5258, 29
      %v8844 = vpop.permute.xlu0 %8843
      %8845 = vrot.lane.b32.xlu0 %v5259, 29
      %v8846 = vpop.permute.xlu0 %8845
      %8847 = vrot.lane.b32.xlu0 %v5260, 29
      %v8848 = vpop.permute.xlu0 %8847
      %8849 = vrot.lane.b32.xlu0 %v5261, 29
      %v8850 = vpop.permute.xlu0 %8849
      %8851 = vrot.lane.b32.xlu0 %v5262, 29
      %v8852 = vpop.permute.xlu0 %8851
      %8853 = vrot.lane.b32.xlu0 %v5263, 29
      %v8854 = vpop.permute.xlu0 %8853
      %8855 = vrot.lane.b32.xlu0 %v7627, 29
      %v8856 = vpop.permute.xlu0 %8855
      %v8857 = vsel %vm3935, %v8840, %v8842
      %v8858 = vsel %vm3935, %v8842, %v8844
      %v8859 = vsel %vm3935, %v8844, %v8846
      %v8860 = vsel %vm3935, %v8846, %v8848
      %v8861 = vsel %vm3935, %v8848, %v8850
      %v8862 = vsel %vm3935, %v8850, %v8852
      %v8863 = vsel %vm3935, %v8852, %v8854
      %v8864 = vsel %vm3935, %v8854, %v8856
      %v8874 = vsel %vm356, %v8838, 0
      %8876 = vmatpush.bf16.msra.mxu0 0
      %8877 = vmatpush.bf16.msra.mxu0 0
      %8878 = vmatpush.bf16.msra.mxu0 0
      %8879 = vmatpush.bf16.msra.mxu0 0
      %8880 = vmatpush.bf16.msra.mxu0 0
      %8881 = vmatpush.bf16.msra.mxu0 0
      %8882 = vmatpush.bf16.msra.mxu0 0
      %8883 = vmatpush.bf16.msra.mxu0 %v8857
      %8884 = vmatmul.bf16.gmra.mxu0 %v8874
      %v8885 = vpop.f32.mrf.mxu0
      %v8886 = vadd.f32 0.0, %v8885
      %v8887 = vpop.f32.mrf.mxu0
      %v8888 = vadd.f32 0.0, %v8887
      %8889 = vdwg.mxu0
      %8890 = vmatpush.bf16.msra.mxu0 0
      %8891 = vmatpush.bf16.msra.mxu0 0
      %8892 = vmatpush.bf16.msra.mxu0 0
      %8893 = vmatpush.bf16.msra.mxu0 0
      %8894 = vmatpush.bf16.msra.mxu0 0
      %8895 = vmatpush.bf16.msra.mxu0 0
      %8896 = vmatpush.bf16.msra.mxu0 0
      %8897 = vmatpush.bf16.msra.mxu0 %v8858
      %8898 = vmatmul.bf16.gmra.mxu0 %v8874
      %v8899 = vpop.f32.mrf.mxu0
      %v8900 = vadd.f32 0.0, %v8899
      %v8901 = vpop.f32.mrf.mxu0
      %v8902 = vadd.f32 0.0, %v8901
      %8903 = vdwg.mxu0
      %8904 = vmatpush.bf16.msra.mxu0 0
      %8905 = vmatpush.bf16.msra.mxu0 0
      %8906 = vmatpush.bf16.msra.mxu0 0
      %8907 = vmatpush.bf16.msra.mxu0 0
      %8908 = vmatpush.bf16.msra.mxu0 0
      %8909 = vmatpush.bf16.msra.mxu0 0
      %8910 = vmatpush.bf16.msra.mxu0 0
      %8911 = vmatpush.bf16.msra.mxu0 %v8859
      %8912 = vmatmul.bf16.gmra.mxu0 %v8874
      %v8913 = vpop.f32.mrf.mxu0
      %v8914 = vadd.f32 0.0, %v8913
      %v8915 = vpop.f32.mrf.mxu0
      %v8916 = vadd.f32 0.0, %v8915
      %8917 = vdwg.mxu0
      %8918 = vmatpush.bf16.msra.mxu0 0
      %8919 = vmatpush.bf16.msra.mxu0 0
      %8920 = vmatpush.bf16.msra.mxu0 0
      %8921 = vmatpush.bf16.msra.mxu0 0
      %8922 = vmatpush.bf16.msra.mxu0 0
      %8923 = vmatpush.bf16.msra.mxu0 0
      %8924 = vmatpush.bf16.msra.mxu0 0
      %8925 = vmatpush.bf16.msra.mxu0 %v8860
      %8926 = vmatmul.bf16.gmra.mxu0 %v8874
      %v8927 = vpop.f32.mrf.mxu0
      %v8928 = vadd.f32 0.0, %v8927
      %v8929 = vpop.f32.mrf.mxu0
      %v8930 = vadd.f32 0.0, %v8929
      %8931 = vdwg.mxu0
      %8932 = vmatpush.bf16.msra.mxu0 0
      %8933 = vmatpush.bf16.msra.mxu0 0
      %8934 = vmatpush.bf16.msra.mxu0 0
      %8935 = vmatpush.bf16.msra.mxu0 0
      %8936 = vmatpush.bf16.msra.mxu0 0
      %8937 = vmatpush.bf16.msra.mxu0 0
      %8938 = vmatpush.bf16.msra.mxu0 0
      %8939 = vmatpush.bf16.msra.mxu0 %v8861
      %8940 = vmatmul.bf16.gmra.mxu0 %v8874
      %v8941 = vpop.f32.mrf.mxu0
      %v8942 = vadd.f32 0.0, %v8941
      %v8943 = vpop.f32.mrf.mxu0
      %v8944 = vadd.f32 0.0, %v8943
      %8945 = vdwg.mxu0
      %8946 = vmatpush.bf16.msra.mxu0 0
      %8947 = vmatpush.bf16.msra.mxu0 0
      %8948 = vmatpush.bf16.msra.mxu0 0
      %8949 = vmatpush.bf16.msra.mxu0 0
      %8950 = vmatpush.bf16.msra.mxu0 0
      %8951 = vmatpush.bf16.msra.mxu0 0
      %8952 = vmatpush.bf16.msra.mxu0 0
      %8953 = vmatpush.bf16.msra.mxu0 %v8862
      %8954 = vmatmul.bf16.gmra.mxu0 %v8874
      %v8955 = vpop.f32.mrf.mxu0
      %v8956 = vadd.f32 0.0, %v8955
      %v8957 = vpop.f32.mrf.mxu0
      %v8958 = vadd.f32 0.0, %v8957
      %8959 = vdwg.mxu0
      %8960 = vmatpush.bf16.msra.mxu0 0
      %8961 = vmatpush.bf16.msra.mxu0 0
      %8962 = vmatpush.bf16.msra.mxu0 0
      %8963 = vmatpush.bf16.msra.mxu0 0
      %8964 = vmatpush.bf16.msra.mxu0 0
      %8965 = vmatpush.bf16.msra.mxu0 0
      %8966 = vmatpush.bf16.msra.mxu0 0
      %8967 = vmatpush.bf16.msra.mxu0 %v8863
      %8968 = vmatmul.bf16.gmra.mxu0 %v8874
      %v8969 = vpop.f32.mrf.mxu0
      %v8970 = vadd.f32 0.0, %v8969
      %v8971 = vpop.f32.mrf.mxu0
      %v8972 = vadd.f32 0.0, %v8971
      %8973 = vdwg.mxu0
      %8974 = vmatpush.bf16.msra.mxu0 0
      %8975 = vmatpush.bf16.msra.mxu0 0
      %8976 = vmatpush.bf16.msra.mxu0 0
      %8977 = vmatpush.bf16.msra.mxu0 0
      %8978 = vmatpush.bf16.msra.mxu0 0
      %8979 = vmatpush.bf16.msra.mxu0 0
      %8980 = vmatpush.bf16.msra.mxu0 0
      %8981 = vmatpush.bf16.msra.mxu0 %v8864
      %8982 = vmatmul.bf16.gmra.mxu0 %v8874
      %v8983 = vpop.f32.mrf.mxu0
      %v8984 = vadd.f32 0.0, %v8983
      %v8985 = vpop.f32.mrf.mxu0
      %v8986 = vadd.f32 0.0, %v8985
      %8987 = vdwg.mxu0
      %v8988 = vadd.f32 %v8815, %v8886
      %v8989 = vadd.f32 %v8816, %v8900
      %v8990 = vadd.f32 %v8817, %v8914
      %v8991 = vadd.f32 %v8818, %v8928
      %v8992 = vadd.f32 %v8819, %v8942
      %v8993 = vadd.f32 %v8820, %v8956
      %v8994 = vadd.f32 %v8821, %v8970
      %v8995 = vadd.f32 %v8822, %v8984
      %v8996 = vadd.f32 %v8823, %v8888
      %v8997 = vadd.f32 %v8824, %v8902
      %v8998 = vadd.f32 %v8825, %v8916
      %v8999 = vadd.f32 %v8826, %v8930
      %v9000 = vadd.f32 %v8827, %v8944
      %v9001 = vadd.f32 %v8828, %v8958
      %v9002 = vadd.f32 %v8829, %v8972
      %v9003 = vadd.f32 %v8830, %v8986
      %s9004 = scalar_lea.vmem %s4, 176
      %v9005 = vld [vmem:[%s9004] sm:$0xf]
      %v9006 = vld [vmem:[%s9004 + $0x4] sm:$0xf]
      %v9009 = vunpack.c.l.b16 %v9005
      %v9010 = vunpack.c.l.b16 %v9006
      %v9011 = vpack.c.b16 %v9010, %v9009
      %9012 = vrot.lane.b32.xlu0 %v5256, 28
      %v9013 = vpop.permute.xlu0 %9012
      %9014 = vrot.lane.b32.xlu0 %v5257, 28
      %v9015 = vpop.permute.xlu0 %9014
      %9016 = vrot.lane.b32.xlu0 %v5258, 28
      %v9017 = vpop.permute.xlu0 %9016
      %9018 = vrot.lane.b32.xlu0 %v5259, 28
      %v9019 = vpop.permute.xlu0 %9018
      %9020 = vrot.lane.b32.xlu0 %v5260, 28
      %v9021 = vpop.permute.xlu0 %9020
      %9022 = vrot.lane.b32.xlu0 %v5261, 28
      %v9023 = vpop.permute.xlu0 %9022
      %9024 = vrot.lane.b32.xlu0 %v5262, 28
      %v9025 = vpop.permute.xlu0 %9024
      %9026 = vrot.lane.b32.xlu0 %v5263, 28
      %v9027 = vpop.permute.xlu0 %9026
      %9028 = vrot.lane.b32.xlu0 %v7627, 28
      %v9029 = vpop.permute.xlu0 %9028
      %v9030 = vsel %vm4109, %v9013, %v9015
      %v9031 = vsel %vm4109, %v9015, %v9017
      %v9032 = vsel %vm4109, %v9017, %v9019
      %v9033 = vsel %vm4109, %v9019, %v9021
      %v9034 = vsel %vm4109, %v9021, %v9023
      %v9035 = vsel %vm4109, %v9023, %v9025
      %v9036 = vsel %vm4109, %v9025, %v9027
      %v9037 = vsel %vm4109, %v9027, %v9029
      %v9047 = vsel %vm356, %v9011, 0
      %9049 = vmatpush.bf16.msra.mxu0 0
      %9050 = vmatpush.bf16.msra.mxu0 0
      %9051 = vmatpush.bf16.msra.mxu0 0
      %9052 = vmatpush.bf16.msra.mxu0 0
      %9053 = vmatpush.bf16.msra.mxu0 0
      %9054 = vmatpush.bf16.msra.mxu0 0
      %9055 = vmatpush.bf16.msra.mxu0 0
      %9056 = vmatpush.bf16.msra.mxu0 %v9030
      %9057 = vmatmul.bf16.gmra.mxu0 %v9047
      %v9058 = vpop.f32.mrf.mxu0
      %v9059 = vadd.f32 0.0, %v9058
      %v9060 = vpop.f32.mrf.mxu0
      %v9061 = vadd.f32 0.0, %v9060
      %9062 = vdwg.mxu0
      %9063 = vmatpush.bf16.msra.mxu0 0
      %9064 = vmatpush.bf16.msra.mxu0 0
      %9065 = vmatpush.bf16.msra.mxu0 0
      %9066 = vmatpush.bf16.msra.mxu0 0
      %9067 = vmatpush.bf16.msra.mxu0 0
      %9068 = vmatpush.bf16.msra.mxu0 0
      %9069 = vmatpush.bf16.msra.mxu0 0
      %9070 = vmatpush.bf16.msra.mxu0 %v9031
      %9071 = vmatmul.bf16.gmra.mxu0 %v9047
      %v9072 = vpop.f32.mrf.mxu0
      %v9073 = vadd.f32 0.0, %v9072
      %v9074 = vpop.f32.mrf.mxu0
      %v9075 = vadd.f32 0.0, %v9074
      %9076 = vdwg.mxu0
      %9077 = vmatpush.bf16.msra.mxu0 0
      %9078 = vmatpush.bf16.msra.mxu0 0
      %9079 = vmatpush.bf16.msra.mxu0 0
      %9080 = vmatpush.bf16.msra.mxu0 0
      %9081 = vmatpush.bf16.msra.mxu0 0
      %9082 = vmatpush.bf16.msra.mxu0 0
      %9083 = vmatpush.bf16.msra.mxu0 0
      %9084 = vmatpush.bf16.msra.mxu0 %v9032
      %9085 = vmatmul.bf16.gmra.mxu0 %v9047
      %v9086 = vpop.f32.mrf.mxu0
      %v9087 = vadd.f32 0.0, %v9086
      %v9088 = vpop.f32.mrf.mxu0
      %v9089 = vadd.f32 0.0, %v9088
      %9090 = vdwg.mxu0
      %9091 = vmatpush.bf16.msra.mxu0 0
      %9092 = vmatpush.bf16.msra.mxu0 0
      %9093 = vmatpush.bf16.msra.mxu0 0
      %9094 = vmatpush.bf16.msra.mxu0 0
      %9095 = vmatpush.bf16.msra.mxu0 0
      %9096 = vmatpush.bf16.msra.mxu0 0
      %9097 = vmatpush.bf16.msra.mxu0 0
      %9098 = vmatpush.bf16.msra.mxu0 %v9033
      %9099 = vmatmul.bf16.gmra.mxu0 %v9047
      %v9100 = vpop.f32.mrf.mxu0
      %v9101 = vadd.f32 0.0, %v9100
      %v9102 = vpop.f32.mrf.mxu0
      %v9103 = vadd.f32 0.0, %v9102
      %9104 = vdwg.mxu0
      %9105 = vmatpush.bf16.msra.mxu0 0
      %9106 = vmatpush.bf16.msra.mxu0 0
      %9107 = vmatpush.bf16.msra.mxu0 0
      %9108 = vmatpush.bf16.msra.mxu0 0
      %9109 = vmatpush.bf16.msra.mxu0 0
      %9110 = vmatpush.bf16.msra.mxu0 0
      %9111 = vmatpush.bf16.msra.mxu0 0
      %9112 = vmatpush.bf16.msra.mxu0 %v9034
      %9113 = vmatmul.bf16.gmra.mxu0 %v9047
      %v9114 = vpop.f32.mrf.mxu0
      %v9115 = vadd.f32 0.0, %v9114
      %v9116 = vpop.f32.mrf.mxu0
      %v9117 = vadd.f32 0.0, %v9116
      %9118 = vdwg.mxu0
      %9119 = vmatpush.bf16.msra.mxu0 0
      %9120 = vmatpush.bf16.msra.mxu0 0
      %9121 = vmatpush.bf16.msra.mxu0 0
      %9122 = vmatpush.bf16.msra.mxu0 0
      %9123 = vmatpush.bf16.msra.mxu0 0
      %9124 = vmatpush.bf16.msra.mxu0 0
      %9125 = vmatpush.bf16.msra.mxu0 0
      %9126 = vmatpush.bf16.msra.mxu0 %v9035
      %9127 = vmatmul.bf16.gmra.mxu0 %v9047
      %v9128 = vpop.f32.mrf.mxu0
      %v9129 = vadd.f32 0.0, %v9128
      %v9130 = vpop.f32.mrf.mxu0
      %v9131 = vadd.f32 0.0, %v9130
      %9132 = vdwg.mxu0
      %9133 = vmatpush.bf16.msra.mxu0 0
      %9134 = vmatpush.bf16.msra.mxu0 0
      %9135 = vmatpush.bf16.msra.mxu0 0
      %9136 = vmatpush.bf16.msra.mxu0 0
      %9137 = vmatpush.bf16.msra.mxu0 0
      %9138 = vmatpush.bf16.msra.mxu0 0
      %9139 = vmatpush.bf16.msra.mxu0 0
      %9140 = vmatpush.bf16.msra.mxu0 %v9036
      %9141 = vmatmul.bf16.gmra.mxu0 %v9047
      %v9142 = vpop.f32.mrf.mxu0
      %v9143 = vadd.f32 0.0, %v9142
      %v9144 = vpop.f32.mrf.mxu0
      %v9145 = vadd.f32 0.0, %v9144
      %9146 = vdwg.mxu0
      %9147 = vmatpush.bf16.msra.mxu0 0
      %9148 = vmatpush.bf16.msra.mxu0 0
      %9149 = vmatpush.bf16.msra.mxu0 0
      %9150 = vmatpush.bf16.msra.mxu0 0
      %9151 = vmatpush.bf16.msra.mxu0 0
      %9152 = vmatpush.bf16.msra.mxu0 0
      %9153 = vmatpush.bf16.msra.mxu0 0
      %9154 = vmatpush.bf16.msra.mxu0 %v9037
      %9155 = vmatmul.bf16.gmra.mxu0 %v9047
      %v9156 = vpop.f32.mrf.mxu0
      %v9157 = vadd.f32 0.0, %v9156
      %v9158 = vpop.f32.mrf.mxu0
      %v9159 = vadd.f32 0.0, %v9158
      %9160 = vdwg.mxu0
      %v9161 = vadd.f32 %v8988, %v9059
      %v9162 = vadd.f32 %v8989, %v9073
      %v9163 = vadd.f32 %v8990, %v9087
      %v9164 = vadd.f32 %v8991, %v9101
      %v9165 = vadd.f32 %v8992, %v9115
      %v9166 = vadd.f32 %v8993, %v9129
      %v9167 = vadd.f32 %v8994, %v9143
      %v9168 = vadd.f32 %v8995, %v9157
      %v9169 = vadd.f32 %v8996, %v9061
      %v9170 = vadd.f32 %v8997, %v9075
      %v9171 = vadd.f32 %v8998, %v9089
      %v9172 = vadd.f32 %v8999, %v9103
      %v9173 = vadd.f32 %v9000, %v9117
      %v9174 = vadd.f32 %v9001, %v9131
      %v9175 = vadd.f32 %v9002, %v9145
      %v9176 = vadd.f32 %v9003, %v9159
      %s9177 = scalar_lea.vmem %s4, 184
      %v9178 = vld [vmem:[%s9177] sm:$0xf]
      %v9179 = vld [vmem:[%s9177 + $0x4] sm:$0xf]
      %v9182 = vunpack.c.l.b16 %v9178
      %v9183 = vunpack.c.l.b16 %v9179
      %v9184 = vpack.c.b16 %v9183, %v9182
      %9185 = vrot.lane.b32.xlu0 %v5256, 27
      %v9186 = vpop.permute.xlu0 %9185
      %9187 = vrot.lane.b32.xlu0 %v5257, 27
      %v9188 = vpop.permute.xlu0 %9187
      %9189 = vrot.lane.b32.xlu0 %v5258, 27
      %v9190 = vpop.permute.xlu0 %9189
      %9191 = vrot.lane.b32.xlu0 %v5259, 27
      %v9192 = vpop.permute.xlu0 %9191
      %9193 = vrot.lane.b32.xlu0 %v5260, 27
      %v9194 = vpop.permute.xlu0 %9193
      %9195 = vrot.lane.b32.xlu0 %v5261, 27
      %v9196 = vpop.permute.xlu0 %9195
      %9197 = vrot.lane.b32.xlu0 %v5262, 27
      %v9198 = vpop.permute.xlu0 %9197
      %9199 = vrot.lane.b32.xlu0 %v5263, 27
      %v9200 = vpop.permute.xlu0 %9199
      %9201 = vrot.lane.b32.xlu0 %v7627, 27
      %v9202 = vpop.permute.xlu0 %9201
      %v9203 = vsel %vm4283, %v9186, %v9188
      %v9204 = vsel %vm4283, %v9188, %v9190
      %v9205 = vsel %vm4283, %v9190, %v9192
      %v9206 = vsel %vm4283, %v9192, %v9194
      %v9207 = vsel %vm4283, %v9194, %v9196
      %v9208 = vsel %vm4283, %v9196, %v9198
      %v9209 = vsel %vm4283, %v9198, %v9200
      %v9210 = vsel %vm4283, %v9200, %v9202
      %v9220 = vsel %vm356, %v9184, 0
      %9222 = vmatpush.bf16.msra.mxu0 0
      %9223 = vmatpush.bf16.msra.mxu0 0
      %9224 = vmatpush.bf16.msra.mxu0 0
      %9225 = vmatpush.bf16.msra.mxu0 0
      %9226 = vmatpush.bf16.msra.mxu0 0
      %9227 = vmatpush.bf16.msra.mxu0 0
      %9228 = vmatpush.bf16.msra.mxu0 0
      %9229 = vmatpush.bf16.msra.mxu0 %v9203
      %9230 = vmatmul.bf16.gmra.mxu0 %v9220
      %v9231 = vpop.f32.mrf.mxu0
      %v9232 = vadd.f32 0.0, %v9231
      %v9233 = vpop.f32.mrf.mxu0
      %v9234 = vadd.f32 0.0, %v9233
      %9235 = vdwg.mxu0
      %9236 = vmatpush.bf16.msra.mxu0 0
      %9237 = vmatpush.bf16.msra.mxu0 0
      %9238 = vmatpush.bf16.msra.mxu0 0
      %9239 = vmatpush.bf16.msra.mxu0 0
      %9240 = vmatpush.bf16.msra.mxu0 0
      %9241 = vmatpush.bf16.msra.mxu0 0
      %9242 = vmatpush.bf16.msra.mxu0 0
      %9243 = vmatpush.bf16.msra.mxu0 %v9204
      %9244 = vmatmul.bf16.gmra.mxu0 %v9220
      %v9245 = vpop.f32.mrf.mxu0
      %v9246 = vadd.f32 0.0, %v9245
      %v9247 = vpop.f32.mrf.mxu0
      %v9248 = vadd.f32 0.0, %v9247
      %9249 = vdwg.mxu0
      %9250 = vmatpush.bf16.msra.mxu0 0
      %9251 = vmatpush.bf16.msra.mxu0 0
      %9252 = vmatpush.bf16.msra.mxu0 0
      %9253 = vmatpush.bf16.msra.mxu0 0
      %9254 = vmatpush.bf16.msra.mxu0 0
      %9255 = vmatpush.bf16.msra.mxu0 0
      %9256 = vmatpush.bf16.msra.mxu0 0
      %9257 = vmatpush.bf16.msra.mxu0 %v9205
      %9258 = vmatmul.bf16.gmra.mxu0 %v9220
      %v9259 = vpop.f32.mrf.mxu0
      %v9260 = vadd.f32 0.0, %v9259
      %v9261 = vpop.f32.mrf.mxu0
      %v9262 = vadd.f32 0.0, %v9261
      %9263 = vdwg.mxu0
      %9264 = vmatpush.bf16.msra.mxu0 0
      %9265 = vmatpush.bf16.msra.mxu0 0
      %9266 = vmatpush.bf16.msra.mxu0 0
      %9267 = vmatpush.bf16.msra.mxu0 0
      %9268 = vmatpush.bf16.msra.mxu0 0
      %9269 = vmatpush.bf16.msra.mxu0 0
      %9270 = vmatpush.bf16.msra.mxu0 0
      %9271 = vmatpush.bf16.msra.mxu0 %v9206
      %9272 = vmatmul.bf16.gmra.mxu0 %v9220
      %v9273 = vpop.f32.mrf.mxu0
      %v9274 = vadd.f32 0.0, %v9273
      %v9275 = vpop.f32.mrf.mxu0
      %v9276 = vadd.f32 0.0, %v9275
      %9277 = vdwg.mxu0
      %9278 = vmatpush.bf16.msra.mxu0 0
      %9279 = vmatpush.bf16.msra.mxu0 0
      %9280 = vmatpush.bf16.msra.mxu0 0
      %9281 = vmatpush.bf16.msra.mxu0 0
      %9282 = vmatpush.bf16.msra.mxu0 0
      %9283 = vmatpush.bf16.msra.mxu0 0
      %9284 = vmatpush.bf16.msra.mxu0 0
      %9285 = vmatpush.bf16.msra.mxu0 %v9207
      %9286 = vmatmul.bf16.gmra.mxu0 %v9220
      %v9287 = vpop.f32.mrf.mxu0
      %v9288 = vadd.f32 0.0, %v9287
      %v9289 = vpop.f32.mrf.mxu0
      %v9290 = vadd.f32 0.0, %v9289
      %9291 = vdwg.mxu0
      %9292 = vmatpush.bf16.msra.mxu0 0
      %9293 = vmatpush.bf16.msra.mxu0 0
      %9294 = vmatpush.bf16.msra.mxu0 0
      %9295 = vmatpush.bf16.msra.mxu0 0
      %9296 = vmatpush.bf16.msra.mxu0 0
      %9297 = vmatpush.bf16.msra.mxu0 0
      %9298 = vmatpush.bf16.msra.mxu0 0
      %9299 = vmatpush.bf16.msra.mxu0 %v9208
      %9300 = vmatmul.bf16.gmra.mxu0 %v9220
      %v9301 = vpop.f32.mrf.mxu0
      %v9302 = vadd.f32 0.0, %v9301
      %v9303 = vpop.f32.mrf.mxu0
      %v9304 = vadd.f32 0.0, %v9303
      %9305 = vdwg.mxu0
      %9306 = vmatpush.bf16.msra.mxu0 0
      %9307 = vmatpush.bf16.msra.mxu0 0
      %9308 = vmatpush.bf16.msra.mxu0 0
      %9309 = vmatpush.bf16.msra.mxu0 0
      %9310 = vmatpush.bf16.msra.mxu0 0
      %9311 = vmatpush.bf16.msra.mxu0 0
      %9312 = vmatpush.bf16.msra.mxu0 0
      %9313 = vmatpush.bf16.msra.mxu0 %v9209
      %9314 = vmatmul.bf16.gmra.mxu0 %v9220
      %v9315 = vpop.f32.mrf.mxu0
      %v9316 = vadd.f32 0.0, %v9315
      %v9317 = vpop.f32.mrf.mxu0
      %v9318 = vadd.f32 0.0, %v9317
      %9319 = vdwg.mxu0
      %9320 = vmatpush.bf16.msra.mxu0 0
      %9321 = vmatpush.bf16.msra.mxu0 0
      %9322 = vmatpush.bf16.msra.mxu0 0
      %9323 = vmatpush.bf16.msra.mxu0 0
      %9324 = vmatpush.bf16.msra.mxu0 0
      %9325 = vmatpush.bf16.msra.mxu0 0
      %9326 = vmatpush.bf16.msra.mxu0 0
      %9327 = vmatpush.bf16.msra.mxu0 %v9210
      %9328 = vmatmul.bf16.gmra.mxu0 %v9220
      %v9329 = vpop.f32.mrf.mxu0
      %v9330 = vadd.f32 0.0, %v9329
      %v9331 = vpop.f32.mrf.mxu0
      %v9332 = vadd.f32 0.0, %v9331
      %9333 = vdwg.mxu0
      %v9334 = vadd.f32 %v9161, %v9232
      %v9335 = vadd.f32 %v9162, %v9246
      %v9336 = vadd.f32 %v9163, %v9260
      %v9337 = vadd.f32 %v9164, %v9274
      %v9338 = vadd.f32 %v9165, %v9288
      %v9339 = vadd.f32 %v9166, %v9302
      %v9340 = vadd.f32 %v9167, %v9316
      %v9341 = vadd.f32 %v9168, %v9330
      %v9342 = vadd.f32 %v9169, %v9234
      %v9343 = vadd.f32 %v9170, %v9248
      %v9344 = vadd.f32 %v9171, %v9262
      %v9345 = vadd.f32 %v9172, %v9276
      %v9346 = vadd.f32 %v9173, %v9290
      %v9347 = vadd.f32 %v9174, %v9304
      %v9348 = vadd.f32 %v9175, %v9318
      %v9349 = vadd.f32 %v9176, %v9332
      %s9350 = scalar_lea.vmem %s4, 192
      %v9351 = vld [vmem:[%s9350] sm:$0xf]
      %v9352 = vld [vmem:[%s9350 + $0x4] sm:$0xf]
      %v9355 = vunpack.c.l.b16 %v9351
      %v9356 = vunpack.c.l.b16 %v9352
      %v9357 = vpack.c.b16 %v9356, %v9355
      %9358 = vrot.lane.b32.xlu0 %v5256, 19
      %v9359 = vpop.permute.xlu0 %9358
      %9360 = vrot.lane.b32.xlu0 %v5257, 19
      %v9361 = vpop.permute.xlu0 %9360
      %9362 = vrot.lane.b32.xlu0 %v5258, 19
      %v9363 = vpop.permute.xlu0 %9362
      %9364 = vrot.lane.b32.xlu0 %v5259, 19
      %v9365 = vpop.permute.xlu0 %9364
      %9366 = vrot.lane.b32.xlu0 %v5260, 19
      %v9367 = vpop.permute.xlu0 %9366
      %9368 = vrot.lane.b32.xlu0 %v5261, 19
      %v9369 = vpop.permute.xlu0 %9368
      %9370 = vrot.lane.b32.xlu0 %v5262, 19
      %v9371 = vpop.permute.xlu0 %9370
      %9372 = vrot.lane.b32.xlu0 %v5263, 19
      %v9373 = vpop.permute.xlu0 %9372
      %9374 = vrot.lane.b32.xlu0 %v7627, 19
      %v9375 = vpop.permute.xlu0 %9374
      %v9376 = vsel %vm4457, %v9359, %v9361
      %v9377 = vsel %vm4457, %v9361, %v9363
      %v9378 = vsel %vm4457, %v9363, %v9365
      %v9379 = vsel %vm4457, %v9365, %v9367
      %v9380 = vsel %vm4457, %v9367, %v9369
      %v9381 = vsel %vm4457, %v9369, %v9371
      %v9382 = vsel %vm4457, %v9371, %v9373
      %v9383 = vsel %vm4457, %v9373, %v9375
      %v9393 = vsel %vm356, %v9357, 0
      %9395 = vmatpush.bf16.msra.mxu0 0
      %9396 = vmatpush.bf16.msra.mxu0 0
      %9397 = vmatpush.bf16.msra.mxu0 0
      %9398 = vmatpush.bf16.msra.mxu0 0
      %9399 = vmatpush.bf16.msra.mxu0 0
      %9400 = vmatpush.bf16.msra.mxu0 0
      %9401 = vmatpush.bf16.msra.mxu0 0
      %9402 = vmatpush.bf16.msra.mxu0 %v9376
      %9403 = vmatmul.bf16.gmra.mxu0 %v9393
      %v9404 = vpop.f32.mrf.mxu0
      %v9405 = vadd.f32 0.0, %v9404
      %v9406 = vpop.f32.mrf.mxu0
      %v9407 = vadd.f32 0.0, %v9406
      %9408 = vdwg.mxu0
      %9409 = vmatpush.bf16.msra.mxu0 0
      %9410 = vmatpush.bf16.msra.mxu0 0
      %9411 = vmatpush.bf16.msra.mxu0 0
      %9412 = vmatpush.bf16.msra.mxu0 0
      %9413 = vmatpush.bf16.msra.mxu0 0
      %9414 = vmatpush.bf16.msra.mxu0 0
      %9415 = vmatpush.bf16.msra.mxu0 0
      %9416 = vmatpush.bf16.msra.mxu0 %v9377
      %9417 = vmatmul.bf16.gmra.mxu0 %v9393
      %v9418 = vpop.f32.mrf.mxu0
      %v9419 = vadd.f32 0.0, %v9418
      %v9420 = vpop.f32.mrf.mxu0
      %v9421 = vadd.f32 0.0, %v9420
      %9422 = vdwg.mxu0
      %9423 = vmatpush.bf16.msra.mxu0 0
      %9424 = vmatpush.bf16.msra.mxu0 0
      %9425 = vmatpush.bf16.msra.mxu0 0
      %9426 = vmatpush.bf16.msra.mxu0 0
      %9427 = vmatpush.bf16.msra.mxu0 0
      %9428 = vmatpush.bf16.msra.mxu0 0
      %9429 = vmatpush.bf16.msra.mxu0 0
      %9430 = vmatpush.bf16.msra.mxu0 %v9378
      %9431 = vmatmul.bf16.gmra.mxu0 %v9393
      %v9432 = vpop.f32.mrf.mxu0
      %v9433 = vadd.f32 0.0, %v9432
      %v9434 = vpop.f32.mrf.mxu0
      %v9435 = vadd.f32 0.0, %v9434
      %9436 = vdwg.mxu0
      %9437 = vmatpush.bf16.msra.mxu0 0
      %9438 = vmatpush.bf16.msra.mxu0 0
      %9439 = vmatpush.bf16.msra.mxu0 0
      %9440 = vmatpush.bf16.msra.mxu0 0
      %9441 = vmatpush.bf16.msra.mxu0 0
      %9442 = vmatpush.bf16.msra.mxu0 0
      %9443 = vmatpush.bf16.msra.mxu0 0
      %9444 = vmatpush.bf16.msra.mxu0 %v9379
      %9445 = vmatmul.bf16.gmra.mxu0 %v9393
      %v9446 = vpop.f32.mrf.mxu0
      %v9447 = vadd.f32 0.0, %v9446
      %v9448 = vpop.f32.mrf.mxu0
      %v9449 = vadd.f32 0.0, %v9448
      %9450 = vdwg.mxu0
      %9451 = vmatpush.bf16.msra.mxu0 0
      %9452 = vmatpush.bf16.msra.mxu0 0
      %9453 = vmatpush.bf16.msra.mxu0 0
      %9454 = vmatpush.bf16.msra.mxu0 0
      %9455 = vmatpush.bf16.msra.mxu0 0
      %9456 = vmatpush.bf16.msra.mxu0 0
      %9457 = vmatpush.bf16.msra.mxu0 0
      %9458 = vmatpush.bf16.msra.mxu0 %v9380
      %9459 = vmatmul.bf16.gmra.mxu0 %v9393
      %v9460 = vpop.f32.mrf.mxu0
      %v9461 = vadd.f32 0.0, %v9460
      %v9462 = vpop.f32.mrf.mxu0
      %v9463 = vadd.f32 0.0, %v9462
      %9464 = vdwg.mxu0
      %9465 = vmatpush.bf16.msra.mxu0 0
      %9466 = vmatpush.bf16.msra.mxu0 0
      %9467 = vmatpush.bf16.msra.mxu0 0
      %9468 = vmatpush.bf16.msra.mxu0 0
      %9469 = vmatpush.bf16.msra.mxu0 0
      %9470 = vmatpush.bf16.msra.mxu0 0
      %9471 = vmatpush.bf16.msra.mxu0 0
      %9472 = vmatpush.bf16.msra.mxu0 %v9381
      %9473 = vmatmul.bf16.gmra.mxu0 %v9393
      %v9474 = vpop.f32.mrf.mxu0
      %v9475 = vadd.f32 0.0, %v9474
      %v9476 = vpop.f32.mrf.mxu0
      %v9477 = vadd.f32 0.0, %v9476
      %9478 = vdwg.mxu0
      %9479 = vmatpush.bf16.msra.mxu0 0
      %9480 = vmatpush.bf16.msra.mxu0 0
      %9481 = vmatpush.bf16.msra.mxu0 0
      %9482 = vmatpush.bf16.msra.mxu0 0
      %9483 = vmatpush.bf16.msra.mxu0 0
      %9484 = vmatpush.bf16.msra.mxu0 0
      %9485 = vmatpush.bf16.msra.mxu0 0
      %9486 = vmatpush.bf16.msra.mxu0 %v9382
      %9487 = vmatmul.bf16.gmra.mxu0 %v9393
      %v9488 = vpop.f32.mrf.mxu0
      %v9489 = vadd.f32 0.0, %v9488
      %v9490 = vpop.f32.mrf.mxu0
      %v9491 = vadd.f32 0.0, %v9490
      %9492 = vdwg.mxu0
      %9493 = vmatpush.bf16.msra.mxu0 0
      %9494 = vmatpush.bf16.msra.mxu0 0
      %9495 = vmatpush.bf16.msra.mxu0 0
      %9496 = vmatpush.bf16.msra.mxu0 0
      %9497 = vmatpush.bf16.msra.mxu0 0
      %9498 = vmatpush.bf16.msra.mxu0 0
      %9499 = vmatpush.bf16.msra.mxu0 0
      %9500 = vmatpush.bf16.msra.mxu0 %v9383
      %9501 = vmatmul.bf16.gmra.mxu0 %v9393
      %v9502 = vpop.f32.mrf.mxu0
      %v9503 = vadd.f32 0.0, %v9502
      %v9504 = vpop.f32.mrf.mxu0
      %v9505 = vadd.f32 0.0, %v9504
      %9506 = vdwg.mxu0
      %v9507 = vadd.f32 %v9334, %v9405
      %v9508 = vadd.f32 %v9335, %v9419
      %v9509 = vadd.f32 %v9336, %v9433
      %v9510 = vadd.f32 %v9337, %v9447
      %v9511 = vadd.f32 %v9338, %v9461
      %v9512 = vadd.f32 %v9339, %v9475
      %v9513 = vadd.f32 %v9340, %v9489
      %v9514 = vadd.f32 %v9341, %v9503
      %v9515 = vadd.f32 %v9342, %v9407
      %v9516 = vadd.f32 %v9343, %v9421
      %v9517 = vadd.f32 %v9344, %v9435
      %v9518 = vadd.f32 %v9345, %v9449
      %v9519 = vadd.f32 %v9346, %v9463
      %v9520 = vadd.f32 %v9347, %v9477
      %v9521 = vadd.f32 %v9348, %v9491
      %v9522 = vadd.f32 %v9349, %v9505
      %s9523 = scalar_lea.vmem %s4, 200
      %v9524 = vld [vmem:[%s9523] sm:$0xf]
      %v9525 = vld [vmem:[%s9523 + $0x4] sm:$0xf]
      %v9528 = vunpack.c.l.b16 %v9524
      %v9529 = vunpack.c.l.b16 %v9525
      %v9530 = vpack.c.b16 %v9529, %v9528
      %9531 = vrot.lane.b32.xlu0 %v5256, 18
      %v9532 = vpop.permute.xlu0 %9531
      %9533 = vrot.lane.b32.xlu0 %v5257, 18
      %v9534 = vpop.permute.xlu0 %9533
      %9535 = vrot.lane.b32.xlu0 %v5258, 18
      %v9536 = vpop.permute.xlu0 %9535
      %9537 = vrot.lane.b32.xlu0 %v5259, 18
      %v9538 = vpop.permute.xlu0 %9537
      %9539 = vrot.lane.b32.xlu0 %v5260, 18
      %v9540 = vpop.permute.xlu0 %9539
      %9541 = vrot.lane.b32.xlu0 %v5261, 18
      %v9542 = vpop.permute.xlu0 %9541
      %9543 = vrot.lane.b32.xlu0 %v5262, 18
      %v9544 = vpop.permute.xlu0 %9543
      %9545 = vrot.lane.b32.xlu0 %v5263, 18
      %v9546 = vpop.permute.xlu0 %9545
      %9547 = vrot.lane.b32.xlu0 %v7627, 18
      %v9548 = vpop.permute.xlu0 %9547
      %v9549 = vsel %vm4631, %v9532, %v9534
      %v9550 = vsel %vm4631, %v9534, %v9536
      %v9551 = vsel %vm4631, %v9536, %v9538
      %v9552 = vsel %vm4631, %v9538, %v9540
      %v9553 = vsel %vm4631, %v9540, %v9542
      %v9554 = vsel %vm4631, %v9542, %v9544
      %v9555 = vsel %vm4631, %v9544, %v9546
      %v9556 = vsel %vm4631, %v9546, %v9548
      %v9566 = vsel %vm356, %v9530, 0
      %9568 = vmatpush.bf16.msra.mxu0 0
      %9569 = vmatpush.bf16.msra.mxu0 0
      %9570 = vmatpush.bf16.msra.mxu0 0
      %9571 = vmatpush.bf16.msra.mxu0 0
      %9572 = vmatpush.bf16.msra.mxu0 0
      %9573 = vmatpush.bf16.msra.mxu0 0
      %9574 = vmatpush.bf16.msra.mxu0 0
      %9575 = vmatpush.bf16.msra.mxu0 %v9549
      %9576 = vmatmul.bf16.gmra.mxu0 %v9566
      %v9577 = vpop.f32.mrf.mxu0
      %v9578 = vadd.f32 0.0, %v9577
      %v9579 = vpop.f32.mrf.mxu0
      %v9580 = vadd.f32 0.0, %v9579
      %9581 = vdwg.mxu0
      %9582 = vmatpush.bf16.msra.mxu0 0
      %9583 = vmatpush.bf16.msra.mxu0 0
      %9584 = vmatpush.bf16.msra.mxu0 0
      %9585 = vmatpush.bf16.msra.mxu0 0
      %9586 = vmatpush.bf16.msra.mxu0 0
      %9587 = vmatpush.bf16.msra.mxu0 0
      %9588 = vmatpush.bf16.msra.mxu0 0
      %9589 = vmatpush.bf16.msra.mxu0 %v9550
      %9590 = vmatmul.bf16.gmra.mxu0 %v9566
      %v9591 = vpop.f32.mrf.mxu0
      %v9592 = vadd.f32 0.0, %v9591
      %v9593 = vpop.f32.mrf.mxu0
      %v9594 = vadd.f32 0.0, %v9593
      %9595 = vdwg.mxu0
      %9596 = vmatpush.bf16.msra.mxu0 0
      %9597 = vmatpush.bf16.msra.mxu0 0
      %9598 = vmatpush.bf16.msra.mxu0 0
      %9599 = vmatpush.bf16.msra.mxu0 0
      %9600 = vmatpush.bf16.msra.mxu0 0
      %9601 = vmatpush.bf16.msra.mxu0 0
      %9602 = vmatpush.bf16.msra.mxu0 0
      %9603 = vmatpush.bf16.msra.mxu0 %v9551
      %9604 = vmatmul.bf16.gmra.mxu0 %v9566
      %v9605 = vpop.f32.mrf.mxu0
      %v9606 = vadd.f32 0.0, %v9605
      %v9607 = vpop.f32.mrf.mxu0
      %v9608 = vadd.f32 0.0, %v9607
      %9609 = vdwg.mxu0
      %9610 = vmatpush.bf16.msra.mxu0 0
      %9611 = vmatpush.bf16.msra.mxu0 0
      %9612 = vmatpush.bf16.msra.mxu0 0
      %9613 = vmatpush.bf16.msra.mxu0 0
      %9614 = vmatpush.bf16.msra.mxu0 0
      %9615 = vmatpush.bf16.msra.mxu0 0
      %9616 = vmatpush.bf16.msra.mxu0 0
      %9617 = vmatpush.bf16.msra.mxu0 %v9552
      %9618 = vmatmul.bf16.gmra.mxu0 %v9566
      %v9619 = vpop.f32.mrf.mxu0
      %v9620 = vadd.f32 0.0, %v9619
      %v9621 = vpop.f32.mrf.mxu0
      %v9622 = vadd.f32 0.0, %v9621
      %9623 = vdwg.mxu0
      %9624 = vmatpush.bf16.msra.mxu0 0
      %9625 = vmatpush.bf16.msra.mxu0 0
      %9626 = vmatpush.bf16.msra.mxu0 0
      %9627 = vmatpush.bf16.msra.mxu0 0
      %9628 = vmatpush.bf16.msra.mxu0 0
      %9629 = vmatpush.bf16.msra.mxu0 0
      %9630 = vmatpush.bf16.msra.mxu0 0
      %9631 = vmatpush.bf16.msra.mxu0 %v9553
      %9632 = vmatmul.bf16.gmra.mxu0 %v9566
      %v9633 = vpop.f32.mrf.mxu0
      %v9634 = vadd.f32 0.0, %v9633
      %v9635 = vpop.f32.mrf.mxu0
      %v9636 = vadd.f32 0.0, %v9635
      %9637 = vdwg.mxu0
      %9638 = vmatpush.bf16.msra.mxu0 0
      %9639 = vmatpush.bf16.msra.mxu0 0
      %9640 = vmatpush.bf16.msra.mxu0 0
      %9641 = vmatpush.bf16.msra.mxu0 0
      %9642 = vmatpush.bf16.msra.mxu0 0
      %9643 = vmatpush.bf16.msra.mxu0 0
      %9644 = vmatpush.bf16.msra.mxu0 0
      %9645 = vmatpush.bf16.msra.mxu0 %v9554
      %9646 = vmatmul.bf16.gmra.mxu0 %v9566
      %v9647 = vpop.f32.mrf.mxu0
      %v9648 = vadd.f32 0.0, %v9647
      %v9649 = vpop.f32.mrf.mxu0
      %v9650 = vadd.f32 0.0, %v9649
      %9651 = vdwg.mxu0
      %9652 = vmatpush.bf16.msra.mxu0 0
      %9653 = vmatpush.bf16.msra.mxu0 0
      %9654 = vmatpush.bf16.msra.mxu0 0
      %9655 = vmatpush.bf16.msra.mxu0 0
      %9656 = vmatpush.bf16.msra.mxu0 0
      %9657 = vmatpush.bf16.msra.mxu0 0
      %9658 = vmatpush.bf16.msra.mxu0 0
      %9659 = vmatpush.bf16.msra.mxu0 %v9555
      %9660 = vmatmul.bf16.gmra.mxu0 %v9566
      %v9661 = vpop.f32.mrf.mxu0
      %v9662 = vadd.f32 0.0, %v9661
      %v9663 = vpop.f32.mrf.mxu0
      %v9664 = vadd.f32 0.0, %v9663
      %9665 = vdwg.mxu0
      %9666 = vmatpush.bf16.msra.mxu0 0
      %9667 = vmatpush.bf16.msra.mxu0 0
      %9668 = vmatpush.bf16.msra.mxu0 0
      %9669 = vmatpush.bf16.msra.mxu0 0
      %9670 = vmatpush.bf16.msra.mxu0 0
      %9671 = vmatpush.bf16.msra.mxu0 0
      %9672 = vmatpush.bf16.msra.mxu0 0
      %9673 = vmatpush.bf16.msra.mxu0 %v9556
      %9674 = vmatmul.bf16.gmra.mxu0 %v9566
      %v9675 = vpop.f32.mrf.mxu0
      %v9676 = vadd.f32 0.0, %v9675
      %v9677 = vpop.f32.mrf.mxu0
      %v9678 = vadd.f32 0.0, %v9677
      %9679 = vdwg.mxu0
      %v9680 = vadd.f32 %v9507, %v9578
      %v9681 = vadd.f32 %v9508, %v9592
      %v9682 = vadd.f32 %v9509, %v9606
      %v9683 = vadd.f32 %v9510, %v9620
      %v9684 = vadd.f32 %v9511, %v9634
      %v9685 = vadd.f32 %v9512, %v9648
      %v9686 = vadd.f32 %v9513, %v9662
      %v9687 = vadd.f32 %v9514, %v9676
      %v9688 = vadd.f32 %v9515, %v9580
      %v9689 = vadd.f32 %v9516, %v9594
      %v9690 = vadd.f32 %v9517, %v9608
      %v9691 = vadd.f32 %v9518, %v9622
      %v9692 = vadd.f32 %v9519, %v9636
      %v9693 = vadd.f32 %v9520, %v9650
      %v9694 = vadd.f32 %v9521, %v9664
      %v9695 = vadd.f32 %v9522, %v9678
      %s9696 = scalar_lea.vmem %s4, 208
      %v9697 = vld [vmem:[%s9696] sm:$0xf]
      %v9698 = vld [vmem:[%s9696 + $0x4] sm:$0xf]
      %v9701 = vunpack.c.l.b16 %v9697
      %v9702 = vunpack.c.l.b16 %v9698
      %v9703 = vpack.c.b16 %v9702, %v9701
      %9704 = vrot.lane.b32.xlu0 %v5256, 17
      %v9705 = vpop.permute.xlu0 %9704
      %9706 = vrot.lane.b32.xlu0 %v5257, 17
      %v9707 = vpop.permute.xlu0 %9706
      %9708 = vrot.lane.b32.xlu0 %v5258, 17
      %v9709 = vpop.permute.xlu0 %9708
      %9710 = vrot.lane.b32.xlu0 %v5259, 17
      %v9711 = vpop.permute.xlu0 %9710
      %9712 = vrot.lane.b32.xlu0 %v5260, 17
      %v9713 = vpop.permute.xlu0 %9712
      %9714 = vrot.lane.b32.xlu0 %v5261, 17
      %v9715 = vpop.permute.xlu0 %9714
      %9716 = vrot.lane.b32.xlu0 %v5262, 17
      %v9717 = vpop.permute.xlu0 %9716
      %9718 = vrot.lane.b32.xlu0 %v5263, 17
      %v9719 = vpop.permute.xlu0 %9718
      %9720 = vrot.lane.b32.xlu0 %v7627, 17
      %v9721 = vpop.permute.xlu0 %9720
      %v9722 = vsel %vm4805, %v9705, %v9707
      %v9723 = vsel %vm4805, %v9707, %v9709
      %v9724 = vsel %vm4805, %v9709, %v9711
      %v9725 = vsel %vm4805, %v9711, %v9713
      %v9726 = vsel %vm4805, %v9713, %v9715
      %v9727 = vsel %vm4805, %v9715, %v9717
      %v9728 = vsel %vm4805, %v9717, %v9719
      %v9729 = vsel %vm4805, %v9719, %v9721
      %v9739 = vsel %vm356, %v9703, 0
      %9741 = vmatpush.bf16.msra.mxu0 0
      %9742 = vmatpush.bf16.msra.mxu0 0
      %9743 = vmatpush.bf16.msra.mxu0 0
      %9744 = vmatpush.bf16.msra.mxu0 0
      %9745 = vmatpush.bf16.msra.mxu0 0
      %9746 = vmatpush.bf16.msra.mxu0 0
      %9747 = vmatpush.bf16.msra.mxu0 0
      %9748 = vmatpush.bf16.msra.mxu0 %v9722
      %9749 = vmatmul.bf16.gmra.mxu0 %v9739
      %v9750 = vpop.f32.mrf.mxu0
      %v9751 = vadd.f32 0.0, %v9750
      %v9752 = vpop.f32.mrf.mxu0
      %v9753 = vadd.f32 0.0, %v9752
      %9754 = vdwg.mxu0
      %9755 = vmatpush.bf16.msra.mxu0 0
      %9756 = vmatpush.bf16.msra.mxu0 0
      %9757 = vmatpush.bf16.msra.mxu0 0
      %9758 = vmatpush.bf16.msra.mxu0 0
      %9759 = vmatpush.bf16.msra.mxu0 0
      %9760 = vmatpush.bf16.msra.mxu0 0
      %9761 = vmatpush.bf16.msra.mxu0 0
      %9762 = vmatpush.bf16.msra.mxu0 %v9723
      %9763 = vmatmul.bf16.gmra.mxu0 %v9739
      %v9764 = vpop.f32.mrf.mxu0
      %v9765 = vadd.f32 0.0, %v9764
      %v9766 = vpop.f32.mrf.mxu0
      %v9767 = vadd.f32 0.0, %v9766
      %9768 = vdwg.mxu0
      %9769 = vmatpush.bf16.msra.mxu0 0
      %9770 = vmatpush.bf16.msra.mxu0 0
      %9771 = vmatpush.bf16.msra.mxu0 0
      %9772 = vmatpush.bf16.msra.mxu0 0
      %9773 = vmatpush.bf16.msra.mxu0 0
      %9774 = vmatpush.bf16.msra.mxu0 0
      %9775 = vmatpush.bf16.msra.mxu0 0
      %9776 = vmatpush.bf16.msra.mxu0 %v9724
      %9777 = vmatmul.bf16.gmra.mxu0 %v9739
      %v9778 = vpop.f32.mrf.mxu0
      %v9779 = vadd.f32 0.0, %v9778
      %v9780 = vpop.f32.mrf.mxu0
      %v9781 = vadd.f32 0.0, %v9780
      %9782 = vdwg.mxu0
      %9783 = vmatpush.bf16.msra.mxu0 0
      %9784 = vmatpush.bf16.msra.mxu0 0
      %9785 = vmatpush.bf16.msra.mxu0 0
      %9786 = vmatpush.bf16.msra.mxu0 0
      %9787 = vmatpush.bf16.msra.mxu0 0
      %9788 = vmatpush.bf16.msra.mxu0 0
      %9789 = vmatpush.bf16.msra.mxu0 0
      %9790 = vmatpush.bf16.msra.mxu0 %v9725
      %9791 = vmatmul.bf16.gmra.mxu0 %v9739
      %v9792 = vpop.f32.mrf.mxu0
      %v9793 = vadd.f32 0.0, %v9792
      %v9794 = vpop.f32.mrf.mxu0
      %v9795 = vadd.f32 0.0, %v9794
      %9796 = vdwg.mxu0
      %9797 = vmatpush.bf16.msra.mxu0 0
      %9798 = vmatpush.bf16.msra.mxu0 0
      %9799 = vmatpush.bf16.msra.mxu0 0
      %9800 = vmatpush.bf16.msra.mxu0 0
      %9801 = vmatpush.bf16.msra.mxu0 0
      %9802 = vmatpush.bf16.msra.mxu0 0
      %9803 = vmatpush.bf16.msra.mxu0 0
      %9804 = vmatpush.bf16.msra.mxu0 %v9726
      %9805 = vmatmul.bf16.gmra.mxu0 %v9739
      %v9806 = vpop.f32.mrf.mxu0
      %v9807 = vadd.f32 0.0, %v9806
      %v9808 = vpop.f32.mrf.mxu0
      %v9809 = vadd.f32 0.0, %v9808
      %9810 = vdwg.mxu0
      %9811 = vmatpush.bf16.msra.mxu0 0
      %9812 = vmatpush.bf16.msra.mxu0 0
      %9813 = vmatpush.bf16.msra.mxu0 0
      %9814 = vmatpush.bf16.msra.mxu0 0
      %9815 = vmatpush.bf16.msra.mxu0 0
      %9816 = vmatpush.bf16.msra.mxu0 0
      %9817 = vmatpush.bf16.msra.mxu0 0
      %9818 = vmatpush.bf16.msra.mxu0 %v9727
      %9819 = vmatmul.bf16.gmra.mxu0 %v9739
      %v9820 = vpop.f32.mrf.mxu0
      %v9821 = vadd.f32 0.0, %v9820
      %v9822 = vpop.f32.mrf.mxu0
      %v9823 = vadd.f32 0.0, %v9822
      %9824 = vdwg.mxu0
      %9825 = vmatpush.bf16.msra.mxu0 0
      %9826 = vmatpush.bf16.msra.mxu0 0
      %9827 = vmatpush.bf16.msra.mxu0 0
      %9828 = vmatpush.bf16.msra.mxu0 0
      %9829 = vmatpush.bf16.msra.mxu0 0
      %9830 = vmatpush.bf16.msra.mxu0 0
      %9831 = vmatpush.bf16.msra.mxu0 0
      %9832 = vmatpush.bf16.msra.mxu0 %v9728
      %9833 = vmatmul.bf16.gmra.mxu0 %v9739
      %v9834 = vpop.f32.mrf.mxu0
      %v9835 = vadd.f32 0.0, %v9834
      %v9836 = vpop.f32.mrf.mxu0
      %v9837 = vadd.f32 0.0, %v9836
      %9838 = vdwg.mxu0
      %9839 = vmatpush.bf16.msra.mxu0 0
      %9840 = vmatpush.bf16.msra.mxu0 0
      %9841 = vmatpush.bf16.msra.mxu0 0
      %9842 = vmatpush.bf16.msra.mxu0 0
      %9843 = vmatpush.bf16.msra.mxu0 0
      %9844 = vmatpush.bf16.msra.mxu0 0
      %9845 = vmatpush.bf16.msra.mxu0 0
      %9846 = vmatpush.bf16.msra.mxu0 %v9729
      %9847 = vmatmul.bf16.gmra.mxu0 %v9739
      %v9848 = vpop.f32.mrf.mxu0
      %v9849 = vadd.f32 0.0, %v9848
      %v9850 = vpop.f32.mrf.mxu0
      %v9851 = vadd.f32 0.0, %v9850
      %9852 = vdwg.mxu0
      %v9853 = vadd.f32 %v9680, %v9751
      %v9854 = vadd.f32 %v9681, %v9765
      %v9855 = vadd.f32 %v9682, %v9779
      %v9856 = vadd.f32 %v9683, %v9793
      %v9857 = vadd.f32 %v9684, %v9807
      %v9858 = vadd.f32 %v9685, %v9821
      %v9859 = vadd.f32 %v9686, %v9835
      %v9860 = vadd.f32 %v9687, %v9849
      %v9861 = vadd.f32 %v9688, %v9753
      %v9862 = vadd.f32 %v9689, %v9767
      %v9863 = vadd.f32 %v9690, %v9781
      %v9864 = vadd.f32 %v9691, %v9795
      %v9865 = vadd.f32 %v9692, %v9809
      %v9866 = vadd.f32 %v9693, %v9823
      %v9867 = vadd.f32 %v9694, %v9837
      %v9868 = vadd.f32 %v9695, %v9851
      %v9869 = vld [vmem:[%s5] sm:$0xff]
      %v9870 = vld [vmem:[%s5 + $0x8] sm:$0xff]
      %9872 = vset.pattern.permute.xlu0 0
      %9873 = vperm.xlu0 %9872, %v9869
      %v9874 = vpop.permute.xlu0 %9873
      %9877 = vset.pattern.permute.xlu0 0
      %9878 = vperm.xlu0 %9877, %v9870
      %v9879 = vpop.permute.xlu0 %9878
      %v9881 = vadd.f32 %v9853, %v9874
      %v9882 = vadd.f32 %v9854, %v9874
      %v9883 = vadd.f32 %v9855, %v9874
      %v9884 = vadd.f32 %v9856, %v9874
      %v9885 = vadd.f32 %v9857, %v9874
      %v9886 = vadd.f32 %v9858, %v9874
      %v9887 = vadd.f32 %v9859, %v9874
      %v9888 = vadd.f32 %v9860, %v9874
      %v9889 = vadd.f32 %v9861, %v9879
      %v9890 = vadd.f32 %v9862, %v9879
      %v9891 = vadd.f32 %v9863, %v9879
      %v9892 = vadd.f32 %v9864, %v9879
      %v9893 = vadd.f32 %v9865, %v9879
      %v9894 = vadd.f32 %v9866, %v9879
      %v9895 = vadd.f32 %v9867, %v9879
      %v9896 = vadd.f32 %v9868, %v9879
      %v9897 = vmul.f32 %v9881, %v4982
      %v9898 = vmul.f32 %v9882, %v4983
      %v9899 = vmul.f32 %v9883, %v4984
      %v9900 = vmul.f32 %v9884, %v4985
      %v9901 = vmul.f32 %v9885, %v4986
      %v9902 = vmul.f32 %v9886, %v4987
      %v9903 = vmul.f32 %v9887, %v4988
      %v9904 = vmul.f32 %v9888, %v4989
      %v9905 = vmul.f32 %v9889, %v4982
      %v9906 = vmul.f32 %v9890, %v4983
      %v9907 = vmul.f32 %v9891, %v4984
      %v9908 = vmul.f32 %v9892, %v4985
      %v9909 = vmul.f32 %v9893, %v4986
      %v9910 = vmul.f32 %v9894, %v4987
      %v9911 = vmul.f32 %v9895, %v4988
      %v9912 = vmul.f32 %v9896, %v4989
      %v9913 = vmul.f32 %v9897, %v9897
      %v9914 = vmul.f32 %v9898, %v9898
      %v9915 = vmul.f32 %v9899, %v9899
      %v9916 = vmul.f32 %v9900, %v9900
      %v9917 = vmul.f32 %v9901, %v9901
      %v9918 = vmul.f32 %v9902, %v9902
      %v9919 = vmul.f32 %v9903, %v9903
      %v9920 = vmul.f32 %v9904, %v9904
      %v9921 = vmul.f32 %v9905, %v9905
      %v9922 = vmul.f32 %v9906, %v9906
      %v9923 = vmul.f32 %v9907, %v9907
      %v9924 = vmul.f32 %v9908, %v9908
      %v9925 = vmul.f32 %v9909, %v9909
      %v9926 = vmul.f32 %v9910, %v9910
      %v9927 = vmul.f32 %v9911, %v9911
      %v9928 = vmul.f32 %v9912, %v9912
      %v9929 = vadd.f32 %v9913, %v9914
      %v9930 = vadd.f32 %v9929, %v9915
      %v9931 = vadd.f32 %v9930, %v9916
      %v9932 = vadd.f32 %v9931, %v9917
      %v9933 = vadd.f32 %v9932, %v9918
      %v9934 = vadd.f32 %v9933, %v9919
      %v9935 = vadd.f32 %v9934, %v9920
      %9936 = vadd.xlane.f32.xlu0 %v9935
      %v9937 = vpop.xlane.xlu0 %9936
      %v9938 = vadd.f32 %v9921, %v9922
      %v9939 = vadd.f32 %v9938, %v9923
      %v9940 = vadd.f32 %v9939, %v9924
      %v9941 = vadd.f32 %v9940, %v9925
      %v9942 = vadd.f32 %v9941, %v9926
      %v9943 = vadd.f32 %v9942, %v9927
      %v9944 = vadd.f32 %v9943, %v9928
      %9945 = vadd.xlane.f32.xlu0 %v9944
      %v9946 = vpop.xlane.xlu0 %9945
      %v9947 = vmul.f32 %v9937, 0.001953125
      %v9948 = vmul.f32 %v9946, 0.001953125
      %v9949 = vadd.f32 %v9947, 1e-06
      %v9950 = vadd.f32 %v9948, 1e-06
      %v9951 = vrsqrt.pop %v9949
      %v9952 = vmul.f32 %v9951, %v9949
      %v9953 = vmul.f32 %v9952, %v9951
      %v9954 = vmul.f32 0.5, %v9953
      %v9955 = vsub.f32 1.5, %v9954
      %v9956 = vmul.f32 %v9951, %v9955
      %vm9957 = vweird.f32 %v9949
      %vm9958 = vweird.f32 %v9951
      %vm9959 = vmor %vm9957, %vm9958
      %v9960 = vsel %vm9959, %v9951, %v9956
      %v9961 = vrsqrt.pop %v9950
      %v9962 = vmul.f32 %v9961, %v9950
      %v9963 = vmul.f32 %v9962, %v9961
      %v9964 = vmul.f32 0.5, %v9963
      %v9965 = vsub.f32 1.5, %v9964
      %v9966 = vmul.f32 %v9961, %v9965
      %vm9967 = vweird.f32 %v9950
      %vm9968 = vweird.f32 %v9961
      %vm9969 = vmor %vm9967, %vm9968
      %v9970 = vsel %vm9969, %v9961, %v9966
      %v9971 = vmul.f32 %v9897, %v9960
      %v9972 = vmul.f32 %v9898, %v9960
      %v9973 = vmul.f32 %v9899, %v9960
      %v9974 = vmul.f32 %v9900, %v9960
      %v9975 = vmul.f32 %v9901, %v9960
      %v9976 = vmul.f32 %v9902, %v9960
      %v9977 = vmul.f32 %v9903, %v9960
      %v9978 = vmul.f32 %v9904, %v9960
      %v9979 = vmul.f32 %v9905, %v9970
      %v9980 = vmul.f32 %v9906, %v9970
      %v9981 = vmul.f32 %v9907, %v9970
      %v9982 = vmul.f32 %v9908, %v9970
      %v9983 = vmul.f32 %v9909, %v9970
      %v9984 = vmul.f32 %v9910, %v9970
      %v9985 = vmul.f32 %v9911, %v9970
      %v9986 = vmul.f32 %v9912, %v9970
      %s9987 = scalar_lea.vmem %s5, 16
      %v9988 = vld [vmem:[%s9987] sm:$0xff]
      %v9989 = vld [vmem:[%s9987 + $0x8] sm:$0xff]
      %9991 = vset.pattern.permute.xlu0 0
      %9992 = vperm.xlu0 %9991, %v9988
      %v9993 = vpop.permute.xlu0 %9992
      %9996 = vset.pattern.permute.xlu0 0
      %9997 = vperm.xlu0 %9996, %v9989
      %v9998 = vpop.permute.xlu0 %9997
      %v10000 = vmul.f32 %v9993, %v9971
      %v10001 = vmul.f32 %v9993, %v9972
      %v10002 = vmul.f32 %v9993, %v9973
      %v10003 = vmul.f32 %v9993, %v9974
      %v10004 = vmul.f32 %v9993, %v9975
      %v10005 = vmul.f32 %v9993, %v9976
      %v10006 = vmul.f32 %v9993, %v9977
      %v10007 = vmul.f32 %v9993, %v9978
      %v10008 = vmul.f32 %v9998, %v9979
      %v10009 = vmul.f32 %v9998, %v9980
      %v10010 = vmul.f32 %v9998, %v9981
      %v10011 = vmul.f32 %v9998, %v9982
      %v10012 = vmul.f32 %v9998, %v9983
      %v10013 = vmul.f32 %v9998, %v9984
      %v10014 = vmul.f32 %v9998, %v9985
      %v10015 = vmul.f32 %v9998, %v9986
      %s10016 = scalar_lea.vmem %s5, 32
      %v10017 = vld [vmem:[%s10016] sm:$0xff]
      %v10018 = vld [vmem:[%s10016 + $0x8] sm:$0xff]
      %10020 = vset.pattern.permute.xlu0 0
      %10021 = vperm.xlu0 %10020, %v10017
      %v10022 = vpop.permute.xlu0 %10021
      %10025 = vset.pattern.permute.xlu0 0
      %10026 = vperm.xlu0 %10025, %v10018
      %v10027 = vpop.permute.xlu0 %10026
      %v10029 = vadd.f32 %v10000, %v10022
      %v10030 = vadd.f32 %v10001, %v10022
      %v10031 = vadd.f32 %v10002, %v10022
      %v10032 = vadd.f32 %v10003, %v10022
      %v10033 = vadd.f32 %v10004, %v10022
      %v10034 = vadd.f32 %v10005, %v10022
      %v10035 = vadd.f32 %v10006, %v10022
      %v10036 = vadd.f32 %v10007, %v10022
      %v10037 = vadd.f32 %v10008, %v10027
      %v10038 = vadd.f32 %v10009, %v10027
      %v10039 = vadd.f32 %v10010, %v10027
      %v10040 = vadd.f32 %v10011, %v10027
      %v10041 = vadd.f32 %v10012, %v10027
      %v10042 = vadd.f32 %v10013, %v10027
      %v10043 = vadd.f32 %v10014, %v10027
      %v10044 = vadd.f32 %v10015, %v10027
      %s10045 = scalar_lea.vmem %s5, 48
      %v10046 = vld [vmem:[%s10045] sm:$0xff]
      %v10047 = vld [vmem:[%s10045 + $0x8] sm:$0xff]
      %10049 = vset.pattern.permute.xlu0 0
      %10050 = vperm.xlu0 %10049, %v10046
      %v10051 = vpop.permute.xlu0 %10050
      %10054 = vset.pattern.permute.xlu0 0
      %10055 = vperm.xlu0 %10054, %v10047
      %v10056 = vpop.permute.xlu0 %10055
      %v10058 = vmax.f32 %v10029, %v10051
      %v10059 = vmax.f32 %v10030, %v10051
      %v10060 = vmax.f32 %v10031, %v10051
      %v10061 = vmax.f32 %v10032, %v10051
      %v10062 = vmax.f32 %v10033, %v10051
      %v10063 = vmax.f32 %v10034, %v10051
      %v10064 = vmax.f32 %v10035, %v10051
      %v10065 = vmax.f32 %v10036, %v10051
      %v10066 = vmax.f32 %v10037, %v10056
      %v10067 = vmax.f32 %v10038, %v10056
      %v10068 = vmax.f32 %v10039, %v10056
      %v10069 = vmax.f32 %v10040, %v10056
      %v10070 = vmax.f32 %v10041, %v10056
      %v10071 = vmax.f32 %v10042, %v10056
      %v10072 = vmax.f32 %v10043, %v10056
      %v10073 = vmax.f32 %v10044, %v10056
      %v10074 = vmul.f32 %v10058, %v4982
      %v10075 = vmul.f32 %v10059, %v4983
      %v10076 = vmul.f32 %v10060, %v4984
      %v10077 = vmul.f32 %v10061, %v4985
      %v10078 = vmul.f32 %v10062, %v4986
      %v10079 = vmul.f32 %v10063, %v4987
      %v10080 = vmul.f32 %v10064, %v4988
      %v10081 = vmul.f32 %v10065, %v4989
      %v10082 = vmul.f32 %v10066, %v4982
      %v10083 = vmul.f32 %v10067, %v4983
      %v10084 = vmul.f32 %v10068, %v4984
      %v10085 = vmul.f32 %v10069, %v4985
      %v10086 = vmul.f32 %v10070, %v4986
      %v10087 = vmul.f32 %v10071, %v4987
      %v10088 = vmul.f32 %v10072, %v4988
      %v10089 = vmul.f32 %v10073, %v4989
      %10090 = vst [vmem:[%s251] sm:$0xff] %v10074
      %10091 = vst [vmem:[%s251 + $0x8] sm:$0xff] %v10075
      %10092 = vst [vmem:[%s251 + $0x10] sm:$0xff] %v10076
      %10093 = vst [vmem:[%s251 + $0x18] sm:$0xff] %v10077
      %10094 = vst [vmem:[%s251 + $0x20] sm:$0xff] %v10078
      %10095 = vst [vmem:[%s251 + $0x28] sm:$0xff] %v10079
      %10096 = vst [vmem:[%s251 + $0x30] sm:$0xff] %v10080
      %10097 = vst [vmem:[%s251 + $0x38] sm:$0xff] %v10081
      %10098 = vst [vmem:[%s251 + $0x40] sm:$0xff] %v10082
      %10099 = vst [vmem:[%s251 + $0x48] sm:$0xff] %v10083
      %10100 = vst [vmem:[%s251 + $0x50] sm:$0xff] %v10084
      %10101 = vst [vmem:[%s251 + $0x58] sm:$0xff] %v10085
      %10102 = vst [vmem:[%s251 + $0x60] sm:$0xff] %v10086
      %10103 = vst [vmem:[%s251 + $0x68] sm:$0xff] %v10087
      %10104 = vst [vmem:[%s251 + $0x70] sm:$0xff] %v10088
      %10105 = vst [vmem:[%s251 + $0x78] sm:$0xff] %v10089
      %p10106 = scmp.lt.s32.totalorder %s17, 1
      %s10107 = scalar_select %p10106, %s17, 1
      %s10108 = smul.addr %s10107, 16
      %s10109 = smul.addr %s10108, 8
      %s10110 = scalar_lea.vmem %s6, %s10109
      // Predicated region
      $region45: #{conv_block_forward.1} parent=43 // pred_check
        %p10111 = pneg %p166
      $region46: #{conv_block_forward.1} parent=43 // pred_check_branch
        %10113 = sbr.rel (%p10111) target = $region48
      $region47: #{conv_block_forward.1} parent=43 // pred_region
        _
      $region48: #{conv_block_forward.1} parent=43 // pred_fallthru
        _
    $region44: #{conv_block_forward.1} parent=5 // pred_fallthru
      _
    %p10114 = scmp.le.s32.totalorder 2, %s12
    // Predicated region
    $region49: #{conv_block_forward.1} parent=5 // pred_check
      %p10115 = pneg %p10114
    $region50: #{conv_block_forward.1} parent=5 // pred_check_branch
      %10117 = sbr.rel (%p10115) target = $region52
    $region51: #{conv_block_forward.1} parent=5 // pred_region
      %s10118 = ssub.s32 %s12, 2
      // Predicated region
      $region53: #{conv_block_forward.1} parent=51 // pred_check
        %p10119 = pneg %p172
      $region54: #{conv_block_forward.1} parent=51 // pred_check_branch
        %10121 = sbr.rel (%p10119) target = $region56
      $region55: #{conv_block_forward.1} parent=51 // pred_region
        %p10122 = scmp.lt.s32.totalorder %s18, 1
        %s10123 = scalar_select %p10122, %s18, 1
        %s10124 = smul.addr %s10123, 16
        %s10125 = smul.addr %s10124, 8
        %s10126 = scalar_lea.vmem %s6, %s10125
      $region56: #{conv_block_forward.1} parent=51 // pred_fallthru
        _
    $region52: #{conv_block_forward.1} parent=5 // pred_fallthru
      _
  $region6: #{conv_block_forward.1} parent=0 // loop_footer
    %s16 = sadd.s32 1, %s12
  $region7: #{conv_block_forward.1} parent=0 // loop_footer_branch
    %11 = sbr.rel target = $region3
  $region8: #{conv_block_forward.1} parent=0 // loop_exit
    _

</llo_original>
